<compile_context>
chip_gen: v6e
topology: v6e:2x2x1
jax: 0.10.0
libtpu: 0.0.40
codegen_flags: <defaults>
</compile_context>

<pallas_src>
import math
from functools import partial

import numpy as np
import jax
import jax.numpy as jnp
from jax.experimental import pallas as pl
from jax.experimental.pallas import tpu as pltpu  # noqa: F401  (kept for TPU-specific tuning hooks)


# ----------------------------------------------------------------------------- in-kernel math helpers

def _erf_poly(x):
    # Abramowitz & Stegun 7.1.26 (max abs err ~1.5e-7 — fp32-exact for practical purposes).
    a1, a2, a3, a4, a5 = 0.254829592, -0.284496736, 1.421413741, -1.453152027, 1.061405429
    t = 1.0 / (1.0 + 0.3275911 * jnp.abs(x))
    poly = ((((a5 * t + a4) * t + a3) * t + a2) * t + a1) * t
    y = 1.0 - poly * jnp.exp(-x * x)
    return jnp.where(x >= 0, y, -y)


def _gelu(x):
    # erf-based gelu, matching torch.nn.functional.gelu default.
    return 0.5 * x * (1.0 + _erf_poly(x * (1.0 / math.sqrt(2.0))))


def _layernorm(y, g, b, eps=1e-5):
    mean = jnp.mean(y, axis=-1, keepdims=True)
    var = jnp.mean((y - mean) ** 2, axis=-1, keepdims=True)
    return (y - mean) * jax.lax.rsqrt(var + eps) * g + b


def _mha(xq, xkv, wq, bq, wk, bk, wv, bv, wo, bo, mask_add, n_heads):
    """Multi-head attention on flattened (rows, D) operands.

    All (batch*channel) rows are folded into the M dimension of the Q/K/V/O matmuls;
    `mask_add` is an additive block-diagonal (+ optional causal) mask that keeps rows
    belonging to different batch entries from attending to each other.
    """
    D = wq.shape[0]
    Dh = D // n_heads
    q = jnp.dot(xq, wq, preferred_element_type=jnp.float32) + bq
    k = jnp.dot(xkv, wk, preferred_element_type=jnp.float32) + bk
    v = jnp.dot(xkv, wv, preferred_element_type=jnp.float32) + bv
    q = q * (1.0 / math.sqrt(Dh))                     # pre-scale q instead of the score matrix

    heads = []
    for h in range(n_heads):                          # static unroll; 4 iterations total
        sl = slice(h * Dh, (h + 1) * Dh)
        s = jax.lax.dot_general(q[:, sl], k[:, sl], (((1,), (1,)), ((), ())),
                                preferred_element_type=jnp.float32)   # (Mq, Mk)
        s = s + mask_add
        s = s - jnp.max(s, axis=-1, keepdims=True)
        p = jnp.exp(s)
        # approx reciprocal (EUP slot, ~free); output is close-to but not bit-exact vs torch.
        p = p * pl.reciprocal(jnp.sum(p, axis=-1, keepdims=True), approx=True)
        heads.append(jnp.dot(p, v[:, sl], preferred_element_type=jnp.float32))
    o = jnp.concatenate(heads, axis=-1)               # (Mq, D)
    return jnp.dot(o, wo, preferred_element_type=jnp.float32) + bo


# ----------------------------------------------------------------------------- fused Pallas kernels

def _encoder_kernel(xp_ref, emb_w_ref, pe_b_ref, mask_ref,
                    attn_w_ref, w1_ref, w2_ref, vec_ref, b1_ref, fnorm_ref,
                    o_ref, *, n_layers, n_heads):
    """Patch embedding + all encoder layers + final encoder LayerNorm, one launch.

    vec_ref[l] rows: 0..3 = bq,bk,bv,bo ; 4,5 = norm1 g,b ; 6 = b2 ; 7,8 = norm2 g,b.
    """
    x = jnp.dot(xp_ref[...], emb_w_ref[...], preferred_element_type=jnp.float32) + pe_b_ref[...]
    mask = mask_ref[...]
    for l in range(n_layers):                         # static unroll over layers
        vec = vec_ref[l]                              # (9, D)
        a = _mha(x, x,
                 attn_w_ref[l, 0], vec[0:1], attn_w_ref[l, 1], vec[1:2],
                 attn_w_ref[l, 2], vec[2:3], attn_w_ref[l, 3], vec[3:4],
                 mask, n_heads)
        x = _layernorm(x + a, vec[4:5], vec[5:6])
        h = _gelu(jnp.dot(x, w1_ref[l], preferred_element_type=jnp.float32) + b1_ref[l])
        y = jnp.dot(h, w2_ref[l], preferred_element_type=jnp.float32) + vec[6:7]
        x = _layernorm(x + y, vec[7:8], vec[8:9])
    fn = fnorm_ref[...]
    o_ref[...] = _layernorm(x, fn[0:1], fn[1:2]).astype(o_ref.dtype)


def _decoder_step_kernel(xp_ref, emb_w_ref, pe_b_ref, enc_ref, smask_ref, cmask_ref,
                         sw_ref, cw_ref, w1_ref, w2_ref, vec_ref, b1_ref,
                         fnorm_ref, projw_ref, projb_ref, o_ref, *, n_layers, n_heads):
    """One AR step: dec embedding + all decoder layers + final LayerNorm + projection.

    vec_ref[l] rows: 0..3 self bq,bk,bv,bo ; 4..7 cross bq,bk,bv,bo ; 8,9 norm1 ;
    10,11 norm2 ; 12 = b2 ; 13,14 norm3.
    """
    x = jnp.dot(xp_ref[...], emb_w_ref[...], preferred_element_type=jnp.float32) + pe_b_ref[...]
    enc = enc_ref[...]
    smask = smask_ref[...]
    cmask = cmask_ref[...]
    for l in range(n_layers):
        vec = vec_ref[l]                              # (15, D)
        a = _mha(x, x,
                 sw_ref[l, 0], vec[0:1], sw_ref[l, 1], vec[1:2],
                 sw_ref[l, 2], vec[2:3], sw_ref[l, 3], vec[3:4],
                 smask, n_heads)
        x = _layernorm(x + a, vec[8:9], vec[9:10])
        a = _mha(x, enc,
                 cw_ref[l, 0], vec[4:5], cw_ref[l, 1], vec[5:6],
                 cw_ref[l, 2], vec[6:7], cw_ref[l, 3], vec[7:8],
                 cmask, n_heads)
        x = _layernorm(x + a, vec[10:11], vec[11:12])
        h = _gelu(jnp.dot(x, w1_ref[l], preferred_element_type=jnp.float32) + b1_ref[l])
        y = jnp.dot(h, w2_ref[l], preferred_element_type=jnp.float32) + vec[12:13]
        x = _layernorm(x + y, vec[13:14], vec[14:15])
    fn = fnorm_ref[...]
    x = _layernorm(x, fn[0:1], fn[1:2])
    o_ref[...] = (jnp.dot(x, projw_ref[...], preferred_element_type=jnp.float32)
                  + projb_ref[...]).astype(o_ref.dtype)


# ----------------------------------------------------------------------------- wrappers / glue

def _block_mask(bc, lq, lk, causal):
    """Additive mask (bc*lq, bc*lk): -1e30 where query/key belong to different
    batch*channel rows, plus upper-triangular masking within a block if causal.
    Built with numpy at trace time -> compile-time constant."""
    row = np.arange(bc * lq)[:, None]
    col = np.arange(bc * lk)[None, :]
    m = (row // lq) != (col // lk)
    if causal:
        m = m | ((col % lk) > (row % lq))
    return jnp.asarray(np.where(m, -1e30, 0.0).astype(np.float32))


def sinusoidal_pe(length, d_model):
    pos = np.arange(length, dtype=np.float32)[:, None]
    div = np.exp(np.arange(0, d_model, 2, dtype=np.float32) * -(math.log(10000.0) / d_model))
    pe = np.zeros((length, d_model), np.float32)
    pe[:, 0::2] = np.sin(pos * div)
    pe[:, 1::2] = np.cos(pos * div)
    return jnp.asarray(pe)


def extract_patches(x, patch_len, stride):
    """x: (B, L, C) -> (B, C, num_patches, patch_len)."""
    B, L, C = x.shape
    num = (L - patch_len) // stride + 1
    xc = jnp.transpose(x, (0, 2, 1))                  # (B, C, L)
    if stride == patch_len and num * patch_len == L:
        return xc.reshape(B, C, num, patch_len)       # non-overlapping: free reshape
    idx = np.arange(num)[:, None] * stride + np.arange(patch_len)[None, :]
    return xc[:, :, idx]


def encoder_forward(params, cfg, patches2, pe_b, bc, seg):
    D = cfg["d_model"]
    kern = partial(_encoder_kernel, n_layers=cfg["e_layers"], n_heads=cfg["n_heads"])
    mask = _block_mask(bc, seg, seg, causal=False)
    return pl.pallas_call(
        kern,
        out_shape=jax.ShapeDtypeStruct((bc * seg, D), jnp.float32),
    )(patches2, params["enc_emb_w"], pe_b, mask,
      params["enc_attn_w"], params["enc_w1"], params["enc_w2"],
      params["enc_vec"], params["enc_b1"], params["enc_norm"])


def decoder_step(params, cfg, dpatches2, pe_b, enc_out2, bc, nseg, seg):
    pld = cfg["patch_len_dec"]
    kern = partial(_decoder_step_kernel, n_layers=cfg["d_layers"], n_heads=cfg["n_heads"])
    smask = _block_mask(bc, nseg, nseg, causal=True)
    cmask = _block_mask(bc, nseg, seg, causal=False)
    return pl.pallas_call(
        kern,
        out_shape=jax.ShapeDtypeStruct((bc * nseg, pld), jnp.float32),
    )(dpatches2, params["dec_emb_w"], pe_b, enc_out2, smask, cmask,
      params["dec_self_w"], params["dec_cross_w"], params["dec_w1"], params["dec_w2"],
      params["dec_vec"], params["dec_b1"], params["dec_norm"],
      params["proj_w"], params["proj_b"])


def revin_norm(x, eps=1e-5):
    mean = jnp.mean(x, axis=1, keepdims=True)
    std = jnp.sqrt(jnp.var(x, axis=1, keepdims=True) + eps)
    return (x - mean) / std, mean, std


def revin_denorm(x, mean, std):
    return x * std + mean


def model_forward(params, cfg, x_enc, x_mark_enc, x_dec, x_mark_dec, train=False):
    # TODO(synk): the temporal-mark (x_mark) embedding branch of enc_embedding and the
    # stochastic teacher-forcing path (train=True) are omitted; eval path only.
    B, L, C = x_enc.shape
    D = cfg["d_model"]
    pld = cfg["patch_len_dec"]
    BC = B * C

    if cfg["revin"]:
        x_n, mean, std = revin_norm(x_enc)
    else:
        x_n, mean, std = x_enc, jnp.zeros((B, 1, C)), jnp.ones((B, 1, C))

    # ---- encoder: ONE fused pallas_call (embedding + layers + final LN)
    patches = extract_patches(x_n, cfg["patch_len"], cfg["stride"])   # (B, C, seg, P)
    seg = patches.shape[2]
    pe_b = jnp.tile(sinusoidal_pe(seg, D) + params["enc_emb_b"][None, :], (BC, 1))
    enc_out2 = encoder_forward(params, cfg, patches.reshape(BC * seg, -1), pe_b, BC, seg)

    # ---- autoregressive decode: ONE fused pallas_call per step
    # TODO(synk): for long horizons convert to a fixed-shape lax.scan over a padded
    # decoder buffer with per-layer KV caching; here shapes grow per step (few variants).
    dec_input = x_n[:, -pld:, :]
    outs = []
    for t in range(cfg["pred_len"] // pld):
        dpatches = extract_patches(dec_input, pld, pld)               # (B, C, nseg, pld)
        nseg = dpatches.shape[2]
        dpe_b = jnp.tile(sinusoidal_pe(nseg, D) + params["dec_emb_b"][None, :], (BC, 1))
        dec2 = decoder_step(params, cfg, dpatches.reshape(BC * nseg, -1), dpe_b,
                            enc_out2, BC, nseg, seg)                  # (BC*nseg, pld)
        last = dec2.reshape(B, C, nseg, pld)[:, :, -1, :]             # (B, C, pld)
        last = jnp.transpose(last, (0, 2, 1))                         # (B, pld, C)
        dec_input = jnp.concatenate([dec_input, last], axis=1)
        outs.append(last)
    outputs = jnp.concatenate(outs, axis=1)                           # (B, pred_len, C)
    if cfg["revin"]:
        outputs = revin_denorm(outputs, mean, std)
    return outputs


# ----------------------------------------------------------------------------- deterministic parameter init

def init_linear(key, din, dout):
    k1, k2 = jax.random.split(key)
    w = jax.random.normal(k1, (din, dout), jnp.float32) / math.sqrt(din)
    b = jax.random.normal(k2, (dout,), jnp.float32) * 0.01
    return w, b


def _init_attn_packed(key, d_model):
    ws, bs = [], []
    for k in jax.random.split(key, 4):                # q, k, v, o
        w, b = init_linear(k, d_model, d_model)
        ws.append(w); bs.append(b)
    return jnp.stack(ws), bs                          # (4, D, D), [4 x (D,)]


def _init_enc_layer(key, d_model, d_ff):
    ks = jax.random.split(key, 3)
    attn_w, attn_b = _init_attn_packed(ks[0], d_model)
    w1, b1 = init_linear(ks[1], d_model, d_ff)
    w2, b2 = init_linear(ks[2], d_ff, d_model)
    ones = jnp.ones((d_model,), jnp.float32)
    zeros = jnp.zeros((d_model,), jnp.float32)
    vec = jnp.stack(attn_b + [ones, zeros, b2, ones, zeros])          # (9, D)
    return attn_w, w1, w2, vec, b1


def _init_dec_layer(key, d_model, d_ff):
    ks = jax.random.split(key, 4)
    sw, sb = _init_attn_packed(ks[0], d_model)
    cw, cb = _init_attn_packed(ks[1], d_model)
    w1, b1 = init_linear(ks[2], d_model, d_ff)
    w2, b2 = init_linear(ks[3], d_ff, d_model)
    ones = jnp.ones((d_model,), jnp.float32)
    zeros = jnp.zeros((d_model,), jnp.float32)
    vec = jnp.stack(sb + cb + [ones, zeros, ones, zeros, b2, ones, zeros])   # (15, D)
    return sw, cw, w1, w2, vec, b1


def init_params(key, cfg):
    D, F = cfg["d_model"], cfg["d_ff"]
    ks = jax.random.split(key, 8)
    p = {}
    p["enc_emb_w"], p["enc_emb_b"] = init_linear(ks[0], cfg["patch_len"], D)
    p["dec_emb_w"], p["dec_emb_b"] = init_linear(ks[1], cfg["patch_len_dec"], D)

    enc = [_init_enc_layer(k, D, F) for k in jax.random.split(ks[2], cfg["e_layers"])]
    p["enc_attn_w"] = jnp.stack([e[0] for e in enc])                  # (E, 4, D, D)
    p["enc_w1"] = jnp.stack([e[1] for e in enc])                      # (E, D, F)
    p["enc_w2"] = jnp.stack([e[2] for e in enc])                      # (E, F, D)
    p["enc_vec"] = jnp.stack([e[3] for e in enc])                     # (E, 9, D)
    p["enc_b1"] = jnp.stack([e[4] for e in enc])[:, None, :]          # (E, 1, F)

    dec = [_init_dec_layer(k, D, F) for k in jax.random.split(ks[3], cfg["d_layers"])]
    p["dec_self_w"] = jnp.stack([d[0] for d in dec])                  # (DL, 4, D, D)
    p["dec_cross_w"] = jnp.stack([d[1] for d in dec])                 # (DL, 4, D, D)
    p["dec_w1"] = jnp.stack([d[2] for d in dec])                      # (DL, D, F)
    p["dec_w2"] = jnp.stack([d[3] for d in dec])                      # (DL, F, D)
    p["dec_vec"] = jnp.stack([d[4] for d in dec])                     # (DL, 15, D)
    p["dec_b1"] = jnp.stack([d[5] for d in dec])[:, None, :]          # (DL, 1, F)

    p["enc_norm"] = jnp.stack([jnp.ones((D,), jnp.float32), jnp.zeros((D,), jnp.float32)])
    p["dec_norm"] = jnp.stack([jnp.ones((D,), jnp.float32), jnp.zeros((D,), jnp.float32)])
    proj_w, proj_b = init_linear(ks[4], D, cfg["patch_len_dec"])
    p["proj_w"] = proj_w                                              # (D, pld)
    p["proj_b"] = proj_b[None, :]                                     # (1, pld)
    return p


# ----------------------------------------------------------------------------- main

if __name__ == "__main__":
    cfg = dict(
        seq_len=16, pred_len=8, label_len=8,
        patch_len=4, stride=4, patch_len_dec=4,
        d_model=32, n_heads=4, d_ff=64,
        e_layers=1, d_layers=1,
        enc_in=3, c_out=3,
        dropout=0.0, activation="gelu",
        output_attention=False, revin=1, tf_ratio=0.5, factor=1, freq="h",
    )

    key = jax.random.PRNGKey(0)
    kp, k1, k2, k3, k4 = jax.random.split(key, 5)
    params = init_params(kp, cfg)

    B = 2
    x_enc = jax.random.normal(k1, (B, cfg["seq_len"], cfg["enc_in"]), jnp.float32)
    x_mark_enc = jax.random.normal(k2, (B, cfg["seq_len"], 4), jnp.float32)
    x_dec = jax.random.normal(k3, (B, cfg["label_len"] + cfg["pred_len"], cfg["enc_in"]), jnp.float32)
    x_mark_dec = jax.random.normal(k4, (B, cfg["label_len"] + cfg["pred_len"], 4), jnp.float32)

    fwd = jax.jit(lambda p, xe, xme, xd, xmd: model_forward(p, cfg, xe, xme, xd, xmd, train=False))
    out = fwd(params, x_enc, x_mark_enc, x_dec, x_mark_dec)
    out = jax.block_until_ready(out)
    assert out.shape == (B, cfg["pred_len"], cfg["c_out"]), out.shape
    assert bool(jnp.all(jnp.isfinite(out)))
    print("KERNEL_OK")
</pallas_src>

<mosaic_0001>
module attributes {stable_mosaic.version = 11 : i64} {
  func.func @_encoder_kernel(%arg0: memref<24x4xf32, #tpu.memory_space<vmem>>, %arg1: memref<4x32xf32, #tpu.memory_space<vmem>>, %arg2: memref<24x32xf32, #tpu.memory_space<vmem>>, %arg3: memref<24x24xf32, #tpu.memory_space<vmem>>, %arg4: memref<1x4x32x32xf32, #tpu.memory_space<vmem>>, %arg5: memref<1x32x64xf32, #tpu.memory_space<vmem>>, %arg6: memref<1x64x32xf32, #tpu.memory_space<vmem>>, %arg7: memref<1x9x32xf32, #tpu.memory_space<vmem>>, %arg8: memref<1x1x64xf32, #tpu.memory_space<vmem>>, %arg9: memref<2x32xf32, #tpu.memory_space<vmem>>, %arg10: memref<24x32xf32, #tpu.memory_space<vmem>>) attributes {dimension_semantics = [], scalar_prefetch = 0 : i64, scratch_operands = 0 : i64, tpu.core_type = #tpu.core_type<tc>} {
    %c0 = arith.constant 0 : index
    %c0_0 = arith.constant 0 : index
    %0 = vector.load %arg0[%c0, %c0_0] : memref<24x4xf32, #tpu.memory_space<vmem>>, vector<24x4xf32>
    %c0_1 = arith.constant 0 : index
    %c0_2 = arith.constant 0 : index
    %1 = vector.load %arg1[%c0_1, %c0_2] : memref<4x32xf32, #tpu.memory_space<vmem>>, vector<4x32xf32>
    %cst = arith.constant dense<0.000000e+00> : vector<24x32xf32>
    %2 = tpu.matmul %0, %1, %cst {dimension_numbers = #tpu.dot_dimension_numbers<[1], [0], [0], [1], [0, 0, 1, 1], [], []>} : vector<24x4xf32>, vector<4x32xf32>, vector<24x32xf32> -> vector<24x32xf32>
    %c0_3 = arith.constant 0 : index
    %c0_4 = arith.constant 0 : index
    %3 = vector.load %arg2[%c0_3, %c0_4] : memref<24x32xf32, #tpu.memory_space<vmem>>, vector<24x32xf32>
    %4 = arith.addf %2, %3 : vector<24x32xf32>
    %c0_5 = arith.constant 0 : index
    %c0_6 = arith.constant 0 : index
    %5 = vector.load %arg3[%c0_5, %c0_6] : memref<24x24xf32, #tpu.memory_space<vmem>>, vector<24x24xf32>
    %c0_7 = arith.constant 0 : index
    %c0_8 = arith.constant 0 : index
    %c0_9 = arith.constant 0 : index
    %6 = vector.load %arg7[%c0_7, %c0_8, %c0_9] : memref<1x9x32xf32, #tpu.memory_space<vmem>>, vector<1x9x32xf32>
    %7 = vector.shape_cast %6 : vector<1x9x32xf32> to vector<9x32xf32>
    %c0_10 = arith.constant 0 : index
    %c0_11 = arith.constant 0 : index
    %c0_12 = arith.constant 0 : index
    %c0_13 = arith.constant 0 : index
    %8 = vector.load %arg4[%c0_10, %c0_11, %c0_12, %c0_13] : memref<1x4x32x32xf32, #tpu.memory_space<vmem>>, vector<1x1x32x32xf32>
    %9 = vector.shape_cast %8 : vector<1x1x32x32xf32> to vector<32x32xf32>
    %10 = vector.extract_strided_slice %7 {offsets = [0, 0], sizes = [1, 32], strides = [1, 1]} : vector<9x32xf32> to vector<1x32xf32>
    %c0_14 = arith.constant 0 : index
    %c1 = arith.constant 1 : index
    %c0_15 = arith.constant 0 : index
    %c0_16 = arith.constant 0 : index
    %11 = vector.load %arg4[%c0_14, %c1, %c0_15, %c0_16] : memref<1x4x32x32xf32, #tpu.memory_space<vmem>>, vector<1x1x32x32xf32>
    %12 = vector.shape_cast %11 : vector<1x1x32x32xf32> to vector<32x32xf32>
    %13 = vector.extract_strided_slice %7 {offsets = [1, 0], sizes = [1, 32], strides = [1, 1]} : vector<9x32xf32> to vector<1x32xf32>
    %c0_17 = arith.constant 0 : index
    %c2 = arith.constant 2 : index
    %c0_18 = arith.constant 0 : index
    %c0_19 = arith.constant 0 : index
    %14 = vector.load %arg4[%c0_17, %c2, %c0_18, %c0_19] : memref<1x4x32x32xf32, #tpu.memory_space<vmem>>, vector<1x1x32x32xf32>
    %15 = vector.shape_cast %14 : vector<1x1x32x32xf32> to vector<32x32xf32>
    %16 = vector.extract_strided_slice %7 {offsets = [2, 0], sizes = [1, 32], strides = [1, 1]} : vector<9x32xf32> to vector<1x32xf32>
    %c0_20 = arith.constant 0 : index
    %c3 = arith.constant 3 : index
    %c0_21 = arith.constant 0 : index
    %c0_22 = arith.constant 0 : index
    %17 = vector.load %arg4[%c0_20, %c3, %c0_21, %c0_22] : memref<1x4x32x32xf32, #tpu.memory_space<vmem>>, vector<1x1x32x32xf32>
    %18 = vector.shape_cast %17 : vector<1x1x32x32xf32> to vector<32x32xf32>
    %19 = vector.extract_strided_slice %7 {offsets = [3, 0], sizes = [1, 32], strides = [1, 1]} : vector<9x32xf32> to vector<1x32xf32>
    %cst_23 = arith.constant dense<0.000000e+00> : vector<24x32xf32>
    %20 = tpu.matmul %4, %9, %cst_23 {dimension_numbers = #tpu.dot_dimension_numbers<[1], [0], [0], [1], [0, 0, 1, 1], [], []>} : vector<24x32xf32>, vector<32x32xf32>, vector<24x32xf32> -> vector<24x32xf32>
    %21 = vector.broadcast %10 : vector<1x32xf32> to vector<24x32xf32>
    %22 = arith.addf %20, %21 : vector<24x32xf32>
    %cst_24 = arith.constant dense<0.000000e+00> : vector<24x32xf32>
    %23 = tpu.matmul %4, %12, %cst_24 {dimension_numbers = #tpu.dot_dimension_numbers<[1], [0], [0], [1], [0, 0, 1, 1], [], []>} : vector<24x32xf32>, vector<32x32xf32>, vector<24x32xf32> -> vector<24x32xf32>
    %24 = vector.broadcast %13 : vector<1x32xf32> to vector<24x32xf32>
    %25 = arith.addf %23, %24 : vector<24x32xf32>
    %cst_25 = arith.constant dense<0.000000e+00> : vector<24x32xf32>
    %26 = tpu.matmul %4, %15, %cst_25 {dimension_numbers = #tpu.dot_dimension_numbers<[1], [0], [0], [1], [0, 0, 1, 1], [], []>} : vector<24x32xf32>, vector<32x32xf32>, vector<24x32xf32> -> vector<24x32xf32>
    %27 = vector.broadcast %16 : vector<1x32xf32> to vector<24x32xf32>
    %28 = arith.addf %26, %27 : vector<24x32xf32>
    %cst_26 = arith.constant 0.353553385 : f32
    %29 = vector.broadcast %cst_26 : f32 to vector<24x32xf32>
    %30 = arith.mulf %22, %29 : vector<24x32xf32>
    %31 = vector.extract_strided_slice %30 {offsets = [0, 0], sizes = [24, 8], strides = [1, 1]} : vector<24x32xf32> to vector<24x8xf32>
    %32 = vector.extract_strided_slice %25 {offsets = [0, 0], sizes = [24, 8], strides = [1, 1]} : vector<24x32xf32> to vector<24x8xf32>
    %cst_27 = arith.constant dense<0.000000e+00> : vector<24x24xf32>
    %33 = tpu.matmul %31, %32, %cst_27 {dimension_numbers = #tpu.dot_dimension_numbers<[1], [1], [0], [0], [0, 0, 1, 0], [], []>} : vector<24x8xf32>, vector<24x8xf32>, vector<24x24xf32> -> vector<24x24xf32>
    %34 = arith.addf %33, %5 : vector<24x24xf32>
    %cst_28 = arith.constant dense<0xFF800000> : vector<24xf32>
    %35 = vector.multi_reduction <maximumf>, %34, %cst_28 [1] : vector<24x24xf32> to vector<24xf32>
    %36 = vector.shape_cast %35 : vector<24xf32> to vector<24x1xf32>
    %37 = vector.broadcast %36 : vector<24x1xf32> to vector<24x24xf32>
    %38 = arith.subf %34, %37 : vector<24x24xf32>
    %39 = math.exp %38 : vector<24x24xf32>
    %cst_29 = arith.constant dense<0.000000e+00> : vector<24xf32>
    %40 = vector.multi_reduction <add>, %39, %cst_29 [1] : vector<24x24xf32> to vector<24xf32>
    %41 = vector.shape_cast %40 : vector<24xf32> to vector<24x1xf32>
    %42 = tpu.reciprocal %41 {approx = true} : vector<24x1xf32> -> vector<24x1xf32>
    %43 = vector.broadcast %42 : vector<24x1xf32> to vector<24x24xf32>
    %44 = arith.mulf %39, %43 : vector<24x24xf32>
    %45 = vector.extract_strided_slice %28 {offsets = [0, 0], sizes = [24, 8], strides = [1, 1]} : vector<24x32xf32> to vector<24x8xf32>
    %cst_30 = arith.constant dense<0.000000e+00> : vector<24x8xf32>
    %46 = tpu.matmul %44, %45, %cst_30 {dimension_numbers = #tpu.dot_dimension_numbers<[1], [0], [0], [1], [0, 0, 1, 1], [], []>} : vector<24x24xf32>, vector<24x8xf32>, vector<24x8xf32> -> vector<24x8xf32>
    %47 = vector.extract_strided_slice %30 {offsets = [0, 8], sizes = [24, 8], strides = [1, 1]} : vector<24x32xf32> to vector<24x8xf32>
    %48 = vector.extract_strided_slice %25 {offsets = [0, 8], sizes = [24, 8], strides = [1, 1]} : vector<24x32xf32> to vector<24x8xf32>
    %cst_31 = arith.constant dense<0.000000e+00> : vector<24x24xf32>
    %49 = tpu.matmul %47, %48, %cst_31 {dimension_numbers = #tpu.dot_dimension_numbers<[1], [1], [0], [0], [0, 0, 1, 0], [], []>} : vector<24x8xf32>, vector<24x8xf32>, vector<24x24xf32> -> vector<24x24xf32>
    %50 = arith.addf %49, %5 : vector<24x24xf32>
    %cst_32 = arith.constant dense<0xFF800000> : vector<24xf32>
    %51 = vector.multi_reduction <maximumf>, %50, %cst_32 [1] : vector<24x24xf32> to vector<24xf32>
    %52 = vector.shape_cast %51 : vector<24xf32> to vector<24x1xf32>
    %53 = vector.broadcast %52 : vector<24x1xf32> to vector<24x24xf32>
    %54 = arith.subf %50, %53 : vector<24x24xf32>
    %55 = math.exp %54 : vector<24x24xf32>
    %cst_33 = arith.constant dense<0.000000e+00> : vector<24xf32>
    %56 = vector.multi_reduction <add>, %55, %cst_33 [1] : vector<24x24xf32> to vector<24xf32>
    %57 = vector.shape_cast %56 : vector<24xf32> to vector<24x1xf32>
    %58 = tpu.reciprocal %57 {approx = true} : vector<24x1xf32> -> vector<24x1xf32>
    %59 = vector.broadcast %58 : vector<24x1xf32> to vector<24x24xf32>
    %60 = arith.mulf %55, %59 : vector<24x24xf32>
    %61 = vector.extract_strided_slice %28 {offsets = [0, 8], sizes = [24, 8], strides = [1, 1]} : vector<24x32xf32> to vector<24x8xf32>
    %cst_34 = arith.constant dense<0.000000e+00> : vector<24x8xf32>
    %62 = tpu.matmul %60, %61, %cst_34 {dimension_numbers = #tpu.dot_dimension_numbers<[1], [0], [0], [1], [0, 0, 1, 1], [], []>} : vector<24x24xf32>, vector<24x8xf32>, vector<24x8xf32> -> vector<24x8xf32>
    %63 = vector.extract_strided_slice %30 {offsets = [0, 16], sizes = [24, 8], strides = [1, 1]} : vector<24x32xf32> to vector<24x8xf32>
    %64 = vector.extract_strided_slice %25 {offsets = [0, 16], sizes = [24, 8], strides = [1, 1]} : vector<24x32xf32> to vector<24x8xf32>
    %cst_35 = arith.constant dense<0.000000e+00> : vector<24x24xf32>
    %65 = tpu.matmul %63, %64, %cst_35 {dimension_numbers = #tpu.dot_dimension_numbers<[1], [1], [0], [0], [0, 0, 1, 0], [], []>} : vector<24x8xf32>, vector<24x8xf32>, vector<24x24xf32> -> vector<24x24xf32>
    %66 = arith.addf %65, %5 : vector<24x24xf32>
    %cst_36 = arith.constant dense<0xFF800000> : vector<24xf32>
    %67 = vector.multi_reduction <maximumf>, %66, %cst_36 [1] : vector<24x24xf32> to vector<24xf32>
    %68 = vector.shape_cast %67 : vector<24xf32> to vector<24x1xf32>
    %69 = vector.broadcast %68 : vector<24x1xf32> to vector<24x24xf32>
    %70 = arith.subf %66, %69 : vector<24x24xf32>
    %71 = math.exp %70 : vector<24x24xf32>
    %cst_37 = arith.constant dense<0.000000e+00> : vector<24xf32>
    %72 = vector.multi_reduction <add>, %71, %cst_37 [1] : vector<24x24xf32> to vector<24xf32>
    %73 = vector.shape_cast %72 : vector<24xf32> to vector<24x1xf32>
    %74 = tpu.reciprocal %73 {approx = true} : vector<24x1xf32> -> vector<24x1xf32>
    %75 = vector.broadcast %74 : vector<24x1xf32> to vector<24x24xf32>
    %76 = arith.mulf %71, %75 : vector<24x24xf32>
    %77 = vector.extract_strided_slice %28 {offsets = [0, 16], sizes = [24, 8], strides = [1, 1]} : vector<24x32xf32> to vector<24x8xf32>
    %cst_38 = arith.constant dense<0.000000e+00> : vector<24x8xf32>
    %78 = tpu.matmul %76, %77, %cst_38 {dimension_numbers = #tpu.dot_dimension_numbers<[1], [0], [0], [1], [0, 0, 1, 1], [], []>} : vector<24x24xf32>, vector<24x8xf32>, vector<24x8xf32> -> vector<24x8xf32>
    %79 = vector.extract_strided_slice %30 {offsets = [0, 24], sizes = [24, 8], strides = [1, 1]} : vector<24x32xf32> to vector<24x8xf32>
    %80 = vector.extract_strided_slice %25 {offsets = [0, 24], sizes = [24, 8], strides = [1, 1]} : vector<24x32xf32> to vector<24x8xf32>
    %cst_39 = arith.constant dense<0.000000e+00> : vector<24x24xf32>
    %81 = tpu.matmul %79, %80, %cst_39 {dimension_numbers = #tpu.dot_dimension_numbers<[1], [1], [0], [0], [0, 0, 1, 0], [], []>} : vector<24x8xf32>, vector<24x8xf32>, vector<24x24xf32> -> vector<24x24xf32>
    %82 = arith.addf %81, %5 : vector<24x24xf32>
    %cst_40 = arith.constant dense<0xFF800000> : vector<24xf32>
    %83 = vector.multi_reduction <maximumf>, %82, %cst_40 [1] : vector<24x24xf32> to vector<24xf32>
    %84 = vector.shape_cast %83 : vector<24xf32> to vector<24x1xf32>
    %85 = vector.broadcast %84 : vector<24x1xf32> to vector<24x24xf32>
    %86 = arith.subf %82, %85 : vector<24x24xf32>
    %87 = math.exp %86 : vector<24x24xf32>
    %cst_41 = arith.constant dense<0.000000e+00> : vector<24xf32>
    %88 = vector.multi_reduction <add>, %87, %cst_41 [1] : vector<24x24xf32> to vector<24xf32>
    %89 = vector.shape_cast %88 : vector<24xf32> to vector<24x1xf32>
    %90 = tpu.reciprocal %89 {approx = true} : vector<24x1xf32> -> vector<24x1xf32>
    %91 = vector.broadcast %90 : vector<24x1xf32> to vector<24x24xf32>
    %92 = arith.mulf %87, %91 : vector<24x24xf32>
    %93 = vector.extract_strided_slice %28 {offsets = [0, 24], sizes = [24, 8], strides = [1, 1]} : vector<24x32xf32> to vector<24x8xf32>
    %cst_42 = arith.constant dense<0.000000e+00> : vector<24x8xf32>
    %94 = tpu.matmul %92, %93, %cst_42 {dimension_numbers = #tpu.dot_dimension_numbers<[1], [0], [0], [1], [0, 0, 1, 1], [], []>} : vector<24x24xf32>, vector<24x8xf32>, vector<24x8xf32> -> vector<24x8xf32>
    %95 = tpu.concatenate %46, %62, %78, %94 in 1 : vector<24x8xf32>, vector<24x8xf32>, vector<24x8xf32>, vector<24x8xf32> -> vector<24x32xf32>
    %cst_43 = arith.constant dense<0.000000e+00> : vector<24x32xf32>
    %96 = tpu.matmul %95, %18, %cst_43 {dimension_numbers = #tpu.dot_dimension_numbers<[1], [0], [0], [1], [0, 0, 1, 1], [], []>} : vector<24x32xf32>, vector<32x32xf32>, vector<24x32xf32> -> vector<24x32xf32>
    %97 = vector.broadcast %19 : vector<1x32xf32> to vector<24x32xf32>
    %98 = arith.addf %96, %97 : vector<24x32xf32>
    %99 = arith.addf %4, %98 : vector<24x32xf32>
    %100 = vector.extract_strided_slice %7 {offsets = [4, 0], sizes = [1, 32], strides = [1, 1]} : vector<9x32xf32> to vector<1x32xf32>
    %101 = vector.extract_strided_slice %7 {offsets = [5, 0], sizes = [1, 32], strides = [1, 1]} : vector<9x32xf32> to vector<1x32xf32>
    %cst_44 = arith.constant dense<0.000000e+00> : vector<24xf32>
    %102 = vector.multi_reduction <add>, %99, %cst_44 [1] : vector<24x32xf32> to vector<24xf32>
    %103 = vector.shape_cast %102 : vector<24xf32> to vector<24x1xf32>
    %cst_45 = arith.constant 3.200000e+01 : f32
    %104 = vector.broadcast %cst_45 : f32 to vector<24x1xf32>
    %105 = arith.divf %103, %104 : vector<24x1xf32>
    %106 = vector.broadcast %105 : vector<24x1xf32> to vector<24x32xf32>
    %107 = arith.subf %99, %106 : vector<24x32xf32>
    %108 = arith.mulf %107, %107 : vector<24x32xf32>
    %cst_46 = arith.constant dense<0.000000e+00> : vector<24xf32>
    %109 = vector.multi_reduction <add>, %108, %cst_46 [1] : vector<24x32xf32> to vector<24xf32>
    %110 = vector.shape_cast %109 : vector<24xf32> to vector<24x1xf32>
    %cst_47 = arith.constant 3.200000e+01 : f32
    %111 = vector.broadcast %cst_47 : f32 to vector<24x1xf32>
    %112 = arith.divf %110, %111 : vector<24x1xf32>
    %113 = vector.broadcast %105 : vector<24x1xf32> to vector<24x32xf32>
    %114 = arith.subf %99, %113 : vector<24x32xf32>
    %cst_48 = arith.constant 9.99999974E-6 : f32
    %115 = vector.broadcast %cst_48 : f32 to vector<24x1xf32>
    %116 = arith.addf %112, %115 : vector<24x1xf32>
    %117 = math.rsqrt %116 : vector<24x1xf32>
    %118 = vector.broadcast %117 : vector<24x1xf32> to vector<24x32xf32>
    %119 = arith.mulf %114, %118 : vector<24x32xf32>
    %120 = vector.broadcast %100 : vector<1x32xf32> to vector<24x32xf32>
    %121 = arith.mulf %119, %120 : vector<24x32xf32>
    %122 = vector.broadcast %101 : vector<1x32xf32> to vector<24x32xf32>
    %123 = arith.addf %121, %122 : vector<24x32xf32>
    %c0_49 = arith.constant 0 : index
    %c0_50 = arith.constant 0 : index
    %c0_51 = arith.constant 0 : index
    %124 = vector.load %arg5[%c0_49, %c0_50, %c0_51] : memref<1x32x64xf32, #tpu.memory_space<vmem>>, vector<1x32x64xf32>
    %125 = vector.shape_cast %124 : vector<1x32x64xf32> to vector<32x64xf32>
    %cst_52 = arith.constant dense<0.000000e+00> : vector<24x64xf32>
    %126 = tpu.matmul %123, %125, %cst_52 {dimension_numbers = #tpu.dot_dimension_numbers<[1], [0], [0], [1], [0, 0, 1, 1], [], []>} : vector<24x32xf32>, vector<32x64xf32>, vector<24x64xf32> -> vector<24x64xf32>
    %c0_53 = arith.constant 0 : index
    %c0_54 = arith.constant 0 : index
    %c0_55 = arith.constant 0 : index
    %127 = vector.load %arg8[%c0_53, %c0_54, %c0_55] : memref<1x1x64xf32, #tpu.memory_space<vmem>>, vector<1x1x64xf32>
    %128 = vector.shape_cast %127 : vector<1x1x64xf32> to vector<1x64xf32>
    %129 = vector.broadcast %128 : vector<1x64xf32> to vector<24x64xf32>
    %130 = arith.addf %126, %129 : vector<24x64xf32>
    %cst_56 = arith.constant 5.000000e-01 : f32
    %131 = vector.broadcast %cst_56 : f32 to vector<24x64xf32>
    %132 = arith.mulf %131, %130 : vector<24x64xf32>
    %cst_57 = arith.constant 0.707106769 : f32
    %133 = vector.broadcast %cst_57 : f32 to vector<24x64xf32>
    %134 = arith.mulf %130, %133 : vector<24x64xf32>
    %135 = math.absf %134 : vector<24x64xf32>
    %cst_58 = arith.constant 0.327591091 : f32
    %136 = vector.broadcast %cst_58 : f32 to vector<24x64xf32>
    %137 = arith.mulf %136, %135 : vector<24x64xf32>
    %cst_59 = arith.constant 1.000000e+00 : f32
    %138 = vector.broadcast %cst_59 : f32 to vector<24x64xf32>
    %139 = arith.addf %138, %137 : vector<24x64xf32>
    %cst_60 = arith.constant 1.000000e+00 : f32
    %140 = vector.broadcast %cst_60 : f32 to vector<24x64xf32>
    %141 = arith.divf %140, %139 : vector<24x64xf32>
    %cst_61 = arith.constant 1.06140542 : f32
    %142 = vector.broadcast %cst_61 : f32 to vector<24x64xf32>
    %143 = arith.mulf %142, %141 : vector<24x64xf32>
    %cst_62 = arith.constant -1.45315206 : f32
    %144 = vector.broadcast %cst_62 : f32 to vector<24x64xf32>
    %145 = arith.addf %143, %144 : vector<24x64xf32>
    %146 = arith.mulf %145, %141 : vector<24x64xf32>
    %cst_63 = arith.constant 1.42141378 : f32
    %147 = vector.broadcast %cst_63 : f32 to vector<24x64xf32>
    %148 = arith.addf %146, %147 : vector<24x64xf32>
    %149 = arith.mulf %148, %141 : vector<24x64xf32>
    %cst_64 = arith.constant -0.284496725 : f32
    %150 = vector.broadcast %cst_64 : f32 to vector<24x64xf32>
    %151 = arith.addf %149, %150 : vector<24x64xf32>
    %152 = arith.mulf %151, %141 : vector<24x64xf32>
    %cst_65 = arith.constant 0.254829586 : f32
    %153 = vector.broadcast %cst_65 : f32 to vector<24x64xf32>
    %154 = arith.addf %152, %153 : vector<24x64xf32>
    %155 = arith.mulf %154, %141 : vector<24x64xf32>
    %cst_66 = arith.constant 0.000000e+00 : f32
    %156 = vector.broadcast %cst_66 : f32 to vector<24x64xf32>
    %157 = arith.subf %156, %134 : vector<24x64xf32>
    %158 = arith.mulf %157, %134 : vector<24x64xf32>
    %159 = math.exp %158 : vector<24x64xf32>
    %160 = arith.mulf %155, %159 : vector<24x64xf32>
    %cst_67 = arith.constant 1.000000e+00 : f32
    %161 = vector.broadcast %cst_67 : f32 to vector<24x64xf32>
    %162 = arith.subf %161, %160 : vector<24x64xf32>
    %cst_68 = arith.constant 0.000000e+00 : f32
    %163 = vector.broadcast %cst_68 : f32 to vector<24x64xf32>
    %164 = arith.cmpf oge, %134, %163 : vector<24x64xf32>
    %cst_69 = arith.constant 0.000000e+00 : f32
    %165 = vector.broadcast %cst_69 : f32 to vector<24x64xf32>
    %166 = arith.subf %165, %162 : vector<24x64xf32>
    %167 = arith.select %164, %162, %166 : vector<24x64xi1>, vector<24x64xf32>
    %cst_70 = arith.constant 1.000000e+00 : f32
    %168 = vector.broadcast %cst_70 : f32 to vector<24x64xf32>
    %169 = arith.addf %168, %167 : vector<24x64xf32>
    %170 = arith.mulf %132, %169 : vector<24x64xf32>
    %c0_71 = arith.constant 0 : index
    %c0_72 = arith.constant 0 : index
    %c0_73 = arith.constant 0 : index
    %171 = vector.load %arg6[%c0_71, %c0_72, %c0_73] : memref<1x64x32xf32, #tpu.memory_space<vmem>>, vector<1x64x32xf32>
    %172 = vector.shape_cast %171 : vector<1x64x32xf32> to vector<64x32xf32>
    %cst_74 = arith.constant dense<0.000000e+00> : vector<24x32xf32>
    %173 = tpu.matmul %170, %172, %cst_74 {dimension_numbers = #tpu.dot_dimension_numbers<[1], [0], [0], [1], [0, 0, 1, 1], [], []>} : vector<24x64xf32>, vector<64x32xf32>, vector<24x32xf32> -> vector<24x32xf32>
    %174 = vector.extract_strided_slice %7 {offsets = [6, 0], sizes = [1, 32], strides = [1, 1]} : vector<9x32xf32> to vector<1x32xf32>
    %175 = vector.broadcast %174 : vector<1x32xf32> to vector<24x32xf32>
    %176 = arith.addf %173, %175 : vector<24x32xf32>
    %177 = arith.addf %123, %176 : vector<24x32xf32>
    %178 = vector.extract_strided_slice %7 {offsets = [7, 0], sizes = [1, 32], strides = [1, 1]} : vector<9x32xf32> to vector<1x32xf32>
    %179 = vector.extract_strided_slice %7 {offsets = [8, 0], sizes = [1, 32], strides = [1, 1]} : vector<9x32xf32> to vector<1x32xf32>
    %cst_75 = arith.constant dense<0.000000e+00> : vector<24xf32>
    %180 = vector.multi_reduction <add>, %177, %cst_75 [1] : vector<24x32xf32> to vector<24xf32>
    %181 = vector.shape_cast %180 : vector<24xf32> to vector<24x1xf32>
    %cst_76 = arith.constant 3.200000e+01 : f32
    %182 = vector.broadcast %cst_76 : f32 to vector<24x1xf32>
    %183 = arith.divf %181, %182 : vector<24x1xf32>
    %184 = vector.broadcast %183 : vector<24x1xf32> to vector<24x32xf32>
    %185 = arith.subf %177, %184 : vector<24x32xf32>
    %186 = arith.mulf %185, %185 : vector<24x32xf32>
    %cst_77 = arith.constant dense<0.000000e+00> : vector<24xf32>
    %187 = vector.multi_reduction <add>, %186, %cst_77 [1] : vector<24x32xf32> to vector<24xf32>
    %188 = vector.shape_cast %187 : vector<24xf32> to vector<24x1xf32>
    %cst_78 = arith.constant 3.200000e+01 : f32
    %189 = vector.broadcast %cst_78 : f32 to vector<24x1xf32>
    %190 = arith.divf %188, %189 : vector<24x1xf32>
    %191 = vector.broadcast %183 : vector<24x1xf32> to vector<24x32xf32>
    %192 = arith.subf %177, %191 : vector<24x32xf32>
    %cst_79 = arith.constant 9.99999974E-6 : f32
    %193 = vector.broadcast %cst_79 : f32 to vector<24x1xf32>
    %194 = arith.addf %190, %193 : vector<24x1xf32>
    %195 = math.rsqrt %194 : vector<24x1xf32>
    %196 = vector.broadcast %195 : vector<24x1xf32> to vector<24x32xf32>
    %197 = arith.mulf %192, %196 : vector<24x32xf32>
    %198 = vector.broadcast %178 : vector<1x32xf32> to vector<24x32xf32>
    %199 = arith.mulf %197, %198 : vector<24x32xf32>
    %200 = vector.broadcast %179 : vector<1x32xf32> to vector<24x32xf32>
    %201 = arith.addf %199, %200 : vector<24x32xf32>
    %c0_80 = arith.constant 0 : index
    %c0_81 = arith.constant 0 : index
    %202 = vector.load %arg9[%c0_80, %c0_81] : memref<2x32xf32, #tpu.memory_space<vmem>>, vector<2x32xf32>
    %203 = vector.extract_strided_slice %202 {offsets = [0, 0], sizes = [1, 32], strides = [1, 1]} : vector<2x32xf32> to vector<1x32xf32>
    %204 = vector.extract_strided_slice %202 {offsets = [1, 0], sizes = [1, 32], strides = [1, 1]} : vector<2x32xf32> to vector<1x32xf32>
    %cst_82 = arith.constant dense<0.000000e+00> : vector<24xf32>
    %205 = vector.multi_reduction <add>, %201, %cst_82 [1] : vector<24x32xf32> to vector<24xf32>
    %206 = vector.shape_cast %205 : vector<24xf32> to vector<24x1xf32>
    %cst_83 = arith.constant 3.200000e+01 : f32
    %207 = vector.broadcast %cst_83 : f32 to vector<24x1xf32>
    %208 = arith.divf %206, %207 : vector<24x1xf32>
    %209 = vector.broadcast %208 : vector<24x1xf32> to vector<24x32xf32>
    %210 = arith.subf %201, %209 : vector<24x32xf32>
    %211 = arith.mulf %210, %210 : vector<24x32xf32>
    %cst_84 = arith.constant dense<0.000000e+00> : vector<24xf32>
    %212 = vector.multi_reduction <add>, %211, %cst_84 [1] : vector<24x32xf32> to vector<24xf32>
    %213 = vector.shape_cast %212 : vector<24xf32> to vector<24x1xf32>
    %cst_85 = arith.constant 3.200000e+01 : f32
    %214 = vector.broadcast %cst_85 : f32 to vector<24x1xf32>
    %215 = arith.divf %213, %214 : vector<24x1xf32>
    %216 = vector.broadcast %208 : vector<24x1xf32> to vector<24x32xf32>
    %217 = arith.subf %201, %216 : vector<24x32xf32>
    %cst_86 = arith.constant 9.99999974E-6 : f32
    %218 = vector.broadcast %cst_86 : f32 to vector<24x1xf32>
    %219 = arith.addf %215, %218 : vector<24x1xf32>
    %220 = math.rsqrt %219 : vector<24x1xf32>
    %221 = vector.broadcast %220 : vector<24x1xf32> to vector<24x32xf32>
    %222 = arith.mulf %217, %221 : vector<24x32xf32>
    %223 = vector.broadcast %203 : vector<1x32xf32> to vector<24x32xf32>
    %224 = arith.mulf %222, %223 : vector<24x32xf32>
    %225 = vector.broadcast %204 : vector<1x32xf32> to vector<24x32xf32>
    %226 = arith.addf %224, %225 : vector<24x32xf32>
    %c0_87 = arith.constant 0 : index
    %c0_88 = arith.constant 0 : index
    %227 = vector.load %arg10[%c0_87, %c0_88] : memref<24x32xf32, #tpu.memory_space<vmem>>, vector<24x32xf32>
    tpu.vector_store %arg10[%c0_87, %c0_88], %226 {strides = array<i32>} : memref<24x32xf32, #tpu.memory_space<vmem>>, vector<24x32xf32>,
    return
  }
}

module attributes {stable_mosaic.version = 11 : i64} {
  func.func @_decoder_step_kernel(%arg0: memref<6x4xf32, #tpu.memory_space<vmem>>, %arg1: memref<4x32xf32, #tpu.memory_space<vmem>>, %arg2: memref<6x32xf32, #tpu.memory_space<vmem>>, %arg3: memref<24x32xf32, #tpu.memory_space<vmem>>, %arg4: memref<6x6xf32, #tpu.memory_space<vmem>>, %arg5: memref<6x24xf32, #tpu.memory_space<vmem>>, %arg6: memref<1x4x32x32xf32, #tpu.memory_space<vmem>>, %arg7: memref<1x4x32x32xf32, #tpu.memory_space<vmem>>, %arg8: memref<1x32x64xf32, #tpu.memory_space<vmem>>, %arg9: memref<1x64x32xf32, #tpu.memory_space<vmem>>, %arg10: memref<1x15x32xf32, #tpu.memory_space<vmem>>, %arg11: memref<1x1x64xf32, #tpu.memory_space<vmem>>, %arg12: memref<2x32xf32, #tpu.memory_space<vmem>>, %arg13: memref<32x4xf32, #tpu.memory_space<vmem>>, %arg14: memref<1x4xf32, #tpu.memory_space<vmem>>, %arg15: memref<6x4xf32, #tpu.memory_space<vmem>>) attributes {dimension_semantics = [], scalar_prefetch = 0 : i64, scratch_operands = 0 : i64, tpu.core_type = #tpu.core_type<tc>} {
    %c0 = arith.constant 0 : index
    %c0_0 = arith.constant 0 : index
    %0 = vector.load %arg0[%c0, %c0_0] : memref<6x4xf32, #tpu.memory_space<vmem>>, vector<6x4xf32>
    %c0_1 = arith.constant 0 : index
    %c0_2 = arith.constant 0 : index
    %1 = vector.load %arg1[%c0_1, %c0_2] : memref<4x32xf32, #tpu.memory_space<vmem>>, vector<4x32xf32>
    %cst = arith.constant dense<0.000000e+00> : vector<6x32xf32>
    %2 = tpu.matmul %0, %1, %cst {dimension_numbers = #tpu.dot_dimension_numbers<[1], [0], [0], [1], [0, 0, 1, 1], [], []>} : vector<6x4xf32>, vector<4x32xf32>, vector<6x32xf32> -> vector<6x32xf32>
    %c0_3 = arith.constant 0 : index
    %c0_4 = arith.constant 0 : index
    %3 = vector.load %arg2[%c0_3, %c0_4] : memref<6x32xf32, #tpu.memory_space<vmem>>, vector<6x32xf32>
    %4 = arith.addf %2, %3 : vector<6x32xf32>
    %c0_5 = arith.constant 0 : index
    %c0_6 = arith.constant 0 : index
    %5 = vector.load %arg3[%c0_5, %c0_6] : memref<24x32xf32, #tpu.memory_space<vmem>>, vector<24x32xf32>
    %c0_7 = arith.constant 0 : index
    %c0_8 = arith.constant 0 : index
    %6 = vector.load %arg4[%c0_7, %c0_8] : memref<6x6xf32, #tpu.memory_space<vmem>>, vector<6x6xf32>
    %c0_9 = arith.constant 0 : index
    %c0_10 = arith.constant 0 : index
    %7 = vector.load %arg5[%c0_9, %c0_10] : memref<6x24xf32, #tpu.memory_space<vmem>>, vector<6x24xf32>
    %c0_11 = arith.constant 0 : index
    %c0_12 = arith.constant 0 : index
    %c0_13 = arith.constant 0 : index
    %8 = vector.load %arg10[%c0_11, %c0_12, %c0_13] : memref<1x15x32xf32, #tpu.memory_space<vmem>>, vector<1x15x32xf32>
    %9 = vector.shape_cast %8 : vector<1x15x32xf32> to vector<15x32xf32>
    %c0_14 = arith.constant 0 : index
    %c0_15 = arith.constant 0 : index
    %c0_16 = arith.constant 0 : index
    %c0_17 = arith.constant 0 : index
    %10 = vector.load %arg6[%c0_14, %c0_15, %c0_16, %c0_17] : memref<1x4x32x32xf32, #tpu.memory_space<vmem>>, vector<1x1x32x32xf32>
    %11 = vector.shape_cast %10 : vector<1x1x32x32xf32> to vector<32x32xf32>
    %12 = vector.extract_strided_slice %9 {offsets = [0, 0], sizes = [1, 32], strides = [1, 1]} : vector<15x32xf32> to vector<1x32xf32>
    %c0_18 = arith.constant 0 : index
    %c1 = arith.constant 1 : index
    %c0_19 = arith.constant 0 : index
    %c0_20 = arith.constant 0 : index
    %13 = vector.load %arg6[%c0_18, %c1, %c0_19, %c0_20] : memref<1x4x32x32xf32, #tpu.memory_space<vmem>>, vector<1x1x32x32xf32>
    %14 = vector.shape_cast %13 : vector<1x1x32x32xf32> to vector<32x32xf32>
    %15 = vector.extract_strided_slice %9 {offsets = [1, 0], sizes = [1, 32], strides = [1, 1]} : vector<15x32xf32> to vector<1x32xf32>
    %c0_21 = arith.constant 0 : index
    %c2 = arith.constant 2 : index
    %c0_22 = arith.constant 0 : index
    %c0_23 = arith.constant 0 : index
    %16 = vector.load %arg6[%c0_21, %c2, %c0_22, %c0_23] : memref<1x4x32x32xf32, #tpu.memory_space<vmem>>, vector<1x1x32x32xf32>
    %17 = vector.shape_cast %16 : vector<1x1x32x32xf32> to vector<32x32xf32>
    %18 = vector.extract_strided_slice %9 {offsets = [2, 0], sizes = [1, 32], strides = [1, 1]} : vector<15x32xf32> to vector<1x32xf32>
    %c0_24 = arith.constant 0 : index
    %c3 = arith.constant 3 : index
    %c0_25 = arith.constant 0 : index
    %c0_26 = arith.constant 0 : index
    %19 = vector.load %arg6[%c0_24, %c3, %c0_25, %c0_26] : memref<1x4x32x32xf32, #tpu.memory_space<vmem>>, vector<1x1x32x32xf32>
    %20 = vector.shape_cast %19 : vector<1x1x32x32xf32> to vector<32x32xf32>
    %21 = vector.extract_strided_slice %9 {offsets = [3, 0], sizes = [1, 32], strides = [1, 1]} : vector<15x32xf32> to vector<1x32xf32>
    %cst_27 = arith.constant dense<0.000000e+00> : vector<6x32xf32>
    %22 = tpu.matmul %4, %11, %cst_27 {dimension_numbers = #tpu.dot_dimension_numbers<[1], [0], [0], [1], [0, 0, 1, 1], [], []>} : vector<6x32xf32>, vector<32x32xf32>, vector<6x32xf32> -> vector<6x32xf32>
    %23 = vector.broadcast %12 : vector<1x32xf32> to vector<6x32xf32>
    %24 = arith.addf %22, %23 : vector<6x32xf32>
    %cst_28 = arith.constant dense<0.000000e+00> : vector<6x32xf32>
    %25 = tpu.matmul %4, %14, %cst_28 {dimension_numbers = #tpu.dot_dimension_numbers<[1], [0], [0], [1], [0, 0, 1, 1], [], []>} : vector<6x32xf32>, vector<32x32xf32>, vector<6x32xf32> -> vector<6x32xf32>
    %26 = vector.broadcast %15 : vector<1x32xf32> to vector<6x32xf32>
    %27 = arith.addf %25, %26 : vector<6x32xf32>
    %cst_29 = arith.constant dense<0.000000e+00> : vector<6x32xf32>
    %28 = tpu.matmul %4, %17, %cst_29 {dimension_numbers = #tpu.dot_dimension_numbers<[1], [0], [0], [1], [0, 0, 1, 1], [], []>} : vector<6x32xf32>, vector<32x32xf32>, vector<6x32xf32> -> vector<6x32xf32>
    %29 = vector.broadcast %18 : vector<1x32xf32> to vector<6x32xf32>
    %30 = arith.addf %28, %29 : vector<6x32xf32>
    %cst_30 = arith.constant 0.353553385 : f32
    %31 = vector.broadcast %cst_30 : f32 to vector<6x32xf32>
    %32 = arith.mulf %24, %31 : vector<6x32xf32>
    %33 = vector.extract_strided_slice %32 {offsets = [0, 0], sizes = [6, 8], strides = [1, 1]} : vector<6x32xf32> to vector<6x8xf32>
    %34 = vector.extract_strided_slice %27 {offsets = [0, 0], sizes = [6, 8], strides = [1, 1]} : vector<6x32xf32> to vector<6x8xf32>
    %cst_31 = arith.constant dense<0.000000e+00> : vector<6x6xf32>
    %35 = tpu.matmul %33, %34, %cst_31 {dimension_numbers = #tpu.dot_dimension_numbers<[1], [1], [0], [0], [0, 0, 1, 0], [], []>} : vector<6x8xf32>, vector<6x8xf32>, vector<6x6xf32> -> vector<6x6xf32>
    %36 = arith.addf %35, %6 : vector<6x6xf32>
    %cst_32 = arith.constant dense<0xFF800000> : vector<6xf32>
    %37 = vector.multi_reduction <maximumf>, %36, %cst_32 [1] : vector<6x6xf32> to vector<6xf32>
    %38 = vector.shape_cast %37 : vector<6xf32> to vector<6x1xf32>
    %39 = vector.broadcast %38 : vector<6x1xf32> to vector<6x6xf32>
    %40 = arith.subf %36, %39 : vector<6x6xf32>
    %41 = math.exp %40 : vector<6x6xf32>
    %cst_33 = arith.constant dense<0.000000e+00> : vector<6xf32>
    %42 = vector.multi_reduction <add>, %41, %cst_33 [1] : vector<6x6xf32> to vector<6xf32>
    %43 = vector.shape_cast %42 : vector<6xf32> to vector<6x1xf32>
    %44 = tpu.reciprocal %43 {approx = true} : vector<6x1xf32> -> vector<6x1xf32>
    %45 = vector.broadcast %44 : vector<6x1xf32> to vector<6x6xf32>
    %46 = arith.mulf %41, %45 : vector<6x6xf32>
    %47 = vector.extract_strided_slice %30 {offsets = [0, 0], sizes = [6, 8], strides = [1, 1]} : vector<6x32xf32> to vector<6x8xf32>
    %cst_34 = arith.constant dense<0.000000e+00> : vector<6x8xf32>
    %48 = tpu.matmul %46, %47, %cst_34 {dimension_numbers = #tpu.dot_dimension_numbers<[1], [0], [0], [1], [0, 0, 1, 1], [], []>} : vector<6x6xf32>, vector<6x8xf32>, vector<6x8xf32> -> vector<6x8xf32>
    %49 = vector.extract_strided_slice %32 {offsets = [0, 8], sizes = [6, 8], strides = [1, 1]} : vector<6x32xf32> to vector<6x8xf32>
    %50 = vector.extract_strided_slice %27 {offsets = [0, 8], sizes = [6, 8], strides = [1, 1]} : vector<6x32xf32> to vector<6x8xf32>
    %cst_35 = arith.constant dense<0.000000e+00> : vector<6x6xf32>
    %51 = tpu.matmul %49, %50, %cst_35 {dimension_numbers = #tpu.dot_dimension_numbers<[1], [1], [0], [0], [0, 0, 1, 0], [], []>} : vector<6x8xf32>, vector<6x8xf32>, vector<6x6xf32> -> vector<6x6xf32>
    %52 = arith.addf %51, %6 : vector<6x6xf32>
    %cst_36 = arith.constant dense<0xFF800000> : vector<6xf32>
    %53 = vector.multi_reduction <maximumf>, %52, %cst_36 [1] : vector<6x6xf32> to vector<6xf32>
    %54 = vector.shape_cast %53 : vector<6xf32> to vector<6x1xf32>
    %55 = vector.broadcast %54 : vector<6x1xf32> to vector<6x6xf32>
    %56 = arith.subf %52, %55 : vector<6x6xf32>
    %57 = math.exp %56 : vector<6x6xf32>
    %cst_37 = arith.constant dense<0.000000e+00> : vector<6xf32>
    %58 = vector.multi_reduction <add>, %57, %cst_37 [1] : vector<6x6xf32> to vector<6xf32>
    %59 = vector.shape_cast %58 : vector<6xf32> to vector<6x1xf32>
    %60 = tpu.reciprocal %59 {approx = true} : vector<6x1xf32> -> vector<6x1xf32>
    %61 = vector.broadcast %60 : vector<6x1xf32> to vector<6x6xf32>
    %62 = arith.mulf %57, %61 : vector<6x6xf32>
    %63 = vector.extract_strided_slice %30 {offsets = [0, 8], sizes = [6, 8], strides = [1, 1]} : vector<6x32xf32> to vector<6x8xf32>
    %cst_38 = arith.constant dense<0.000000e+00> : vector<6x8xf32>
    %64 = tpu.matmul %62, %63, %cst_38 {dimension_numbers = #tpu.dot_dimension_numbers<[1], [0], [0], [1], [0, 0, 1, 1], [], []>} : vector<6x6xf32>, vector<6x8xf32>, vector<6x8xf32> -> vector<6x8xf32>
    %65 = vector.extract_strided_slice %32 {offsets = [0, 16], sizes = [6, 8], strides = [1, 1]} : vector<6x32xf32> to vector<6x8xf32>
    %66 = vector.extract_strided_slice %27 {offsets = [0, 16], sizes = [6, 8], strides = [1, 1]} : vector<6x32xf32> to vector<6x8xf32>
    %cst_39 = arith.constant dense<0.000000e+00> : vector<6x6xf32>
    %67 = tpu.matmul %65, %66, %cst_39 {dimension_numbers = #tpu.dot_dimension_numbers<[1], [1], [0], [0], [0, 0, 1, 0], [], []>} : vector<6x8xf32>, vector<6x8xf32>, vector<6x6xf32> -> vector<6x6xf32>
    %68 = arith.addf %67, %6 : vector<6x6xf32>
    %cst_40 = arith.constant dense<0xFF800000> : vector<6xf32>
    %69 = vector.multi_reduction <maximumf>, %68, %cst_40 [1] : vector<6x6xf32> to vector<6xf32>
    %70 = vector.shape_cast %69 : vector<6xf32> to vector<6x1xf32>
    %71 = vector.broadcast %70 : vector<6x1xf32> to vector<6x6xf32>
    %72 = arith.subf %68, %71 : vector<6x6xf32>
    %73 = math.exp %72 : vector<6x6xf32>
    %cst_41 = arith.constant dense<0.000000e+00> : vector<6xf32>
    %74 = vector.multi_reduction <add>, %73, %cst_41 [1] : vector<6x6xf32> to vector<6xf32>
    %75 = vector.shape_cast %74 : vector<6xf32> to vector<6x1xf32>
    %76 = tpu.reciprocal %75 {approx = true} : vector<6x1xf32> -> vector<6x1xf32>
    %77 = vector.broadcast %76 : vector<6x1xf32> to vector<6x6xf32>
    %78 = arith.mulf %73, %77 : vector<6x6xf32>
    %79 = vector.extract_strided_slice %30 {offsets = [0, 16], sizes = [6, 8], strides = [1, 1]} : vector<6x32xf32> to vector<6x8xf32>
    %cst_42 = arith.constant dense<0.000000e+00> : vector<6x8xf32>
    %80 = tpu.matmul %78, %79, %cst_42 {dimension_numbers = #tpu.dot_dimension_numbers<[1], [0], [0], [1], [0, 0, 1, 1], [], []>} : vector<6x6xf32>, vector<6x8xf32>, vector<6x8xf32> -> vector<6x8xf32>
    %81 = vector.extract_strided_slice %32 {offsets = [0, 24], sizes = [6, 8], strides = [1, 1]} : vector<6x32xf32> to vector<6x8xf32>
    %82 = vector.extract_strided_slice %27 {offsets = [0, 24], sizes = [6, 8], strides = [1, 1]} : vector<6x32xf32> to vector<6x8xf32>
    %cst_43 = arith.constant dense<0.000000e+00> : vector<6x6xf32>
    %83 = tpu.matmul %81, %82, %cst_43 {dimension_numbers = #tpu.dot_dimension_numbers<[1], [1], [0], [0], [0, 0, 1, 0], [], []>} : vector<6x8xf32>, vector<6x8xf32>, vector<6x6xf32> -> vector<6x6xf32>
    %84 = arith.addf %83, %6 : vector<6x6xf32>
    %cst_44 = arith.constant dense<0xFF800000> : vector<6xf32>
    %85 = vector.multi_reduction <maximumf>, %84, %cst_44 [1] : vector<6x6xf32> to vector<6xf32>
    %86 = vector.shape_cast %85 : vector<6xf32> to vector<6x1xf32>
    %87 = vector.broadcast %86 : vector<6x1xf32> to vector<6x6xf32>
    %88 = arith.subf %84, %87 : vector<6x6xf32>
    %89 = math.exp %88 : vector<6x6xf32>
    %cst_45 = arith.constant dense<0.000000e+00> : vector<6xf32>
    %90 = vector.multi_reduction <add>, %89, %cst_45 [1] : vector<6x6xf32> to vector<6xf32>
    %91 = vector.shape_cast %90 : vector<6xf32> to vector<6x1xf32>
    %92 = tpu.reciprocal %91 {approx = true} : vector<6x1xf32> -> vector<6x1xf32>
    %93 = vector.broadcast %92 : vector<6x1xf32> to vector<6x6xf32>
    %94 = arith.mulf %89, %93 : vector<6x6xf32>
    %95 = vector.extract_strided_slice %30 {offsets = [0, 24], sizes = [6, 8], strides = [1, 1]} : vector<6x32xf32> to vector<6x8xf32>
    %cst_46 = arith.constant dense<0.000000e+00> : vector<6x8xf32>
    %96 = tpu.matmul %94, %95, %cst_46 {dimension_numbers = #tpu.dot_dimension_numbers<[1], [0], [0], [1], [0, 0, 1, 1], [], []>} : vector<6x6xf32>, vector<6x8xf32>, vector<6x8xf32> -> vector<6x8xf32>
    %97 = tpu.concatenate %48, %64, %80, %96 in 1 : vector<6x8xf32>, vector<6x8xf32>, vector<6x8xf32>, vector<6x8xf32> -> vector<6x32xf32>
    %cst_47 = arith.constant dense<0.000000e+00> : vector<6x32xf32>
    %98 = tpu.matmul %97, %20, %cst_47 {dimension_numbers = #tpu.dot_dimension_numbers<[1], [0], [0], [1], [0, 0, 1, 1], [], []>} : vector<6x32xf32>, vector<32x32xf32>, vector<6x32xf32> -> vector<6x32xf32>
    %99 = vector.broadcast %21 : vector<1x32xf32> to vector<6x32xf32>
    %100 = arith.addf %98, %99 : vector<6x32xf32>
    %101 = arith.addf %4, %100 : vector<6x32xf32>
    %102 = vector.extract_strided_slice %9 {offsets = [8, 0], sizes = [1, 32], strides = [1, 1]} : vector<15x32xf32> to vector<1x32xf32>
    %103 = vector.extract_strided_slice %9 {offsets = [9, 0], sizes = [1, 32], strides = [1, 1]} : vector<15x32xf32> to vector<1x32xf32>
    %cst_48 = arith.constant dense<0.000000e+00> : vector<6xf32>
    %104 = vector.multi_reduction <add>, %101, %cst_48 [1] : vector<6x32xf32> to vector<6xf32>
    %105 = vector.shape_cast %104 : vector<6xf32> to vector<6x1xf32>
    %cst_49 = arith.constant 3.200000e+01 : f32
    %106 = vector.broadcast %cst_49 : f32 to vector<6x1xf32>
    %107 = arith.divf %105, %106 : vector<6x1xf32>
    %108 = vector.broadcast %107 : vector<6x1xf32> to vector<6x32xf32>
    %109 = arith.subf %101, %108 : vector<6x32xf32>
    %110 = arith.mulf %109, %109 : vector<6x32xf32>
    %cst_50 = arith.constant dense<0.000000e+00> : vector<6xf32>
    %111 = vector.multi_reduction <add>, %110, %cst_50 [1] : vector<6x32xf32> to vector<6xf32>
    %112 = vector.shape_cast %111 : vector<6xf32> to vector<6x1xf32>
    %cst_51 = arith.constant 3.200000e+01 : f32
    %113 = vector.broadcast %cst_51 : f32 to vector<6x1xf32>
    %114 = arith.divf %112, %113 : vector<6x1xf32>
    %115 = vector.broadcast %107 : vector<6x1xf32> to vector<6x32xf32>
    %116 = arith.subf %101, %115 : vector<6x32xf32>
    %cst_52 = arith.constant 9.99999974E-6 : f32
    %117 = vector.broadcast %cst_52 : f32 to vector<6x1xf32>
    %118 = arith.addf %114, %117 : vector<6x1xf32>
    %119 = math.rsqrt %118 : vector<6x1xf32>
    %120 = vector.broadcast %119 : vector<6x1xf32> to vector<6x32xf32>
    %121 = arith.mulf %116, %120 : vector<6x32xf32>
    %122 = vector.broadcast %102 : vector<1x32xf32> to vector<6x32xf32>
    %123 = arith.mulf %121, %122 : vector<6x32xf32>
    %124 = vector.broadcast %103 : vector<1x32xf32> to vector<6x32xf32>
    %125 = arith.addf %123, %124 : vector<6x32xf32>
    %c0_53 = arith.constant 0 : index
    %c0_54 = arith.constant 0 : index
    %c0_55 = arith.constant 0 : index
    %c0_56 = arith.constant 0 : index
    %126 = vector.load %arg7[%c0_53, %c0_54, %c0_55, %c0_56] : memref<1x4x32x32xf32, #tpu.memory_space<vmem>>, vector<1x1x32x32xf32>
    %127 = vector.shape_cast %126 : vector<1x1x32x32xf32> to vector<32x32xf32>
    %128 = vector.extract_strided_slice %9 {offsets = [4, 0], sizes = [1, 32], strides = [1, 1]} : vector<15x32xf32> to vector<1x32xf32>
    %c0_57 = arith.constant 0 : index
    %c1_58 = arith.constant 1 : index
    %c0_59 = arith.constant 0 : index
    %c0_60 = arith.constant 0 : index
    %129 = vector.load %arg7[%c0_57, %c1_58, %c0_59, %c0_60] : memref<1x4x32x32xf32, #tpu.memory_space<vmem>>, vector<1x1x32x32xf32>
    %130 = vector.shape_cast %129 : vector<1x1x32x32xf32> to vector<32x32xf32>
    %131 = vector.extract_strided_slice %9 {offsets = [5, 0], sizes = [1, 32], strides = [1, 1]} : vector<15x32xf32> to vector<1x32xf32>
    %c0_61 = arith.constant 0 : index
    %c2_62 = arith.constant 2 : index
    %c0_63 = arith.constant 0 : index
    %c0_64 = arith.constant 0 : index
    %132 = vector.load %arg7[%c0_61, %c2_62, %c0_63, %c0_64] : memref<1x4x32x32xf32, #tpu.memory_space<vmem>>, vector<1x1x32x32xf32>
    %133 = vector.shape_cast %132 : vector<1x1x32x32xf32> to vector<32x32xf32>
    %134 = vector.extract_strided_slice %9 {offsets = [6, 0], sizes = [1, 32], strides = [1, 1]} : vector<15x32xf32> to vector<1x32xf32>
    %c0_65 = arith.constant 0 : index
    %c3_66 = arith.constant 3 : index
    %c0_67 = arith.constant 0 : index
    %c0_68 = arith.constant 0 : index
    %135 = vector.load %arg7[%c0_65, %c3_66, %c0_67, %c0_68] : memref<1x4x32x32xf32, #tpu.memory_space<vmem>>, vector<1x1x32x32xf32>
    %136 = vector.shape_cast %135 : vector<1x1x32x32xf32> to vector<32x32xf32>
    %137 = vector.extract_strided_slice %9 {offsets = [7, 0], sizes = [1, 32], strides = [1, 1]} : vector<15x32xf32> to vector<1x32xf32>
    %cst_69 = arith.constant dense<0.000000e+00> : vector<6x32xf32>
    %138 = tpu.matmul %125, %127, %cst_69 {dimension_numbers = #tpu.dot_dimension_numbers<[1], [0], [0], [1], [0, 0, 1, 1], [], []>} : vector<6x32xf32>, vector<32x32xf32>, vector<6x32xf32> -> vector<6x32xf32>
    %139 = vector.broadcast %128 : vector<1x32xf32> to vector<6x32xf32>
    %140 = arith.addf %138, %139 : vector<6x32xf32>
    %cst_70 = arith.constant dense<0.000000e+00> : vector<24x32xf32>
    %141 = tpu.matmul %5, %130, %cst_70 {dimension_numbers = #tpu.dot_dimension_numbers<[1], [0], [0], [1], [0, 0, 1, 1], [], []>} : vector<24x32xf32>, vector<32x32xf32>, vector<24x32xf32> -> vector<24x32xf32>
    %142 = vector.broadcast %131 : vector<1x32xf32> to vector<24x32xf32>
    %143 = arith.addf %141, %142 : vector<24x32xf32>
    %cst_71 = arith.constant dense<0.000000e+00> : vector<24x32xf32>
    %144 = tpu.matmul %5, %133, %cst_71 {dimension_numbers = #tpu.dot_dimension_numbers<[1], [0], [0], [1], [0, 0, 1, 1], [], []>} : vector<24x32xf32>, vector<32x32xf32>, vector<24x32xf32> -> vector<24x32xf32>
    %145 = vector.broadcast %134 : vector<1x32xf32> to vector<24x32xf32>
    %146 = arith.addf %144, %145 : vector<24x32xf32>
    %cst_72 = arith.constant 0.353553385 : f32
    %147 = vector.broadcast %cst_72 : f32 to vector<6x32xf32>
    %148 = arith.mulf %140, %147 : vector<6x32xf32>
    %149 = vector.extract_strided_slice %148 {offsets = [0, 0], sizes = [6, 8], strides = [1, 1]} : vector<6x32xf32> to vector<6x8xf32>
    %150 = vector.extract_strided_slice %143 {offsets = [0, 0], sizes = [24, 8], strides = [1, 1]} : vector<24x32xf32> to vector<24x8xf32>
    %cst_73 = arith.constant dense<0.000000e+00> : vector<6x24xf32>
    %151 = tpu.matmul %149, %150, %cst_73 {dimension_numbers = #tpu.dot_dimension_numbers<[1], [1], [0], [0], [0, 0, 1, 0], [], []>} : vector<6x8xf32>, vector<24x8xf32>, vector<6x24xf32> -> vector<6x24xf32>
    %152 = arith.addf %151, %7 : vector<6x24xf32>
    %cst_74 = arith.constant dense<0xFF800000> : vector<6xf32>
    %153 = vector.multi_reduction <maximumf>, %152, %cst_74 [1] : vector<6x24xf32> to vector<6xf32>
    %154 = vector.shape_cast %153 : vector<6xf32> to vector<6x1xf32>
    %155 = vector.broadcast %154 : vector<6x1xf32> to vector<6x24xf32>
    %156 = arith.subf %152, %155 : vector<6x24xf32>
    %157 = math.exp %156 : vector<6x24xf32>
    %cst_75 = arith.constant dense<0.000000e+00> : vector<6xf32>
    %158 = vector.multi_reduction <add>, %157, %cst_75 [1] : vector<6x24xf32> to vector<6xf32>
    %159 = vector.shape_cast %158 : vector<6xf32> to vector<6x1xf32>
    %160 = tpu.reciprocal %159 {approx = true} : vector<6x1xf32> -> vector<6x1xf32>
    %161 = vector.broadcast %160 : vector<6x1xf32> to vector<6x24xf32>
    %162 = arith.mulf %157, %161 : vector<6x24xf32>
    %163 = vector.extract_strided_slice %146 {offsets = [0, 0], sizes = [24, 8], strides = [1, 1]} : vector<24x32xf32> to vector<24x8xf32>
    %cst_76 = arith.constant dense<0.000000e+00> : vector<6x8xf32>
    %164 = tpu.matmul %162, %163, %cst_76 {dimension_numbers = #tpu.dot_dimension_numbers<[1], [0], [0], [1], [0, 0, 1, 1], [], []>} : vector<6x24xf32>, vector<24x8xf32>, vector<6x8xf32> -> vector<6x8xf32>
    %165 = vector.extract_strided_slice %148 {offsets = [0, 8], sizes = [6, 8], strides = [1, 1]} : vector<6x32xf32> to vector<6x8xf32>
    %166 = vector.extract_strided_slice %143 {offsets = [0, 8], sizes = [24, 8], strides = [1, 1]} : vector<24x32xf32> to vector<24x8xf32>
    %cst_77 = arith.constant dense<0.000000e+00> : vector<6x24xf32>
    %167 = tpu.matmul %165, %166, %cst_77 {dimension_numbers = #tpu.dot_dimension_numbers<[1], [1], [0], [0], [0, 0, 1, 0], [], []>} : vector<6x8xf32>, vector<24x8xf32>, vector<6x24xf32> -> vector<6x24xf32>
    %168 = arith.addf %167, %7 : vector<6x24xf32>
    %cst_78 = arith.constant dense<0xFF800000> : vector<6xf32>
    %169 = vector.multi_reduction <maximumf>, %168, %cst_78 [1] : vector<6x24xf32> to vector<6xf32>
    %170 = vector.shape_cast %169 : vector<6xf32> to vector<6x1xf32>
    %171 = vector.broadcast %170 : vector<6x1xf32> to vector<6x24xf32>
    %172 = arith.subf %168, %171 : vector<6x24xf32>
    %173 = math.exp %172 : vector<6x24xf32>
    %cst_79 = arith.constant dense<0.000000e+00> : vector<6xf32>
    %174 = vector.multi_reduction <add>, %173, %cst_79 [1] : vector<6x24xf32> to vector<6xf32>
    %175 = vector.shape_cast %174 : vector<6xf32> to vector<6x1xf32>
    %176 = tpu.reciprocal %175 {approx = true} : vector<6x1xf32> -> vector<6x1xf32>
    %177 = vector.broadcast %176 : vector<6x1xf32> to vector<6x24xf32>
    %178 = arith.mulf %173, %177 : vector<6x24xf32>
    %179 = vector.extract_strided_slice %146 {offsets = [0, 8], sizes = [24, 8], strides = [1, 1]} : vector<24x32xf32> to vector<24x8xf32>
    %cst_80 = arith.constant dense<0.000000e+00> : vector<6x8xf32>
    %180 = tpu.matmul %178, %179, %cst_80 {dimension_numbers = #tpu.dot_dimension_numbers<[1], [0], [0], [1], [0, 0, 1, 1], [], []>} : vector<6x24xf32>, vector<24x8xf32>, vector<6x8xf32> -> vector<6x8xf32>
    %181 = vector.extract_strided_slice %148 {offsets = [0, 16], sizes = [6, 8], strides = [1, 1]} : vector<6x32xf32> to vector<6x8xf32>
    %182 = vector.extract_strided_slice %143 {offsets = [0, 16], sizes = [24, 8], strides = [1, 1]} : vector<24x32xf32> to vector<24x8xf32>
    %cst_81 = arith.constant dense<0.000000e+00> : vector<6x24xf32>
    %183 = tpu.matmul %181, %182, %cst_81 {dimension_numbers = #tpu.dot_dimension_numbers<[1], [1], [0], [0], [0, 0, 1, 0], [], []>} : vector<6x8xf32>, vector<24x8xf32>, vector<6x24xf32> -> vector<6x24xf32>
    %184 = arith.addf %183, %7 : vector<6x24xf32>
    %cst_82 = arith.constant dense<0xFF800000> : vector<6xf32>
    %185 = vector.multi_reduction <maximumf>, %184, %cst_82 [1] : vector<6x24xf32> to vector<6xf32>
    %186 = vector.shape_cast %185 : vector<6xf32> to vector<6x1xf32>
    %187 = vector.broadcast %186 : vector<6x1xf32> to vector<6x24xf32>
    %188 = arith.subf %184, %187 : vector<6x24xf32>
    %189 = math.exp %188 : vector<6x24xf32>
    %cst_83 = arith.constant dense<0.000000e+00> : vector<6xf32>
    %190 = vector.multi_reduction <add>, %189, %cst_83 [1] : vector<6x24xf32> to vector<6xf32>
    %191 = vector.shape_cast %190 : vector<6xf32> to vector<6x1xf32>
    %192 = tpu.reciprocal %191 {approx = true} : vector<6x1xf32> -> vector<6x1xf32>
    %193 = vector.broadcast %192 : vector<6x1xf32> to vector<6x24xf32>
    %194 = arith.mulf %189, %193 : vector<6x24xf32>
    %195 = vector.extract_strided_slice %146 {offsets = [0, 16], sizes = [24, 8], strides = [1, 1]} : vector<24x32xf32> to vector<24x8xf32>
    %cst_84 = arith.constant dense<0.000000e+00> : vector<6x8xf32>
    %196 = tpu.matmul %194, %195, %cst_84 {dimension_numbers = #tpu.dot_dimension_numbers<[1], [0], [0], [1], [0, 0, 1, 1], [], []>} : vector<6x24xf32>, vector<24x8xf32>, vector<6x8xf32> -> vector<6x8xf32>
    %197 = vector.extract_strided_slice %148 {offsets = [0, 24], sizes = [6, 8], strides = [1, 1]} : vector<6x32xf32> to vector<6x8xf32>
    %198 = vector.extract_strided_slice %143 {offsets = [0, 24], sizes = [24, 8], strides = [1, 1]} : vector<24x32xf32> to vector<24x8xf32>
    %cst_85 = arith.constant dense<0.000000e+00> : vector<6x24xf32>
    %199 = tpu.matmul %197, %198, %cst_85 {dimension_numbers = #tpu.dot_dimension_numbers<[1], [1], [0], [0], [0, 0, 1, 0], [], []>} : vector<6x8xf32>, vector<24x8xf32>, vector<6x24xf32> -> vector<6x24xf32>
    %200 = arith.addf %199, %7 : vector<6x24xf32>
    %cst_86 = arith.constant dense<0xFF800000> : vector<6xf32>
    %201 = vector.multi_reduction <maximumf>, %200, %cst_86 [1] : vector<6x24xf32> to vector<6xf32>
    %202 = vector.shape_cast %201 : vector<6xf32> to vector<6x1xf32>
    %203 = vector.broadcast %202 : vector<6x1xf32> to vector<6x24xf32>
    %204 = arith.subf %200, %203 : vector<6x24xf32>
    %205 = math.exp %204 : vector<6x24xf32>
    %cst_87 = arith.constant dense<0.000000e+00> : vector<6xf32>
    %206 = vector.multi_reduction <add>, %205, %cst_87 [1] : vector<6x24xf32> to vector<6xf32>
    %207 = vector.shape_cast %206 : vector<6xf32> to vector<6x1xf32>
    %208 = tpu.reciprocal %207 {approx = true} : vector<6x1xf32> -> vector<6x1xf32>
    %209 = vector.broadcast %208 : vector<6x1xf32> to vector<6x24xf32>
    %210 = arith.mulf %205, %209 : vector<6x24xf32>
    %211 = vector.extract_strided_slice %146 {offsets = [0, 24], sizes = [24, 8], strides = [1, 1]} : vector<24x32xf32> to vector<24x8xf32>
    %cst_88 = arith.constant dense<0.000000e+00> : vector<6x8xf32>
    %212 = tpu.matmul %210, %211, %cst_88 {dimension_numbers = #tpu.dot_dimension_numbers<[1], [0], [0], [1], [0, 0, 1, 1], [], []>} : vector<6x24xf32>, vector<24x8xf32>, vector<6x8xf32> -> vector<6x8xf32>
    %213 = tpu.concatenate %164, %180, %196, %212 in 1 : vector<6x8xf32>, vector<6x8xf32>, vector<6x8xf32>, vector<6x8xf32> -> vector<6x32xf32>
    %cst_89 = arith.constant dense<0.000000e+00> : vector<6x32xf32>
    %214 = tpu.matmul %213, %136, %cst_89 {dimension_numbers = #tpu.dot_dimension_numbers<[1], [0], [0], [1], [0, 0, 1, 1], [], []>} : vector<6x32xf32>, vector<32x32xf32>, vector<6x32xf32> -> vector<6x32xf32>
    %215 = vector.broadcast %137 : vector<1x32xf32> to vector<6x32xf32>
    %216 = arith.addf %214, %215 : vector<6x32xf32>
    %217 = arith.addf %125, %216 : vector<6x32xf32>
    %218 = vector.extract_strided_slice %9 {offsets = [10, 0], sizes = [1, 32], strides = [1, 1]} : vector<15x32xf32> to vector<1x32xf32>
    %219 = vector.extract_strided_slice %9 {offsets = [11, 0], sizes = [1, 32], strides = [1, 1]} : vector<15x32xf32> to vector<1x32xf32>
    %cst_90 = arith.constant dense<0.000000e+00> : vector<6xf32>
    %220 = vector.multi_reduction <add>, %217, %cst_90 [1] : vector<6x32xf32> to vector<6xf32>
    %221 = vector.shape_cast %220 : vector<6xf32> to vector<6x1xf32>
    %cst_91 = arith.constant 3.200000e+01 : f32
    %222 = vector.broadcast %cst_91 : f32 to vector<6x1xf32>
    %223 = arith.divf %221, %222 : vector<6x1xf32>
    %224 = vector.broadcast %223 : vector<6x1xf32> to vector<6x32xf32>
    %225 = arith.subf %217, %224 : vector<6x32xf32>
    %226 = arith.mulf %225, %225 : vector<6x32xf32>
    %cst_92 = arith.constant dense<0.000000e+00> : vector<6xf32>
    %227 = vector.multi_reduction <add>, %226, %cst_92 [1] : vector<6x32xf32> to vector<6xf32>
    %228 = vector.shape_cast %227 : vector<6xf32> to vector<6x1xf32>
    %cst_93 = arith.constant 3.200000e+01 : f32
    %229 = vector.broadcast %cst_93 : f32 to vector<6x1xf32>
    %230 = arith.divf %228, %229 : vector<6x1xf32>
    %231 = vector.broadcast %223 : vector<6x1xf32> to vector<6x32xf32>
    %232 = arith.subf %217, %231 : vector<6x32xf32>
    %cst_94 = arith.constant 9.99999974E-6 : f32
    %233 = vector.broadcast %cst_94 : f32 to vector<6x1xf32>
    %234 = arith.addf %230, %233 : vector<6x1xf32>
    %235 = math.rsqrt %234 : vector<6x1xf32>
    %236 = vector.broadcast %235 : vector<6x1xf32> to vector<6x32xf32>
    %237 = arith.mulf %232, %236 : vector<6x32xf32>
    %238 = vector.broadcast %218 : vector<1x32xf32> to vector<6x32xf32>
    %239 = arith.mulf %237, %238 : vector<6x32xf32>
    %240 = vector.broadcast %219 : vector<1x32xf32> to vector<6x32xf32>
    %241 = arith.addf %239, %240 : vector<6x32xf32>
    %c0_95 = arith.constant 0 : index
    %c0_96 = arith.constant 0 : index
    %c0_97 = arith.constant 0 : index
    %242 = vector.load %arg8[%c0_95, %c0_96, %c0_97] : memref<1x32x64xf32, #tpu.memory_space<vmem>>, vector<1x32x64xf32>
    %243 = vector.shape_cast %242 : vector<1x32x64xf32> to vector<32x64xf32>
    %cst_98 = arith.constant dense<0.000000e+00> : vector<6x64xf32>
    %244 = tpu.matmul %241, %243, %cst_98 {dimension_numbers = #tpu.dot_dimension_numbers<[1], [0], [0], [1], [0, 0, 1, 1], [], []>} : vector<6x32xf32>, vector<32x64xf32>, vector<6x64xf32> -> vector<6x64xf32>
    %c0_99 = arith.constant 0 : index
    %c0_100 = arith.constant 0 : index
    %c0_101 = arith.constant 0 : index
    %245 = vector.load %arg11[%c0_99, %c0_100, %c0_101] : memref<1x1x64xf32, #tpu.memory_space<vmem>>, vector<1x1x64xf32>
    %246 = vector.shape_cast %245 : vector<1x1x64xf32> to vector<1x64xf32>
    %247 = vector.broadcast %246 : vector<1x64xf32> to vector<6x64xf32>
    %248 = arith.addf %244, %247 : vector<6x64xf32>
    %cst_102 = arith.constant 5.000000e-01 : f32
    %249 = vector.broadcast %cst_102 : f32 to vector<6x64xf32>
    %250 = arith.mulf %249, %248 : vector<6x64xf32>
    %cst_103 = arith.constant 0.707106769 : f32
    %251 = vector.broadcast %cst_103 : f32 to vector<6x64xf32>
    %252 = arith.mulf %248, %251 : vector<6x64xf32>
    %253 = math.absf %252 : vector<6x64xf32>
    %cst_104 = arith.constant 0.327591091 : f32
    %254 = vector.broadcast %cst_104 : f32 to vector<6x64xf32>
    %255 = arith.mulf %254, %253 : vector<6x64xf32>
    %cst_105 = arith.constant 1.000000e+00 : f32
    %256 = vector.broadcast %cst_105 : f32 to vector<6x64xf32>
    %257 = arith.addf %256, %255 : vector<6x64xf32>
    %cst_106 = arith.constant 1.000000e+00 : f32
    %258 = vector.broadcast %cst_106 : f32 to vector<6x64xf32>
    %259 = arith.divf %258, %257 : vector<6x64xf32>
    %cst_107 = arith.constant 1.06140542 : f32
    %260 = vector.broadcast %cst_107 : f32 to vector<6x64xf32>
    %261 = arith.mulf %260, %259 : vector<6x64xf32>
    %cst_108 = arith.constant -1.45315206 : f32
    %262 = vector.broadcast %cst_108 : f32 to vector<6x64xf32>
    %263 = arith.addf %261, %262 : vector<6x64xf32>
    %264 = arith.mulf %263, %259 : vector<6x64xf32>
    %cst_109 = arith.constant 1.42141378 : f32
    %265 = vector.broadcast %cst_109 : f32 to vector<6x64xf32>
    %266 = arith.addf %264, %265 : vector<6x64xf32>
    %267 = arith.mulf %266, %259 : vector<6x64xf32>
    %cst_110 = arith.constant -0.284496725 : f32
    %268 = vector.broadcast %cst_110 : f32 to vector<6x64xf32>
    %269 = arith.addf %267, %268 : vector<6x64xf32>
    %270 = arith.mulf %269, %259 : vector<6x64xf32>
    %cst_111 = arith.constant 0.254829586 : f32
    %271 = vector.broadcast %cst_111 : f32 to vector<6x64xf32>
    %272 = arith.addf %270, %271 : vector<6x64xf32>
    %273 = arith.mulf %272, %259 : vector<6x64xf32>
    %cst_112 = arith.constant 0.000000e+00 : f32
    %274 = vector.broadcast %cst_112 : f32 to vector<6x64xf32>
    %275 = arith.subf %274, %252 : vector<6x64xf32>
    %276 = arith.mulf %275, %252 : vector<6x64xf32>
    %277 = math.exp %276 : vector<6x64xf32>
    %278 = arith.mulf %273, %277 : vector<6x64xf32>
    %cst_113 = arith.constant 1.000000e+00 : f32
    %279 = vector.broadcast %cst_113 : f32 to vector<6x64xf32>
    %280 = arith.subf %279, %278 : vector<6x64xf32>
    %cst_114 = arith.constant 0.000000e+00 : f32
    %281 = vector.broadcast %cst_114 : f32 to vector<6x64xf32>
    %282 = arith.cmpf oge, %252, %281 : vector<6x64xf32>
    %cst_115 = arith.constant 0.000000e+00 : f32
    %283 = vector.broadcast %cst_115 : f32 to vector<6x64xf32>
    %284 = arith.subf %283, %280 : vector<6x64xf32>
    %285 = arith.select %282, %280, %284 : vector<6x64xi1>, vector<6x64xf32>
    %cst_116 = arith.constant 1.000000e+00 : f32
    %286 = vector.broadcast %cst_116 : f32 to vector<6x64xf32>
    %287 = arith.addf %286, %285 : vector<6x64xf32>
    %288 = arith.mulf %250, %287 : vector<6x64xf32>
    %c0_117 = arith.constant 0 : index
    %c0_118 = arith.constant 0 : index
    %c0_119 = arith.constant 0 : index
    %289 = vector.load %arg9[%c0_117, %c0_118, %c0_119] : memref<1x64x32xf32, #tpu.memory_space<vmem>>, vector<1x64x32xf32>
    %290 = vector.shape_cast %289 : vector<1x64x32xf32> to vector<64x32xf32>
    %cst_120 = arith.constant dense<0.000000e+00> : vector<6x32xf32>
    %291 = tpu.matmul %288, %290, %cst_120 {dimension_numbers = #tpu.dot_dimension_numbers<[1], [0], [0], [1], [0, 0, 1, 1], [], []>} : vector<6x64xf32>, vector<64x32xf32>, vector<6x32xf32> -> vector<6x32xf32>
    %292 = vector.extract_strided_slice %9 {offsets = [12, 0], sizes = [1, 32], strides = [1, 1]} : vector<15x32xf32> to vector<1x32xf32>
    %293 = vector.broadcast %292 : vector<1x32xf32> to vector<6x32xf32>
    %294 = arith.addf %291, %293 : vector<6x32xf32>
    %295 = arith.addf %241, %294 : vector<6x32xf32>
    %296 = vector.extract_strided_slice %9 {offsets = [13, 0], sizes = [1, 32], strides = [1, 1]} : vector<15x32xf32> to vector<1x32xf32>
    %297 = vector.extract_strided_slice %9 {offsets = [14, 0], sizes = [1, 32], strides = [1, 1]} : vector<15x32xf32> to vector<1x32xf32>
    %cst_121 = arith.constant dense<0.000000e+00> : vector<6xf32>
    %298 = vector.multi_reduction <add>, %295, %cst_121 [1] : vector<6x32xf32> to vector<6xf32>
    %299 = vector.shape_cast %298 : vector<6xf32> to vector<6x1xf32>
    %cst_122 = arith.constant 3.200000e+01 : f32
    %300 = vector.broadcast %cst_122 : f32 to vector<6x1xf32>
    %301 = arith.divf %299, %300 : vector<6x1xf32>
    %302 = vector.broadcast %301 : vector<6x1xf32> to vector<6x32xf32>
    %303 = arith.subf %295, %302 : vector<6x32xf32>
    %304 = arith.mulf %303, %303 : vector<6x32xf32>
    %cst_123 = arith.constant dense<0.000000e+00> : vector<6xf32>
    %305 = vector.multi_reduction <add>, %304, %cst_123 [1] : vector<6x32xf32> to vector<6xf32>
    %306 = vector.shape_cast %305 : vector<6xf32> to vector<6x1xf32>
    %cst_124 = arith.constant 3.200000e+01 : f32
    %307 = vector.broadcast %cst_124 : f32 to vector<6x1xf32>
    %308 = arith.divf %306, %307 : vector<6x1xf32>
    %309 = vector.broadcast %301 : vector<6x1xf32> to vector<6x32xf32>
    %310 = arith.subf %295, %309 : vector<6x32xf32>
    %cst_125 = arith.constant 9.99999974E-6 : f32
    %311 = vector.broadcast %cst_125 : f32 to vector<6x1xf32>
    %312 = arith.addf %308, %311 : vector<6x1xf32>
    %313 = math.rsqrt %312 : vector<6x1xf32>
    %314 = vector.broadcast %313 : vector<6x1xf32> to vector<6x32xf32>
    %315 = arith.mulf %310, %314 : vector<6x32xf32>
    %316 = vector.broadcast %296 : vector<1x32xf32> to vector<6x32xf32>
    %317 = arith.mulf %315, %316 : vector<6x32xf32>
    %318 = vector.broadcast %297 : vector<1x32xf32> to vector<6x32xf32>
    %319 = arith.addf %317, %318 : vector<6x32xf32>
    %c0_126 = arith.constant 0 : index
    %c0_127 = arith.constant 0 : index
    %320 = vector.load %arg12[%c0_126, %c0_127] : memref<2x32xf32, #tpu.memory_space<vmem>>, vector<2x32xf32>
    %321 = vector.extract_strided_slice %320 {offsets = [0, 0], sizes = [1, 32], strides = [1, 1]} : vector<2x32xf32> to vector<1x32xf32>
    %322 = vector.extract_strided_slice %320 {offsets = [1, 0], sizes = [1, 32], strides = [1, 1]} : vector<2x32xf32> to vector<1x32xf32>
    %cst_128 = arith.constant dense<0.000000e+00> : vector<6xf32>
    %323 = vector.multi_reduction <add>, %319, %cst_128 [1] : vector<6x32xf32> to vector<6xf32>
    %324 = vector.shape_cast %323 : vector<6xf32> to vector<6x1xf32>
    %cst_129 = arith.constant 3.200000e+01 : f32
    %325 = vector.broadcast %cst_129 : f32 to vector<6x1xf32>
    %326 = arith.divf %324, %325 : vector<6x1xf32>
    %327 = vector.broadcast %326 : vector<6x1xf32> to vector<6x32xf32>
    %328 = arith.subf %319, %327 : vector<6x32xf32>
    %329 = arith.mulf %328, %328 : vector<6x32xf32>
    %cst_130 = arith.constant dense<0.000000e+00> : vector<6xf32>
    %330 = vector.multi_reduction <add>, %329, %cst_130 [1] : vector<6x32xf32> to vector<6xf32>
    %331 = vector.shape_cast %330 : vector<6xf32> to vector<6x1xf32>
    %cst_131 = arith.constant 3.200000e+01 : f32
    %332 = vector.broadcast %cst_131 : f32 to vector<6x1xf32>
    %333 = arith.divf %331, %332 : vector<6x1xf32>
    %334 = vector.broadcast %326 : vector<6x1xf32> to vector<6x32xf32>
    %335 = arith.subf %319, %334 : vector<6x32xf32>
    %cst_132 = arith.constant 9.99999974E-6 : f32
    %336 = vector.broadcast %cst_132 : f32 to vector<6x1xf32>
    %337 = arith.addf %333, %336 : vector<6x1xf32>
    %338 = math.rsqrt %337 : vector<6x1xf32>
    %339 = vector.broadcast %338 : vector<6x1xf32> to vector<6x32xf32>
    %340 = arith.mulf %335, %339 : vector<6x32xf32>
    %341 = vector.broadcast %321 : vector<1x32xf32> to vector<6x32xf32>
    %342 = arith.mulf %340, %341 : vector<6x32xf32>
    %343 = vector.broadcast %322 : vector<1x32xf32> to vector<6x32xf32>
    %344 = arith.addf %342, %343 : vector<6x32xf32>
    %c0_133 = arith.constant 0 : index
    %c0_134 = arith.constant 0 : index
    %345 = vector.load %arg13[%c0_133, %c0_134] : memref<32x4xf32, #tpu.memory_space<vmem>>, vector<32x4xf32>
    %cst_135 = arith.constant dense<0.000000e+00> : vector<6x4xf32>
    %346 = tpu.matmul %344, %345, %cst_135 {dimension_numbers = #tpu.dot_dimension_numbers<[1], [0], [0], [1], [0, 0, 1, 1], [], []>} : vector<6x32xf32>, vector<32x4xf32>, vector<6x4xf32> -> vector<6x4xf32>
    %c0_136 = arith.constant 0 : index
    %c0_137 = arith.constant 0 : index
    %347 = vector.load %arg14[%c0_136, %c0_137] : memref<1x4xf32, #tpu.memory_space<vmem>>, vector<1x4xf32>
    %348 = vector.broadcast %347 : vector<1x4xf32> to vector<6x4xf32>
    %349 = arith.addf %346, %348 : vector<6x4xf32>
    %c0_138 = arith.constant 0 : index
    %c0_139 = arith.constant 0 : index
    %350 = vector.load %arg15[%c0_138, %c0_139] : memref<6x4xf32, #tpu.memory_space<vmem>>, vector<6x4xf32>
    tpu.vector_store %arg15[%c0_138, %c0_139], %349 {strides = array<i32>} : memref<6x4xf32, #tpu.memory_space<vmem>>, vector<6x4xf32>,
    return
  }
}

module attributes {stable_mosaic.version = 11 : i64} {
  func.func @_decoder_step_kernel(%arg0: memref<12x4xf32, #tpu.memory_space<vmem>>, %arg1: memref<4x32xf32, #tpu.memory_space<vmem>>, %arg2: memref<12x32xf32, #tpu.memory_space<vmem>>, %arg3: memref<24x32xf32, #tpu.memory_space<vmem>>, %arg4: memref<12x12xf32, #tpu.memory_space<vmem>>, %arg5: memref<12x24xf32, #tpu.memory_space<vmem>>, %arg6: memref<1x4x32x32xf32, #tpu.memory_space<vmem>>, %arg7: memref<1x4x32x32xf32, #tpu.memory_space<vmem>>, %arg8: memref<1x32x64xf32, #tpu.memory_space<vmem>>, %arg9: memref<1x64x32xf32, #tpu.memory_space<vmem>>, %arg10: memref<1x15x32xf32, #tpu.memory_space<vmem>>, %arg11: memref<1x1x64xf32, #tpu.memory_space<vmem>>, %arg12: memref<2x32xf32, #tpu.memory_space<vmem>>, %arg13: memref<32x4xf32, #tpu.memory_space<vmem>>, %arg14: memref<1x4xf32, #tpu.memory_space<vmem>>, %arg15: memref<12x4xf32, #tpu.memory_space<vmem>>) attributes {dimension_semantics = [], scalar_prefetch = 0 : i64, scratch_operands = 0 : i64, tpu.core_type = #tpu.core_type<tc>} {
    %c0 = arith.constant 0 : index
    %c0_0 = arith.constant 0 : index
    %0 = vector.load %arg0[%c0, %c0_0] : memref<12x4xf32, #tpu.memory_space<vmem>>, vector<12x4xf32>
    %c0_1 = arith.constant 0 : index
    %c0_2 = arith.constant 0 : index
    %1 = vector.load %arg1[%c0_1, %c0_2] : memref<4x32xf32, #tpu.memory_space<vmem>>, vector<4x32xf32>
    %cst = arith.constant dense<0.000000e+00> : vector<12x32xf32>
    %2 = tpu.matmul %0, %1, %cst {dimension_numbers = #tpu.dot_dimension_numbers<[1], [0], [0], [1], [0, 0, 1, 1], [], []>} : vector<12x4xf32>, vector<4x32xf32>, vector<12x32xf32> -> vector<12x32xf32>
    %c0_3 = arith.constant 0 : index
    %c0_4 = arith.constant 0 : index
    %3 = vector.load %arg2[%c0_3, %c0_4] : memref<12x32xf32, #tpu.memory_space<vmem>>, vector<12x32xf32>
    %4 = arith.addf %2, %3 : vector<12x32xf32>
    %c0_5 = arith.constant 0 : index
    %c0_6 = arith.constant 0 : index
    %5 = vector.load %arg3[%c0_5, %c0_6] : memref<24x32xf32, #tpu.memory_space<vmem>>, vector<24x32xf32>
    %c0_7 = arith.constant 0 : index
    %c0_8 = arith.constant 0 : index
    %6 = vector.load %arg4[%c0_7, %c0_8] : memref<12x12xf32, #tpu.memory_space<vmem>>, vector<12x12xf32>
    %c0_9 = arith.constant 0 : index
    %c0_10 = arith.constant 0 : index
    %7 = vector.load %arg5[%c0_9, %c0_10] : memref<12x24xf32, #tpu.memory_space<vmem>>, vector<12x24xf32>
    %c0_11 = arith.constant 0 : index
    %c0_12 = arith.constant 0 : index
    %c0_13 = arith.constant 0 : index
    %8 = vector.load %arg10[%c0_11, %c0_12, %c0_13] : memref<1x15x32xf32, #tpu.memory_space<vmem>>, vector<1x15x32xf32>
    %9 = vector.shape_cast %8 : vector<1x15x32xf32> to vector<15x32xf32>
    %c0_14 = arith.constant 0 : index
    %c0_15 = arith.constant 0 : index
    %c0_16 = arith.constant 0 : index
    %c0_17 = arith.constant 0 : index
    %10 = vector.load %arg6[%c0_14, %c0_15, %c0_16, %c0_17] : memref<1x4x32x32xf32, #tpu.memory_space<vmem>>, vector<1x1x32x32xf32>
    %11 = vector.shape_cast %10 : vector<1x1x32x32xf32> to vector<32x32xf32>
    %12 = vector.extract_strided_slice %9 {offsets = [0, 0], sizes = [1, 32], strides = [1, 1]} : vector<15x32xf32> to vector<1x32xf32>
    %c0_18 = arith.constant 0 : index
    %c1 = arith.constant 1 : index
    %c0_19 = arith.constant 0 : index
    %c0_20 = arith.constant 0 : index
    %13 = vector.load %arg6[%c0_18, %c1, %c0_19, %c0_20] : memref<1x4x32x32xf32, #tpu.memory_space<vmem>>, vector<1x1x32x32xf32>
    %14 = vector.shape_cast %13 : vector<1x1x32x32xf32> to vector<32x32xf32>
    %15 = vector.extract_strided_slice %9 {offsets = [1, 0], sizes = [1, 32], strides = [1, 1]} : vector<15x32xf32> to vector<1x32xf32>
    %c0_21 = arith.constant 0 : index
    %c2 = arith.constant 2 : index
    %c0_22 = arith.constant 0 : index
    %c0_23 = arith.constant 0 : index
    %16 = vector.load %arg6[%c0_21, %c2, %c0_22, %c0_23] : memref<1x4x32x32xf32, #tpu.memory_space<vmem>>, vector<1x1x32x32xf32>
    %17 = vector.shape_cast %16 : vector<1x1x32x32xf32> to vector<32x32xf32>
    %18 = vector.extract_strided_slice %9 {offsets = [2, 0], sizes = [1, 32], strides = [1, 1]} : vector<15x32xf32> to vector<1x32xf32>
    %c0_24 = arith.constant 0 : index
    %c3 = arith.constant 3 : index
    %c0_25 = arith.constant 0 : index
    %c0_26 = arith.constant 0 : index
    %19 = vector.load %arg6[%c0_24, %c3, %c0_25, %c0_26] : memref<1x4x32x32xf32, #tpu.memory_space<vmem>>, vector<1x1x32x32xf32>
    %20 = vector.shape_cast %19 : vector<1x1x32x32xf32> to vector<32x32xf32>
    %21 = vector.extract_strided_slice %9 {offsets = [3, 0], sizes = [1, 32], strides = [1, 1]} : vector<15x32xf32> to vector<1x32xf32>
    %cst_27 = arith.constant dense<0.000000e+00> : vector<12x32xf32>
    %22 = tpu.matmul %4, %11, %cst_27 {dimension_numbers = #tpu.dot_dimension_numbers<[1], [0], [0], [1], [0, 0, 1, 1], [], []>} : vector<12x32xf32>, vector<32x32xf32>, vector<12x32xf32> -> vector<12x32xf32>
    %23 = vector.broadcast %12 : vector<1x32xf32> to vector<12x32xf32>
    %24 = arith.addf %22, %23 : vector<12x32xf32>
    %cst_28 = arith.constant dense<0.000000e+00> : vector<12x32xf32>
    %25 = tpu.matmul %4, %14, %cst_28 {dimension_numbers = #tpu.dot_dimension_numbers<[1], [0], [0], [1], [0, 0, 1, 1], [], []>} : vector<12x32xf32>, vector<32x32xf32>, vector<12x32xf32> -> vector<12x32xf32>
    %26 = vector.broadcast %15 : vector<1x32xf32> to vector<12x32xf32>
    %27 = arith.addf %25, %26 : vector<12x32xf32>
    %cst_29 = arith.constant dense<0.000000e+00> : vector<12x32xf32>
    %28 = tpu.matmul %4, %17, %cst_29 {dimension_numbers = #tpu.dot_dimension_numbers<[1], [0], [0], [1], [0, 0, 1, 1], [], []>} : vector<12x32xf32>, vector<32x32xf32>, vector<12x32xf32> -> vector<12x32xf32>
    %29 = vector.broadcast %18 : vector<1x32xf32> to vector<12x32xf32>
    %30 = arith.addf %28, %29 : vector<12x32xf32>
    %cst_30 = arith.constant 0.353553385 : f32
    %31 = vector.broadcast %cst_30 : f32 to vector<12x32xf32>
    %32 = arith.mulf %24, %31 : vector<12x32xf32>
    %33 = vector.extract_strided_slice %32 {offsets = [0, 0], sizes = [12, 8], strides = [1, 1]} : vector<12x32xf32> to vector<12x8xf32>
    %34 = vector.extract_strided_slice %27 {offsets = [0, 0], sizes = [12, 8], strides = [1, 1]} : vector<12x32xf32> to vector<12x8xf32>
    %cst_31 = arith.constant dense<0.000000e+00> : vector<12x12xf32>
    %35 = tpu.matmul %33, %34, %cst_31 {dimension_numbers = #tpu.dot_dimension_numbers<[1], [1], [0], [0], [0, 0, 1, 0], [], []>} : vector<12x8xf32>, vector<12x8xf32>, vector<12x12xf32> -> vector<12x12xf32>
    %36 = arith.addf %35, %6 : vector<12x12xf32>
    %cst_32 = arith.constant dense<0xFF800000> : vector<12xf32>
    %37 = vector.multi_reduction <maximumf>, %36, %cst_32 [1] : vector<12x12xf32> to vector<12xf32>
    %38 = vector.shape_cast %37 : vector<12xf32> to vector<12x1xf32>
    %39 = vector.broadcast %38 : vector<12x1xf32> to vector<12x12xf32>
    %40 = arith.subf %36, %39 : vector<12x12xf32>
    %41 = math.exp %40 : vector<12x12xf32>
    %cst_33 = arith.constant dense<0.000000e+00> : vector<12xf32>
    %42 = vector.multi_reduction <add>, %41, %cst_33 [1] : vector<12x12xf32> to vector<12xf32>
    %43 = vector.shape_cast %42 : vector<12xf32> to vector<12x1xf32>
    %44 = tpu.reciprocal %43 {approx = true} : vector<12x1xf32> -> vector<12x1xf32>
    %45 = vector.broadcast %44 : vector<12x1xf32> to vector<12x12xf32>
    %46 = arith.mulf %41, %45 : vector<12x12xf32>
    %47 = vector.extract_strided_slice %30 {offsets = [0, 0], sizes = [12, 8], strides = [1, 1]} : vector<12x32xf32> to vector<12x8xf32>
    %cst_34 = arith.constant dense<0.000000e+00> : vector<12x8xf32>
    %48 = tpu.matmul %46, %47, %cst_34 {dimension_numbers = #tpu.dot_dimension_numbers<[1], [0], [0], [1], [0, 0, 1, 1], [], []>} : vector<12x12xf32>, vector<12x8xf32>, vector<12x8xf32> -> vector<12x8xf32>
    %49 = vector.extract_strided_slice %32 {offsets = [0, 8], sizes = [12, 8], strides = [1, 1]} : vector<12x32xf32> to vector<12x8xf32>
    %50 = vector.extract_strided_slice %27 {offsets = [0, 8], sizes = [12, 8], strides = [1, 1]} : vector<12x32xf32> to vector<12x8xf32>
    %cst_35 = arith.constant dense<0.000000e+00> : vector<12x12xf32>
    %51 = tpu.matmul %49, %50, %cst_35 {dimension_numbers = #tpu.dot_dimension_numbers<[1], [1], [0], [0], [0, 0, 1, 0], [], []>} : vector<12x8xf32>, vector<12x8xf32>, vector<12x12xf32> -> vector<12x12xf32>
    %52 = arith.addf %51, %6 : vector<12x12xf32>
    %cst_36 = arith.constant dense<0xFF800000> : vector<12xf32>
    %53 = vector.multi_reduction <maximumf>, %52, %cst_36 [1] : vector<12x12xf32> to vector<12xf32>
    %54 = vector.shape_cast %53 : vector<12xf32> to vector<12x1xf32>
    %55 = vector.broadcast %54 : vector<12x1xf32> to vector<12x12xf32>
    %56 = arith.subf %52, %55 : vector<12x12xf32>
    %57 = math.exp %56 : vector<12x12xf32>
    %cst_37 = arith.constant dense<0.000000e+00> : vector<12xf32>
    %58 = vector.multi_reduction <add>, %57, %cst_37 [1] : vector<12x12xf32> to vector<12xf32>
    %59 = vector.shape_cast %58 : vector<12xf32> to vector<12x1xf32>
    %60 = tpu.reciprocal %59 {approx = true} : vector<12x1xf32> -> vector<12x1xf32>
    %61 = vector.broadcast %60 : vector<12x1xf32> to vector<12x12xf32>
    %62 = arith.mulf %57, %61 : vector<12x12xf32>
    %63 = vector.extract_strided_slice %30 {offsets = [0, 8], sizes = [12, 8], strides = [1, 1]} : vector<12x32xf32> to vector<12x8xf32>
    %cst_38 = arith.constant dense<0.000000e+00> : vector<12x8xf32>
    %64 = tpu.matmul %62, %63, %cst_38 {dimension_numbers = #tpu.dot_dimension_numbers<[1], [0], [0], [1], [0, 0, 1, 1], [], []>} : vector<12x12xf32>, vector<12x8xf32>, vector<12x8xf32> -> vector<12x8xf32>
    %65 = vector.extract_strided_slice %32 {offsets = [0, 16], sizes = [12, 8], strides = [1, 1]} : vector<12x32xf32> to vector<12x8xf32>
    %66 = vector.extract_strided_slice %27 {offsets = [0, 16], sizes = [12, 8], strides = [1, 1]} : vector<12x32xf32> to vector<12x8xf32>
    %cst_39 = arith.constant dense<0.000000e+00> : vector<12x12xf32>
    %67 = tpu.matmul %65, %66, %cst_39 {dimension_numbers = #tpu.dot_dimension_numbers<[1], [1], [0], [0], [0, 0, 1, 0], [], []>} : vector<12x8xf32>, vector<12x8xf32>, vector<12x12xf32> -> vector<12x12xf32>
    %68 = arith.addf %67, %6 : vector<12x12xf32>
    %cst_40 = arith.constant dense<0xFF800000> : vector<12xf32>
    %69 = vector.multi_reduction <maximumf>, %68, %cst_40 [1] : vector<12x12xf32> to vector<12xf32>
    %70 = vector.shape_cast %69 : vector<12xf32> to vector<12x1xf32>
    %71 = vector.broadcast %70 : vector<12x1xf32> to vector<12x12xf32>
    %72 = arith.subf %68, %71 : vector<12x12xf32>
    %73 = math.exp %72 : vector<12x12xf32>
    %cst_41 = arith.constant dense<0.000000e+00> : vector<12xf32>
    %74 = vector.multi_reduction <add>, %73, %cst_41 [1] : vector<12x12xf32> to vector<12xf32>
    %75 = vector.shape_cast %74 : vector<12xf32> to vector<12x1xf32>
    %76 = tpu.reciprocal %75 {approx = true} : vector<12x1xf32> -> vector<12x1xf32>
    %77 = vector.broadcast %76 : vector<12x1xf32> to vector<12x12xf32>
    %78 = arith.mulf %73, %77 : vector<12x12xf32>
    %79 = vector.extract_strided_slice %30 {offsets = [0, 16], sizes = [12, 8], strides = [1, 1]} : vector<12x32xf32> to vector<12x8xf32>
    %cst_42 = arith.constant dense<0.000000e+00> : vector<12x8xf32>
    %80 = tpu.matmul %78, %79, %cst_42 {dimension_numbers = #tpu.dot_dimension_numbers<[1], [0], [0], [1], [0, 0, 1, 1], [], []>} : vector<12x12xf32>, vector<12x8xf32>, vector<12x8xf32> -> vector<12x8xf32>
    %81 = vector.extract_strided_slice %32 {offsets = [0, 24], sizes = [12, 8], strides = [1, 1]} : vector<12x32xf32> to vector<12x8xf32>
    %82 = vector.extract_strided_slice %27 {offsets = [0, 24], sizes = [12, 8], strides = [1, 1]} : vector<12x32xf32> to vector<12x8xf32>
    %cst_43 = arith.constant dense<0.000000e+00> : vector<12x12xf32>
    %83 = tpu.matmul %81, %82, %cst_43 {dimension_numbers = #tpu.dot_dimension_numbers<[1], [1], [0], [0], [0, 0, 1, 0], [], []>} : vector<12x8xf32>, vector<12x8xf32>, vector<12x12xf32> -> vector<12x12xf32>
    %84 = arith.addf %83, %6 : vector<12x12xf32>
    %cst_44 = arith.constant dense<0xFF800000> : vector<12xf32>
    %85 = vector.multi_reduction <maximumf>, %84, %cst_44 [1] : vector<12x12xf32> to vector<12xf32>
    %86 = vector.shape_cast %85 : vector<12xf32> to vector<12x1xf32>
    %87 = vector.broadcast %86 : vector<12x1xf32> to vector<12x12xf32>
    %88 = arith.subf %84, %87 : vector<12x12xf32>
    %89 = math.exp %88 : vector<12x12xf32>
    %cst_45 = arith.constant dense<0.000000e+00> : vector<12xf32>
    %90 = vector.multi_reduction <add>, %89, %cst_45 [1] : vector<12x12xf32> to vector<12xf32>
    %91 = vector.shape_cast %90 : vector<12xf32> to vector<12x1xf32>
    %92 = tpu.reciprocal %91 {approx = true} : vector<12x1xf32> -> vector<12x1xf32>
    %93 = vector.broadcast %92 : vector<12x1xf32> to vector<12x12xf32>
    %94 = arith.mulf %89, %93 : vector<12x12xf32>
    %95 = vector.extract_strided_slice %30 {offsets = [0, 24], sizes = [12, 8], strides = [1, 1]} : vector<12x32xf32> to vector<12x8xf32>
    %cst_46 = arith.constant dense<0.000000e+00> : vector<12x8xf32>
    %96 = tpu.matmul %94, %95, %cst_46 {dimension_numbers = #tpu.dot_dimension_numbers<[1], [0], [0], [1], [0, 0, 1, 1], [], []>} : vector<12x12xf32>, vector<12x8xf32>, vector<12x8xf32> -> vector<12x8xf32>
    %97 = tpu.concatenate %48, %64, %80, %96 in 1 : vector<12x8xf32>, vector<12x8xf32>, vector<12x8xf32>, vector<12x8xf32> -> vector<12x32xf32>
    %cst_47 = arith.constant dense<0.000000e+00> : vector<12x32xf32>
    %98 = tpu.matmul %97, %20, %cst_47 {dimension_numbers = #tpu.dot_dimension_numbers<[1], [0], [0], [1], [0, 0, 1, 1], [], []>} : vector<12x32xf32>, vector<32x32xf32>, vector<12x32xf32> -> vector<12x32xf32>
    %99 = vector.broadcast %21 : vector<1x32xf32> to vector<12x32xf32>
    %100 = arith.addf %98, %99 : vector<12x32xf32>
    %101 = arith.addf %4, %100 : vector<12x32xf32>
    %102 = vector.extract_strided_slice %9 {offsets = [8, 0], sizes = [1, 32], strides = [1, 1]} : vector<15x32xf32> to vector<1x32xf32>
    %103 = vector.extract_strided_slice %9 {offsets = [9, 0], sizes = [1, 32], strides = [1, 1]} : vector<15x32xf32> to vector<1x32xf32>
    %cst_48 = arith.constant dense<0.000000e+00> : vector<12xf32>
    %104 = vector.multi_reduction <add>, %101, %cst_48 [1] : vector<12x32xf32> to vector<12xf32>
    %105 = vector.shape_cast %104 : vector<12xf32> to vector<12x1xf32>
    %cst_49 = arith.constant 3.200000e+01 : f32
    %106 = vector.broadcast %cst_49 : f32 to vector<12x1xf32>
    %107 = arith.divf %105, %106 : vector<12x1xf32>
    %108 = vector.broadcast %107 : vector<12x1xf32> to vector<12x32xf32>
    %109 = arith.subf %101, %108 : vector<12x32xf32>
    %110 = arith.mulf %109, %109 : vector<12x32xf32>
    %cst_50 = arith.constant dense<0.000000e+00> : vector<12xf32>
    %111 = vector.multi_reduction <add>, %110, %cst_50 [1] : vector<12x32xf32> to vector<12xf32>
    %112 = vector.shape_cast %111 : vector<12xf32> to vector<12x1xf32>
    %cst_51 = arith.constant 3.200000e+01 : f32
    %113 = vector.broadcast %cst_51 : f32 to vector<12x1xf32>
    %114 = arith.divf %112, %113 : vector<12x1xf32>
    %115 = vector.broadcast %107 : vector<12x1xf32> to vector<12x32xf32>
    %116 = arith.subf %101, %115 : vector<12x32xf32>
    %cst_52 = arith.constant 9.99999974E-6 : f32
    %117 = vector.broadcast %cst_52 : f32 to vector<12x1xf32>
    %118 = arith.addf %114, %117 : vector<12x1xf32>
    %119 = math.rsqrt %118 : vector<12x1xf32>
    %120 = vector.broadcast %119 : vector<12x1xf32> to vector<12x32xf32>
    %121 = arith.mulf %116, %120 : vector<12x32xf32>
    %122 = vector.broadcast %102 : vector<1x32xf32> to vector<12x32xf32>
    %123 = arith.mulf %121, %122 : vector<12x32xf32>
    %124 = vector.broadcast %103 : vector<1x32xf32> to vector<12x32xf32>
    %125 = arith.addf %123, %124 : vector<12x32xf32>
    %c0_53 = arith.constant 0 : index
    %c0_54 = arith.constant 0 : index
    %c0_55 = arith.constant 0 : index
    %c0_56 = arith.constant 0 : index
    %126 = vector.load %arg7[%c0_53, %c0_54, %c0_55, %c0_56] : memref<1x4x32x32xf32, #tpu.memory_space<vmem>>, vector<1x1x32x32xf32>
    %127 = vector.shape_cast %126 : vector<1x1x32x32xf32> to vector<32x32xf32>
    %128 = vector.extract_strided_slice %9 {offsets = [4, 0], sizes = [1, 32], strides = [1, 1]} : vector<15x32xf32> to vector<1x32xf32>
    %c0_57 = arith.constant 0 : index
    %c1_58 = arith.constant 1 : index
    %c0_59 = arith.constant 0 : index
    %c0_60 = arith.constant 0 : index
    %129 = vector.load %arg7[%c0_57, %c1_58, %c0_59, %c0_60] : memref<1x4x32x32xf32, #tpu.memory_space<vmem>>, vector<1x1x32x32xf32>
    %130 = vector.shape_cast %129 : vector<1x1x32x32xf32> to vector<32x32xf32>
    %131 = vector.extract_strided_slice %9 {offsets = [5, 0], sizes = [1, 32], strides = [1, 1]} : vector<15x32xf32> to vector<1x32xf32>
    %c0_61 = arith.constant 0 : index
    %c2_62 = arith.constant 2 : index
    %c0_63 = arith.constant 0 : index
    %c0_64 = arith.constant 0 : index
    %132 = vector.load %arg7[%c0_61, %c2_62, %c0_63, %c0_64] : memref<1x4x32x32xf32, #tpu.memory_space<vmem>>, vector<1x1x32x32xf32>
    %133 = vector.shape_cast %132 : vector<1x1x32x32xf32> to vector<32x32xf32>
    %134 = vector.extract_strided_slice %9 {offsets = [6, 0], sizes = [1, 32], strides = [1, 1]} : vector<15x32xf32> to vector<1x32xf32>
    %c0_65 = arith.constant 0 : index
    %c3_66 = arith.constant 3 : index
    %c0_67 = arith.constant 0 : index
    %c0_68 = arith.constant 0 : index
    %135 = vector.load %arg7[%c0_65, %c3_66, %c0_67, %c0_68] : memref<1x4x32x32xf32, #tpu.memory_space<vmem>>, vector<1x1x32x32xf32>
    %136 = vector.shape_cast %135 : vector<1x1x32x32xf32> to vector<32x32xf32>
    %137 = vector.extract_strided_slice %9 {offsets = [7, 0], sizes = [1, 32], strides = [1, 1]} : vector<15x32xf32> to vector<1x32xf32>
    %cst_69 = arith.constant dense<0.000000e+00> : vector<12x32xf32>
    %138 = tpu.matmul %125, %127, %cst_69 {dimension_numbers = #tpu.dot_dimension_numbers<[1], [0], [0], [1], [0, 0, 1, 1], [], []>} : vector<12x32xf32>, vector<32x32xf32>, vector<12x32xf32> -> vector<12x32xf32>
    %139 = vector.broadcast %128 : vector<1x32xf32> to vector<12x32xf32>
    %140 = arith.addf %138, %139 : vector<12x32xf32>
    %cst_70 = arith.constant dense<0.000000e+00> : vector<24x32xf32>
    %141 = tpu.matmul %5, %130, %cst_70 {dimension_numbers = #tpu.dot_dimension_numbers<[1], [0], [0], [1], [0, 0, 1, 1], [], []>} : vector<24x32xf32>, vector<32x32xf32>, vector<24x32xf32> -> vector<24x32xf32>
    %142 = vector.broadcast %131 : vector<1x32xf32> to vector<24x32xf32>
    %143 = arith.addf %141, %142 : vector<24x32xf32>
    %cst_71 = arith.constant dense<0.000000e+00> : vector<24x32xf32>
    %144 = tpu.matmul %5, %133, %cst_71 {dimension_numbers = #tpu.dot_dimension_numbers<[1], [0], [0], [1], [0, 0, 1, 1], [], []>} : vector<24x32xf32>, vector<32x32xf32>, vector<24x32xf32> -> vector<24x32xf32>
    %145 = vector.broadcast %134 : vector<1x32xf32> to vector<24x32xf32>
    %146 = arith.addf %144, %145 : vector<24x32xf32>
    %cst_72 = arith.constant 0.353553385 : f32
    %147 = vector.broadcast %cst_72 : f32 to vector<12x32xf32>
    %148 = arith.mulf %140, %147 : vector<12x32xf32>
    %149 = vector.extract_strided_slice %148 {offsets = [0, 0], sizes = [12, 8], strides = [1, 1]} : vector<12x32xf32> to vector<12x8xf32>
    %150 = vector.extract_strided_slice %143 {offsets = [0, 0], sizes = [24, 8], strides = [1, 1]} : vector<24x32xf32> to vector<24x8xf32>
    %cst_73 = arith.constant dense<0.000000e+00> : vector<12x24xf32>
    %151 = tpu.matmul %149, %150, %cst_73 {dimension_numbers = #tpu.dot_dimension_numbers<[1], [1], [0], [0], [0, 0, 1, 0], [], []>} : vector<12x8xf32>, vector<24x8xf32>, vector<12x24xf32> -> vector<12x24xf32>
    %152 = arith.addf %151, %7 : vector<12x24xf32>
    %cst_74 = arith.constant dense<0xFF800000> : vector<12xf32>
    %153 = vector.multi_reduction <maximumf>, %152, %cst_74 [1] : vector<12x24xf32> to vector<12xf32>
    %154 = vector.shape_cast %153 : vector<12xf32> to vector<12x1xf32>
    %155 = vector.broadcast %154 : vector<12x1xf32> to vector<12x24xf32>
    %156 = arith.subf %152, %155 : vector<12x24xf32>
    %157 = math.exp %156 : vector<12x24xf32>
    %cst_75 = arith.constant dense<0.000000e+00> : vector<12xf32>
    %158 = vector.multi_reduction <add>, %157, %cst_75 [1] : vector<12x24xf32> to vector<12xf32>
    %159 = vector.shape_cast %158 : vector<12xf32> to vector<12x1xf32>
    %160 = tpu.reciprocal %159 {approx = true} : vector<12x1xf32> -> vector<12x1xf32>
    %161 = vector.broadcast %160 : vector<12x1xf32> to vector<12x24xf32>
    %162 = arith.mulf %157, %161 : vector<12x24xf32>
    %163 = vector.extract_strided_slice %146 {offsets = [0, 0], sizes = [24, 8], strides = [1, 1]} : vector<24x32xf32> to vector<24x8xf32>
    %cst_76 = arith.constant dense<0.000000e+00> : vector<12x8xf32>
    %164 = tpu.matmul %162, %163, %cst_76 {dimension_numbers = #tpu.dot_dimension_numbers<[1], [0], [0], [1], [0, 0, 1, 1], [], []>} : vector<12x24xf32>, vector<24x8xf32>, vector<12x8xf32> -> vector<12x8xf32>
    %165 = vector.extract_strided_slice %148 {offsets = [0, 8], sizes = [12, 8], strides = [1, 1]} : vector<12x32xf32> to vector<12x8xf32>
    %166 = vector.extract_strided_slice %143 {offsets = [0, 8], sizes = [24, 8], strides = [1, 1]} : vector<24x32xf32> to vector<24x8xf32>
    %cst_77 = arith.constant dense<0.000000e+00> : vector<12x24xf32>
    %167 = tpu.matmul %165, %166, %cst_77 {dimension_numbers = #tpu.dot_dimension_numbers<[1], [1], [0], [0], [0, 0, 1, 0], [], []>} : vector<12x8xf32>, vector<24x8xf32>, vector<12x24xf32> -> vector<12x24xf32>
    %168 = arith.addf %167, %7 : vector<12x24xf32>
    %cst_78 = arith.constant dense<0xFF800000> : vector<12xf32>
    %169 = vector.multi_reduction <maximumf>, %168, %cst_78 [1] : vector<12x24xf32> to vector<12xf32>
    %170 = vector.shape_cast %169 : vector<12xf32> to vector<12x1xf32>
    %171 = vector.broadcast %170 : vector<12x1xf32> to vector<12x24xf32>
    %172 = arith.subf %168, %171 : vector<12x24xf32>
    %173 = math.exp %172 : vector<12x24xf32>
    %cst_79 = arith.constant dense<0.000000e+00> : vector<12xf32>
    %174 = vector.multi_reduction <add>, %173, %cst_79 [1] : vector<12x24xf32> to vector<12xf32>
    %175 = vector.shape_cast %174 : vector<12xf32> to vector<12x1xf32>
    %176 = tpu.reciprocal %175 {approx = true} : vector<12x1xf32> -> vector<12x1xf32>
    %177 = vector.broadcast %176 : vector<12x1xf32> to vector<12x24xf32>
    %178 = arith.mulf %173, %177 : vector<12x24xf32>
    %179 = vector.extract_strided_slice %146 {offsets = [0, 8], sizes = [24, 8], strides = [1, 1]} : vector<24x32xf32> to vector<24x8xf32>
    %cst_80 = arith.constant dense<0.000000e+00> : vector<12x8xf32>
    %180 = tpu.matmul %178, %179, %cst_80 {dimension_numbers = #tpu.dot_dimension_numbers<[1], [0], [0], [1], [0, 0, 1, 1], [], []>} : vector<12x24xf32>, vector<24x8xf32>, vector<12x8xf32> -> vector<12x8xf32>
    %181 = vector.extract_strided_slice %148 {offsets = [0, 16], sizes = [12, 8], strides = [1, 1]} : vector<12x32xf32> to vector<12x8xf32>
    %182 = vector.extract_strided_slice %143 {offsets = [0, 16], sizes = [24, 8], strides = [1, 1]} : vector<24x32xf32> to vector<24x8xf32>
    %cst_81 = arith.constant dense<0.000000e+00> : vector<12x24xf32>
    %183 = tpu.matmul %181, %182, %cst_81 {dimension_numbers = #tpu.dot_dimension_numbers<[1], [1], [0], [0], [0, 0, 1, 0], [], []>} : vector<12x8xf32>, vector<24x8xf32>, vector<12x24xf32> -> vector<12x24xf32>
    %184 = arith.addf %183, %7 : vector<12x24xf32>
    %cst_82 = arith.constant dense<0xFF800000> : vector<12xf32>
    %185 = vector.multi_reduction <maximumf>, %184, %cst_82 [1] : vector<12x24xf32> to vector<12xf32>
    %186 = vector.shape_cast %185 : vector<12xf32> to vector<12x1xf32>
    %187 = vector.broadcast %186 : vector<12x1xf32> to vector<12x24xf32>
    %188 = arith.subf %184, %187 : vector<12x24xf32>
    %189 = math.exp %188 : vector<12x24xf32>
    %cst_83 = arith.constant dense<0.000000e+00> : vector<12xf32>
    %190 = vector.multi_reduction <add>, %189, %cst_83 [1] : vector<12x24xf32> to vector<12xf32>
    %191 = vector.shape_cast %190 : vector<12xf32> to vector<12x1xf32>
    %192 = tpu.reciprocal %191 {approx = true} : vector<12x1xf32> -> vector<12x1xf32>
    %193 = vector.broadcast %192 : vector<12x1xf32> to vector<12x24xf32>
    %194 = arith.mulf %189, %193 : vector<12x24xf32>
    %195 = vector.extract_strided_slice %146 {offsets = [0, 16], sizes = [24, 8], strides = [1, 1]} : vector<24x32xf32> to vector<24x8xf32>
    %cst_84 = arith.constant dense<0.000000e+00> : vector<12x8xf32>
    %196 = tpu.matmul %194, %195, %cst_84 {dimension_numbers = #tpu.dot_dimension_numbers<[1], [0], [0], [1], [0, 0, 1, 1], [], []>} : vector<12x24xf32>, vector<24x8xf32>, vector<12x8xf32> -> vector<12x8xf32>
    %197 = vector.extract_strided_slice %148 {offsets = [0, 24], sizes = [12, 8], strides = [1, 1]} : vector<12x32xf32> to vector<12x8xf32>
    %198 = vector.extract_strided_slice %143 {offsets = [0, 24], sizes = [24, 8], strides = [1, 1]} : vector<24x32xf32> to vector<24x8xf32>
    %cst_85 = arith.constant dense<0.000000e+00> : vector<12x24xf32>
    %199 = tpu.matmul %197, %198, %cst_85 {dimension_numbers = #tpu.dot_dimension_numbers<[1], [1], [0], [0], [0, 0, 1, 0], [], []>} : vector<12x8xf32>, vector<24x8xf32>, vector<12x24xf32> -> vector<12x24xf32>
    %200 = arith.addf %199, %7 : vector<12x24xf32>
    %cst_86 = arith.constant dense<0xFF800000> : vector<12xf32>
    %201 = vector.multi_reduction <maximumf>, %200, %cst_86 [1] : vector<12x24xf32> to vector<12xf32>
    %202 = vector.shape_cast %201 : vector<12xf32> to vector<12x1xf32>
    %203 = vector.broadcast %202 : vector<12x1xf32> to vector<12x24xf32>
    %204 = arith.subf %200, %203 : vector<12x24xf32>
    %205 = math.exp %204 : vector<12x24xf32>
    %cst_87 = arith.constant dense<0.000000e+00> : vector<12xf32>
    %206 = vector.multi_reduction <add>, %205, %cst_87 [1] : vector<12x24xf32> to vector<12xf32>
    %207 = vector.shape_cast %206 : vector<12xf32> to vector<12x1xf32>
    %208 = tpu.reciprocal %207 {approx = true} : vector<12x1xf32> -> vector<12x1xf32>
    %209 = vector.broadcast %208 : vector<12x1xf32> to vector<12x24xf32>
    %210 = arith.mulf %205, %209 : vector<12x24xf32>
    %211 = vector.extract_strided_slice %146 {offsets = [0, 24], sizes = [24, 8], strides = [1, 1]} : vector<24x32xf32> to vector<24x8xf32>
    %cst_88 = arith.constant dense<0.000000e+00> : vector<12x8xf32>
    %212 = tpu.matmul %210, %211, %cst_88 {dimension_numbers = #tpu.dot_dimension_numbers<[1], [0], [0], [1], [0, 0, 1, 1], [], []>} : vector<12x24xf32>, vector<24x8xf32>, vector<12x8xf32> -> vector<12x8xf32>
    %213 = tpu.concatenate %164, %180, %196, %212 in 1 : vector<12x8xf32>, vector<12x8xf32>, vector<12x8xf32>, vector<12x8xf32> -> vector<12x32xf32>
    %cst_89 = arith.constant dense<0.000000e+00> : vector<12x32xf32>
    %214 = tpu.matmul %213, %136, %cst_89 {dimension_numbers = #tpu.dot_dimension_numbers<[1], [0], [0], [1], [0, 0, 1, 1], [], []>} : vector<12x32xf32>, vector<32x32xf32>, vector<12x32xf32> -> vector<12x32xf32>
    %215 = vector.broadcast %137 : vector<1x32xf32> to vector<12x32xf32>
    %216 = arith.addf %214, %215 : vector<12x32xf32>
    %217 = arith.addf %125, %216 : vector<12x32xf32>
    %218 = vector.extract_strided_slice %9 {offsets = [10, 0], sizes = [1, 32], strides = [1, 1]} : vector<15x32xf32> to vector<1x32xf32>
    %219 = vector.extract_strided_slice %9 {offsets = [11, 0], sizes = [1, 32], strides = [1, 1]} : vector<15x32xf32> to vector<1x32xf32>
    %cst_90 = arith.constant dense<0.000000e+00> : vector<12xf32>
    %220 = vector.multi_reduction <add>, %217, %cst_90 [1] : vector<12x32xf32> to vector<12xf32>
    %221 = vector.shape_cast %220 : vector<12xf32> to vector<12x1xf32>
    %cst_91 = arith.constant 3.200000e+01 : f32
    %222 = vector.broadcast %cst_91 : f32 to vector<12x1xf32>
    %223 = arith.divf %221, %222 : vector<12x1xf32>
    %224 = vector.broadcast %223 : vector<12x1xf32> to vector<12x32xf32>
    %225 = arith.subf %217, %224 : vector<12x32xf32>
    %226 = arith.mulf %225, %225 : vector<12x32xf32>
    %cst_92 = arith.constant dense<0.000000e+00> : vector<12xf32>
    %227 = vector.multi_reduction <add>, %226, %cst_92 [1] : vector<12x32xf32> to vector<12xf32>
    %228 = vector.shape_cast %227 : vector<12xf32> to vector<12x1xf32>
    %cst_93 = arith.constant 3.200000e+01 : f32
    %229 = vector.broadcast %cst_93 : f32 to vector<12x1xf32>
    %230 = arith.divf %228, %229 : vector<12x1xf32>
    %231 = vector.broadcast %223 : vector<12x1xf32> to vector<12x32xf32>
    %232 = arith.subf %217, %231 : vector<12x32xf32>
    %cst_94 = arith.constant 9.99999974E-6 : f32
    %233 = vector.broadcast %cst_94 : f32 to vector<12x1xf32>
    %234 = arith.addf %230, %233 : vector<12x1xf32>
    %235 = math.rsqrt %234 : vector<12x1xf32>
    %236 = vector.broadcast %235 : vector<12x1xf32> to vector<12x32xf32>
    %237 = arith.mulf %232, %236 : vector<12x32xf32>
    %238 = vector.broadcast %218 : vector<1x32xf32> to vector<12x32xf32>
    %239 = arith.mulf %237, %238 : vector<12x32xf32>
    %240 = vector.broadcast %219 : vector<1x32xf32> to vector<12x32xf32>
    %241 = arith.addf %239, %240 : vector<12x32xf32>
    %c0_95 = arith.constant 0 : index
    %c0_96 = arith.constant 0 : index
    %c0_97 = arith.constant 0 : index
    %242 = vector.load %arg8[%c0_95, %c0_96, %c0_97] : memref<1x32x64xf32, #tpu.memory_space<vmem>>, vector<1x32x64xf32>
    %243 = vector.shape_cast %242 : vector<1x32x64xf32> to vector<32x64xf32>
    %cst_98 = arith.constant dense<0.000000e+00> : vector<12x64xf32>
    %244 = tpu.matmul %241, %243, %cst_98 {dimension_numbers = #tpu.dot_dimension_numbers<[1], [0], [0], [1], [0, 0, 1, 1], [], []>} : vector<12x32xf32>, vector<32x64xf32>, vector<12x64xf32> -> vector<12x64xf32>
    %c0_99 = arith.constant 0 : index
    %c0_100 = arith.constant 0 : index
    %c0_101 = arith.constant 0 : index
    %245 = vector.load %arg11[%c0_99, %c0_100, %c0_101] : memref<1x1x64xf32, #tpu.memory_space<vmem>>, vector<1x1x64xf32>
    %246 = vector.shape_cast %245 : vector<1x1x64xf32> to vector<1x64xf32>
    %247 = vector.broadcast %246 : vector<1x64xf32> to vector<12x64xf32>
    %248 = arith.addf %244, %247 : vector<12x64xf32>
    %cst_102 = arith.constant 5.000000e-01 : f32
    %249 = vector.broadcast %cst_102 : f32 to vector<12x64xf32>
    %250 = arith.mulf %249, %248 : vector<12x64xf32>
    %cst_103 = arith.constant 0.707106769 : f32
    %251 = vector.broadcast %cst_103 : f32 to vector<12x64xf32>
    %252 = arith.mulf %248, %251 : vector<12x64xf32>
    %253 = math.absf %252 : vector<12x64xf32>
    %cst_104 = arith.constant 0.327591091 : f32
    %254 = vector.broadcast %cst_104 : f32 to vector<12x64xf32>
    %255 = arith.mulf %254, %253 : vector<12x64xf32>
    %cst_105 = arith.constant 1.000000e+00 : f32
    %256 = vector.broadcast %cst_105 : f32 to vector<12x64xf32>
    %257 = arith.addf %256, %255 : vector<12x64xf32>
    %cst_106 = arith.constant 1.000000e+00 : f32
    %258 = vector.broadcast %cst_106 : f32 to vector<12x64xf32>
    %259 = arith.divf %258, %257 : vector<12x64xf32>
    %cst_107 = arith.constant 1.06140542 : f32
    %260 = vector.broadcast %cst_107 : f32 to vector<12x64xf32>
    %261 = arith.mulf %260, %259 : vector<12x64xf32>
    %cst_108 = arith.constant -1.45315206 : f32
    %262 = vector.broadcast %cst_108 : f32 to vector<12x64xf32>
    %263 = arith.addf %261, %262 : vector<12x64xf32>
    %264 = arith.mulf %263, %259 : vector<12x64xf32>
    %cst_109 = arith.constant 1.42141378 : f32
    %265 = vector.broadcast %cst_109 : f32 to vector<12x64xf32>
    %266 = arith.addf %264, %265 : vector<12x64xf32>
    %267 = arith.mulf %266, %259 : vector<12x64xf32>
    %cst_110 = arith.constant -0.284496725 : f32
    %268 = vector.broadcast %cst_110 : f32 to vector<12x64xf32>
    %269 = arith.addf %267, %268 : vector<12x64xf32>
    %270 = arith.mulf %269, %259 : vector<12x64xf32>
    %cst_111 = arith.constant 0.254829586 : f32
    %271 = vector.broadcast %cst_111 : f32 to vector<12x64xf32>
    %272 = arith.addf %270, %271 : vector<12x64xf32>
    %273 = arith.mulf %272, %259 : vector<12x64xf32>
    %cst_112 = arith.constant 0.000000e+00 : f32
    %274 = vector.broadcast %cst_112 : f32 to vector<12x64xf32>
    %275 = arith.subf %274, %252 : vector<12x64xf32>
    %276 = arith.mulf %275, %252 : vector<12x64xf32>
    %277 = math.exp %276 : vector<12x64xf32>
    %278 = arith.mulf %273, %277 : vector<12x64xf32>
    %cst_113 = arith.constant 1.000000e+00 : f32
    %279 = vector.broadcast %cst_113 : f32 to vector<12x64xf32>
    %280 = arith.subf %279, %278 : vector<12x64xf32>
    %cst_114 = arith.constant 0.000000e+00 : f32
    %281 = vector.broadcast %cst_114 : f32 to vector<12x64xf32>
    %282 = arith.cmpf oge, %252, %281 : vector<12x64xf32>
    %cst_115 = arith.constant 0.000000e+00 : f32
    %283 = vector.broadcast %cst_115 : f32 to vector<12x64xf32>
    %284 = arith.subf %283, %280 : vector<12x64xf32>
    %285 = arith.select %282, %280, %284 : vector<12x64xi1>, vector<12x64xf32>
    %cst_116 = arith.constant 1.000000e+00 : f32
    %286 = vector.broadcast %cst_116 : f32 to vector<12x64xf32>
    %287 = arith.addf %286, %285 : vector<12x64xf32>
    %288 = arith.mulf %250, %287 : vector<12x64xf32>
    %c0_117 = arith.constant 0 : index
    %c0_118 = arith.constant 0 : index
    %c0_119 = arith.constant 0 : index
    %289 = vector.load %arg9[%c0_117, %c0_118, %c0_119] : memref<1x64x32xf32, #tpu.memory_space<vmem>>, vector<1x64x32xf32>
    %290 = vector.shape_cast %289 : vector<1x64x32xf32> to vector<64x32xf32>
    %cst_120 = arith.constant dense<0.000000e+00> : vector<12x32xf32>
    %291 = tpu.matmul %288, %290, %cst_120 {dimension_numbers = #tpu.dot_dimension_numbers<[1], [0], [0], [1], [0, 0, 1, 1], [], []>} : vector<12x64xf32>, vector<64x32xf32>, vector<12x32xf32> -> vector<12x32xf32>
    %292 = vector.extract_strided_slice %9 {offsets = [12, 0], sizes = [1, 32], strides = [1, 1]} : vector<15x32xf32> to vector<1x32xf32>
    %293 = vector.broadcast %292 : vector<1x32xf32> to vector<12x32xf32>
    %294 = arith.addf %291, %293 : vector<12x32xf32>
    %295 = arith.addf %241, %294 : vector<12x32xf32>
    %296 = vector.extract_strided_slice %9 {offsets = [13, 0], sizes = [1, 32], strides = [1, 1]} : vector<15x32xf32> to vector<1x32xf32>
    %297 = vector.extract_strided_slice %9 {offsets = [14, 0], sizes = [1, 32], strides = [1, 1]} : vector<15x32xf32> to vector<1x32xf32>
    %cst_121 = arith.constant dense<0.000000e+00> : vector<12xf32>
    %298 = vector.multi_reduction <add>, %295, %cst_121 [1] : vector<12x32xf32> to vector<12xf32>
    %299 = vector.shape_cast %298 : vector<12xf32> to vector<12x1xf32>
    %cst_122 = arith.constant 3.200000e+01 : f32
    %300 = vector.broadcast %cst_122 : f32 to vector<12x1xf32>
    %301 = arith.divf %299, %300 : vector<12x1xf32>
    %302 = vector.broadcast %301 : vector<12x1xf32> to vector<12x32xf32>
    %303 = arith.subf %295, %302 : vector<12x32xf32>
    %304 = arith.mulf %303, %303 : vector<12x32xf32>
    %cst_123 = arith.constant dense<0.000000e+00> : vector<12xf32>
    %305 = vector.multi_reduction <add>, %304, %cst_123 [1] : vector<12x32xf32> to vector<12xf32>
    %306 = vector.shape_cast %305 : vector<12xf32> to vector<12x1xf32>
    %cst_124 = arith.constant 3.200000e+01 : f32
    %307 = vector.broadcast %cst_124 : f32 to vector<12x1xf32>
    %308 = arith.divf %306, %307 : vector<12x1xf32>
    %309 = vector.broadcast %301 : vector<12x1xf32> to vector<12x32xf32>
    %310 = arith.subf %295, %309 : vector<12x32xf32>
    %cst_125 = arith.constant 9.99999974E-6 : f32
    %311 = vector.broadcast %cst_125 : f32 to vector<12x1xf32>
    %312 = arith.addf %308, %311 : vector<12x1xf32>
    %313 = math.rsqrt %312 : vector<12x1xf32>
    %314 = vector.broadcast %313 : vector<12x1xf32> to vector<12x32xf32>
    %315 = arith.mulf %310, %314 : vector<12x32xf32>
    %316 = vector.broadcast %296 : vector<1x32xf32> to vector<12x32xf32>
    %317 = arith.mulf %315, %316 : vector<12x32xf32>
    %318 = vector.broadcast %297 : vector<1x32xf32> to vector<12x32xf32>
    %319 = arith.addf %317, %318 : vector<12x32xf32>
    %c0_126 = arith.constant 0 : index
    %c0_127 = arith.constant 0 : index
    %320 = vector.load %arg12[%c0_126, %c0_127] : memref<2x32xf32, #tpu.memory_space<vmem>>, vector<2x32xf32>
    %321 = vector.extract_strided_slice %320 {offsets = [0, 0], sizes = [1, 32], strides = [1, 1]} : vector<2x32xf32> to vector<1x32xf32>
    %322 = vector.extract_strided_slice %320 {offsets = [1, 0], sizes = [1, 32], strides = [1, 1]} : vector<2x32xf32> to vector<1x32xf32>
    %cst_128 = arith.constant dense<0.000000e+00> : vector<12xf32>
    %323 = vector.multi_reduction <add>, %319, %cst_128 [1] : vector<12x32xf32> to vector<12xf32>
    %324 = vector.shape_cast %323 : vector<12xf32> to vector<12x1xf32>
    %cst_129 = arith.constant 3.200000e+01 : f32
    %325 = vector.broadcast %cst_129 : f32 to vector<12x1xf32>
    %326 = arith.divf %324, %325 : vector<12x1xf32>
    %327 = vector.broadcast %326 : vector<12x1xf32> to vector<12x32xf32>
    %328 = arith.subf %319, %327 : vector<12x32xf32>
    %329 = arith.mulf %328, %328 : vector<12x32xf32>
    %cst_130 = arith.constant dense<0.000000e+00> : vector<12xf32>
    %330 = vector.multi_reduction <add>, %329, %cst_130 [1] : vector<12x32xf32> to vector<12xf32>
    %331 = vector.shape_cast %330 : vector<12xf32> to vector<12x1xf32>
    %cst_131 = arith.constant 3.200000e+01 : f32
    %332 = vector.broadcast %cst_131 : f32 to vector<12x1xf32>
    %333 = arith.divf %331, %332 : vector<12x1xf32>
    %334 = vector.broadcast %326 : vector<12x1xf32> to vector<12x32xf32>
    %335 = arith.subf %319, %334 : vector<12x32xf32>
    %cst_132 = arith.constant 9.99999974E-6 : f32
    %336 = vector.broadcast %cst_132 : f32 to vector<12x1xf32>
    %337 = arith.addf %333, %336 : vector<12x1xf32>
    %338 = math.rsqrt %337 : vector<12x1xf32>
    %339 = vector.broadcast %338 : vector<12x1xf32> to vector<12x32xf32>
    %340 = arith.mulf %335, %339 : vector<12x32xf32>
    %341 = vector.broadcast %321 : vector<1x32xf32> to vector<12x32xf32>
    %342 = arith.mulf %340, %341 : vector<12x32xf32>
    %343 = vector.broadcast %322 : vector<1x32xf32> to vector<12x32xf32>
    %344 = arith.addf %342, %343 : vector<12x32xf32>
    %c0_133 = arith.constant 0 : index
    %c0_134 = arith.constant 0 : index
    %345 = vector.load %arg13[%c0_133, %c0_134] : memref<32x4xf32, #tpu.memory_space<vmem>>, vector<32x4xf32>
    %cst_135 = arith.constant dense<0.000000e+00> : vector<12x4xf32>
    %346 = tpu.matmul %344, %345, %cst_135 {dimension_numbers = #tpu.dot_dimension_numbers<[1], [0], [0], [1], [0, 0, 1, 1], [], []>} : vector<12x32xf32>, vector<32x4xf32>, vector<12x4xf32> -> vector<12x4xf32>
    %c0_136 = arith.constant 0 : index
    %c0_137 = arith.constant 0 : index
    %347 = vector.load %arg14[%c0_136, %c0_137] : memref<1x4xf32, #tpu.memory_space<vmem>>, vector<1x4xf32>
    %348 = vector.broadcast %347 : vector<1x4xf32> to vector<12x4xf32>
    %349 = arith.addf %346, %348 : vector<12x4xf32>
    %c0_138 = arith.constant 0 : index
    %c0_139 = arith.constant 0 : index
    %350 = vector.load %arg15[%c0_138, %c0_139] : memref<12x4xf32, #tpu.memory_space<vmem>>, vector<12x4xf32>
    tpu.vector_store %arg15[%c0_138, %c0_139], %349 {strides = array<i32>} : memref<12x4xf32, #tpu.memory_space<vmem>>, vector<12x4xf32>,
    return
  }
}

</mosaic_0001>

<llo_original>
// kernel: tile.29
$region0: #{tile.29}
  %s0 = inlined_call_operand.vmem [shape: f32[6,2,32], index: 0, kind: input, shape index: {}]
  %s1 = inlined_call_operand.vmem [shape: f32[12,32], index: 1, kind: output, shape index: {}]
  $region1: #{tile.29} parent=0
    #allocation0 [shape = 'u8[24576]{0}', space=vmem, size = 0x6000, scoped, tag = 'scoped mem for input reshape']
    %s3 = sshll.u32 1, 2
    %s4 = ssub.s32 %s3, 1
    %s5 = smul.addr 2, 5
    %s6 = scalar_lea.vmem %s0, %s5
    %v7 = vld [vmem:[%s6] sm:%s4]
    %s8 = scalar_lea.vmem [#allocation0], 40
    %9 = vst [vmem:[%s8] sm:%s4] %v7
    %s10 = smul.addr 2, 4
    %s11 = scalar_lea.vmem %s0, %s10
    %v12 = vld [vmem:[%s11] sm:%s4]
    %s13 = scalar_lea.vmem [#allocation0], 32
    %14 = vst [vmem:[%s13] sm:%s4] %v12
    %s15 = smul.addr 2, 3
    %s16 = scalar_lea.vmem %s0, %s15
    %v17 = vld [vmem:[%s16] sm:%s4]
    %s18 = scalar_lea.vmem [#allocation0], 24
    %19 = vst [vmem:[%s18] sm:%s4] %v17
    %s20 = smul.addr 2, 2
    %s21 = scalar_lea.vmem %s0, %s20
    %v22 = vld [vmem:[%s21] sm:%s4]
    %s23 = scalar_lea.vmem [#allocation0], 16
    %24 = vst [vmem:[%s23] sm:%s4] %v22
    %s25 = scalar_lea.vmem %s0, 2
    %v26 = vld [vmem:[%s25] sm:%s4]
    %s27 = scalar_lea.vmem [#allocation0], 8
    %28 = vst [vmem:[%s27] sm:%s4] %v26
    %v29 = vld [vmem:[%s0] sm:%s4]
    %30 = vst [vmem:[#allocation0] sm:%s4] %v29
    %v31 = vld [vmem:[#allocation0] sm:$0x3]
    %vm32 = vcmask 261120
    %33 = vst.msk [vmem:[%s1] sm:$0x3] %vm32, %v31
    %s34 = scalar_lea.vmem [#allocation0], 8
    %v35 = vld [vmem:[%s34] sm:$0x3]
    %vm36 = vcmask 261120
    %s37 = scalar_lea.vmem %s1, 2
    %38 = vst.msk [vmem:[%s37] sm:$0x3] %vm36, %v35
    %s39 = scalar_lea.vmem [#allocation0], 16
    %v40 = vld [vmem:[%s39] sm:$0x3]
    %vm41 = vcmask 261120
    %s42 = scalar_lea.vmem %s1, 4
    %43 = vst.msk [vmem:[%s42] sm:$0x3] %vm41, %v40
    %s44 = scalar_lea.vmem [#allocation0], 24
    %v45 = vld [vmem:[%s44] sm:$0x3]
    %vm46 = vcmask 261120
    %s47 = scalar_lea.vmem %s1, 6
    %48 = vst.msk [vmem:[%s47] sm:$0x3] %vm46, %v45
    %s49 = scalar_lea.vmem [#allocation0], 32
    %v50 = vld [vmem:[%s49] sm:$0x3]
    %vm51 = vcmask 261120
    %s52 = scalar_lea.vmem %s1, 8
    %53 = vst.msk [vmem:[%s52] sm:$0x3] %vm51, %v50
    %s54 = scalar_lea.vmem [#allocation0], 40
    %v55 = vld [vmem:[%s54] sm:$0x3]
    %vm56 = vcmask 261120
    %s57 = scalar_lea.vmem %s1, 10
    %58 = vst.msk [vmem:[%s57] sm:$0x3] %vm56, %v55

// kernel: _lambda_.3
$region0: #{_lambda_.3}
  #allocation0 [shape = 'u32[]', space=smem, size = 0x4, offset = 0x4, fixed_abs, tag = 'smem constant byte address 0x4 - core index']
  #allocation1 [shape = 'u32[144,128]{1,0:T(1,128)}', space=vmem, size = 0x12000, scoped, tag = 'internal scratch']
  %s0 = inlined_call_operand.vmem [shape: f32[24,4], index: 0, kind: input, shape index: {}]
  %s1 = inlined_call_operand.vmem [shape: f32[4,32], index: 1, kind: input, shape index: {}]
  %s2 = inlined_call_operand.vmem [shape: f32[24,32], index: 2, kind: input, shape index: {}]
  %s3 = inlined_call_operand.vmem [shape: f32[24,24], index: 3, kind: input, shape index: {}]
  %s4 = inlined_call_operand.vmem [shape: f32[1,4,32,32], index: 4, kind: input, shape index: {}]
  %s5 = inlined_call_operand.vmem [shape: f32[1,32,64], index: 5, kind: input, shape index: {}]
  %s6 = inlined_call_operand.vmem [shape: f32[1,64,32], index: 6, kind: input, shape index: {}]
  %s7 = inlined_call_operand.vmem [shape: f32[1,9,32], index: 7, kind: input, shape index: {}]
  %s8 = inlined_call_operand.vmem [shape: f32[1,1,64], index: 8, kind: input, shape index: {}]
  %s9 = inlined_call_operand.vmem [shape: f32[2,32], index: 9, kind: input, shape index: {}]
  %s10 = inlined_call_operand.vmem [shape: f32[24,32], index: 10, kind: output, shape index: {}]
  %s11 = sld [smem:[#allocation0]]
  $region50: #{_lambda_.3} parent=0
    _
  %s13 = ssub.s32 1, %s11
  %s14 = scalar_select 0, %s13, %s11
  // Predicated region
  $region2: #{_lambda_.3} parent=0 // pred_check
    _
  $region3: #{_lambda_.3} parent=0 // pred_check_branch
    %16 = sbr.rel (0) target = $region5
  $region4: #{_lambda_.3} parent=0 // pred_region
    _
  $region5: #{_lambda_.3} parent=0 // pred_fallthru
    _
  // Predicated region
  $region6: #{_lambda_.3} parent=0 // pred_check
    _
  $region7: #{_lambda_.3} parent=0 // pred_check_branch
    %18 = sbr.rel (0) target = $region9
  $region8: #{_lambda_.3} parent=0 // pred_region
    _
  $region9: #{_lambda_.3} parent=0 // pred_fallthru
    _
  // Predicated region
  $region10: #{_lambda_.3} parent=0 // pred_check
    _
  $region11: #{_lambda_.3} parent=0 // pred_check_branch
    %20 = sbr.rel (0) target = $region13
  $region12: #{_lambda_.3} parent=0 // pred_region
    _
  $region13: #{_lambda_.3} parent=0 // pred_fallthru
    _
  // Predicated region
  $region14: #{_lambda_.3} parent=0 // pred_check
    _
  $region15: #{_lambda_.3} parent=0 // pred_check_branch
    %22 = sbr.rel (0) target = $region17
  $region16: #{_lambda_.3} parent=0 // pred_region
    _
  $region17: #{_lambda_.3} parent=0 // pred_fallthru
    _
  // Predicated region
  $region18: #{_lambda_.3} parent=0 // pred_check
    _
  $region19: #{_lambda_.3} parent=0 // pred_check_branch
    %24 = sbr.rel (0) target = $region21
  $region20: #{_lambda_.3} parent=0 // pred_region
    _
  $region21: #{_lambda_.3} parent=0 // pred_fallthru
    _
  // Predicated region
  $region22: #{_lambda_.3} parent=0 // pred_check
    _
  $region23: #{_lambda_.3} parent=0 // pred_check_branch
    %26 = sbr.rel (0) target = $region25
  $region24: #{_lambda_.3} parent=0 // pred_region
    _
  $region25: #{_lambda_.3} parent=0 // pred_fallthru
    _
  // Predicated region
  $region26: #{_lambda_.3} parent=0 // pred_check
    _
  $region27: #{_lambda_.3} parent=0 // pred_check_branch
    %28 = sbr.rel (0) target = $region29
  $region28: #{_lambda_.3} parent=0 // pred_region
    _
  $region29: #{_lambda_.3} parent=0 // pred_fallthru
    _
  // Predicated region
  $region30: #{_lambda_.3} parent=0 // pred_check
    _
  $region31: #{_lambda_.3} parent=0 // pred_check_branch
    %30 = sbr.rel (0) target = $region33
  $region32: #{_lambda_.3} parent=0 // pred_region
    _
  $region33: #{_lambda_.3} parent=0 // pred_fallthru
    _
  // Predicated region
  $region34: #{_lambda_.3} parent=0 // pred_check
    _
  $region35: #{_lambda_.3} parent=0 // pred_check_branch
    %32 = sbr.rel (0) target = $region37
  $region36: #{_lambda_.3} parent=0 // pred_region
    _
  $region37: #{_lambda_.3} parent=0 // pred_fallthru
    _
  // Predicated region
  $region38: #{_lambda_.3} parent=0 // pred_check
    _
  $region39: #{_lambda_.3} parent=0 // pred_check_branch
    %34 = sbr.rel (0) target = $region41
  $region40: #{_lambda_.3} parent=0 // pred_region
    _
  $region41: #{_lambda_.3} parent=0 // pred_fallthru
    _
  %v35 = vld [vmem:[%s0] sm:$0xff]
  %v36 = vld [vmem:[%s0 + $0x8] sm:$0xff]
  %v37 = vld [vmem:[%s0 + $0x10] sm:$0xff]
  %v38 = vld [vmem:[%s1] sm:$0xf]
  %v39 = vld [vmem:[%s2] sm:$0xff]
  %v40 = vld [vmem:[%s2 + $0x8] sm:$0xff]
  %v41 = vld [vmem:[%s2 + $0x10] sm:$0xff]
  %vm42 = vcmask 31744
  %v44 = vsel %vm42, %v35, 0
  %v47 = vsel %vm42, %v36, 0
  %v50 = vsel %vm42, %v37, 0
  %vm52 = vcmask 1043456
  %v54 = vsel %vm52, %v38, 0
  %56 = vmatprep.subr.mxu0 0.0
  %57 = vmatpush1.msra.mxu0 0.0
  %58 = vmatprep.subr.mxu0 0.0
  %59 = vmatpush1.msra.mxu0 0.0
  %60 = vmatprep.subr.mxu0 0.0
  %61 = vmatpush1.msra.mxu0 0.0
  %62 = vmatprep.subr.mxu0 0.0
  %63 = vmatpush1.msra.mxu0 0.0
  %64 = vmatprep.subr.mxu0 0.0
  %65 = vmatpush1.msra.mxu0 0.0
  %66 = vmatprep.subr.mxu0 0.0
  %67 = vmatpush1.msra.mxu0 0.0
  %68 = vmatprep.subr.mxu0 0.0
  %69 = vmatpush1.msra.mxu0 0.0
  %70 = vmatprep.subr.mxu0 0.0
  %71 = vmatpush1.msra.mxu0 0.0
  %72 = vmatprep.subr.mxu0 0.0
  %73 = vmatpush1.msra.mxu0 0.0
  %74 = vmatprep.subr.mxu0 0.0
  %75 = vmatpush1.msra.mxu0 0.0
  %76 = vmatprep.subr.mxu0 0.0
  %77 = vmatpush1.msra.mxu0 0.0
  %78 = vmatprep.subr.mxu0 0.0
  %79 = vmatpush1.msra.mxu0 0.0
  %80 = vmatprep.subr.mxu0 0.0
  %81 = vmatpush1.msra.mxu0 0.0
  %82 = vmatprep.subr.mxu0 0.0
  %83 = vmatpush1.msra.mxu0 0.0
  %84 = vmatprep.subr.mxu0 0.0
  %85 = vmatpush1.msra.mxu0 0.0
  %86 = vmatprep.subr.mxu0 0.0
  %87 = vmatpush1.msra.mxu0 %v54
  %88 = vmatprep.subr.mxu0 0.0
  %89 = vmatpush2.msra.mxu0 0.0
  %90 = vmatprep.subr.mxu0 0.0
  %91 = vmatpush2.msra.mxu0 0.0
  %92 = vmatprep.subr.mxu0 0.0
  %93 = vmatpush2.msra.mxu0 0.0
  %94 = vmatprep.subr.mxu0 0.0
  %95 = vmatpush2.msra.mxu0 0.0
  %96 = vmatprep.subr.mxu0 0.0
  %97 = vmatpush2.msra.mxu0 0.0
  %98 = vmatprep.subr.mxu0 0.0
  %99 = vmatpush2.msra.mxu0 0.0
  %100 = vmatprep.subr.mxu0 0.0
  %101 = vmatpush2.msra.mxu0 0.0
  %102 = vmatprep.subr.mxu0 0.0
  %103 = vmatpush2.msra.mxu0 0.0
  %104 = vmatprep.subr.mxu0 0.0
  %105 = vmatpush2.msra.mxu0 0.0
  %106 = vmatprep.subr.mxu0 0.0
  %107 = vmatpush2.msra.mxu0 0.0
  %108 = vmatprep.subr.mxu0 0.0
  %109 = vmatpush2.msra.mxu0 0.0
  %110 = vmatprep.subr.mxu0 0.0
  %111 = vmatpush2.msra.mxu0 0.0
  %112 = vmatprep.subr.mxu0 0.0
  %113 = vmatpush2.msra.mxu0 0.0
  %114 = vmatprep.subr.mxu0 0.0
  %115 = vmatpush2.msra.mxu0 0.0
  %116 = vmatprep.subr.mxu0 0.0
  %117 = vmatpush2.msra.mxu0 0.0
  %118 = vmatprep.subr.mxu0 0.0
  %119 = vmatpush2.msra.mxu0 0.0
  %120 = vmatprep.mubr.f32.mxu0 0.0
  %121 = vmatmul.mubr.f32.gmra.mxu0 %v44
  %v122 = vpop.f32.mrf.mxu0
  %v123 = vadd.f32 %v39, %v122
  %v124 = vpop.f32.mrf.mxu0
  %125 = vmatprep.mubr.f32.mxu0 0.0
  %126 = vmatmul.mubr.f32.gmra.mxu0 %v47
  %v127 = vpop.f32.mrf.mxu0
  %v128 = vadd.f32 %v40, %v127
  %v129 = vpop.f32.mrf.mxu0
  %130 = vmatprep.mubr.f32.mxu0 0.0
  %131 = vmatmul.mubr.f32.gmra.mxu0 %v50
  %v132 = vpop.f32.mrf.mxu0
  %v133 = vadd.f32 %v41, %v132
  %v134 = vpop.f32.mrf.mxu0
  %135 = vdwg.mxu0
  %v136 = vld [vmem:[%s3] sm:$0xff]
  %v137 = vld [vmem:[%s3 + $0x8] sm:$0xff]
  %v138 = vld [vmem:[%s3 + $0x10] sm:$0xff]
  %v139 = vld [vmem:[%s7] sm:$0xff]
  %v140 = vld [vmem:[%s7 + $0x8] sm:$0x1]
  %v141 = vld [vmem:[%s4] sm:$0xff]
  %v142 = vld [vmem:[%s4 + $0x8] sm:$0xff]
  %v143 = vld [vmem:[%s4 + $0x10] sm:$0xff]
  %v144 = vld [vmem:[%s4 + $0x18] sm:$0xff]
  %s145 = scalar_lea.vmem %s4, 32
  %v146 = vld [vmem:[%s145] sm:$0xff]
  %v147 = vld [vmem:[%s145 + $0x8] sm:$0xff]
  %v148 = vld [vmem:[%s145 + $0x10] sm:$0xff]
  %v149 = vld [vmem:[%s145 + $0x18] sm:$0xff]
  %s150 = scalar_lea.vmem %s4, 64
  %v151 = vld [vmem:[%s150] sm:$0xff]
  %v152 = vld [vmem:[%s150 + $0x8] sm:$0xff]
  %v153 = vld [vmem:[%s150 + $0x10] sm:$0xff]
  %v154 = vld [vmem:[%s150 + $0x18] sm:$0xff]
  %s155 = scalar_lea.vmem %s4, 96
  %v156 = vld [vmem:[%s155] sm:$0xff]
  %v157 = vld [vmem:[%s155 + $0x8] sm:$0xff]
  %v158 = vld [vmem:[%s155 + $0x10] sm:$0xff]
  %v159 = vld [vmem:[%s155 + $0x18] sm:$0xff]
  %v160 = vlaneseq
  %v161 = vshrl.u32 %v160, 7
  %v162 = vsub.s32 0, %v161
  %v163 = vrot.slane %v139, %v162
  %vm164 = vcmask 261120
  %v166 = vsel %vm164, %v123, 0
  %v169 = vsel %vm164, %v128, 0
  %v172 = vsel %vm164, %v133, 0
  %174 = vmatprep.subr.mxu0 0.0
  %175 = vmatpush1.msra.mxu0 0.0
  %176 = vmatprep.subr.mxu0 0.0
  %177 = vmatpush1.msra.mxu0 0.0
  %178 = vmatprep.subr.mxu0 0.0
  %179 = vmatpush1.msra.mxu0 0.0
  %180 = vmatprep.subr.mxu0 0.0
  %181 = vmatpush1.msra.mxu0 0.0
  %182 = vmatprep.subr.mxu0 0.0
  %183 = vmatpush1.msra.mxu0 0.0
  %184 = vmatprep.subr.mxu0 0.0
  %185 = vmatpush1.msra.mxu0 0.0
  %186 = vmatprep.subr.mxu0 0.0
  %187 = vmatpush1.msra.mxu0 0.0
  %188 = vmatprep.subr.mxu0 0.0
  %189 = vmatpush1.msra.mxu0 0.0
  %190 = vmatprep.subr.mxu0 0.0
  %191 = vmatpush1.msra.mxu0 0.0
  %192 = vmatprep.subr.mxu0 0.0
  %193 = vmatpush1.msra.mxu0 0.0
  %194 = vmatprep.subr.mxu0 0.0
  %195 = vmatpush1.msra.mxu0 0.0
  %196 = vmatprep.subr.mxu0 0.0
  %197 = vmatpush1.msra.mxu0 0.0
  %198 = vmatprep.subr.mxu0 0.0
  %199 = vmatpush1.msra.mxu0 %v144
  %200 = vmatprep.subr.mxu0 0.0
  %201 = vmatpush1.msra.mxu0 %v143
  %202 = vmatprep.subr.mxu0 0.0
  %203 = vmatpush1.msra.mxu0 %v142
  %204 = vmatprep.subr.mxu0 0.0
  %205 = vmatpush1.msra.mxu0 %v141
  %206 = vmatprep.subr.mxu0 0.0
  %207 = vmatpush2.msra.mxu0 0.0
  %208 = vmatprep.subr.mxu0 0.0
  %209 = vmatpush2.msra.mxu0 0.0
  %210 = vmatprep.subr.mxu0 0.0
  %211 = vmatpush2.msra.mxu0 0.0
  %212 = vmatprep.subr.mxu0 0.0
  %213 = vmatpush2.msra.mxu0 0.0
  %214 = vmatprep.subr.mxu0 0.0
  %215 = vmatpush2.msra.mxu0 0.0
  %216 = vmatprep.subr.mxu0 0.0
  %217 = vmatpush2.msra.mxu0 0.0
  %218 = vmatprep.subr.mxu0 0.0
  %219 = vmatpush2.msra.mxu0 0.0
  %220 = vmatprep.subr.mxu0 0.0
  %221 = vmatpush2.msra.mxu0 0.0
  %222 = vmatprep.subr.mxu0 0.0
  %223 = vmatpush2.msra.mxu0 0.0
  %224 = vmatprep.subr.mxu0 0.0
  %225 = vmatpush2.msra.mxu0 0.0
  %226 = vmatprep.subr.mxu0 0.0
  %227 = vmatpush2.msra.mxu0 0.0
  %228 = vmatprep.subr.mxu0 0.0
  %229 = vmatpush2.msra.mxu0 0.0
  %230 = vmatprep.subr.mxu0 0.0
  %231 = vmatpush2.msra.mxu0 0.0
  %232 = vmatprep.subr.mxu0 0.0
  %233 = vmatpush2.msra.mxu0 0.0
  %234 = vmatprep.subr.mxu0 0.0
  %235 = vmatpush2.msra.mxu0 0.0
  %236 = vmatprep.subr.mxu0 0.0
  %237 = vmatpush2.msra.mxu0 0.0
  %238 = vmatprep.mubr.f32.mxu0 0.0
  %239 = vmatmul.mubr.f32.gmra.mxu0 %v166
  %v240 = vpop.f32.mrf.mxu0
  %v241 = vadd.f32 %v163, %v240
  %v242 = vpop.f32.mrf.mxu0
  %243 = vmatprep.mubr.f32.mxu0 0.0
  %244 = vmatmul.mubr.f32.gmra.mxu0 %v169
  %v245 = vpop.f32.mrf.mxu0
  %v246 = vadd.f32 %v163, %v245
  %v247 = vpop.f32.mrf.mxu0
  %248 = vmatprep.mubr.f32.mxu0 0.0
  %249 = vmatmul.mubr.f32.gmra.mxu0 %v172
  %v250 = vpop.f32.mrf.mxu0
  %v251 = vadd.f32 %v163, %v250
  %v252 = vpop.f32.mrf.mxu0
  %253 = vdwg.mxu0
  %v254 = vlaneseq
  %v255 = vshrl.u32 %v254, 7
  %v256 = vsub.s32 1, %v255
  %v257 = vrot.slane %v139, %v256
  %258 = vmatprep.subr.mxu0 0.0
  %259 = vmatpush1.msra.mxu0 0.0
  %260 = vmatprep.subr.mxu0 0.0
  %261 = vmatpush1.msra.mxu0 0.0
  %262 = vmatprep.subr.mxu0 0.0
  %263 = vmatpush1.msra.mxu0 0.0
  %264 = vmatprep.subr.mxu0 0.0
  %265 = vmatpush1.msra.mxu0 0.0
  %266 = vmatprep.subr.mxu0 0.0
  %267 = vmatpush1.msra.mxu0 0.0
  %268 = vmatprep.subr.mxu0 0.0
  %269 = vmatpush1.msra.mxu0 0.0
  %270 = vmatprep.subr.mxu0 0.0
  %271 = vmatpush1.msra.mxu0 0.0
  %272 = vmatprep.subr.mxu0 0.0
  %273 = vmatpush1.msra.mxu0 0.0
  %274 = vmatprep.subr.mxu0 0.0
  %275 = vmatpush1.msra.mxu0 0.0
  %276 = vmatprep.subr.mxu0 0.0
  %277 = vmatpush1.msra.mxu0 0.0
  %278 = vmatprep.subr.mxu0 0.0
  %279 = vmatpush1.msra.mxu0 0.0
  %280 = vmatprep.subr.mxu0 0.0
  %281 = vmatpush1.msra.mxu0 0.0
  %282 = vmatprep.subr.mxu0 0.0
  %283 = vmatpush1.msra.mxu0 %v149
  %284 = vmatprep.subr.mxu0 0.0
  %285 = vmatpush1.msra.mxu0 %v148
  %286 = vmatprep.subr.mxu0 0.0
  %287 = vmatpush1.msra.mxu0 %v147
  %288 = vmatprep.subr.mxu0 0.0
  %289 = vmatpush1.msra.mxu0 %v146
  %290 = vmatprep.subr.mxu0 0.0
  %291 = vmatpush2.msra.mxu0 0.0
  %292 = vmatprep.subr.mxu0 0.0
  %293 = vmatpush2.msra.mxu0 0.0
  %294 = vmatprep.subr.mxu0 0.0
  %295 = vmatpush2.msra.mxu0 0.0
  %296 = vmatprep.subr.mxu0 0.0
  %297 = vmatpush2.msra.mxu0 0.0
  %298 = vmatprep.subr.mxu0 0.0
  %299 = vmatpush2.msra.mxu0 0.0
  %300 = vmatprep.subr.mxu0 0.0
  %301 = vmatpush2.msra.mxu0 0.0
  %302 = vmatprep.subr.mxu0 0.0
  %303 = vmatpush2.msra.mxu0 0.0
  %304 = vmatprep.subr.mxu0 0.0
  %305 = vmatpush2.msra.mxu0 0.0
  %306 = vmatprep.subr.mxu0 0.0
  %307 = vmatpush2.msra.mxu0 0.0
  %308 = vmatprep.subr.mxu0 0.0
  %309 = vmatpush2.msra.mxu0 0.0
  %310 = vmatprep.subr.mxu0 0.0
  %311 = vmatpush2.msra.mxu0 0.0
  %312 = vmatprep.subr.mxu0 0.0
  %313 = vmatpush2.msra.mxu0 0.0
  %314 = vmatprep.subr.mxu0 0.0
  %315 = vmatpush2.msra.mxu0 0.0
  %316 = vmatprep.subr.mxu0 0.0
  %317 = vmatpush2.msra.mxu0 0.0
  %318 = vmatprep.subr.mxu0 0.0
  %319 = vmatpush2.msra.mxu0 0.0
  %320 = vmatprep.subr.mxu0 0.0
  %321 = vmatpush2.msra.mxu0 0.0
  %322 = vmatprep.mubr.f32.mxu0 0.0
  %323 = vmatmul.mubr.f32.gmra.mxu0 %v166
  %v324 = vpop.f32.mrf.mxu0
  %v325 = vadd.f32 %v257, %v324
  %v326 = vpop.f32.mrf.mxu0
  %327 = vmatprep.mubr.f32.mxu0 0.0
  %328 = vmatmul.mubr.f32.gmra.mxu0 %v169
  %v329 = vpop.f32.mrf.mxu0
  %v330 = vadd.f32 %v257, %v329
  %v331 = vpop.f32.mrf.mxu0
  %332 = vmatprep.mubr.f32.mxu0 0.0
  %333 = vmatmul.mubr.f32.gmra.mxu0 %v172
  %v334 = vpop.f32.mrf.mxu0
  %v335 = vadd.f32 %v257, %v334
  %v336 = vpop.f32.mrf.mxu0
  %337 = vdwg.mxu0
  %v338 = vlaneseq
  %v339 = vshrl.u32 %v338, 7
  %v340 = vsub.s32 2, %v339
  %v341 = vrot.slane %v139, %v340
  %342 = vmatprep.subr.mxu0 0.0
  %343 = vmatpush1.msra.mxu0 0.0
  %344 = vmatprep.subr.mxu0 0.0
  %345 = vmatpush1.msra.mxu0 0.0
  %346 = vmatprep.subr.mxu0 0.0
  %347 = vmatpush1.msra.mxu0 0.0
  %348 = vmatprep.subr.mxu0 0.0
  %349 = vmatpush1.msra.mxu0 0.0
  %350 = vmatprep.subr.mxu0 0.0
  %351 = vmatpush1.msra.mxu0 0.0
  %352 = vmatprep.subr.mxu0 0.0
  %353 = vmatpush1.msra.mxu0 0.0
  %354 = vmatprep.subr.mxu0 0.0
  %355 = vmatpush1.msra.mxu0 0.0
  %356 = vmatprep.subr.mxu0 0.0
  %357 = vmatpush1.msra.mxu0 0.0
  %358 = vmatprep.subr.mxu0 0.0
  %359 = vmatpush1.msra.mxu0 0.0
  %360 = vmatprep.subr.mxu0 0.0
  %361 = vmatpush1.msra.mxu0 0.0
  %362 = vmatprep.subr.mxu0 0.0
  %363 = vmatpush1.msra.mxu0 0.0
  %364 = vmatprep.subr.mxu0 0.0
  %365 = vmatpush1.msra.mxu0 0.0
  %366 = vmatprep.subr.mxu0 0.0
  %367 = vmatpush1.msra.mxu0 %v154
  %368 = vmatprep.subr.mxu0 0.0
  %369 = vmatpush1.msra.mxu0 %v153
  %370 = vmatprep.subr.mxu0 0.0
  %371 = vmatpush1.msra.mxu0 %v152
  %372 = vmatprep.subr.mxu0 0.0
  %373 = vmatpush1.msra.mxu0 %v151
  %374 = vmatprep.subr.mxu0 0.0
  %375 = vmatpush2.msra.mxu0 0.0
  %376 = vmatprep.subr.mxu0 0.0
  %377 = vmatpush2.msra.mxu0 0.0
  %378 = vmatprep.subr.mxu0 0.0
  %379 = vmatpush2.msra.mxu0 0.0
  %380 = vmatprep.subr.mxu0 0.0
  %381 = vmatpush2.msra.mxu0 0.0
  %382 = vmatprep.subr.mxu0 0.0
  %383 = vmatpush2.msra.mxu0 0.0
  %384 = vmatprep.subr.mxu0 0.0
  %385 = vmatpush2.msra.mxu0 0.0
  %386 = vmatprep.subr.mxu0 0.0
  %387 = vmatpush2.msra.mxu0 0.0
  %388 = vmatprep.subr.mxu0 0.0
  %389 = vmatpush2.msra.mxu0 0.0
  %390 = vmatprep.subr.mxu0 0.0
  %391 = vmatpush2.msra.mxu0 0.0
  %392 = vmatprep.subr.mxu0 0.0
  %393 = vmatpush2.msra.mxu0 0.0
  %394 = vmatprep.subr.mxu0 0.0
  %395 = vmatpush2.msra.mxu0 0.0
  %396 = vmatprep.subr.mxu0 0.0
  %397 = vmatpush2.msra.mxu0 0.0
  %398 = vmatprep.subr.mxu0 0.0
  %399 = vmatpush2.msra.mxu0 0.0
  %400 = vmatprep.subr.mxu0 0.0
  %401 = vmatpush2.msra.mxu0 0.0
  %402 = vmatprep.subr.mxu0 0.0
  %403 = vmatpush2.msra.mxu0 0.0
  %404 = vmatprep.subr.mxu0 0.0
  %405 = vmatpush2.msra.mxu0 0.0
  %406 = vmatprep.mubr.f32.mxu0 0.0
  %407 = vmatmul.mubr.f32.gmra.mxu0 %v166
  %v408 = vpop.f32.mrf.mxu0
  %v409 = vadd.f32 %v341, %v408
  %v410 = vpop.f32.mrf.mxu0
  %411 = vmatprep.mubr.f32.mxu0 0.0
  %412 = vmatmul.mubr.f32.gmra.mxu0 %v169
  %v413 = vpop.f32.mrf.mxu0
  %v414 = vadd.f32 %v341, %v413
  %v415 = vpop.f32.mrf.mxu0
  %416 = vmatprep.mubr.f32.mxu0 0.0
  %417 = vmatmul.mubr.f32.gmra.mxu0 %v172
  %v418 = vpop.f32.mrf.mxu0
  %v419 = vadd.f32 %v341, %v418
  %v420 = vpop.f32.mrf.mxu0
  %421 = vdwg.mxu0
  %v422 = vmul.f32 %v241, 0.35355338
  %v423 = vmul.f32 %v246, 0.35355338
  %v424 = vmul.f32 %v251, 0.35355338
  %vm425 = vcmask 64512
  %v427 = vsel %vm425, %v422, 0
  %v430 = vsel %vm425, %v423, 0
  %v433 = vsel %vm425, %v424, 0
  %v436 = vsel %vm425, %v325, 0
  %v439 = vsel %vm425, %v330, 0
  %v442 = vsel %vm425, %v335, 0
  %444 = vmatprep.subr.mxu0 0.0
  %445 = vmatpush1.xpose.msra.mxu0 0.0
  %446 = vmatprep.subr.mxu0 0.0
  %447 = vmatpush1.xpose.msra.mxu0 0.0
  %448 = vmatprep.subr.mxu0 0.0
  %449 = vmatpush1.xpose.msra.mxu0 0.0
  %450 = vmatprep.subr.mxu0 0.0
  %451 = vmatpush1.xpose.msra.mxu0 0.0
  %452 = vmatprep.subr.mxu0 0.0
  %453 = vmatpush1.xpose.msra.mxu0 0.0
  %454 = vmatprep.subr.mxu0 0.0
  %455 = vmatpush1.xpose.msra.mxu0 0.0
  %456 = vmatprep.subr.mxu0 0.0
  %457 = vmatpush1.xpose.msra.mxu0 0.0
  %458 = vmatprep.subr.mxu0 0.0
  %459 = vmatpush1.xpose.msra.mxu0 0.0
  %460 = vmatprep.subr.mxu0 0.0
  %461 = vmatpush1.xpose.msra.mxu0 0.0
  %462 = vmatprep.subr.mxu0 0.0
  %463 = vmatpush1.xpose.msra.mxu0 0.0
  %464 = vmatprep.subr.mxu0 0.0
  %465 = vmatpush1.xpose.msra.mxu0 0.0
  %466 = vmatprep.subr.mxu0 0.0
  %467 = vmatpush1.xpose.msra.mxu0 0.0
  %468 = vmatprep.subr.mxu0 0.0
  %469 = vmatpush1.xpose.msra.mxu0 0.0
  %470 = vmatprep.subr.mxu0 0.0
  %471 = vmatpush1.xpose.msra.mxu0 %v442
  %472 = vmatprep.subr.mxu0 0.0
  %473 = vmatpush1.xpose.msra.mxu0 %v439
  %474 = vmatprep.subr.mxu0 0.0
  %475 = vmatpush1.xpose.msra.mxu0 %v436
  %476 = vmatprep.subr.mxu0 0.0
  %477 = vmatpush2.xpose.msra.mxu0 0.0
  %478 = vmatprep.subr.mxu0 0.0
  %479 = vmatpush2.xpose.msra.mxu0 0.0
  %480 = vmatprep.subr.mxu0 0.0
  %481 = vmatpush2.xpose.msra.mxu0 0.0
  %482 = vmatprep.subr.mxu0 0.0
  %483 = vmatpush2.xpose.msra.mxu0 0.0
  %484 = vmatprep.subr.mxu0 0.0
  %485 = vmatpush2.xpose.msra.mxu0 0.0
  %486 = vmatprep.subr.mxu0 0.0
  %487 = vmatpush2.xpose.msra.mxu0 0.0
  %488 = vmatprep.subr.mxu0 0.0
  %489 = vmatpush2.xpose.msra.mxu0 0.0
  %490 = vmatprep.subr.mxu0 0.0
  %491 = vmatpush2.xpose.msra.mxu0 0.0
  %492 = vmatprep.subr.mxu0 0.0
  %493 = vmatpush2.xpose.msra.mxu0 0.0
  %494 = vmatprep.subr.mxu0 0.0
  %495 = vmatpush2.xpose.msra.mxu0 0.0
  %496 = vmatprep.subr.mxu0 0.0
  %497 = vmatpush2.xpose.msra.mxu0 0.0
  %498 = vmatprep.subr.mxu0 0.0
  %499 = vmatpush2.xpose.msra.mxu0 0.0
  %500 = vmatprep.subr.mxu0 0.0
  %501 = vmatpush2.xpose.msra.mxu0 0.0
  %502 = vmatprep.subr.mxu0 0.0
  %503 = vmatpush2.xpose.msra.mxu0 0.0
  %504 = vmatprep.subr.mxu0 0.0
  %505 = vmatpush2.xpose.msra.mxu0 0.0
  %506 = vmatprep.subr.mxu0 0.0
  %507 = vmatpush2.xpose.msra.mxu0 0.0
  %508 = vmatprep.mubr.f32.mxu0 0.0
  %509 = vmatmul.mubr.f32.gmra.mxu0 %v427
  %v510 = vpop.f32.mrf.mxu0
  %v511 = vadd.f32 %v136, %v510
  %v512 = vpop.f32.mrf.mxu0
  %513 = vmatprep.mubr.f32.mxu0 0.0
  %514 = vmatmul.mubr.f32.gmra.mxu0 %v430
  %v515 = vpop.f32.mrf.mxu0
  %v516 = vadd.f32 %v137, %v515
  %v517 = vpop.f32.mrf.mxu0
  %518 = vmatprep.mubr.f32.mxu0 0.0
  %519 = vmatmul.mubr.f32.gmra.mxu0 %v433
  %v520 = vpop.f32.mrf.mxu0
  %v521 = vadd.f32 %v138, %v520
  %v522 = vpop.f32.mrf.mxu0
  %523 = vdwg.mxu0
  %vm524 = vcmask 195584
  %v525 = vsel %vm524, %v511, -inf
  %526 = vmax.xlane.f32.xlu0 %v525
  %v527 = vpop.xlane.xlu0 %526
  %v528 = vsel %vm524, %v516, -inf
  %529 = vmax.xlane.f32.xlu0 %v528
  %v530 = vpop.xlane.xlu0 %529
  %v531 = vsel %vm524, %v521, -inf
  %532 = vmax.xlane.f32.xlu0 %v531
  %v533 = vpop.xlane.xlu0 %532
  %v534 = vsub.f32 %v511, %v527
  %v535 = vsub.f32 %v516, %v530
  %v536 = vsub.f32 %v521, %v533
  %v537 = vmul.f32 %v534, 1.442695
  %v538 = vpow.pop %v537
  %v539 = vmul.f32 %v535, 1.442695
  %v540 = vpow.pop %v539
  %v541 = vmul.f32 %v536, 1.442695
  %v542 = vpow.pop %v541
  %v543 = vsel %vm524, %v538, 0.0
  %544 = vadd.xlane.f32.xlu0 %v543
  %v545 = vpop.xlane.xlu0 %544
  %v546 = vsel %vm524, %v540, 0.0
  %547 = vadd.xlane.f32.xlu0 %v546
  %v548 = vpop.xlane.xlu0 %547
  %v549 = vsel %vm524, %v542, 0.0
  %550 = vadd.xlane.f32.xlu0 %v549
  %v551 = vpop.xlane.xlu0 %550
  %v552 = vrcp.pop %v545
  %v553 = vrcp.pop %v548
  %v554 = vrcp.pop %v551
  %v555 = vmul.f32 %v538, %v552
  %v556 = vmul.f32 %v540, %v553
  %v557 = vmul.f32 %v542, %v554
  %v559 = vsel %vm524, %v555, 0
  %v562 = vsel %vm524, %v556, 0
  %v565 = vsel %vm524, %v557, 0
  %567 = vmatprep.subr.mxu0 0.0
  %568 = vmatpush1.msra.mxu0 0.0
  %569 = vmatprep.subr.mxu0 0.0
  %570 = vmatpush1.msra.mxu0 0.0
  %571 = vmatprep.subr.mxu0 0.0
  %572 = vmatpush1.msra.mxu0 0.0
  %573 = vmatprep.subr.mxu0 0.0
  %574 = vmatpush1.msra.mxu0 0.0
  %575 = vmatprep.subr.mxu0 0.0
  %576 = vmatpush1.msra.mxu0 0.0
  %577 = vmatprep.subr.mxu0 0.0
  %578 = vmatpush1.msra.mxu0 0.0
  %579 = vmatprep.subr.mxu0 0.0
  %580 = vmatpush1.msra.mxu0 0.0
  %581 = vmatprep.subr.mxu0 0.0
  %582 = vmatpush1.msra.mxu0 0.0
  %583 = vmatprep.subr.mxu0 0.0
  %584 = vmatpush1.msra.mxu0 0.0
  %585 = vmatprep.subr.mxu0 0.0
  %586 = vmatpush1.msra.mxu0 0.0
  %587 = vmatprep.subr.mxu0 0.0
  %588 = vmatpush1.msra.mxu0 0.0
  %589 = vmatprep.subr.mxu0 0.0
  %590 = vmatpush1.msra.mxu0 0.0
  %591 = vmatprep.subr.mxu0 0.0
  %592 = vmatpush1.msra.mxu0 0.0
  %593 = vmatprep.subr.mxu0 0.0
  %594 = vmatpush1.msra.mxu0 %v419
  %595 = vmatprep.subr.mxu0 0.0
  %596 = vmatpush1.msra.mxu0 %v414
  %597 = vmatprep.subr.mxu0 0.0
  %598 = vmatpush1.msra.mxu0 %v409
  %599 = vmatprep.subr.mxu0 0.0
  %600 = vmatpush2.msra.mxu0 0.0
  %601 = vmatprep.subr.mxu0 0.0
  %602 = vmatpush2.msra.mxu0 0.0
  %603 = vmatprep.subr.mxu0 0.0
  %604 = vmatpush2.msra.mxu0 0.0
  %605 = vmatprep.subr.mxu0 0.0
  %606 = vmatpush2.msra.mxu0 0.0
  %607 = vmatprep.subr.mxu0 0.0
  %608 = vmatpush2.msra.mxu0 0.0
  %609 = vmatprep.subr.mxu0 0.0
  %610 = vmatpush2.msra.mxu0 0.0
  %611 = vmatprep.subr.mxu0 0.0
  %612 = vmatpush2.msra.mxu0 0.0
  %613 = vmatprep.subr.mxu0 0.0
  %614 = vmatpush2.msra.mxu0 0.0
  %615 = vmatprep.subr.mxu0 0.0
  %616 = vmatpush2.msra.mxu0 0.0
  %617 = vmatprep.subr.mxu0 0.0
  %618 = vmatpush2.msra.mxu0 0.0
  %619 = vmatprep.subr.mxu0 0.0
  %620 = vmatpush2.msra.mxu0 0.0
  %621 = vmatprep.subr.mxu0 0.0
  %622 = vmatpush2.msra.mxu0 0.0
  %623 = vmatprep.subr.mxu0 0.0
  %624 = vmatpush2.msra.mxu0 0.0
  %625 = vmatprep.subr.mxu0 0.0
  %626 = vmatpush2.msra.mxu0 0.0
  %627 = vmatprep.subr.mxu0 0.0
  %628 = vmatpush2.msra.mxu0 0.0
  %629 = vmatprep.subr.mxu0 0.0
  %630 = vmatpush2.msra.mxu0 0.0
  %631 = vmatprep.mubr.f32.mxu0 0.0
  %632 = vmatmul.mubr.f32.gmra.mxu0 %v559
  %v633 = vpop.f32.mrf.mxu0
  %v634 = vadd.f32 0.0, %v633
  %v635 = vpop.f32.mrf.mxu0
  %636 = vmatprep.mubr.f32.mxu0 0.0
  %637 = vmatmul.mubr.f32.gmra.mxu0 %v562
  %v638 = vpop.f32.mrf.mxu0
  %v639 = vadd.f32 0.0, %v638
  %v640 = vpop.f32.mrf.mxu0
  %641 = vmatprep.mubr.f32.mxu0 0.0
  %642 = vmatmul.mubr.f32.gmra.mxu0 %v565
  %v643 = vpop.f32.mrf.mxu0
  %v644 = vadd.f32 0.0, %v643
  %v645 = vpop.f32.mrf.mxu0
  %646 = vdwg.mxu0
  %647 = vrot.lane.b32.xlu0 %v422, 120
  %v648 = vpop.permute.xlu0 %647
  %649 = vrot.lane.b32.xlu0 %v423, 120
  %v650 = vpop.permute.xlu0 %649
  %651 = vrot.lane.b32.xlu0 %v424, 120
  %v652 = vpop.permute.xlu0 %651
  %653 = vrot.lane.b32.xlu0 %v325, 120
  %v654 = vpop.permute.xlu0 %653
  %655 = vrot.lane.b32.xlu0 %v330, 120
  %v656 = vpop.permute.xlu0 %655
  %657 = vrot.lane.b32.xlu0 %v335, 120
  %v658 = vpop.permute.xlu0 %657
  %v659 = vsel %vm425, %v648, 0
  %v661 = vsel %vm425, %v650, 0
  %v663 = vsel %vm425, %v652, 0
  %v665 = vsel %vm425, %v654, 0
  %v667 = vsel %vm425, %v656, 0
  %v669 = vsel %vm425, %v658, 0
  %671 = vmatprep.subr.mxu0 0.0
  %672 = vmatpush1.xpose.msra.mxu0 0.0
  %673 = vmatprep.subr.mxu0 0.0
  %674 = vmatpush1.xpose.msra.mxu0 0.0
  %675 = vmatprep.subr.mxu0 0.0
  %676 = vmatpush1.xpose.msra.mxu0 0.0
  %677 = vmatprep.subr.mxu0 0.0
  %678 = vmatpush1.xpose.msra.mxu0 0.0
  %679 = vmatprep.subr.mxu0 0.0
  %680 = vmatpush1.xpose.msra.mxu0 0.0
  %681 = vmatprep.subr.mxu0 0.0
  %682 = vmatpush1.xpose.msra.mxu0 0.0
  %683 = vmatprep.subr.mxu0 0.0
  %684 = vmatpush1.xpose.msra.mxu0 0.0
  %685 = vmatprep.subr.mxu0 0.0
  %686 = vmatpush1.xpose.msra.mxu0 0.0
  %687 = vmatprep.subr.mxu0 0.0
  %688 = vmatpush1.xpose.msra.mxu0 0.0
  %689 = vmatprep.subr.mxu0 0.0
  %690 = vmatpush1.xpose.msra.mxu0 0.0
  %691 = vmatprep.subr.mxu0 0.0
  %692 = vmatpush1.xpose.msra.mxu0 0.0
  %693 = vmatprep.subr.mxu0 0.0
  %694 = vmatpush1.xpose.msra.mxu0 0.0
  %695 = vmatprep.subr.mxu0 0.0
  %696 = vmatpush1.xpose.msra.mxu0 0.0
  %697 = vmatprep.subr.mxu0 0.0
  %698 = vmatpush1.xpose.msra.mxu0 %v669
  %699 = vmatprep.subr.mxu0 0.0
  %700 = vmatpush1.xpose.msra.mxu0 %v667
  %701 = vmatprep.subr.mxu0 0.0
  %702 = vmatpush1.xpose.msra.mxu0 %v665
  %703 = vmatprep.subr.mxu0 0.0
  %704 = vmatpush2.xpose.msra.mxu0 0.0
  %705 = vmatprep.subr.mxu0 0.0
  %706 = vmatpush2.xpose.msra.mxu0 0.0
  %707 = vmatprep.subr.mxu0 0.0
  %708 = vmatpush2.xpose.msra.mxu0 0.0
  %709 = vmatprep.subr.mxu0 0.0
  %710 = vmatpush2.xpose.msra.mxu0 0.0
  %711 = vmatprep.subr.mxu0 0.0
  %712 = vmatpush2.xpose.msra.mxu0 0.0
  %713 = vmatprep.subr.mxu0 0.0
  %714 = vmatpush2.xpose.msra.mxu0 0.0
  %715 = vmatprep.subr.mxu0 0.0
  %716 = vmatpush2.xpose.msra.mxu0 0.0
  %717 = vmatprep.subr.mxu0 0.0
  %718 = vmatpush2.xpose.msra.mxu0 0.0
  %719 = vmatprep.subr.mxu0 0.0
  %720 = vmatpush2.xpose.msra.mxu0 0.0
  %721 = vmatprep.subr.mxu0 0.0
  %722 = vmatpush2.xpose.msra.mxu0 0.0
  %723 = vmatprep.subr.mxu0 0.0
  %724 = vmatpush2.xpose.msra.mxu0 0.0
  %725 = vmatprep.subr.mxu0 0.0
  %726 = vmatpush2.xpose.msra.mxu0 0.0
  %727 = vmatprep.subr.mxu0 0.0
  %728 = vmatpush2.xpose.msra.mxu0 0.0
  %729 = vmatprep.subr.mxu0 0.0
  %730 = vmatpush2.xpose.msra.mxu0 0.0
  %731 = vmatprep.subr.mxu0 0.0
  %732 = vmatpush2.xpose.msra.mxu0 0.0
  %733 = vmatprep.subr.mxu0 0.0
  %734 = vmatpush2.xpose.msra.mxu0 0.0
  %735 = vmatprep.mubr.f32.mxu0 0.0
  %736 = vmatmul.mubr.f32.gmra.mxu0 %v659
  %v737 = vpop.f32.mrf.mxu0
  %v738 = vadd.f32 %v136, %v737
  %v739 = vpop.f32.mrf.mxu0
  %740 = vmatprep.mubr.f32.mxu0 0.0
  %741 = vmatmul.mubr.f32.gmra.mxu0 %v661
  %v742 = vpop.f32.mrf.mxu0
  %v743 = vadd.f32 %v137, %v742
  %v744 = vpop.f32.mrf.mxu0
  %745 = vmatprep.mubr.f32.mxu0 0.0
  %746 = vmatmul.mubr.f32.gmra.mxu0 %v663
  %v747 = vpop.f32.mrf.mxu0
  %v748 = vadd.f32 %v138, %v747
  %v749 = vpop.f32.mrf.mxu0
  %750 = vdwg.mxu0
  %v751 = vsel %vm524, %v738, -inf
  %752 = vmax.xlane.f32.xlu0 %v751
  %v753 = vpop.xlane.xlu0 %752
  %v754 = vsel %vm524, %v743, -inf
  %755 = vmax.xlane.f32.xlu0 %v754
  %v756 = vpop.xlane.xlu0 %755
  %v757 = vsel %vm524, %v748, -inf
  %758 = vmax.xlane.f32.xlu0 %v757
  %v759 = vpop.xlane.xlu0 %758
  %v760 = vsub.f32 %v738, %v753
  %v761 = vsub.f32 %v743, %v756
  %v762 = vsub.f32 %v748, %v759
  %v763 = vmul.f32 %v760, 1.442695
  %v764 = vpow.pop %v763
  %v765 = vmul.f32 %v761, 1.442695
  %v766 = vpow.pop %v765
  %v767 = vmul.f32 %v762, 1.442695
  %v768 = vpow.pop %v767
  %v769 = vsel %vm524, %v764, 0.0
  %770 = vadd.xlane.f32.xlu0 %v769
  %v771 = vpop.xlane.xlu0 %770
  %v772 = vsel %vm524, %v766, 0.0
  %773 = vadd.xlane.f32.xlu0 %v772
  %v774 = vpop.xlane.xlu0 %773
  %v775 = vsel %vm524, %v768, 0.0
  %776 = vadd.xlane.f32.xlu0 %v775
  %v777 = vpop.xlane.xlu0 %776
  %v778 = vrcp.pop %v771
  %v779 = vrcp.pop %v774
  %v780 = vrcp.pop %v777
  %v781 = vmul.f32 %v764, %v778
  %v782 = vmul.f32 %v766, %v779
  %v783 = vmul.f32 %v768, %v780
  %787 = vrot.lane.b32.xlu0 %v409, 120
  %v788 = vpop.permute.xlu0 %787
  %789 = vrot.lane.b32.xlu0 %v414, 120
  %v790 = vpop.permute.xlu0 %789
  %791 = vrot.lane.b32.xlu0 %v419, 120
  %v792 = vpop.permute.xlu0 %791
  %v797 = vsel %vm524, %v781, 0
  %v800 = vsel %vm524, %v782, 0
  %v803 = vsel %vm524, %v783, 0
  %805 = vmatprep.subr.mxu0 0.0
  %806 = vmatpush1.msra.mxu0 0.0
  %807 = vmatprep.subr.mxu0 0.0
  %808 = vmatpush1.msra.mxu0 0.0
  %809 = vmatprep.subr.mxu0 0.0
  %810 = vmatpush1.msra.mxu0 0.0
  %811 = vmatprep.subr.mxu0 0.0
  %812 = vmatpush1.msra.mxu0 0.0
  %813 = vmatprep.subr.mxu0 0.0
  %814 = vmatpush1.msra.mxu0 0.0
  %815 = vmatprep.subr.mxu0 0.0
  %816 = vmatpush1.msra.mxu0 0.0
  %817 = vmatprep.subr.mxu0 0.0
  %818 = vmatpush1.msra.mxu0 0.0
  %819 = vmatprep.subr.mxu0 0.0
  %820 = vmatpush1.msra.mxu0 0.0
  %821 = vmatprep.subr.mxu0 0.0
  %822 = vmatpush1.msra.mxu0 0.0
  %823 = vmatprep.subr.mxu0 0.0
  %824 = vmatpush1.msra.mxu0 0.0
  %825 = vmatprep.subr.mxu0 0.0
  %826 = vmatpush1.msra.mxu0 0.0
  %827 = vmatprep.subr.mxu0 0.0
  %828 = vmatpush1.msra.mxu0 0.0
  %829 = vmatprep.subr.mxu0 0.0
  %830 = vmatpush1.msra.mxu0 0.0
  %831 = vmatprep.subr.mxu0 0.0
  %832 = vmatpush1.msra.mxu0 %v792
  %833 = vmatprep.subr.mxu0 0.0
  %834 = vmatpush1.msra.mxu0 %v790
  %835 = vmatprep.subr.mxu0 0.0
  %836 = vmatpush1.msra.mxu0 %v788
  %837 = vmatprep.subr.mxu0 0.0
  %838 = vmatpush2.msra.mxu0 0.0
  %839 = vmatprep.subr.mxu0 0.0
  %840 = vmatpush2.msra.mxu0 0.0
  %841 = vmatprep.subr.mxu0 0.0
  %842 = vmatpush2.msra.mxu0 0.0
  %843 = vmatprep.subr.mxu0 0.0
  %844 = vmatpush2.msra.mxu0 0.0
  %845 = vmatprep.subr.mxu0 0.0
  %846 = vmatpush2.msra.mxu0 0.0
  %847 = vmatprep.subr.mxu0 0.0
  %848 = vmatpush2.msra.mxu0 0.0
  %849 = vmatprep.subr.mxu0 0.0
  %850 = vmatpush2.msra.mxu0 0.0
  %851 = vmatprep.subr.mxu0 0.0
  %852 = vmatpush2.msra.mxu0 0.0
  %853 = vmatprep.subr.mxu0 0.0
  %854 = vmatpush2.msra.mxu0 0.0
  %855 = vmatprep.subr.mxu0 0.0
  %856 = vmatpush2.msra.mxu0 0.0
  %857 = vmatprep.subr.mxu0 0.0
  %858 = vmatpush2.msra.mxu0 0.0
  %859 = vmatprep.subr.mxu0 0.0
  %860 = vmatpush2.msra.mxu0 0.0
  %861 = vmatprep.subr.mxu0 0.0
  %862 = vmatpush2.msra.mxu0 0.0
  %863 = vmatprep.subr.mxu0 0.0
  %864 = vmatpush2.msra.mxu0 0.0
  %865 = vmatprep.subr.mxu0 0.0
  %866 = vmatpush2.msra.mxu0 0.0
  %867 = vmatprep.subr.mxu0 0.0
  %868 = vmatpush2.msra.mxu0 0.0
  %869 = vmatprep.mubr.f32.mxu0 0.0
  %870 = vmatmul.mubr.f32.gmra.mxu0 %v797
  %v871 = vpop.f32.mrf.mxu0
  %v872 = vadd.f32 0.0, %v871
  %v873 = vpop.f32.mrf.mxu0
  %874 = vmatprep.mubr.f32.mxu0 0.0
  %875 = vmatmul.mubr.f32.gmra.mxu0 %v800
  %v876 = vpop.f32.mrf.mxu0
  %v877 = vadd.f32 0.0, %v876
  %v878 = vpop.f32.mrf.mxu0
  %879 = vmatprep.mubr.f32.mxu0 0.0
  %880 = vmatmul.mubr.f32.gmra.mxu0 %v803
  %v881 = vpop.f32.mrf.mxu0
  %v882 = vadd.f32 0.0, %v881
  %v883 = vpop.f32.mrf.mxu0
  %884 = vdwg.mxu0
  %885 = vrot.lane.b32.xlu0 %v422, 112
  %v886 = vpop.permute.xlu0 %885
  %887 = vrot.lane.b32.xlu0 %v423, 112
  %v888 = vpop.permute.xlu0 %887
  %889 = vrot.lane.b32.xlu0 %v424, 112
  %v890 = vpop.permute.xlu0 %889
  %891 = vrot.lane.b32.xlu0 %v325, 112
  %v892 = vpop.permute.xlu0 %891
  %893 = vrot.lane.b32.xlu0 %v330, 112
  %v894 = vpop.permute.xlu0 %893
  %895 = vrot.lane.b32.xlu0 %v335, 112
  %v896 = vpop.permute.xlu0 %895
  %v897 = vsel %vm425, %v886, 0
  %v899 = vsel %vm425, %v888, 0
  %v901 = vsel %vm425, %v890, 0
  %v903 = vsel %vm425, %v892, 0
  %v905 = vsel %vm425, %v894, 0
  %v907 = vsel %vm425, %v896, 0
  %909 = vmatprep.subr.mxu0 0.0
  %910 = vmatpush1.xpose.msra.mxu0 0.0
  %911 = vmatprep.subr.mxu0 0.0
  %912 = vmatpush1.xpose.msra.mxu0 0.0
  %913 = vmatprep.subr.mxu0 0.0
  %914 = vmatpush1.xpose.msra.mxu0 0.0
  %915 = vmatprep.subr.mxu0 0.0
  %916 = vmatpush1.xpose.msra.mxu0 0.0
  %917 = vmatprep.subr.mxu0 0.0
  %918 = vmatpush1.xpose.msra.mxu0 0.0
  %919 = vmatprep.subr.mxu0 0.0
  %920 = vmatpush1.xpose.msra.mxu0 0.0
  %921 = vmatprep.subr.mxu0 0.0
  %922 = vmatpush1.xpose.msra.mxu0 0.0
  %923 = vmatprep.subr.mxu0 0.0
  %924 = vmatpush1.xpose.msra.mxu0 0.0
  %925 = vmatprep.subr.mxu0 0.0
  %926 = vmatpush1.xpose.msra.mxu0 0.0
  %927 = vmatprep.subr.mxu0 0.0
  %928 = vmatpush1.xpose.msra.mxu0 0.0
  %929 = vmatprep.subr.mxu0 0.0
  %930 = vmatpush1.xpose.msra.mxu0 0.0
  %931 = vmatprep.subr.mxu0 0.0
  %932 = vmatpush1.xpose.msra.mxu0 0.0
  %933 = vmatprep.subr.mxu0 0.0
  %934 = vmatpush1.xpose.msra.mxu0 0.0
  %935 = vmatprep.subr.mxu0 0.0
  %936 = vmatpush1.xpose.msra.mxu0 %v907
  %937 = vmatprep.subr.mxu0 0.0
  %938 = vmatpush1.xpose.msra.mxu0 %v905
  %939 = vmatprep.subr.mxu0 0.0
  %940 = vmatpush1.xpose.msra.mxu0 %v903
  %941 = vmatprep.subr.mxu0 0.0
  %942 = vmatpush2.xpose.msra.mxu0 0.0
  %943 = vmatprep.subr.mxu0 0.0
  %944 = vmatpush2.xpose.msra.mxu0 0.0
  %945 = vmatprep.subr.mxu0 0.0
  %946 = vmatpush2.xpose.msra.mxu0 0.0
  %947 = vmatprep.subr.mxu0 0.0
  %948 = vmatpush2.xpose.msra.mxu0 0.0
  %949 = vmatprep.subr.mxu0 0.0
  %950 = vmatpush2.xpose.msra.mxu0 0.0
  %951 = vmatprep.subr.mxu0 0.0
  %952 = vmatpush2.xpose.msra.mxu0 0.0
  %953 = vmatprep.subr.mxu0 0.0
  %954 = vmatpush2.xpose.msra.mxu0 0.0
  %955 = vmatprep.subr.mxu0 0.0
  %956 = vmatpush2.xpose.msra.mxu0 0.0
  %957 = vmatprep.subr.mxu0 0.0
  %958 = vmatpush2.xpose.msra.mxu0 0.0
  %959 = vmatprep.subr.mxu0 0.0
  %960 = vmatpush2.xpose.msra.mxu0 0.0
  %961 = vmatprep.subr.mxu0 0.0
  %962 = vmatpush2.xpose.msra.mxu0 0.0
  %963 = vmatprep.subr.mxu0 0.0
  %964 = vmatpush2.xpose.msra.mxu0 0.0
  %965 = vmatprep.subr.mxu0 0.0
  %966 = vmatpush2.xpose.msra.mxu0 0.0
  %967 = vmatprep.subr.mxu0 0.0
  %968 = vmatpush2.xpose.msra.mxu0 0.0
  %969 = vmatprep.subr.mxu0 0.0
  %970 = vmatpush2.xpose.msra.mxu0 0.0
  %971 = vmatprep.subr.mxu0 0.0
  %972 = vmatpush2.xpose.msra.mxu0 0.0
  %973 = vmatprep.mubr.f32.mxu0 0.0
  %974 = vmatmul.mubr.f32.gmra.mxu0 %v897
  %v975 = vpop.f32.mrf.mxu0
  %v976 = vadd.f32 %v136, %v975
  %v977 = vpop.f32.mrf.mxu0
  %978 = vmatprep.mubr.f32.mxu0 0.0
  %979 = vmatmul.mubr.f32.gmra.mxu0 %v899
  %v980 = vpop.f32.mrf.mxu0
  %v981 = vadd.f32 %v137, %v980
  %v982 = vpop.f32.mrf.mxu0
  %983 = vmatprep.mubr.f32.mxu0 0.0
  %984 = vmatmul.mubr.f32.gmra.mxu0 %v901
  %v985 = vpop.f32.mrf.mxu0
  %v986 = vadd.f32 %v138, %v985
  %v987 = vpop.f32.mrf.mxu0
  %988 = vdwg.mxu0
  %v989 = vsel %vm524, %v976, -inf
  %990 = vmax.xlane.f32.xlu0 %v989
  %v991 = vpop.xlane.xlu0 %990
  %v992 = vsel %vm524, %v981, -inf
  %993 = vmax.xlane.f32.xlu0 %v992
  %v994 = vpop.xlane.xlu0 %993
  %v995 = vsel %vm524, %v986, -inf
  %996 = vmax.xlane.f32.xlu0 %v995
  %v997 = vpop.xlane.xlu0 %996
  %v998 = vsub.f32 %v976, %v991
  %v999 = vsub.f32 %v981, %v994
  %v1000 = vsub.f32 %v986, %v997
  %v1001 = vmul.f32 %v998, 1.442695
  %v1002 = vpow.pop %v1001
  %v1003 = vmul.f32 %v999, 1.442695
  %v1004 = vpow.pop %v1003
  %v1005 = vmul.f32 %v1000, 1.442695
  %v1006 = vpow.pop %v1005
  %v1007 = vsel %vm524, %v1002, 0.0
  %1008 = vadd.xlane.f32.xlu0 %v1007
  %v1009 = vpop.xlane.xlu0 %1008
  %v1010 = vsel %vm524, %v1004, 0.0
  %1011 = vadd.xlane.f32.xlu0 %v1010
  %v1012 = vpop.xlane.xlu0 %1011
  %v1013 = vsel %vm524, %v1006, 0.0
  %1014 = vadd.xlane.f32.xlu0 %v1013
  %v1015 = vpop.xlane.xlu0 %1014
  %v1016 = vrcp.pop %v1009
  %v1017 = vrcp.pop %v1012
  %v1018 = vrcp.pop %v1015
  %v1019 = vmul.f32 %v1002, %v1016
  %v1020 = vmul.f32 %v1004, %v1017
  %v1021 = vmul.f32 %v1006, %v1018
  %1022 = vrot.lane.b32.xlu0 %v409, 112
  %v1023 = vpop.permute.xlu0 %1022
  %1024 = vrot.lane.b32.xlu0 %v414, 112
  %v1025 = vpop.permute.xlu0 %1024
  %1026 = vrot.lane.b32.xlu0 %v419, 112
  %v1027 = vpop.permute.xlu0 %1026
  %v1032 = vsel %vm524, %v1019, 0
  %v1035 = vsel %vm524, %v1020, 0
  %v1038 = vsel %vm524, %v1021, 0
  %1040 = vmatprep.subr.mxu0 0.0
  %1041 = vmatpush1.msra.mxu0 0.0
  %1042 = vmatprep.subr.mxu0 0.0
  %1043 = vmatpush1.msra.mxu0 0.0
  %1044 = vmatprep.subr.mxu0 0.0
  %1045 = vmatpush1.msra.mxu0 0.0
  %1046 = vmatprep.subr.mxu0 0.0
  %1047 = vmatpush1.msra.mxu0 0.0
  %1048 = vmatprep.subr.mxu0 0.0
  %1049 = vmatpush1.msra.mxu0 0.0
  %1050 = vmatprep.subr.mxu0 0.0
  %1051 = vmatpush1.msra.mxu0 0.0
  %1052 = vmatprep.subr.mxu0 0.0
  %1053 = vmatpush1.msra.mxu0 0.0
  %1054 = vmatprep.subr.mxu0 0.0
  %1055 = vmatpush1.msra.mxu0 0.0
  %1056 = vmatprep.subr.mxu0 0.0
  %1057 = vmatpush1.msra.mxu0 0.0
  %1058 = vmatprep.subr.mxu0 0.0
  %1059 = vmatpush1.msra.mxu0 0.0
  %1060 = vmatprep.subr.mxu0 0.0
  %1061 = vmatpush1.msra.mxu0 0.0
  %1062 = vmatprep.subr.mxu0 0.0
  %1063 = vmatpush1.msra.mxu0 0.0
  %1064 = vmatprep.subr.mxu0 0.0
  %1065 = vmatpush1.msra.mxu0 0.0
  %1066 = vmatprep.subr.mxu0 0.0
  %1067 = vmatpush1.msra.mxu0 %v1027
  %1068 = vmatprep.subr.mxu0 0.0
  %1069 = vmatpush1.msra.mxu0 %v1025
  %1070 = vmatprep.subr.mxu0 0.0
  %1071 = vmatpush1.msra.mxu0 %v1023
  %1072 = vmatprep.subr.mxu0 0.0
  %1073 = vmatpush2.msra.mxu0 0.0
  %1074 = vmatprep.subr.mxu0 0.0
  %1075 = vmatpush2.msra.mxu0 0.0
  %1076 = vmatprep.subr.mxu0 0.0
  %1077 = vmatpush2.msra.mxu0 0.0
  %1078 = vmatprep.subr.mxu0 0.0
  %1079 = vmatpush2.msra.mxu0 0.0
  %1080 = vmatprep.subr.mxu0 0.0
  %1081 = vmatpush2.msra.mxu0 0.0
  %1082 = vmatprep.subr.mxu0 0.0
  %1083 = vmatpush2.msra.mxu0 0.0
  %1084 = vmatprep.subr.mxu0 0.0
  %1085 = vmatpush2.msra.mxu0 0.0
  %1086 = vmatprep.subr.mxu0 0.0
  %1087 = vmatpush2.msra.mxu0 0.0
  %1088 = vmatprep.subr.mxu0 0.0
  %1089 = vmatpush2.msra.mxu0 0.0
  %1090 = vmatprep.subr.mxu0 0.0
  %1091 = vmatpush2.msra.mxu0 0.0
  %1092 = vmatprep.subr.mxu0 0.0
  %1093 = vmatpush2.msra.mxu0 0.0
  %1094 = vmatprep.subr.mxu0 0.0
  %1095 = vmatpush2.msra.mxu0 0.0
  %1096 = vmatprep.subr.mxu0 0.0
  %1097 = vmatpush2.msra.mxu0 0.0
  %1098 = vmatprep.subr.mxu0 0.0
  %1099 = vmatpush2.msra.mxu0 0.0
  %1100 = vmatprep.subr.mxu0 0.0
  %1101 = vmatpush2.msra.mxu0 0.0
  %1102 = vmatprep.subr.mxu0 0.0
  %1103 = vmatpush2.msra.mxu0 0.0
  %1104 = vmatprep.mubr.f32.mxu0 0.0
  %1105 = vmatmul.mubr.f32.gmra.mxu0 %v1032
  %v1106 = vpop.f32.mrf.mxu0
  %v1107 = vadd.f32 0.0, %v1106
  %v1108 = vpop.f32.mrf.mxu0
  %1109 = vmatprep.mubr.f32.mxu0 0.0
  %1110 = vmatmul.mubr.f32.gmra.mxu0 %v1035
  %v1111 = vpop.f32.mrf.mxu0
  %v1112 = vadd.f32 0.0, %v1111
  %v1113 = vpop.f32.mrf.mxu0
  %1114 = vmatprep.mubr.f32.mxu0 0.0
  %1115 = vmatmul.mubr.f32.gmra.mxu0 %v1038
  %v1116 = vpop.f32.mrf.mxu0
  %v1117 = vadd.f32 0.0, %v1116
  %v1118 = vpop.f32.mrf.mxu0
  %1119 = vdwg.mxu0
  %1120 = vrot.lane.b32.xlu0 %v422, 104
  %v1121 = vpop.permute.xlu0 %1120
  %1122 = vrot.lane.b32.xlu0 %v423, 104
  %v1123 = vpop.permute.xlu0 %1122
  %1124 = vrot.lane.b32.xlu0 %v424, 104
  %v1125 = vpop.permute.xlu0 %1124
  %1126 = vrot.lane.b32.xlu0 %v325, 104
  %v1127 = vpop.permute.xlu0 %1126
  %1128 = vrot.lane.b32.xlu0 %v330, 104
  %v1129 = vpop.permute.xlu0 %1128
  %1130 = vrot.lane.b32.xlu0 %v335, 104
  %v1131 = vpop.permute.xlu0 %1130
  %v1132 = vsel %vm425, %v1121, 0
  %v1134 = vsel %vm425, %v1123, 0
  %v1136 = vsel %vm425, %v1125, 0
  %v1138 = vsel %vm425, %v1127, 0
  %v1140 = vsel %vm425, %v1129, 0
  %v1142 = vsel %vm425, %v1131, 0
  %1144 = vmatprep.subr.mxu0 0.0
  %1145 = vmatpush1.xpose.msra.mxu0 0.0
  %1146 = vmatprep.subr.mxu0 0.0
  %1147 = vmatpush1.xpose.msra.mxu0 0.0
  %1148 = vmatprep.subr.mxu0 0.0
  %1149 = vmatpush1.xpose.msra.mxu0 0.0
  %1150 = vmatprep.subr.mxu0 0.0
  %1151 = vmatpush1.xpose.msra.mxu0 0.0
  %1152 = vmatprep.subr.mxu0 0.0
  %1153 = vmatpush1.xpose.msra.mxu0 0.0
  %1154 = vmatprep.subr.mxu0 0.0
  %1155 = vmatpush1.xpose.msra.mxu0 0.0
  %1156 = vmatprep.subr.mxu0 0.0
  %1157 = vmatpush1.xpose.msra.mxu0 0.0
  %1158 = vmatprep.subr.mxu0 0.0
  %1159 = vmatpush1.xpose.msra.mxu0 0.0
  %1160 = vmatprep.subr.mxu0 0.0
  %1161 = vmatpush1.xpose.msra.mxu0 0.0
  %1162 = vmatprep.subr.mxu0 0.0
  %1163 = vmatpush1.xpose.msra.mxu0 0.0
  %1164 = vmatprep.subr.mxu0 0.0
  %1165 = vmatpush1.xpose.msra.mxu0 0.0
  %1166 = vmatprep.subr.mxu0 0.0
  %1167 = vmatpush1.xpose.msra.mxu0 0.0
  %1168 = vmatprep.subr.mxu0 0.0
  %1169 = vmatpush1.xpose.msra.mxu0 0.0
  %1170 = vmatprep.subr.mxu0 0.0
  %1171 = vmatpush1.xpose.msra.mxu0 %v1142
  %1172 = vmatprep.subr.mxu0 0.0
  %1173 = vmatpush1.xpose.msra.mxu0 %v1140
  %1174 = vmatprep.subr.mxu0 0.0
  %1175 = vmatpush1.xpose.msra.mxu0 %v1138
  %1176 = vmatprep.subr.mxu0 0.0
  %1177 = vmatpush2.xpose.msra.mxu0 0.0
  %1178 = vmatprep.subr.mxu0 0.0
  %1179 = vmatpush2.xpose.msra.mxu0 0.0
  %1180 = vmatprep.subr.mxu0 0.0
  %1181 = vmatpush2.xpose.msra.mxu0 0.0
  %1182 = vmatprep.subr.mxu0 0.0
  %1183 = vmatpush2.xpose.msra.mxu0 0.0
  %1184 = vmatprep.subr.mxu0 0.0
  %1185 = vmatpush2.xpose.msra.mxu0 0.0
  %1186 = vmatprep.subr.mxu0 0.0
  %1187 = vmatpush2.xpose.msra.mxu0 0.0
  %1188 = vmatprep.subr.mxu0 0.0
  %1189 = vmatpush2.xpose.msra.mxu0 0.0
  %1190 = vmatprep.subr.mxu0 0.0
  %1191 = vmatpush2.xpose.msra.mxu0 0.0
  %1192 = vmatprep.subr.mxu0 0.0
  %1193 = vmatpush2.xpose.msra.mxu0 0.0
  %1194 = vmatprep.subr.mxu0 0.0
  %1195 = vmatpush2.xpose.msra.mxu0 0.0
  %1196 = vmatprep.subr.mxu0 0.0
  %1197 = vmatpush2.xpose.msra.mxu0 0.0
  %1198 = vmatprep.subr.mxu0 0.0
  %1199 = vmatpush2.xpose.msra.mxu0 0.0
  %1200 = vmatprep.subr.mxu0 0.0
  %1201 = vmatpush2.xpose.msra.mxu0 0.0
  %1202 = vmatprep.subr.mxu0 0.0
  %1203 = vmatpush2.xpose.msra.mxu0 0.0
  %1204 = vmatprep.subr.mxu0 0.0
  %1205 = vmatpush2.xpose.msra.mxu0 0.0
  %1206 = vmatprep.subr.mxu0 0.0
  %1207 = vmatpush2.xpose.msra.mxu0 0.0
  %1208 = vmatprep.mubr.f32.mxu0 0.0
  %1209 = vmatmul.mubr.f32.gmra.mxu0 %v1132
  %v1210 = vpop.f32.mrf.mxu0
  %v1211 = vadd.f32 %v136, %v1210
  %v1212 = vpop.f32.mrf.mxu0
  %1213 = vmatprep.mubr.f32.mxu0 0.0
  %1214 = vmatmul.mubr.f32.gmra.mxu0 %v1134
  %v1215 = vpop.f32.mrf.mxu0
  %v1216 = vadd.f32 %v137, %v1215
  %v1217 = vpop.f32.mrf.mxu0
  %1218 = vmatprep.mubr.f32.mxu0 0.0
  %1219 = vmatmul.mubr.f32.gmra.mxu0 %v1136
  %v1220 = vpop.f32.mrf.mxu0
  %v1221 = vadd.f32 %v138, %v1220
  %v1222 = vpop.f32.mrf.mxu0
  %1223 = vdwg.mxu0
  %v1224 = vsel %vm524, %v1211, -inf
  %1225 = vmax.xlane.f32.xlu0 %v1224
  %v1226 = vpop.xlane.xlu0 %1225
  %v1227 = vsel %vm524, %v1216, -inf
  %1228 = vmax.xlane.f32.xlu0 %v1227
  %v1229 = vpop.xlane.xlu0 %1228
  %v1230 = vsel %vm524, %v1221, -inf
  %1231 = vmax.xlane.f32.xlu0 %v1230
  %v1232 = vpop.xlane.xlu0 %1231
  %v1233 = vsub.f32 %v1211, %v1226
  %v1234 = vsub.f32 %v1216, %v1229
  %v1235 = vsub.f32 %v1221, %v1232
  %v1236 = vmul.f32 %v1233, 1.442695
  %v1237 = vpow.pop %v1236
  %v1238 = vmul.f32 %v1234, 1.442695
  %v1239 = vpow.pop %v1238
  %v1240 = vmul.f32 %v1235, 1.442695
  %v1241 = vpow.pop %v1240
  %v1242 = vsel %vm524, %v1237, 0.0
  %1243 = vadd.xlane.f32.xlu0 %v1242
  %v1244 = vpop.xlane.xlu0 %1243
  %v1245 = vsel %vm524, %v1239, 0.0
  %1246 = vadd.xlane.f32.xlu0 %v1245
  %v1247 = vpop.xlane.xlu0 %1246
  %v1248 = vsel %vm524, %v1241, 0.0
  %1249 = vadd.xlane.f32.xlu0 %v1248
  %v1250 = vpop.xlane.xlu0 %1249
  %v1251 = vrcp.pop %v1244
  %v1252 = vrcp.pop %v1247
  %v1253 = vrcp.pop %v1250
  %v1254 = vmul.f32 %v1237, %v1251
  %v1255 = vmul.f32 %v1239, %v1252
  %v1256 = vmul.f32 %v1241, %v1253
  %1257 = vrot.lane.b32.xlu0 %v409, 104
  %v1258 = vpop.permute.xlu0 %1257
  %1259 = vrot.lane.b32.xlu0 %v414, 104
  %v1260 = vpop.permute.xlu0 %1259
  %1261 = vrot.lane.b32.xlu0 %v419, 104
  %v1262 = vpop.permute.xlu0 %1261
  %v1267 = vsel %vm524, %v1254, 0
  %v1270 = vsel %vm524, %v1255, 0
  %v1273 = vsel %vm524, %v1256, 0
  %1275 = vmatprep.subr.mxu0 0.0
  %1276 = vmatpush1.msra.mxu0 0.0
  %1277 = vmatprep.subr.mxu0 0.0
  %1278 = vmatpush1.msra.mxu0 0.0
  %1279 = vmatprep.subr.mxu0 0.0
  %1280 = vmatpush1.msra.mxu0 0.0
  %1281 = vmatprep.subr.mxu0 0.0
  %1282 = vmatpush1.msra.mxu0 0.0
  %1283 = vmatprep.subr.mxu0 0.0
  %1284 = vmatpush1.msra.mxu0 0.0
  %1285 = vmatprep.subr.mxu0 0.0
  %1286 = vmatpush1.msra.mxu0 0.0
  %1287 = vmatprep.subr.mxu0 0.0
  %1288 = vmatpush1.msra.mxu0 0.0
  %1289 = vmatprep.subr.mxu0 0.0
  %1290 = vmatpush1.msra.mxu0 0.0
  %1291 = vmatprep.subr.mxu0 0.0
  %1292 = vmatpush1.msra.mxu0 0.0
  %1293 = vmatprep.subr.mxu0 0.0
  %1294 = vmatpush1.msra.mxu0 0.0
  %1295 = vmatprep.subr.mxu0 0.0
  %1296 = vmatpush1.msra.mxu0 0.0
  %1297 = vmatprep.subr.mxu0 0.0
  %1298 = vmatpush1.msra.mxu0 0.0
  %1299 = vmatprep.subr.mxu0 0.0
  %1300 = vmatpush1.msra.mxu0 0.0
  %1301 = vmatprep.subr.mxu0 0.0
  %1302 = vmatpush1.msra.mxu0 %v1262
  %1303 = vmatprep.subr.mxu0 0.0
  %1304 = vmatpush1.msra.mxu0 %v1260
  %1305 = vmatprep.subr.mxu0 0.0
  %1306 = vmatpush1.msra.mxu0 %v1258
  %1307 = vmatprep.subr.mxu0 0.0
  %1308 = vmatpush2.msra.mxu0 0.0
  %1309 = vmatprep.subr.mxu0 0.0
  %1310 = vmatpush2.msra.mxu0 0.0
  %1311 = vmatprep.subr.mxu0 0.0
  %1312 = vmatpush2.msra.mxu0 0.0
  %1313 = vmatprep.subr.mxu0 0.0
  %1314 = vmatpush2.msra.mxu0 0.0
  %1315 = vmatprep.subr.mxu0 0.0
  %1316 = vmatpush2.msra.mxu0 0.0
  %1317 = vmatprep.subr.mxu0 0.0
  %1318 = vmatpush2.msra.mxu0 0.0
  %1319 = vmatprep.subr.mxu0 0.0
  %1320 = vmatpush2.msra.mxu0 0.0
  %1321 = vmatprep.subr.mxu0 0.0
  %1322 = vmatpush2.msra.mxu0 0.0
  %1323 = vmatprep.subr.mxu0 0.0
  %1324 = vmatpush2.msra.mxu0 0.0
  %1325 = vmatprep.subr.mxu0 0.0
  %1326 = vmatpush2.msra.mxu0 0.0
  %1327 = vmatprep.subr.mxu0 0.0
  %1328 = vmatpush2.msra.mxu0 0.0
  %1329 = vmatprep.subr.mxu0 0.0
  %1330 = vmatpush2.msra.mxu0 0.0
  %1331 = vmatprep.subr.mxu0 0.0
  %1332 = vmatpush2.msra.mxu0 0.0
  %1333 = vmatprep.subr.mxu0 0.0
  %1334 = vmatpush2.msra.mxu0 0.0
  %1335 = vmatprep.subr.mxu0 0.0
  %1336 = vmatpush2.msra.mxu0 0.0
  %1337 = vmatprep.subr.mxu0 0.0
  %1338 = vmatpush2.msra.mxu0 0.0
  %1339 = vmatprep.mubr.f32.mxu0 0.0
  %1340 = vmatmul.mubr.f32.gmra.mxu0 %v1267
  %v1341 = vpop.f32.mrf.mxu0
  %v1342 = vadd.f32 0.0, %v1341
  %v1343 = vpop.f32.mrf.mxu0
  %1344 = vmatprep.mubr.f32.mxu0 0.0
  %1345 = vmatmul.mubr.f32.gmra.mxu0 %v1270
  %v1346 = vpop.f32.mrf.mxu0
  %v1347 = vadd.f32 0.0, %v1346
  %v1348 = vpop.f32.mrf.mxu0
  %1349 = vmatprep.mubr.f32.mxu0 0.0
  %1350 = vmatmul.mubr.f32.gmra.mxu0 %v1273
  %v1351 = vpop.f32.mrf.mxu0
  %v1352 = vadd.f32 0.0, %v1351
  %v1353 = vpop.f32.mrf.mxu0
  %1354 = vdwg.mxu0
  %1358 = vrot.lane.b32.xlu0 %v872, 8
  %v1359 = vpop.permute.xlu0 %1358
  %1360 = vrot.lane.b32.xlu0 %v877, 8
  %v1361 = vpop.permute.xlu0 %1360
  %1362 = vrot.lane.b32.xlu0 %v882, 8
  %v1363 = vpop.permute.xlu0 %1362
  %1370 = vrot.lane.b32.xlu0 %v1107, 16
  %v1371 = vpop.permute.xlu0 %1370
  %1372 = vrot.lane.b32.xlu0 %v1112, 16
  %v1373 = vpop.permute.xlu0 %1372
  %1374 = vrot.lane.b32.xlu0 %v1117, 16
  %v1375 = vpop.permute.xlu0 %1374
  %1382 = vrot.lane.b32.xlu0 %v1342, 24
  %v1383 = vpop.permute.xlu0 %1382
  %1384 = vrot.lane.b32.xlu0 %v1347, 24
  %v1385 = vpop.permute.xlu0 %1384
  %1386 = vrot.lane.b32.xlu0 %v1352, 24
  %v1387 = vpop.permute.xlu0 %1386
  %v1391 = vsel %vm425, %v634, %v1359
  %v1392 = vsel %vm425, %v639, %v1361
  %v1393 = vsel %vm425, %v644, %v1363
  %vm1394 = vcmask 130048
  %v1395 = vsel %vm1394, %v1391, %v1371
  %v1396 = vsel %vm1394, %v1392, %v1373
  %v1397 = vsel %vm1394, %v1393, %v1375
  %v1398 = vsel %vm524, %v1395, %v1383
  %v1399 = vsel %vm524, %v1396, %v1385
  %v1400 = vsel %vm524, %v1397, %v1387
  %v1401 = vlaneseq
  %v1402 = vshrl.u32 %v1401, 7
  %v1403 = vsub.s32 3, %v1402
  %v1404 = vrot.slane %v139, %v1403
  %v1406 = vsel %vm164, %v1398, 0
  %v1409 = vsel %vm164, %v1399, 0
  %v1412 = vsel %vm164, %v1400, 0
  %1414 = vmatprep.subr.mxu0 0.0
  %1415 = vmatpush1.msra.mxu0 0.0
  %1416 = vmatprep.subr.mxu0 0.0
  %1417 = vmatpush1.msra.mxu0 0.0
  %1418 = vmatprep.subr.mxu0 0.0
  %1419 = vmatpush1.msra.mxu0 0.0
  %1420 = vmatprep.subr.mxu0 0.0
  %1421 = vmatpush1.msra.mxu0 0.0
  %1422 = vmatprep.subr.mxu0 0.0
  %1423 = vmatpush1.msra.mxu0 0.0
  %1424 = vmatprep.subr.mxu0 0.0
  %1425 = vmatpush1.msra.mxu0 0.0
  %1426 = vmatprep.subr.mxu0 0.0
  %1427 = vmatpush1.msra.mxu0 0.0
  %1428 = vmatprep.subr.mxu0 0.0
  %1429 = vmatpush1.msra.mxu0 0.0
  %1430 = vmatprep.subr.mxu0 0.0
  %1431 = vmatpush1.msra.mxu0 0.0
  %1432 = vmatprep.subr.mxu0 0.0
  %1433 = vmatpush1.msra.mxu0 0.0
  %1434 = vmatprep.subr.mxu0 0.0
  %1435 = vmatpush1.msra.mxu0 0.0
  %1436 = vmatprep.subr.mxu0 0.0
  %1437 = vmatpush1.msra.mxu0 0.0
  %1438 = vmatprep.subr.mxu0 0.0
  %1439 = vmatpush1.msra.mxu0 %v159
  %1440 = vmatprep.subr.mxu0 0.0
  %1441 = vmatpush1.msra.mxu0 %v158
  %1442 = vmatprep.subr.mxu0 0.0
  %1443 = vmatpush1.msra.mxu0 %v157
  %1444 = vmatprep.subr.mxu0 0.0
  %1445 = vmatpush1.msra.mxu0 %v156
  %1446 = vmatprep.subr.mxu0 0.0
  %1447 = vmatpush2.msra.mxu0 0.0
  %1448 = vmatprep.subr.mxu0 0.0
  %1449 = vmatpush2.msra.mxu0 0.0
  %1450 = vmatprep.subr.mxu0 0.0
  %1451 = vmatpush2.msra.mxu0 0.0
  %1452 = vmatprep.subr.mxu0 0.0
  %1453 = vmatpush2.msra.mxu0 0.0
  %1454 = vmatprep.subr.mxu0 0.0
  %1455 = vmatpush2.msra.mxu0 0.0
  %1456 = vmatprep.subr.mxu0 0.0
  %1457 = vmatpush2.msra.mxu0 0.0
  %1458 = vmatprep.subr.mxu0 0.0
  %1459 = vmatpush2.msra.mxu0 0.0
  %1460 = vmatprep.subr.mxu0 0.0
  %1461 = vmatpush2.msra.mxu0 0.0
  %1462 = vmatprep.subr.mxu0 0.0
  %1463 = vmatpush2.msra.mxu0 0.0
  %1464 = vmatprep.subr.mxu0 0.0
  %1465 = vmatpush2.msra.mxu0 0.0
  %1466 = vmatprep.subr.mxu0 0.0
  %1467 = vmatpush2.msra.mxu0 0.0
  %1468 = vmatprep.subr.mxu0 0.0
  %1469 = vmatpush2.msra.mxu0 0.0
  %1470 = vmatprep.subr.mxu0 0.0
  %1471 = vmatpush2.msra.mxu0 0.0
  %1472 = vmatprep.subr.mxu0 0.0
  %1473 = vmatpush2.msra.mxu0 0.0
  %1474 = vmatprep.subr.mxu0 0.0
  %1475 = vmatpush2.msra.mxu0 0.0
  %1476 = vmatprep.subr.mxu0 0.0
  %1477 = vmatpush2.msra.mxu0 0.0
  %1478 = vmatprep.mubr.f32.mxu0 0.0
  %1479 = vmatmul.mubr.f32.gmra.mxu0 %v1406
  %v1480 = vpop.f32.mrf.mxu0
  %v1481 = vadd.f32 %v1404, %v1480
  %v1482 = vpop.f32.mrf.mxu0
  %1483 = vmatprep.mubr.f32.mxu0 0.0
  %1484 = vmatmul.mubr.f32.gmra.mxu0 %v1409
  %v1485 = vpop.f32.mrf.mxu0
  %v1486 = vadd.f32 %v1404, %v1485
  %v1487 = vpop.f32.mrf.mxu0
  %1488 = vmatprep.mubr.f32.mxu0 0.0
  %1489 = vmatmul.mubr.f32.gmra.mxu0 %v1412
  %v1490 = vpop.f32.mrf.mxu0
  %v1491 = vadd.f32 %v1404, %v1490
  %v1492 = vpop.f32.mrf.mxu0
  %1493 = vdwg.mxu0
  %v1494 = vadd.f32 %v123, %v1481
  %v1495 = vadd.f32 %v128, %v1486
  %v1496 = vadd.f32 %v133, %v1491
  %v1497 = vsel %vm164, %v1494, 0.0
  %1498 = vadd.xlane.f32.xlu0 %v1497
  %v1499 = vpop.xlane.xlu0 %1498
  %v1500 = vsel %vm164, %v1495, 0.0
  %1501 = vadd.xlane.f32.xlu0 %v1500
  %v1502 = vpop.xlane.xlu0 %1501
  %v1503 = vsel %vm164, %v1496, 0.0
  %1504 = vadd.xlane.f32.xlu0 %v1503
  %v1505 = vpop.xlane.xlu0 %1504
  %v1506 = vrcp.pop 32.0
  %v1507 = vmul.f32 %v1499, %v1506
  %v1508 = vmul.f32 %v1502, %v1506
  %v1509 = vmul.f32 %v1505, %v1506
  %v1510 = vsub.f32 %v1494, %v1507
  %v1511 = vsub.f32 %v1495, %v1508
  %v1512 = vsub.f32 %v1496, %v1509
  %v1513 = vmul.f32 %v1510, %v1510
  %v1514 = vmul.f32 %v1511, %v1511
  %v1515 = vmul.f32 %v1512, %v1512
  %v1516 = vsel %vm164, %v1513, 0.0
  %1517 = vadd.xlane.f32.xlu0 %v1516
  %v1518 = vpop.xlane.xlu0 %1517
  %v1519 = vsel %vm164, %v1514, 0.0
  %1520 = vadd.xlane.f32.xlu0 %v1519
  %v1521 = vpop.xlane.xlu0 %1520
  %v1522 = vsel %vm164, %v1515, 0.0
  %1523 = vadd.xlane.f32.xlu0 %v1522
  %v1524 = vpop.xlane.xlu0 %1523
  %v1525 = vmul.f32 %v1518, %v1506
  %v1526 = vmul.f32 %v1521, %v1506
  %v1527 = vmul.f32 %v1524, %v1506
  %v1528 = vadd.f32 %v1525, 1e-05
  %v1529 = vadd.f32 %v1526, 1e-05
  %v1530 = vadd.f32 %v1527, 1e-05
  %v1531 = vrsqrt.pop %v1528
  %v1532 = vrsqrt.pop %v1529
  %v1533 = vrsqrt.pop %v1530
  %v1534 = vmul.f32 %v1510, %v1531
  %v1535 = vmul.f32 %v1511, %v1532
  %v1536 = vmul.f32 %v1512, %v1533
  %v1537 = vlaneseq
  %v1538 = vshrl.u32 %v1537, 7
  %v1539 = vsub.s32 4, %v1538
  %v1540 = vrot.slane %v139, %v1539
  %v1541 = vmul.f32 %v1534, %v1540
  %v1542 = vmul.f32 %v1535, %v1540
  %v1543 = vmul.f32 %v1536, %v1540
  %v1544 = vlaneseq
  %v1545 = vshrl.u32 %v1544, 7
  %v1546 = vsub.s32 5, %v1545
  %v1547 = vrot.slane %v139, %v1546
  %v1548 = vadd.f32 %v1541, %v1547
  %v1549 = vadd.f32 %v1542, %v1547
  %v1550 = vadd.f32 %v1543, %v1547
  %v1551 = vld [vmem:[%s5] sm:$0xff]
  %v1552 = vld [vmem:[%s5 + $0x8] sm:$0xff]
  %v1553 = vld [vmem:[%s5 + $0x10] sm:$0xff]
  %v1554 = vld [vmem:[%s5 + $0x18] sm:$0xff]
  %v1555 = vld [vmem:[%s8] sm:$0x1]
  %v1557 = vlaneseq
  %v1558 = vshrl.u32 %v1557, 7
  %v1559 = vsub.s32 0, %v1558
  %v1560 = vrot.slane %v1555, %v1559
  %v1563 = vsel %vm164, %v1548, 0
  %v1566 = vsel %vm164, %v1549, 0
  %v1569 = vsel %vm164, %v1550, 0
  %1571 = vmatprep.subr.mxu0 0.0
  %1572 = vmatpush1.msra.mxu0 0.0
  %1573 = vmatprep.subr.mxu0 0.0
  %1574 = vmatpush1.msra.mxu0 0.0
  %1575 = vmatprep.subr.mxu0 0.0
  %1576 = vmatpush1.msra.mxu0 0.0
  %1577 = vmatprep.subr.mxu0 0.0
  %1578 = vmatpush1.msra.mxu0 0.0
  %1579 = vmatprep.subr.mxu0 0.0
  %1580 = vmatpush1.msra.mxu0 0.0
  %1581 = vmatprep.subr.mxu0 0.0
  %1582 = vmatpush1.msra.mxu0 0.0
  %1583 = vmatprep.subr.mxu0 0.0
  %1584 = vmatpush1.msra.mxu0 0.0
  %1585 = vmatprep.subr.mxu0 0.0
  %1586 = vmatpush1.msra.mxu0 0.0
  %1587 = vmatprep.subr.mxu0 0.0
  %1588 = vmatpush1.msra.mxu0 0.0
  %1589 = vmatprep.subr.mxu0 0.0
  %1590 = vmatpush1.msra.mxu0 0.0
  %1591 = vmatprep.subr.mxu0 0.0
  %1592 = vmatpush1.msra.mxu0 0.0
  %1593 = vmatprep.subr.mxu0 0.0
  %1594 = vmatpush1.msra.mxu0 0.0
  %1595 = vmatprep.subr.mxu0 0.0
  %1596 = vmatpush1.msra.mxu0 %v1554
  %1597 = vmatprep.subr.mxu0 0.0
  %1598 = vmatpush1.msra.mxu0 %v1553
  %1599 = vmatprep.subr.mxu0 0.0
  %1600 = vmatpush1.msra.mxu0 %v1552
  %1601 = vmatprep.subr.mxu0 0.0
  %1602 = vmatpush1.msra.mxu0 %v1551
  %1603 = vmatprep.subr.mxu0 0.0
  %1604 = vmatpush2.msra.mxu0 0.0
  %1605 = vmatprep.subr.mxu0 0.0
  %1606 = vmatpush2.msra.mxu0 0.0
  %1607 = vmatprep.subr.mxu0 0.0
  %1608 = vmatpush2.msra.mxu0 0.0
  %1609 = vmatprep.subr.mxu0 0.0
  %1610 = vmatpush2.msra.mxu0 0.0
  %1611 = vmatprep.subr.mxu0 0.0
  %1612 = vmatpush2.msra.mxu0 0.0
  %1613 = vmatprep.subr.mxu0 0.0
  %1614 = vmatpush2.msra.mxu0 0.0
  %1615 = vmatprep.subr.mxu0 0.0
  %1616 = vmatpush2.msra.mxu0 0.0
  %1617 = vmatprep.subr.mxu0 0.0
  %1618 = vmatpush2.msra.mxu0 0.0
  %1619 = vmatprep.subr.mxu0 0.0
  %1620 = vmatpush2.msra.mxu0 0.0
  %1621 = vmatprep.subr.mxu0 0.0
  %1622 = vmatpush2.msra.mxu0 0.0
  %1623 = vmatprep.subr.mxu0 0.0
  %1624 = vmatpush2.msra.mxu0 0.0
  %1625 = vmatprep.subr.mxu0 0.0
  %1626 = vmatpush2.msra.mxu0 0.0
  %1627 = vmatprep.subr.mxu0 0.0
  %1628 = vmatpush2.msra.mxu0 0.0
  %1629 = vmatprep.subr.mxu0 0.0
  %1630 = vmatpush2.msra.mxu0 0.0
  %1631 = vmatprep.subr.mxu0 0.0
  %1632 = vmatpush2.msra.mxu0 0.0
  %1633 = vmatprep.subr.mxu0 0.0
  %1634 = vmatpush2.msra.mxu0 0.0
  %1635 = vmatprep.mubr.f32.mxu0 0.0
  %1636 = vmatmul.mubr.f32.gmra.mxu0 %v1563
  %v1637 = vpop.f32.mrf.mxu0
  %v1638 = vadd.f32 %v1560, %v1637
  %v1639 = vpop.f32.mrf.mxu0
  %1640 = vmatprep.mubr.f32.mxu0 0.0
  %1641 = vmatmul.mubr.f32.gmra.mxu0 %v1566
  %v1642 = vpop.f32.mrf.mxu0
  %v1643 = vadd.f32 %v1560, %v1642
  %v1644 = vpop.f32.mrf.mxu0
  %1645 = vmatprep.mubr.f32.mxu0 0.0
  %1646 = vmatmul.mubr.f32.gmra.mxu0 %v1569
  %v1647 = vpop.f32.mrf.mxu0
  %v1648 = vadd.f32 %v1560, %v1647
  %v1649 = vpop.f32.mrf.mxu0
  %1650 = vdwg.mxu0
  %v1651 = vmul.f32 %v1638, 0.5
  %v1652 = vmul.f32 %v1643, 0.5
  %v1653 = vmul.f32 %v1648, 0.5
  %v1654 = vmul.f32 %v1638, 0.70710677
  %v1655 = vmul.f32 %v1643, 0.70710677
  %v1656 = vmul.f32 %v1648, 0.70710677
  %v1657 = vand.u32 2147483647, %v1654
  %v1658 = vand.u32 2147483647, %v1655
  %v1659 = vand.u32 2147483647, %v1656
  %v1660 = vmul.f32 %v1657, 0.3275911
  %v1661 = vmul.f32 %v1658, 0.3275911
  %v1662 = vmul.f32 %v1659, 0.3275911
  %v1663 = vadd.f32 %v1660, 1.0
  %v1664 = vadd.f32 %v1661, 1.0
  %v1665 = vadd.f32 %v1662, 1.0
  %v1666 = vrcp.pop %v1663
  %v1667 = vmul.f32 1.0, %v1666
  %v1668 = vrcp.pop %v1664
  %v1669 = vmul.f32 1.0, %v1668
  %v1670 = vrcp.pop %v1665
  %v1671 = vmul.f32 1.0, %v1670
  %v1672 = vmul.f32 %v1667, 1.0614054
  %v1673 = vmul.f32 %v1669, 1.0614054
  %v1674 = vmul.f32 %v1671, 1.0614054
  %v1675 = vadd.f32 %v1672, -1.4531521
  %v1676 = vadd.f32 %v1673, -1.4531521
  %v1677 = vadd.f32 %v1674, -1.4531521
  %v1678 = vmul.f32 %v1675, %v1667
  %v1679 = vmul.f32 %v1676, %v1669
  %v1680 = vmul.f32 %v1677, %v1671
  %v1681 = vadd.f32 %v1678, 1.4214138
  %v1682 = vadd.f32 %v1679, 1.4214138
  %v1683 = vadd.f32 %v1680, 1.4214138
  %v1684 = vmul.f32 %v1681, %v1667
  %v1685 = vmul.f32 %v1682, %v1669
  %v1686 = vmul.f32 %v1683, %v1671
  %v1687 = vadd.f32 %v1684, -0.28449672
  %v1688 = vadd.f32 %v1685, -0.28449672
  %v1689 = vadd.f32 %v1686, -0.28449672
  %v1690 = vmul.f32 %v1687, %v1667
  %v1691 = vmul.f32 %v1688, %v1669
  %v1692 = vmul.f32 %v1689, %v1671
  %v1693 = vadd.f32 %v1690, 0.2548296
  %v1694 = vadd.f32 %v1691, 0.2548296
  %v1695 = vadd.f32 %v1692, 0.2548296
  %v1696 = vmul.f32 %v1693, %v1667
  %v1697 = vmul.f32 %v1694, %v1669
  %v1698 = vmul.f32 %v1695, %v1671
  %v1699 = vsub.f32 0.0, %v1654
  %v1700 = vsub.f32 0.0, %v1655
  %v1701 = vsub.f32 0.0, %v1656
  %v1702 = vmul.f32 %v1699, %v1654
  %v1703 = vmul.f32 %v1700, %v1655
  %v1704 = vmul.f32 %v1701, %v1656
  %v1705 = vmul.f32 %v1702, 1.442695
  %v1706 = vpow.pop %v1705
  %v1707 = vmul.f32 %v1703, 1.442695
  %v1708 = vpow.pop %v1707
  %v1709 = vmul.f32 %v1704, 1.442695
  %v1710 = vpow.pop %v1709
  %v1711 = vmul.f32 %v1696, %v1706
  %v1712 = vmul.f32 %v1697, %v1708
  %v1713 = vmul.f32 %v1698, %v1710
  %v1714 = vsub.f32 1.0, %v1711
  %v1715 = vsub.f32 1.0, %v1712
  %v1716 = vsub.f32 1.0, %v1713
  %vm1717 = vcmp.ge.f32.partialorder %v1654, 0.0
  %vm1718 = vcmp.ge.f32.partialorder %v1655, 0.0
  %vm1719 = vcmp.ge.f32.partialorder %v1656, 0.0
  %v1720 = vsub.f32 0.0, %v1714
  %v1721 = vsub.f32 0.0, %v1715
  %v1722 = vsub.f32 0.0, %v1716
  %v1723 = vsel %vm1717, %v1714, %v1720
  %v1724 = vsel %vm1718, %v1715, %v1721
  %v1725 = vsel %vm1719, %v1716, %v1722
  %v1726 = vadd.f32 %v1723, 1.0
  %v1727 = vadd.f32 %v1724, 1.0
  %v1728 = vadd.f32 %v1725, 1.0
  %v1729 = vmul.f32 %v1651, %v1726
  %v1730 = vmul.f32 %v1652, %v1727
  %v1731 = vmul.f32 %v1653, %v1728
  %v1732 = vld [vmem:[%s6] sm:$0xff]
  %v1733 = vld [vmem:[%s6 + $0x8] sm:$0xff]
  %v1734 = vld [vmem:[%s6 + $0x10] sm:$0xff]
  %v1735 = vld [vmem:[%s6 + $0x18] sm:$0xff]
  %v1736 = vld [vmem:[%s6 + $0x20] sm:$0xff]
  %v1737 = vld [vmem:[%s6 + $0x28] sm:$0xff]
  %v1738 = vld [vmem:[%s6 + $0x30] sm:$0xff]
  %v1739 = vld [vmem:[%s6 + $0x38] sm:$0xff]
  %v1740 = vlaneseq
  %v1741 = vshrl.u32 %v1740, 7
  %v1742 = vsub.s32 6, %v1741
  %v1743 = vrot.slane %v139, %v1742
  %vm1744 = vcmask 523264
  %v1746 = vsel %vm1744, %v1729, 0
  %v1749 = vsel %vm1744, %v1730, 0
  %v1752 = vsel %vm1744, %v1731, 0
  %1754 = vmatprep.subr.mxu0 0.0
  %1755 = vmatpush1.msra.mxu0 0.0
  %1756 = vmatprep.subr.mxu0 0.0
  %1757 = vmatpush1.msra.mxu0 0.0
  %1758 = vmatprep.subr.mxu0 0.0
  %1759 = vmatpush1.msra.mxu0 0.0
  %1760 = vmatprep.subr.mxu0 0.0
  %1761 = vmatpush1.msra.mxu0 0.0
  %1762 = vmatprep.subr.mxu0 0.0
  %1763 = vmatpush1.msra.mxu0 0.0
  %1764 = vmatprep.subr.mxu0 0.0
  %1765 = vmatpush1.msra.mxu0 0.0
  %1766 = vmatprep.subr.mxu0 0.0
  %1767 = vmatpush1.msra.mxu0 0.0
  %1768 = vmatprep.subr.mxu0 0.0
  %1769 = vmatpush1.msra.mxu0 0.0
  %1770 = vmatprep.subr.mxu0 0.0
  %1771 = vmatpush1.msra.mxu0 %v1739
  %1772 = vmatprep.subr.mxu0 0.0
  %1773 = vmatpush1.msra.mxu0 %v1738
  %1774 = vmatprep.subr.mxu0 0.0
  %1775 = vmatpush1.msra.mxu0 %v1737
  %1776 = vmatprep.subr.mxu0 0.0
  %1777 = vmatpush1.msra.mxu0 %v1736
  %1778 = vmatprep.subr.mxu0 0.0
  %1779 = vmatpush1.msra.mxu0 %v1735
  %1780 = vmatprep.subr.mxu0 0.0
  %1781 = vmatpush1.msra.mxu0 %v1734
  %1782 = vmatprep.subr.mxu0 0.0
  %1783 = vmatpush1.msra.mxu0 %v1733
  %1784 = vmatprep.subr.mxu0 0.0
  %1785 = vmatpush1.msra.mxu0 %v1732
  %1786 = vmatprep.subr.mxu0 0.0
  %1787 = vmatpush2.msra.mxu0 0.0
  %1788 = vmatprep.subr.mxu0 0.0
  %1789 = vmatpush2.msra.mxu0 0.0
  %1790 = vmatprep.subr.mxu0 0.0
  %1791 = vmatpush2.msra.mxu0 0.0
  %1792 = vmatprep.subr.mxu0 0.0
  %1793 = vmatpush2.msra.mxu0 0.0
  %1794 = vmatprep.subr.mxu0 0.0
  %1795 = vmatpush2.msra.mxu0 0.0
  %1796 = vmatprep.subr.mxu0 0.0
  %1797 = vmatpush2.msra.mxu0 0.0
  %1798 = vmatprep.subr.mxu0 0.0
  %1799 = vmatpush2.msra.mxu0 0.0
  %1800 = vmatprep.subr.mxu0 0.0
  %1801 = vmatpush2.msra.mxu0 0.0
  %1802 = vmatprep.subr.mxu0 0.0
  %1803 = vmatpush2.msra.mxu0 0.0
  %1804 = vmatprep.subr.mxu0 0.0
  %1805 = vmatpush2.msra.mxu0 0.0
  %1806 = vmatprep.subr.mxu0 0.0
  %1807 = vmatpush2.msra.mxu0 0.0
  %1808 = vmatprep.subr.mxu0 0.0
  %1809 = vmatpush2.msra.mxu0 0.0
  %1810 = vmatprep.subr.mxu0 0.0
  %1811 = vmatpush2.msra.mxu0 0.0
  %1812 = vmatprep.subr.mxu0 0.0
  %1813 = vmatpush2.msra.mxu0 0.0
  %1814 = vmatprep.subr.mxu0 0.0
  %1815 = vmatpush2.msra.mxu0 0.0
  %1816 = vmatprep.subr.mxu0 0.0
  %1817 = vmatpush2.msra.mxu0 0.0
  %1818 = vmatprep.mubr.f32.mxu0 0.0
  %1819 = vmatmul.mubr.f32.gmra.mxu0 %v1746
  %v1820 = vpop.f32.mrf.mxu0
  %v1821 = vadd.f32 %v1743, %v1820
  %v1822 = vpop.f32.mrf.mxu0
  %1823 = vmatprep.mubr.f32.mxu0 0.0
  %1824 = vmatmul.mubr.f32.gmra.mxu0 %v1749
  %v1825 = vpop.f32.mrf.mxu0
  %v1826 = vadd.f32 %v1743, %v1825
  %v1827 = vpop.f32.mrf.mxu0
  %1828 = vmatprep.mubr.f32.mxu0 0.0
  %1829 = vmatmul.mubr.f32.gmra.mxu0 %v1752
  %v1830 = vpop.f32.mrf.mxu0
  %v1831 = vadd.f32 %v1743, %v1830
  %v1832 = vpop.f32.mrf.mxu0
  %1833 = vdwg.mxu0
  %v1834 = vadd.f32 %v1548, %v1821
  %v1835 = vadd.f32 %v1549, %v1826
  %v1836 = vadd.f32 %v1550, %v1831
  %v1837 = vsel %vm164, %v1834, 0.0
  %1838 = vadd.xlane.f32.xlu0 %v1837
  %v1839 = vpop.xlane.xlu0 %1838
  %v1840 = vsel %vm164, %v1835, 0.0
  %1841 = vadd.xlane.f32.xlu0 %v1840
  %v1842 = vpop.xlane.xlu0 %1841
  %v1843 = vsel %vm164, %v1836, 0.0
  %1844 = vadd.xlane.f32.xlu0 %v1843
  %v1845 = vpop.xlane.xlu0 %1844
  %v1846 = vmul.f32 %v1839, %v1506
  %v1847 = vmul.f32 %v1842, %v1506
  %v1848 = vmul.f32 %v1845, %v1506
  %v1849 = vsub.f32 %v1834, %v1846
  %v1850 = vsub.f32 %v1835, %v1847
  %v1851 = vsub.f32 %v1836, %v1848
  %v1852 = vmul.f32 %v1849, %v1849
  %v1853 = vmul.f32 %v1850, %v1850
  %v1854 = vmul.f32 %v1851, %v1851
  %v1855 = vsel %vm164, %v1852, 0.0
  %1856 = vadd.xlane.f32.xlu0 %v1855
  %v1857 = vpop.xlane.xlu0 %1856
  %v1858 = vsel %vm164, %v1853, 0.0
  %1859 = vadd.xlane.f32.xlu0 %v1858
  %v1860 = vpop.xlane.xlu0 %1859
  %v1861 = vsel %vm164, %v1854, 0.0
  %1862 = vadd.xlane.f32.xlu0 %v1861
  %v1863 = vpop.xlane.xlu0 %1862
  %v1864 = vmul.f32 %v1857, %v1506
  %v1865 = vmul.f32 %v1860, %v1506
  %v1866 = vmul.f32 %v1863, %v1506
  %v1867 = vadd.f32 %v1864, 1e-05
  %v1868 = vadd.f32 %v1865, 1e-05
  %v1869 = vadd.f32 %v1866, 1e-05
  %v1870 = vrsqrt.pop %v1867
  %v1871 = vrsqrt.pop %v1868
  %v1872 = vrsqrt.pop %v1869
  %v1873 = vmul.f32 %v1849, %v1870
  %v1874 = vmul.f32 %v1850, %v1871
  %v1875 = vmul.f32 %v1851, %v1872
  %v1876 = vlaneseq
  %v1877 = vshrl.u32 %v1876, 7
  %v1878 = vsub.s32 7, %v1877
  %v1879 = vrot.slane %v139, %v1878
  %v1880 = vmul.f32 %v1873, %v1879
  %v1881 = vmul.f32 %v1874, %v1879
  %v1882 = vmul.f32 %v1875, %v1879
  %v1883 = vlaneseq
  %v1884 = vshrl.u32 %v1883, 7
  %v1885 = vsub.s32 0, %v1884
  %v1886 = vrot.slane %v140, %v1885
  %v1887 = vadd.f32 %v1880, %v1886
  %v1888 = vadd.f32 %v1881, %v1886
  %v1889 = vadd.f32 %v1882, %v1886
  %v1890 = vld [vmem:[%s9] sm:$0x3]
  %v1891 = vsel %vm164, %v1887, 0.0
  %1892 = vadd.xlane.f32.xlu0 %v1891
  %v1893 = vpop.xlane.xlu0 %1892
  %v1894 = vsel %vm164, %v1888, 0.0
  %1895 = vadd.xlane.f32.xlu0 %v1894
  %v1896 = vpop.xlane.xlu0 %1895
  %v1897 = vsel %vm164, %v1889, 0.0
  %1898 = vadd.xlane.f32.xlu0 %v1897
  %v1899 = vpop.xlane.xlu0 %1898
  %v1900 = vmul.f32 %v1893, %v1506
  %v1901 = vmul.f32 %v1896, %v1506
  %v1902 = vmul.f32 %v1899, %v1506
  %v1903 = vsub.f32 %v1887, %v1900
  %v1904 = vsub.f32 %v1888, %v1901
  %v1905 = vsub.f32 %v1889, %v1902
  %v1906 = vmul.f32 %v1903, %v1903
  %v1907 = vmul.f32 %v1904, %v1904
  %v1908 = vmul.f32 %v1905, %v1905
  %v1909 = vsel %vm164, %v1906, 0.0
  %1910 = vadd.xlane.f32.xlu0 %v1909
  %v1911 = vpop.xlane.xlu0 %1910
  %v1912 = vsel %vm164, %v1907, 0.0
  %1913 = vadd.xlane.f32.xlu0 %v1912
  %v1914 = vpop.xlane.xlu0 %1913
  %v1915 = vsel %vm164, %v1908, 0.0
  %1916 = vadd.xlane.f32.xlu0 %v1915
  %v1917 = vpop.xlane.xlu0 %1916
  %v1918 = vmul.f32 %v1911, %v1506
  %v1919 = vmul.f32 %v1914, %v1506
  %v1920 = vmul.f32 %v1917, %v1506
  %v1921 = vadd.f32 %v1918, 1e-05
  %v1922 = vadd.f32 %v1919, 1e-05
  %v1923 = vadd.f32 %v1920, 1e-05
  %v1924 = vrsqrt.pop %v1921
  %v1925 = vrsqrt.pop %v1922
  %v1926 = vrsqrt.pop %v1923
  %v1927 = vmul.f32 %v1903, %v1924
  %v1928 = vmul.f32 %v1904, %v1925
  %v1929 = vmul.f32 %v1905, %v1926
  %v1930 = vlaneseq
  %v1931 = vshrl.u32 %v1930, 7
  %v1932 = vsub.s32 0, %v1931
  %v1933 = vrot.slane %v1890, %v1932
  %v1934 = vmul.f32 %v1927, %v1933
  %v1935 = vmul.f32 %v1928, %v1933
  %v1936 = vmul.f32 %v1929, %v1933
  %v1937 = vlaneseq
  %v1938 = vshrl.u32 %v1937, 7
  %v1939 = vsub.s32 1, %v1938
  %v1940 = vrot.slane %v1890, %v1939
  %v1941 = vadd.f32 %v1934, %v1940
  %v1942 = vadd.f32 %v1935, %v1940
  %v1943 = vadd.f32 %v1936, %v1940
  %1944 = vst.msk [vmem:[%s10] sm:$0xff] %vm164, %v1941
  %1945 = vst.msk [vmem:[%s10 + $0x8] sm:$0xff] %vm164, %v1942
  %1946 = vst.msk [vmem:[%s10 + $0x10] sm:$0xff] %vm164, %v1943
  // Predicated region
  $region42: #{_lambda_.3} parent=0 // pred_check
    _
  $region43: #{_lambda_.3} parent=0 // pred_check_branch
    %1948 = sbr.rel (0) target = $region45
  $region44: #{_lambda_.3} parent=0 // pred_region
    _
  $region45: #{_lambda_.3} parent=0 // pred_fallthru
    _
  // Predicated region
  $region46: #{_lambda_.3} parent=0 // pred_check
    _
  $region47: #{_lambda_.3} parent=0 // pred_check_branch
    %1950 = sbr.rel (0) target = $region49
  $region48: #{_lambda_.3} parent=0 // pred_region
    _
  $region49: #{_lambda_.3} parent=0 // pred_fallthru
    _

// kernel: _lambda_.4
$region0: #{_lambda_.4}
  #allocation0 [shape = 'u32[]', space=smem, size = 0x4, offset = 0x4, fixed_abs, tag = 'smem constant byte address 0x4 - core index']
  #allocation1 [shape = 'u32[144,128]{1,0:T(1,128)}', space=vmem, size = 0x12000, scoped, tag = 'internal scratch']
  %s0 = inlined_call_operand.vmem [shape: f32[6,4], index: 0, kind: input, shape index: {}]
  %s1 = inlined_call_operand.vmem [shape: f32[4,32], index: 1, kind: input, shape index: {}]
  %s2 = inlined_call_operand.vmem [shape: f32[6,32], index: 2, kind: input, shape index: {}]
  %s3 = inlined_call_operand.vmem [shape: f32[24,32], index: 3, kind: input, shape index: {}]
  %s4 = inlined_call_operand.vmem [shape: f32[6,6], index: 4, kind: input, shape index: {}]
  %s5 = inlined_call_operand.vmem [shape: f32[6,24], index: 5, kind: input, shape index: {}]
  %s6 = inlined_call_operand.vmem [shape: f32[1,4,32,32], index: 6, kind: input, shape index: {}]
  %s7 = inlined_call_operand.vmem [shape: f32[1,4,32,32], index: 7, kind: input, shape index: {}]
  %s8 = inlined_call_operand.vmem [shape: f32[1,32,64], index: 8, kind: input, shape index: {}]
  %s9 = inlined_call_operand.vmem [shape: f32[1,64,32], index: 9, kind: input, shape index: {}]
  %s10 = inlined_call_operand.vmem [shape: f32[1,15,32], index: 10, kind: input, shape index: {}]
  %s11 = inlined_call_operand.vmem [shape: f32[1,1,64], index: 11, kind: input, shape index: {}]
  %s12 = inlined_call_operand.vmem [shape: f32[2,32], index: 12, kind: input, shape index: {}]
  %s13 = inlined_call_operand.vmem [shape: f32[32,4], index: 13, kind: input, shape index: {}]
  %s14 = inlined_call_operand.vmem [shape: f32[1,4], index: 14, kind: input, shape index: {}]
  %s15 = inlined_call_operand.vmem [shape: f32[6,4], index: 15, kind: output, shape index: {}]
  %s16 = sld [smem:[#allocation0]]
  $region70: #{_lambda_.4} parent=0
    _
  %s18 = ssub.s32 1, %s16
  %s19 = scalar_select 0, %s18, %s16
  // Predicated region
  $region2: #{_lambda_.4} parent=0 // pred_check
    _
  $region3: #{_lambda_.4} parent=0 // pred_check_branch
    %21 = sbr.rel (0) target = $region5
  $region4: #{_lambda_.4} parent=0 // pred_region
    _
  $region5: #{_lambda_.4} parent=0 // pred_fallthru
    _
  // Predicated region
  $region6: #{_lambda_.4} parent=0 // pred_check
    _
  $region7: #{_lambda_.4} parent=0 // pred_check_branch
    %23 = sbr.rel (0) target = $region9
  $region8: #{_lambda_.4} parent=0 // pred_region
    _
  $region9: #{_lambda_.4} parent=0 // pred_fallthru
    _
  // Predicated region
  $region10: #{_lambda_.4} parent=0 // pred_check
    _
  $region11: #{_lambda_.4} parent=0 // pred_check_branch
    %25 = sbr.rel (0) target = $region13
  $region12: #{_lambda_.4} parent=0 // pred_region
    _
  $region13: #{_lambda_.4} parent=0 // pred_fallthru
    _
  // Predicated region
  $region14: #{_lambda_.4} parent=0 // pred_check
    _
  $region15: #{_lambda_.4} parent=0 // pred_check_branch
    %27 = sbr.rel (0) target = $region17
  $region16: #{_lambda_.4} parent=0 // pred_region
    _
  $region17: #{_lambda_.4} parent=0 // pred_fallthru
    _
  // Predicated region
  $region18: #{_lambda_.4} parent=0 // pred_check
    _
  $region19: #{_lambda_.4} parent=0 // pred_check_branch
    %29 = sbr.rel (0) target = $region21
  $region20: #{_lambda_.4} parent=0 // pred_region
    _
  $region21: #{_lambda_.4} parent=0 // pred_fallthru
    _
  // Predicated region
  $region22: #{_lambda_.4} parent=0 // pred_check
    _
  $region23: #{_lambda_.4} parent=0 // pred_check_branch
    %31 = sbr.rel (0) target = $region25
  $region24: #{_lambda_.4} parent=0 // pred_region
    _
  $region25: #{_lambda_.4} parent=0 // pred_fallthru
    _
  // Predicated region
  $region26: #{_lambda_.4} parent=0 // pred_check
    _
  $region27: #{_lambda_.4} parent=0 // pred_check_branch
    %33 = sbr.rel (0) target = $region29
  $region28: #{_lambda_.4} parent=0 // pred_region
    _
  $region29: #{_lambda_.4} parent=0 // pred_fallthru
    _
  // Predicated region
  $region30: #{_lambda_.4} parent=0 // pred_check
    _
  $region31: #{_lambda_.4} parent=0 // pred_check_branch
    %35 = sbr.rel (0) target = $region33
  $region32: #{_lambda_.4} parent=0 // pred_region
    _
  $region33: #{_lambda_.4} parent=0 // pred_fallthru
    _
  // Predicated region
  $region34: #{_lambda_.4} parent=0 // pred_check
    _
  $region35: #{_lambda_.4} parent=0 // pred_check_branch
    %37 = sbr.rel (0) target = $region37
  $region36: #{_lambda_.4} parent=0 // pred_region
    _
  $region37: #{_lambda_.4} parent=0 // pred_fallthru
    _
  // Predicated region
  $region38: #{_lambda_.4} parent=0 // pred_check
    _
  $region39: #{_lambda_.4} parent=0 // pred_check_branch
    %39 = sbr.rel (0) target = $region41
  $region40: #{_lambda_.4} parent=0 // pred_region
    _
  $region41: #{_lambda_.4} parent=0 // pred_fallthru
    _
  // Predicated region
  $region42: #{_lambda_.4} parent=0 // pred_check
    _
  $region43: #{_lambda_.4} parent=0 // pred_check_branch
    %41 = sbr.rel (0) target = $region45
  $region44: #{_lambda_.4} parent=0 // pred_region
    _
  $region45: #{_lambda_.4} parent=0 // pred_fallthru
    _
  // Predicated region
  $region46: #{_lambda_.4} parent=0 // pred_check
    _
  $region47: #{_lambda_.4} parent=0 // pred_check_branch
    %43 = sbr.rel (0) target = $region49
  $region48: #{_lambda_.4} parent=0 // pred_region
    _
  $region49: #{_lambda_.4} parent=0 // pred_fallthru
    _
  // Predicated region
  $region50: #{_lambda_.4} parent=0 // pred_check
    _
  $region51: #{_lambda_.4} parent=0 // pred_check_branch
    %45 = sbr.rel (0) target = $region53
  $region52: #{_lambda_.4} parent=0 // pred_region
    _
  $region53: #{_lambda_.4} parent=0 // pred_fallthru
    _
  // Predicated region
  $region54: #{_lambda_.4} parent=0 // pred_check
    _
  $region55: #{_lambda_.4} parent=0 // pred_check_branch
    %47 = sbr.rel (0) target = $region57
  $region56: #{_lambda_.4} parent=0 // pred_region
    _
  $region57: #{_lambda_.4} parent=0 // pred_fallthru
    _
  // Predicated region
  $region58: #{_lambda_.4} parent=0 // pred_check
    _
  $region59: #{_lambda_.4} parent=0 // pred_check_branch
    %49 = sbr.rel (0) target = $region61
  $region60: #{_lambda_.4} parent=0 // pred_region
    _
  $region61: #{_lambda_.4} parent=0 // pred_fallthru
    _
  %v50 = vld [vmem:[%s0] sm:$0x3f]
  %v51 = vld [vmem:[%s1] sm:$0xf]
  %v52 = vld [vmem:[%s2] sm:$0x3f]
  %vm53 = vcmask 31744
  %v55 = vsel %vm53, %v50, 0
  %vm57 = vcmask 1043456
  %v59 = vsel %vm57, %v51, 0
  %61 = vmatprep.subr.mxu0 0.0
  %62 = vmatpush1.msra.mxu0 0.0
  %63 = vmatprep.subr.mxu0 0.0
  %64 = vmatpush1.msra.mxu0 0.0
  %65 = vmatprep.subr.mxu0 0.0
  %66 = vmatpush1.msra.mxu0 0.0
  %67 = vmatprep.subr.mxu0 0.0
  %68 = vmatpush1.msra.mxu0 0.0
  %69 = vmatprep.subr.mxu0 0.0
  %70 = vmatpush1.msra.mxu0 0.0
  %71 = vmatprep.subr.mxu0 0.0
  %72 = vmatpush1.msra.mxu0 0.0
  %73 = vmatprep.subr.mxu0 0.0
  %74 = vmatpush1.msra.mxu0 0.0
  %75 = vmatprep.subr.mxu0 0.0
  %76 = vmatpush1.msra.mxu0 0.0
  %77 = vmatprep.subr.mxu0 0.0
  %78 = vmatpush1.msra.mxu0 0.0
  %79 = vmatprep.subr.mxu0 0.0
  %80 = vmatpush1.msra.mxu0 0.0
  %81 = vmatprep.subr.mxu0 0.0
  %82 = vmatpush1.msra.mxu0 0.0
  %83 = vmatprep.subr.mxu0 0.0
  %84 = vmatpush1.msra.mxu0 0.0
  %85 = vmatprep.subr.mxu0 0.0
  %86 = vmatpush1.msra.mxu0 0.0
  %87 = vmatprep.subr.mxu0 0.0
  %88 = vmatpush1.msra.mxu0 0.0
  %89 = vmatprep.subr.mxu0 0.0
  %90 = vmatpush1.msra.mxu0 0.0
  %91 = vmatprep.subr.mxu0 0.0
  %92 = vmatpush1.msra.mxu0 %v59
  %93 = vmatprep.subr.mxu0 0.0
  %94 = vmatpush2.msra.mxu0 0.0
  %95 = vmatprep.subr.mxu0 0.0
  %96 = vmatpush2.msra.mxu0 0.0
  %97 = vmatprep.subr.mxu0 0.0
  %98 = vmatpush2.msra.mxu0 0.0
  %99 = vmatprep.subr.mxu0 0.0
  %100 = vmatpush2.msra.mxu0 0.0
  %101 = vmatprep.subr.mxu0 0.0
  %102 = vmatpush2.msra.mxu0 0.0
  %103 = vmatprep.subr.mxu0 0.0
  %104 = vmatpush2.msra.mxu0 0.0
  %105 = vmatprep.subr.mxu0 0.0
  %106 = vmatpush2.msra.mxu0 0.0
  %107 = vmatprep.subr.mxu0 0.0
  %108 = vmatpush2.msra.mxu0 0.0
  %109 = vmatprep.subr.mxu0 0.0
  %110 = vmatpush2.msra.mxu0 0.0
  %111 = vmatprep.subr.mxu0 0.0
  %112 = vmatpush2.msra.mxu0 0.0
  %113 = vmatprep.subr.mxu0 0.0
  %114 = vmatpush2.msra.mxu0 0.0
  %115 = vmatprep.subr.mxu0 0.0
  %116 = vmatpush2.msra.mxu0 0.0
  %117 = vmatprep.subr.mxu0 0.0
  %118 = vmatpush2.msra.mxu0 0.0
  %119 = vmatprep.subr.mxu0 0.0
  %120 = vmatpush2.msra.mxu0 0.0
  %121 = vmatprep.subr.mxu0 0.0
  %122 = vmatpush2.msra.mxu0 0.0
  %123 = vmatprep.subr.mxu0 0.0
  %124 = vmatpush2.msra.mxu0 0.0
  %125 = vmatprep.mubr.f32.mxu0 0.0
  %126 = vmatmul.mubr.f32.gmra.mxu0 %v55
  %v127 = vpop.f32.mrf.mxu0
  %v128 = vadd.f32 %v52, %v127
  %v129 = vpop.f32.mrf.mxu0
  %130 = vdwg.mxu0
  %v131 = vld [vmem:[%s3] sm:$0xff]
  %v132 = vld [vmem:[%s3 + $0x8] sm:$0xff]
  %v133 = vld [vmem:[%s3 + $0x10] sm:$0xff]
  %v134 = vld [vmem:[%s4] sm:$0x3f]
  %v135 = vld [vmem:[%s5] sm:$0x3f]
  %v136 = vld [vmem:[%s10] sm:$0xff]
  %v137 = vld [vmem:[%s10 + $0x8] sm:$0x7f]
  %v138 = vld [vmem:[%s6] sm:$0xff]
  %v139 = vld [vmem:[%s6 + $0x8] sm:$0xff]
  %v140 = vld [vmem:[%s6 + $0x10] sm:$0xff]
  %v141 = vld [vmem:[%s6 + $0x18] sm:$0xff]
  %s142 = scalar_lea.vmem %s6, 32
  %v143 = vld [vmem:[%s142] sm:$0xff]
  %v144 = vld [vmem:[%s142 + $0x8] sm:$0xff]
  %v145 = vld [vmem:[%s142 + $0x10] sm:$0xff]
  %v146 = vld [vmem:[%s142 + $0x18] sm:$0xff]
  %s147 = scalar_lea.vmem %s6, 64
  %v148 = vld [vmem:[%s147] sm:$0xff]
  %v149 = vld [vmem:[%s147 + $0x8] sm:$0xff]
  %v150 = vld [vmem:[%s147 + $0x10] sm:$0xff]
  %v151 = vld [vmem:[%s147 + $0x18] sm:$0xff]
  %s152 = scalar_lea.vmem %s6, 96
  %v153 = vld [vmem:[%s152] sm:$0xff]
  %v154 = vld [vmem:[%s152 + $0x8] sm:$0xff]
  %v155 = vld [vmem:[%s152 + $0x10] sm:$0xff]
  %v156 = vld [vmem:[%s152 + $0x18] sm:$0xff]
  %v157 = vlaneseq
  %v158 = vshrl.u32 %v157, 7
  %v159 = vsub.s32 0, %v158
  %v160 = vrot.slane %v136, %v159
  %vm161 = vcmask 261120
  %v163 = vsel %vm161, %v128, 0
  %165 = vmatprep.subr.mxu0 0.0
  %166 = vmatpush1.msra.mxu0 0.0
  %167 = vmatprep.subr.mxu0 0.0
  %168 = vmatpush1.msra.mxu0 0.0
  %169 = vmatprep.subr.mxu0 0.0
  %170 = vmatpush1.msra.mxu0 0.0
  %171 = vmatprep.subr.mxu0 0.0
  %172 = vmatpush1.msra.mxu0 0.0
  %173 = vmatprep.subr.mxu0 0.0
  %174 = vmatpush1.msra.mxu0 0.0
  %175 = vmatprep.subr.mxu0 0.0
  %176 = vmatpush1.msra.mxu0 0.0
  %177 = vmatprep.subr.mxu0 0.0
  %178 = vmatpush1.msra.mxu0 0.0
  %179 = vmatprep.subr.mxu0 0.0
  %180 = vmatpush1.msra.mxu0 0.0
  %181 = vmatprep.subr.mxu0 0.0
  %182 = vmatpush1.msra.mxu0 0.0
  %183 = vmatprep.subr.mxu0 0.0
  %184 = vmatpush1.msra.mxu0 0.0
  %185 = vmatprep.subr.mxu0 0.0
  %186 = vmatpush1.msra.mxu0 0.0
  %187 = vmatprep.subr.mxu0 0.0
  %188 = vmatpush1.msra.mxu0 0.0
  %189 = vmatprep.subr.mxu0 0.0
  %190 = vmatpush1.msra.mxu0 %v141
  %191 = vmatprep.subr.mxu0 0.0
  %192 = vmatpush1.msra.mxu0 %v140
  %193 = vmatprep.subr.mxu0 0.0
  %194 = vmatpush1.msra.mxu0 %v139
  %195 = vmatprep.subr.mxu0 0.0
  %196 = vmatpush1.msra.mxu0 %v138
  %197 = vmatprep.subr.mxu0 0.0
  %198 = vmatpush2.msra.mxu0 0.0
  %199 = vmatprep.subr.mxu0 0.0
  %200 = vmatpush2.msra.mxu0 0.0
  %201 = vmatprep.subr.mxu0 0.0
  %202 = vmatpush2.msra.mxu0 0.0
  %203 = vmatprep.subr.mxu0 0.0
  %204 = vmatpush2.msra.mxu0 0.0
  %205 = vmatprep.subr.mxu0 0.0
  %206 = vmatpush2.msra.mxu0 0.0
  %207 = vmatprep.subr.mxu0 0.0
  %208 = vmatpush2.msra.mxu0 0.0
  %209 = vmatprep.subr.mxu0 0.0
  %210 = vmatpush2.msra.mxu0 0.0
  %211 = vmatprep.subr.mxu0 0.0
  %212 = vmatpush2.msra.mxu0 0.0
  %213 = vmatprep.subr.mxu0 0.0
  %214 = vmatpush2.msra.mxu0 0.0
  %215 = vmatprep.subr.mxu0 0.0
  %216 = vmatpush2.msra.mxu0 0.0
  %217 = vmatprep.subr.mxu0 0.0
  %218 = vmatpush2.msra.mxu0 0.0
  %219 = vmatprep.subr.mxu0 0.0
  %220 = vmatpush2.msra.mxu0 0.0
  %221 = vmatprep.subr.mxu0 0.0
  %222 = vmatpush2.msra.mxu0 0.0
  %223 = vmatprep.subr.mxu0 0.0
  %224 = vmatpush2.msra.mxu0 0.0
  %225 = vmatprep.subr.mxu0 0.0
  %226 = vmatpush2.msra.mxu0 0.0
  %227 = vmatprep.subr.mxu0 0.0
  %228 = vmatpush2.msra.mxu0 0.0
  %229 = vmatprep.mubr.f32.mxu0 0.0
  %230 = vmatmul.mubr.f32.gmra.mxu0 %v163
  %v231 = vpop.f32.mrf.mxu0
  %v232 = vadd.f32 %v160, %v231
  %v233 = vpop.f32.mrf.mxu0
  %234 = vdwg.mxu0
  %v235 = vlaneseq
  %v236 = vshrl.u32 %v235, 7
  %v237 = vsub.s32 1, %v236
  %v238 = vrot.slane %v136, %v237
  %239 = vmatprep.subr.mxu0 0.0
  %240 = vmatpush1.msra.mxu0 0.0
  %241 = vmatprep.subr.mxu0 0.0
  %242 = vmatpush1.msra.mxu0 0.0
  %243 = vmatprep.subr.mxu0 0.0
  %244 = vmatpush1.msra.mxu0 0.0
  %245 = vmatprep.subr.mxu0 0.0
  %246 = vmatpush1.msra.mxu0 0.0
  %247 = vmatprep.subr.mxu0 0.0
  %248 = vmatpush1.msra.mxu0 0.0
  %249 = vmatprep.subr.mxu0 0.0
  %250 = vmatpush1.msra.mxu0 0.0
  %251 = vmatprep.subr.mxu0 0.0
  %252 = vmatpush1.msra.mxu0 0.0
  %253 = vmatprep.subr.mxu0 0.0
  %254 = vmatpush1.msra.mxu0 0.0
  %255 = vmatprep.subr.mxu0 0.0
  %256 = vmatpush1.msra.mxu0 0.0
  %257 = vmatprep.subr.mxu0 0.0
  %258 = vmatpush1.msra.mxu0 0.0
  %259 = vmatprep.subr.mxu0 0.0
  %260 = vmatpush1.msra.mxu0 0.0
  %261 = vmatprep.subr.mxu0 0.0
  %262 = vmatpush1.msra.mxu0 0.0
  %263 = vmatprep.subr.mxu0 0.0
  %264 = vmatpush1.msra.mxu0 %v146
  %265 = vmatprep.subr.mxu0 0.0
  %266 = vmatpush1.msra.mxu0 %v145
  %267 = vmatprep.subr.mxu0 0.0
  %268 = vmatpush1.msra.mxu0 %v144
  %269 = vmatprep.subr.mxu0 0.0
  %270 = vmatpush1.msra.mxu0 %v143
  %271 = vmatprep.subr.mxu0 0.0
  %272 = vmatpush2.msra.mxu0 0.0
  %273 = vmatprep.subr.mxu0 0.0
  %274 = vmatpush2.msra.mxu0 0.0
  %275 = vmatprep.subr.mxu0 0.0
  %276 = vmatpush2.msra.mxu0 0.0
  %277 = vmatprep.subr.mxu0 0.0
  %278 = vmatpush2.msra.mxu0 0.0
  %279 = vmatprep.subr.mxu0 0.0
  %280 = vmatpush2.msra.mxu0 0.0
  %281 = vmatprep.subr.mxu0 0.0
  %282 = vmatpush2.msra.mxu0 0.0
  %283 = vmatprep.subr.mxu0 0.0
  %284 = vmatpush2.msra.mxu0 0.0
  %285 = vmatprep.subr.mxu0 0.0
  %286 = vmatpush2.msra.mxu0 0.0
  %287 = vmatprep.subr.mxu0 0.0
  %288 = vmatpush2.msra.mxu0 0.0
  %289 = vmatprep.subr.mxu0 0.0
  %290 = vmatpush2.msra.mxu0 0.0
  %291 = vmatprep.subr.mxu0 0.0
  %292 = vmatpush2.msra.mxu0 0.0
  %293 = vmatprep.subr.mxu0 0.0
  %294 = vmatpush2.msra.mxu0 0.0
  %295 = vmatprep.subr.mxu0 0.0
  %296 = vmatpush2.msra.mxu0 0.0
  %297 = vmatprep.subr.mxu0 0.0
  %298 = vmatpush2.msra.mxu0 0.0
  %299 = vmatprep.subr.mxu0 0.0
  %300 = vmatpush2.msra.mxu0 0.0
  %301 = vmatprep.subr.mxu0 0.0
  %302 = vmatpush2.msra.mxu0 0.0
  %303 = vmatprep.mubr.f32.mxu0 0.0
  %304 = vmatmul.mubr.f32.gmra.mxu0 %v163
  %v305 = vpop.f32.mrf.mxu0
  %v306 = vadd.f32 %v238, %v305
  %v307 = vpop.f32.mrf.mxu0
  %308 = vdwg.mxu0
  %v309 = vlaneseq
  %v310 = vshrl.u32 %v309, 7
  %v311 = vsub.s32 2, %v310
  %v312 = vrot.slane %v136, %v311
  %313 = vmatprep.subr.mxu0 0.0
  %314 = vmatpush1.msra.mxu0 0.0
  %315 = vmatprep.subr.mxu0 0.0
  %316 = vmatpush1.msra.mxu0 0.0
  %317 = vmatprep.subr.mxu0 0.0
  %318 = vmatpush1.msra.mxu0 0.0
  %319 = vmatprep.subr.mxu0 0.0
  %320 = vmatpush1.msra.mxu0 0.0
  %321 = vmatprep.subr.mxu0 0.0
  %322 = vmatpush1.msra.mxu0 0.0
  %323 = vmatprep.subr.mxu0 0.0
  %324 = vmatpush1.msra.mxu0 0.0
  %325 = vmatprep.subr.mxu0 0.0
  %326 = vmatpush1.msra.mxu0 0.0
  %327 = vmatprep.subr.mxu0 0.0
  %328 = vmatpush1.msra.mxu0 0.0
  %329 = vmatprep.subr.mxu0 0.0
  %330 = vmatpush1.msra.mxu0 0.0
  %331 = vmatprep.subr.mxu0 0.0
  %332 = vmatpush1.msra.mxu0 0.0
  %333 = vmatprep.subr.mxu0 0.0
  %334 = vmatpush1.msra.mxu0 0.0
  %335 = vmatprep.subr.mxu0 0.0
  %336 = vmatpush1.msra.mxu0 0.0
  %337 = vmatprep.subr.mxu0 0.0
  %338 = vmatpush1.msra.mxu0 %v151
  %339 = vmatprep.subr.mxu0 0.0
  %340 = vmatpush1.msra.mxu0 %v150
  %341 = vmatprep.subr.mxu0 0.0
  %342 = vmatpush1.msra.mxu0 %v149
  %343 = vmatprep.subr.mxu0 0.0
  %344 = vmatpush1.msra.mxu0 %v148
  %345 = vmatprep.subr.mxu0 0.0
  %346 = vmatpush2.msra.mxu0 0.0
  %347 = vmatprep.subr.mxu0 0.0
  %348 = vmatpush2.msra.mxu0 0.0
  %349 = vmatprep.subr.mxu0 0.0
  %350 = vmatpush2.msra.mxu0 0.0
  %351 = vmatprep.subr.mxu0 0.0
  %352 = vmatpush2.msra.mxu0 0.0
  %353 = vmatprep.subr.mxu0 0.0
  %354 = vmatpush2.msra.mxu0 0.0
  %355 = vmatprep.subr.mxu0 0.0
  %356 = vmatpush2.msra.mxu0 0.0
  %357 = vmatprep.subr.mxu0 0.0
  %358 = vmatpush2.msra.mxu0 0.0
  %359 = vmatprep.subr.mxu0 0.0
  %360 = vmatpush2.msra.mxu0 0.0
  %361 = vmatprep.subr.mxu0 0.0
  %362 = vmatpush2.msra.mxu0 0.0
  %363 = vmatprep.subr.mxu0 0.0
  %364 = vmatpush2.msra.mxu0 0.0
  %365 = vmatprep.subr.mxu0 0.0
  %366 = vmatpush2.msra.mxu0 0.0
  %367 = vmatprep.subr.mxu0 0.0
  %368 = vmatpush2.msra.mxu0 0.0
  %369 = vmatprep.subr.mxu0 0.0
  %370 = vmatpush2.msra.mxu0 0.0
  %371 = vmatprep.subr.mxu0 0.0
  %372 = vmatpush2.msra.mxu0 0.0
  %373 = vmatprep.subr.mxu0 0.0
  %374 = vmatpush2.msra.mxu0 0.0
  %375 = vmatprep.subr.mxu0 0.0
  %376 = vmatpush2.msra.mxu0 0.0
  %377 = vmatprep.mubr.f32.mxu0 0.0
  %378 = vmatmul.mubr.f32.gmra.mxu0 %v163
  %v379 = vpop.f32.mrf.mxu0
  %v380 = vadd.f32 %v312, %v379
  %v381 = vpop.f32.mrf.mxu0
  %382 = vdwg.mxu0
  %v383 = vmul.f32 %v232, 0.35355338
  %vm384 = vcmask 64512
  %v386 = vsel %vm384, %v383, 0
  %v389 = vsel %vm384, %v306, 0
  %391 = vmatprep.subr.mxu0 0.0
  %392 = vmatpush1.xpose.msra.mxu0 0.0
  %393 = vmatprep.subr.mxu0 0.0
  %394 = vmatpush1.xpose.msra.mxu0 0.0
  %395 = vmatprep.subr.mxu0 0.0
  %396 = vmatpush1.xpose.msra.mxu0 0.0
  %397 = vmatprep.subr.mxu0 0.0
  %398 = vmatpush1.xpose.msra.mxu0 0.0
  %399 = vmatprep.subr.mxu0 0.0
  %400 = vmatpush1.xpose.msra.mxu0 0.0
  %401 = vmatprep.subr.mxu0 0.0
  %402 = vmatpush1.xpose.msra.mxu0 0.0
  %403 = vmatprep.subr.mxu0 0.0
  %404 = vmatpush1.xpose.msra.mxu0 0.0
  %405 = vmatprep.subr.mxu0 0.0
  %406 = vmatpush1.xpose.msra.mxu0 0.0
  %407 = vmatprep.subr.mxu0 0.0
  %408 = vmatpush1.xpose.msra.mxu0 0.0
  %409 = vmatprep.subr.mxu0 0.0
  %410 = vmatpush1.xpose.msra.mxu0 0.0
  %411 = vmatprep.subr.mxu0 0.0
  %412 = vmatpush1.xpose.msra.mxu0 0.0
  %413 = vmatprep.subr.mxu0 0.0
  %414 = vmatpush1.xpose.msra.mxu0 0.0
  %415 = vmatprep.subr.mxu0 0.0
  %416 = vmatpush1.xpose.msra.mxu0 0.0
  %417 = vmatprep.subr.mxu0 0.0
  %418 = vmatpush1.xpose.msra.mxu0 0.0
  %419 = vmatprep.subr.mxu0 0.0
  %420 = vmatpush1.xpose.msra.mxu0 0.0
  %421 = vmatprep.subr.mxu0 0.0
  %422 = vmatpush1.xpose.msra.mxu0 %v389
  %423 = vmatprep.subr.mxu0 0.0
  %424 = vmatpush2.xpose.msra.mxu0 0.0
  %425 = vmatprep.subr.mxu0 0.0
  %426 = vmatpush2.xpose.msra.mxu0 0.0
  %427 = vmatprep.subr.mxu0 0.0
  %428 = vmatpush2.xpose.msra.mxu0 0.0
  %429 = vmatprep.subr.mxu0 0.0
  %430 = vmatpush2.xpose.msra.mxu0 0.0
  %431 = vmatprep.subr.mxu0 0.0
  %432 = vmatpush2.xpose.msra.mxu0 0.0
  %433 = vmatprep.subr.mxu0 0.0
  %434 = vmatpush2.xpose.msra.mxu0 0.0
  %435 = vmatprep.subr.mxu0 0.0
  %436 = vmatpush2.xpose.msra.mxu0 0.0
  %437 = vmatprep.subr.mxu0 0.0
  %438 = vmatpush2.xpose.msra.mxu0 0.0
  %439 = vmatprep.subr.mxu0 0.0
  %440 = vmatpush2.xpose.msra.mxu0 0.0
  %441 = vmatprep.subr.mxu0 0.0
  %442 = vmatpush2.xpose.msra.mxu0 0.0
  %443 = vmatprep.subr.mxu0 0.0
  %444 = vmatpush2.xpose.msra.mxu0 0.0
  %445 = vmatprep.subr.mxu0 0.0
  %446 = vmatpush2.xpose.msra.mxu0 0.0
  %447 = vmatprep.subr.mxu0 0.0
  %448 = vmatpush2.xpose.msra.mxu0 0.0
  %449 = vmatprep.subr.mxu0 0.0
  %450 = vmatpush2.xpose.msra.mxu0 0.0
  %451 = vmatprep.subr.mxu0 0.0
  %452 = vmatpush2.xpose.msra.mxu0 0.0
  %453 = vmatprep.subr.mxu0 0.0
  %454 = vmatpush2.xpose.msra.mxu0 0.0
  %455 = vmatprep.mubr.f32.mxu0 0.0
  %456 = vmatmul.mubr.f32.gmra.mxu0 %v386
  %v457 = vpop.f32.mrf.mxu0
  %v458 = vadd.f32 %v134, %v457
  %v459 = vpop.f32.mrf.mxu0
  %460 = vdwg.mxu0
  %vm461 = vcmask 46080
  %v462 = vsel %vm461, %v458, -inf
  %463 = vmax.xlane.f32.xlu0 %v462
  %v464 = vpop.xlane.xlu0 %463
  %v465 = vsub.f32 %v458, %v464
  %v466 = vmul.f32 %v465, 1.442695
  %v467 = vpow.pop %v466
  %v468 = vsel %vm461, %v467, 0.0
  %469 = vadd.xlane.f32.xlu0 %v468
  %v470 = vpop.xlane.xlu0 %469
  %v471 = vrcp.pop %v470
  %v472 = vmul.f32 %v467, %v471
  %vm473 = vcmask 48128
  %v475 = vsel %vm473, %v472, 0
  %vm477 = vcmask 1045504
  %v479 = vsel %vm477, %v380, 0
  %481 = vmatprep.subr.mxu0 0.0
  %482 = vmatpush1.msra.mxu0 0.0
  %483 = vmatprep.subr.mxu0 0.0
  %484 = vmatpush1.msra.mxu0 0.0
  %485 = vmatprep.subr.mxu0 0.0
  %486 = vmatpush1.msra.mxu0 0.0
  %487 = vmatprep.subr.mxu0 0.0
  %488 = vmatpush1.msra.mxu0 0.0
  %489 = vmatprep.subr.mxu0 0.0
  %490 = vmatpush1.msra.mxu0 0.0
  %491 = vmatprep.subr.mxu0 0.0
  %492 = vmatpush1.msra.mxu0 0.0
  %493 = vmatprep.subr.mxu0 0.0
  %494 = vmatpush1.msra.mxu0 0.0
  %495 = vmatprep.subr.mxu0 0.0
  %496 = vmatpush1.msra.mxu0 0.0
  %497 = vmatprep.subr.mxu0 0.0
  %498 = vmatpush1.msra.mxu0 0.0
  %499 = vmatprep.subr.mxu0 0.0
  %500 = vmatpush1.msra.mxu0 0.0
  %501 = vmatprep.subr.mxu0 0.0
  %502 = vmatpush1.msra.mxu0 0.0
  %503 = vmatprep.subr.mxu0 0.0
  %504 = vmatpush1.msra.mxu0 0.0
  %505 = vmatprep.subr.mxu0 0.0
  %506 = vmatpush1.msra.mxu0 0.0
  %507 = vmatprep.subr.mxu0 0.0
  %508 = vmatpush1.msra.mxu0 0.0
  %509 = vmatprep.subr.mxu0 0.0
  %510 = vmatpush1.msra.mxu0 0.0
  %511 = vmatprep.subr.mxu0 0.0
  %512 = vmatpush1.msra.mxu0 %v479
  %513 = vmatprep.subr.mxu0 0.0
  %514 = vmatpush2.msra.mxu0 0.0
  %515 = vmatprep.subr.mxu0 0.0
  %516 = vmatpush2.msra.mxu0 0.0
  %517 = vmatprep.subr.mxu0 0.0
  %518 = vmatpush2.msra.mxu0 0.0
  %519 = vmatprep.subr.mxu0 0.0
  %520 = vmatpush2.msra.mxu0 0.0
  %521 = vmatprep.subr.mxu0 0.0
  %522 = vmatpush2.msra.mxu0 0.0
  %523 = vmatprep.subr.mxu0 0.0
  %524 = vmatpush2.msra.mxu0 0.0
  %525 = vmatprep.subr.mxu0 0.0
  %526 = vmatpush2.msra.mxu0 0.0
  %527 = vmatprep.subr.mxu0 0.0
  %528 = vmatpush2.msra.mxu0 0.0
  %529 = vmatprep.subr.mxu0 0.0
  %530 = vmatpush2.msra.mxu0 0.0
  %531 = vmatprep.subr.mxu0 0.0
  %532 = vmatpush2.msra.mxu0 0.0
  %533 = vmatprep.subr.mxu0 0.0
  %534 = vmatpush2.msra.mxu0 0.0
  %535 = vmatprep.subr.mxu0 0.0
  %536 = vmatpush2.msra.mxu0 0.0
  %537 = vmatprep.subr.mxu0 0.0
  %538 = vmatpush2.msra.mxu0 0.0
  %539 = vmatprep.subr.mxu0 0.0
  %540 = vmatpush2.msra.mxu0 0.0
  %541 = vmatprep.subr.mxu0 0.0
  %542 = vmatpush2.msra.mxu0 0.0
  %543 = vmatprep.subr.mxu0 0.0
  %544 = vmatpush2.msra.mxu0 0.0
  %545 = vmatprep.mubr.f32.mxu0 0.0
  %546 = vmatmul.mubr.f32.gmra.mxu0 %v475
  %v547 = vpop.f32.mrf.mxu0
  %v548 = vadd.f32 0.0, %v547
  %v549 = vpop.f32.mrf.mxu0
  %550 = vdwg.mxu0
  %551 = vrot.lane.b32.xlu0 %v383, 120
  %v552 = vpop.permute.xlu0 %551
  %553 = vrot.lane.b32.xlu0 %v306, 120
  %v554 = vpop.permute.xlu0 %553
  %v555 = vsel %vm384, %v552, 0
  %v557 = vsel %vm384, %v554, 0
  %559 = vmatprep.subr.mxu0 0.0
  %560 = vmatpush1.xpose.msra.mxu0 0.0
  %561 = vmatprep.subr.mxu0 0.0
  %562 = vmatpush1.xpose.msra.mxu0 0.0
  %563 = vmatprep.subr.mxu0 0.0
  %564 = vmatpush1.xpose.msra.mxu0 0.0
  %565 = vmatprep.subr.mxu0 0.0
  %566 = vmatpush1.xpose.msra.mxu0 0.0
  %567 = vmatprep.subr.mxu0 0.0
  %568 = vmatpush1.xpose.msra.mxu0 0.0
  %569 = vmatprep.subr.mxu0 0.0
  %570 = vmatpush1.xpose.msra.mxu0 0.0
  %571 = vmatprep.subr.mxu0 0.0
  %572 = vmatpush1.xpose.msra.mxu0 0.0
  %573 = vmatprep.subr.mxu0 0.0
  %574 = vmatpush1.xpose.msra.mxu0 0.0
  %575 = vmatprep.subr.mxu0 0.0
  %576 = vmatpush1.xpose.msra.mxu0 0.0
  %577 = vmatprep.subr.mxu0 0.0
  %578 = vmatpush1.xpose.msra.mxu0 0.0
  %579 = vmatprep.subr.mxu0 0.0
  %580 = vmatpush1.xpose.msra.mxu0 0.0
  %581 = vmatprep.subr.mxu0 0.0
  %582 = vmatpush1.xpose.msra.mxu0 0.0
  %583 = vmatprep.subr.mxu0 0.0
  %584 = vmatpush1.xpose.msra.mxu0 0.0
  %585 = vmatprep.subr.mxu0 0.0
  %586 = vmatpush1.xpose.msra.mxu0 0.0
  %587 = vmatprep.subr.mxu0 0.0
  %588 = vmatpush1.xpose.msra.mxu0 0.0
  %589 = vmatprep.subr.mxu0 0.0
  %590 = vmatpush1.xpose.msra.mxu0 %v557
  %591 = vmatprep.subr.mxu0 0.0
  %592 = vmatpush2.xpose.msra.mxu0 0.0
  %593 = vmatprep.subr.mxu0 0.0
  %594 = vmatpush2.xpose.msra.mxu0 0.0
  %595 = vmatprep.subr.mxu0 0.0
  %596 = vmatpush2.xpose.msra.mxu0 0.0
  %597 = vmatprep.subr.mxu0 0.0
  %598 = vmatpush2.xpose.msra.mxu0 0.0
  %599 = vmatprep.subr.mxu0 0.0
  %600 = vmatpush2.xpose.msra.mxu0 0.0
  %601 = vmatprep.subr.mxu0 0.0
  %602 = vmatpush2.xpose.msra.mxu0 0.0
  %603 = vmatprep.subr.mxu0 0.0
  %604 = vmatpush2.xpose.msra.mxu0 0.0
  %605 = vmatprep.subr.mxu0 0.0
  %606 = vmatpush2.xpose.msra.mxu0 0.0
  %607 = vmatprep.subr.mxu0 0.0
  %608 = vmatpush2.xpose.msra.mxu0 0.0
  %609 = vmatprep.subr.mxu0 0.0
  %610 = vmatpush2.xpose.msra.mxu0 0.0
  %611 = vmatprep.subr.mxu0 0.0
  %612 = vmatpush2.xpose.msra.mxu0 0.0
  %613 = vmatprep.subr.mxu0 0.0
  %614 = vmatpush2.xpose.msra.mxu0 0.0
  %615 = vmatprep.subr.mxu0 0.0
  %616 = vmatpush2.xpose.msra.mxu0 0.0
  %617 = vmatprep.subr.mxu0 0.0
  %618 = vmatpush2.xpose.msra.mxu0 0.0
  %619 = vmatprep.subr.mxu0 0.0
  %620 = vmatpush2.xpose.msra.mxu0 0.0
  %621 = vmatprep.subr.mxu0 0.0
  %622 = vmatpush2.xpose.msra.mxu0 0.0
  %623 = vmatprep.mubr.f32.mxu0 0.0
  %624 = vmatmul.mubr.f32.gmra.mxu0 %v555
  %v625 = vpop.f32.mrf.mxu0
  %v626 = vadd.f32 %v134, %v625
  %v627 = vpop.f32.mrf.mxu0
  %628 = vdwg.mxu0
  %v629 = vsel %vm461, %v626, -inf
  %630 = vmax.xlane.f32.xlu0 %v629
  %v631 = vpop.xlane.xlu0 %630
  %v632 = vsub.f32 %v626, %v631
  %v633 = vmul.f32 %v632, 1.442695
  %v634 = vpow.pop %v633
  %v635 = vsel %vm461, %v634, 0.0
  %636 = vadd.xlane.f32.xlu0 %v635
  %v637 = vpop.xlane.xlu0 %636
  %v638 = vrcp.pop %v637
  %v639 = vmul.f32 %v634, %v638
  %640 = vrot.lane.b32.xlu0 %v380, 120
  %v641 = vpop.permute.xlu0 %640
  %v643 = vsel %vm473, %v639, 0
  %v645 = vsel %vm477, %v641, 0
  %647 = vmatprep.subr.mxu0 0.0
  %648 = vmatpush1.msra.mxu0 0.0
  %649 = vmatprep.subr.mxu0 0.0
  %650 = vmatpush1.msra.mxu0 0.0
  %651 = vmatprep.subr.mxu0 0.0
  %652 = vmatpush1.msra.mxu0 0.0
  %653 = vmatprep.subr.mxu0 0.0
  %654 = vmatpush1.msra.mxu0 0.0
  %655 = vmatprep.subr.mxu0 0.0
  %656 = vmatpush1.msra.mxu0 0.0
  %657 = vmatprep.subr.mxu0 0.0
  %658 = vmatpush1.msra.mxu0 0.0
  %659 = vmatprep.subr.mxu0 0.0
  %660 = vmatpush1.msra.mxu0 0.0
  %661 = vmatprep.subr.mxu0 0.0
  %662 = vmatpush1.msra.mxu0 0.0
  %663 = vmatprep.subr.mxu0 0.0
  %664 = vmatpush1.msra.mxu0 0.0
  %665 = vmatprep.subr.mxu0 0.0
  %666 = vmatpush1.msra.mxu0 0.0
  %667 = vmatprep.subr.mxu0 0.0
  %668 = vmatpush1.msra.mxu0 0.0
  %669 = vmatprep.subr.mxu0 0.0
  %670 = vmatpush1.msra.mxu0 0.0
  %671 = vmatprep.subr.mxu0 0.0
  %672 = vmatpush1.msra.mxu0 0.0
  %673 = vmatprep.subr.mxu0 0.0
  %674 = vmatpush1.msra.mxu0 0.0
  %675 = vmatprep.subr.mxu0 0.0
  %676 = vmatpush1.msra.mxu0 0.0
  %677 = vmatprep.subr.mxu0 0.0
  %678 = vmatpush1.msra.mxu0 %v645
  %679 = vmatprep.subr.mxu0 0.0
  %680 = vmatpush2.msra.mxu0 0.0
  %681 = vmatprep.subr.mxu0 0.0
  %682 = vmatpush2.msra.mxu0 0.0
  %683 = vmatprep.subr.mxu0 0.0
  %684 = vmatpush2.msra.mxu0 0.0
  %685 = vmatprep.subr.mxu0 0.0
  %686 = vmatpush2.msra.mxu0 0.0
  %687 = vmatprep.subr.mxu0 0.0
  %688 = vmatpush2.msra.mxu0 0.0
  %689 = vmatprep.subr.mxu0 0.0
  %690 = vmatpush2.msra.mxu0 0.0
  %691 = vmatprep.subr.mxu0 0.0
  %692 = vmatpush2.msra.mxu0 0.0
  %693 = vmatprep.subr.mxu0 0.0
  %694 = vmatpush2.msra.mxu0 0.0
  %695 = vmatprep.subr.mxu0 0.0
  %696 = vmatpush2.msra.mxu0 0.0
  %697 = vmatprep.subr.mxu0 0.0
  %698 = vmatpush2.msra.mxu0 0.0
  %699 = vmatprep.subr.mxu0 0.0
  %700 = vmatpush2.msra.mxu0 0.0
  %701 = vmatprep.subr.mxu0 0.0
  %702 = vmatpush2.msra.mxu0 0.0
  %703 = vmatprep.subr.mxu0 0.0
  %704 = vmatpush2.msra.mxu0 0.0
  %705 = vmatprep.subr.mxu0 0.0
  %706 = vmatpush2.msra.mxu0 0.0
  %707 = vmatprep.subr.mxu0 0.0
  %708 = vmatpush2.msra.mxu0 0.0
  %709 = vmatprep.subr.mxu0 0.0
  %710 = vmatpush2.msra.mxu0 0.0
  %711 = vmatprep.mubr.f32.mxu0 0.0
  %712 = vmatmul.mubr.f32.gmra.mxu0 %v643
  %v713 = vpop.f32.mrf.mxu0
  %v714 = vadd.f32 0.0, %v713
  %v715 = vpop.f32.mrf.mxu0
  %716 = vdwg.mxu0
  %717 = vrot.lane.b32.xlu0 %v383, 112
  %v718 = vpop.permute.xlu0 %717
  %719 = vrot.lane.b32.xlu0 %v306, 112
  %v720 = vpop.permute.xlu0 %719
  %v721 = vsel %vm384, %v718, 0
  %v723 = vsel %vm384, %v720, 0
  %725 = vmatprep.subr.mxu0 0.0
  %726 = vmatpush1.xpose.msra.mxu0 0.0
  %727 = vmatprep.subr.mxu0 0.0
  %728 = vmatpush1.xpose.msra.mxu0 0.0
  %729 = vmatprep.subr.mxu0 0.0
  %730 = vmatpush1.xpose.msra.mxu0 0.0
  %731 = vmatprep.subr.mxu0 0.0
  %732 = vmatpush1.xpose.msra.mxu0 0.0
  %733 = vmatprep.subr.mxu0 0.0
  %734 = vmatpush1.xpose.msra.mxu0 0.0
  %735 = vmatprep.subr.mxu0 0.0
  %736 = vmatpush1.xpose.msra.mxu0 0.0
  %737 = vmatprep.subr.mxu0 0.0
  %738 = vmatpush1.xpose.msra.mxu0 0.0
  %739 = vmatprep.subr.mxu0 0.0
  %740 = vmatpush1.xpose.msra.mxu0 0.0
  %741 = vmatprep.subr.mxu0 0.0
  %742 = vmatpush1.xpose.msra.mxu0 0.0
  %743 = vmatprep.subr.mxu0 0.0
  %744 = vmatpush1.xpose.msra.mxu0 0.0
  %745 = vmatprep.subr.mxu0 0.0
  %746 = vmatpush1.xpose.msra.mxu0 0.0
  %747 = vmatprep.subr.mxu0 0.0
  %748 = vmatpush1.xpose.msra.mxu0 0.0
  %749 = vmatprep.subr.mxu0 0.0
  %750 = vmatpush1.xpose.msra.mxu0 0.0
  %751 = vmatprep.subr.mxu0 0.0
  %752 = vmatpush1.xpose.msra.mxu0 0.0
  %753 = vmatprep.subr.mxu0 0.0
  %754 = vmatpush1.xpose.msra.mxu0 0.0
  %755 = vmatprep.subr.mxu0 0.0
  %756 = vmatpush1.xpose.msra.mxu0 %v723
  %757 = vmatprep.subr.mxu0 0.0
  %758 = vmatpush2.xpose.msra.mxu0 0.0
  %759 = vmatprep.subr.mxu0 0.0
  %760 = vmatpush2.xpose.msra.mxu0 0.0
  %761 = vmatprep.subr.mxu0 0.0
  %762 = vmatpush2.xpose.msra.mxu0 0.0
  %763 = vmatprep.subr.mxu0 0.0
  %764 = vmatpush2.xpose.msra.mxu0 0.0
  %765 = vmatprep.subr.mxu0 0.0
  %766 = vmatpush2.xpose.msra.mxu0 0.0
  %767 = vmatprep.subr.mxu0 0.0
  %768 = vmatpush2.xpose.msra.mxu0 0.0
  %769 = vmatprep.subr.mxu0 0.0
  %770 = vmatpush2.xpose.msra.mxu0 0.0
  %771 = vmatprep.subr.mxu0 0.0
  %772 = vmatpush2.xpose.msra.mxu0 0.0
  %773 = vmatprep.subr.mxu0 0.0
  %774 = vmatpush2.xpose.msra.mxu0 0.0
  %775 = vmatprep.subr.mxu0 0.0
  %776 = vmatpush2.xpose.msra.mxu0 0.0
  %777 = vmatprep.subr.mxu0 0.0
  %778 = vmatpush2.xpose.msra.mxu0 0.0
  %779 = vmatprep.subr.mxu0 0.0
  %780 = vmatpush2.xpose.msra.mxu0 0.0
  %781 = vmatprep.subr.mxu0 0.0
  %782 = vmatpush2.xpose.msra.mxu0 0.0
  %783 = vmatprep.subr.mxu0 0.0
  %784 = vmatpush2.xpose.msra.mxu0 0.0
  %785 = vmatprep.subr.mxu0 0.0
  %786 = vmatpush2.xpose.msra.mxu0 0.0
  %787 = vmatprep.subr.mxu0 0.0
  %788 = vmatpush2.xpose.msra.mxu0 0.0
  %789 = vmatprep.mubr.f32.mxu0 0.0
  %790 = vmatmul.mubr.f32.gmra.mxu0 %v721
  %v791 = vpop.f32.mrf.mxu0
  %v792 = vadd.f32 %v134, %v791
  %v793 = vpop.f32.mrf.mxu0
  %794 = vdwg.mxu0
  %v795 = vsel %vm461, %v792, -inf
  %796 = vmax.xlane.f32.xlu0 %v795
  %v797 = vpop.xlane.xlu0 %796
  %v798 = vsub.f32 %v792, %v797
  %v799 = vmul.f32 %v798, 1.442695
  %v800 = vpow.pop %v799
  %v801 = vsel %vm461, %v800, 0.0
  %802 = vadd.xlane.f32.xlu0 %v801
  %v803 = vpop.xlane.xlu0 %802
  %v804 = vrcp.pop %v803
  %v805 = vmul.f32 %v800, %v804
  %806 = vrot.lane.b32.xlu0 %v380, 112
  %v807 = vpop.permute.xlu0 %806
  %v809 = vsel %vm473, %v805, 0
  %v811 = vsel %vm477, %v807, 0
  %813 = vmatprep.subr.mxu0 0.0
  %814 = vmatpush1.msra.mxu0 0.0
  %815 = vmatprep.subr.mxu0 0.0
  %816 = vmatpush1.msra.mxu0 0.0
  %817 = vmatprep.subr.mxu0 0.0
  %818 = vmatpush1.msra.mxu0 0.0
  %819 = vmatprep.subr.mxu0 0.0
  %820 = vmatpush1.msra.mxu0 0.0
  %821 = vmatprep.subr.mxu0 0.0
  %822 = vmatpush1.msra.mxu0 0.0
  %823 = vmatprep.subr.mxu0 0.0
  %824 = vmatpush1.msra.mxu0 0.0
  %825 = vmatprep.subr.mxu0 0.0
  %826 = vmatpush1.msra.mxu0 0.0
  %827 = vmatprep.subr.mxu0 0.0
  %828 = vmatpush1.msra.mxu0 0.0
  %829 = vmatprep.subr.mxu0 0.0
  %830 = vmatpush1.msra.mxu0 0.0
  %831 = vmatprep.subr.mxu0 0.0
  %832 = vmatpush1.msra.mxu0 0.0
  %833 = vmatprep.subr.mxu0 0.0
  %834 = vmatpush1.msra.mxu0 0.0
  %835 = vmatprep.subr.mxu0 0.0
  %836 = vmatpush1.msra.mxu0 0.0
  %837 = vmatprep.subr.mxu0 0.0
  %838 = vmatpush1.msra.mxu0 0.0
  %839 = vmatprep.subr.mxu0 0.0
  %840 = vmatpush1.msra.mxu0 0.0
  %841 = vmatprep.subr.mxu0 0.0
  %842 = vmatpush1.msra.mxu0 0.0
  %843 = vmatprep.subr.mxu0 0.0
  %844 = vmatpush1.msra.mxu0 %v811
  %845 = vmatprep.subr.mxu0 0.0
  %846 = vmatpush2.msra.mxu0 0.0
  %847 = vmatprep.subr.mxu0 0.0
  %848 = vmatpush2.msra.mxu0 0.0
  %849 = vmatprep.subr.mxu0 0.0
  %850 = vmatpush2.msra.mxu0 0.0
  %851 = vmatprep.subr.mxu0 0.0
  %852 = vmatpush2.msra.mxu0 0.0
  %853 = vmatprep.subr.mxu0 0.0
  %854 = vmatpush2.msra.mxu0 0.0
  %855 = vmatprep.subr.mxu0 0.0
  %856 = vmatpush2.msra.mxu0 0.0
  %857 = vmatprep.subr.mxu0 0.0
  %858 = vmatpush2.msra.mxu0 0.0
  %859 = vmatprep.subr.mxu0 0.0
  %860 = vmatpush2.msra.mxu0 0.0
  %861 = vmatprep.subr.mxu0 0.0
  %862 = vmatpush2.msra.mxu0 0.0
  %863 = vmatprep.subr.mxu0 0.0
  %864 = vmatpush2.msra.mxu0 0.0
  %865 = vmatprep.subr.mxu0 0.0
  %866 = vmatpush2.msra.mxu0 0.0
  %867 = vmatprep.subr.mxu0 0.0
  %868 = vmatpush2.msra.mxu0 0.0
  %869 = vmatprep.subr.mxu0 0.0
  %870 = vmatpush2.msra.mxu0 0.0
  %871 = vmatprep.subr.mxu0 0.0
  %872 = vmatpush2.msra.mxu0 0.0
  %873 = vmatprep.subr.mxu0 0.0
  %874 = vmatpush2.msra.mxu0 0.0
  %875 = vmatprep.subr.mxu0 0.0
  %876 = vmatpush2.msra.mxu0 0.0
  %877 = vmatprep.mubr.f32.mxu0 0.0
  %878 = vmatmul.mubr.f32.gmra.mxu0 %v809
  %v879 = vpop.f32.mrf.mxu0
  %v880 = vadd.f32 0.0, %v879
  %v881 = vpop.f32.mrf.mxu0
  %882 = vdwg.mxu0
  %883 = vrot.lane.b32.xlu0 %v383, 104
  %v884 = vpop.permute.xlu0 %883
  %885 = vrot.lane.b32.xlu0 %v306, 104
  %v886 = vpop.permute.xlu0 %885
  %v887 = vsel %vm384, %v884, 0
  %v889 = vsel %vm384, %v886, 0
  %891 = vmatprep.subr.mxu0 0.0
  %892 = vmatpush1.xpose.msra.mxu0 0.0
  %893 = vmatprep.subr.mxu0 0.0
  %894 = vmatpush1.xpose.msra.mxu0 0.0
  %895 = vmatprep.subr.mxu0 0.0
  %896 = vmatpush1.xpose.msra.mxu0 0.0
  %897 = vmatprep.subr.mxu0 0.0
  %898 = vmatpush1.xpose.msra.mxu0 0.0
  %899 = vmatprep.subr.mxu0 0.0
  %900 = vmatpush1.xpose.msra.mxu0 0.0
  %901 = vmatprep.subr.mxu0 0.0
  %902 = vmatpush1.xpose.msra.mxu0 0.0
  %903 = vmatprep.subr.mxu0 0.0
  %904 = vmatpush1.xpose.msra.mxu0 0.0
  %905 = vmatprep.subr.mxu0 0.0
  %906 = vmatpush1.xpose.msra.mxu0 0.0
  %907 = vmatprep.subr.mxu0 0.0
  %908 = vmatpush1.xpose.msra.mxu0 0.0
  %909 = vmatprep.subr.mxu0 0.0
  %910 = vmatpush1.xpose.msra.mxu0 0.0
  %911 = vmatprep.subr.mxu0 0.0
  %912 = vmatpush1.xpose.msra.mxu0 0.0
  %913 = vmatprep.subr.mxu0 0.0
  %914 = vmatpush1.xpose.msra.mxu0 0.0
  %915 = vmatprep.subr.mxu0 0.0
  %916 = vmatpush1.xpose.msra.mxu0 0.0
  %917 = vmatprep.subr.mxu0 0.0
  %918 = vmatpush1.xpose.msra.mxu0 0.0
  %919 = vmatprep.subr.mxu0 0.0
  %920 = vmatpush1.xpose.msra.mxu0 0.0
  %921 = vmatprep.subr.mxu0 0.0
  %922 = vmatpush1.xpose.msra.mxu0 %v889
  %923 = vmatprep.subr.mxu0 0.0
  %924 = vmatpush2.xpose.msra.mxu0 0.0
  %925 = vmatprep.subr.mxu0 0.0
  %926 = vmatpush2.xpose.msra.mxu0 0.0
  %927 = vmatprep.subr.mxu0 0.0
  %928 = vmatpush2.xpose.msra.mxu0 0.0
  %929 = vmatprep.subr.mxu0 0.0
  %930 = vmatpush2.xpose.msra.mxu0 0.0
  %931 = vmatprep.subr.mxu0 0.0
  %932 = vmatpush2.xpose.msra.mxu0 0.0
  %933 = vmatprep.subr.mxu0 0.0
  %934 = vmatpush2.xpose.msra.mxu0 0.0
  %935 = vmatprep.subr.mxu0 0.0
  %936 = vmatpush2.xpose.msra.mxu0 0.0
  %937 = vmatprep.subr.mxu0 0.0
  %938 = vmatpush2.xpose.msra.mxu0 0.0
  %939 = vmatprep.subr.mxu0 0.0
  %940 = vmatpush2.xpose.msra.mxu0 0.0
  %941 = vmatprep.subr.mxu0 0.0
  %942 = vmatpush2.xpose.msra.mxu0 0.0
  %943 = vmatprep.subr.mxu0 0.0
  %944 = vmatpush2.xpose.msra.mxu0 0.0
  %945 = vmatprep.subr.mxu0 0.0
  %946 = vmatpush2.xpose.msra.mxu0 0.0
  %947 = vmatprep.subr.mxu0 0.0
  %948 = vmatpush2.xpose.msra.mxu0 0.0
  %949 = vmatprep.subr.mxu0 0.0
  %950 = vmatpush2.xpose.msra.mxu0 0.0
  %951 = vmatprep.subr.mxu0 0.0
  %952 = vmatpush2.xpose.msra.mxu0 0.0
  %953 = vmatprep.subr.mxu0 0.0
  %954 = vmatpush2.xpose.msra.mxu0 0.0
  %955 = vmatprep.mubr.f32.mxu0 0.0
  %956 = vmatmul.mubr.f32.gmra.mxu0 %v887
  %v957 = vpop.f32.mrf.mxu0
  %v958 = vadd.f32 %v134, %v957
  %v959 = vpop.f32.mrf.mxu0
  %960 = vdwg.mxu0
  %v961 = vsel %vm461, %v958, -inf
  %962 = vmax.xlane.f32.xlu0 %v961
  %v963 = vpop.xlane.xlu0 %962
  %v964 = vsub.f32 %v958, %v963
  %v965 = vmul.f32 %v964, 1.442695
  %v966 = vpow.pop %v965
  %v967 = vsel %vm461, %v966, 0.0
  %968 = vadd.xlane.f32.xlu0 %v967
  %v969 = vpop.xlane.xlu0 %968
  %v970 = vrcp.pop %v969
  %v971 = vmul.f32 %v966, %v970
  %972 = vrot.lane.b32.xlu0 %v380, 104
  %v973 = vpop.permute.xlu0 %972
  %v975 = vsel %vm473, %v971, 0
  %v977 = vsel %vm477, %v973, 0
  %979 = vmatprep.subr.mxu0 0.0
  %980 = vmatpush1.msra.mxu0 0.0
  %981 = vmatprep.subr.mxu0 0.0
  %982 = vmatpush1.msra.mxu0 0.0
  %983 = vmatprep.subr.mxu0 0.0
  %984 = vmatpush1.msra.mxu0 0.0
  %985 = vmatprep.subr.mxu0 0.0
  %986 = vmatpush1.msra.mxu0 0.0
  %987 = vmatprep.subr.mxu0 0.0
  %988 = vmatpush1.msra.mxu0 0.0
  %989 = vmatprep.subr.mxu0 0.0
  %990 = vmatpush1.msra.mxu0 0.0
  %991 = vmatprep.subr.mxu0 0.0
  %992 = vmatpush1.msra.mxu0 0.0
  %993 = vmatprep.subr.mxu0 0.0
  %994 = vmatpush1.msra.mxu0 0.0
  %995 = vmatprep.subr.mxu0 0.0
  %996 = vmatpush1.msra.mxu0 0.0
  %997 = vmatprep.subr.mxu0 0.0
  %998 = vmatpush1.msra.mxu0 0.0
  %999 = vmatprep.subr.mxu0 0.0
  %1000 = vmatpush1.msra.mxu0 0.0
  %1001 = vmatprep.subr.mxu0 0.0
  %1002 = vmatpush1.msra.mxu0 0.0
  %1003 = vmatprep.subr.mxu0 0.0
  %1004 = vmatpush1.msra.mxu0 0.0
  %1005 = vmatprep.subr.mxu0 0.0
  %1006 = vmatpush1.msra.mxu0 0.0
  %1007 = vmatprep.subr.mxu0 0.0
  %1008 = vmatpush1.msra.mxu0 0.0
  %1009 = vmatprep.subr.mxu0 0.0
  %1010 = vmatpush1.msra.mxu0 %v977
  %1011 = vmatprep.subr.mxu0 0.0
  %1012 = vmatpush2.msra.mxu0 0.0
  %1013 = vmatprep.subr.mxu0 0.0
  %1014 = vmatpush2.msra.mxu0 0.0
  %1015 = vmatprep.subr.mxu0 0.0
  %1016 = vmatpush2.msra.mxu0 0.0
  %1017 = vmatprep.subr.mxu0 0.0
  %1018 = vmatpush2.msra.mxu0 0.0
  %1019 = vmatprep.subr.mxu0 0.0
  %1020 = vmatpush2.msra.mxu0 0.0
  %1021 = vmatprep.subr.mxu0 0.0
  %1022 = vmatpush2.msra.mxu0 0.0
  %1023 = vmatprep.subr.mxu0 0.0
  %1024 = vmatpush2.msra.mxu0 0.0
  %1025 = vmatprep.subr.mxu0 0.0
  %1026 = vmatpush2.msra.mxu0 0.0
  %1027 = vmatprep.subr.mxu0 0.0
  %1028 = vmatpush2.msra.mxu0 0.0
  %1029 = vmatprep.subr.mxu0 0.0
  %1030 = vmatpush2.msra.mxu0 0.0
  %1031 = vmatprep.subr.mxu0 0.0
  %1032 = vmatpush2.msra.mxu0 0.0
  %1033 = vmatprep.subr.mxu0 0.0
  %1034 = vmatpush2.msra.mxu0 0.0
  %1035 = vmatprep.subr.mxu0 0.0
  %1036 = vmatpush2.msra.mxu0 0.0
  %1037 = vmatprep.subr.mxu0 0.0
  %1038 = vmatpush2.msra.mxu0 0.0
  %1039 = vmatprep.subr.mxu0 0.0
  %1040 = vmatpush2.msra.mxu0 0.0
  %1041 = vmatprep.subr.mxu0 0.0
  %1042 = vmatpush2.msra.mxu0 0.0
  %1043 = vmatprep.mubr.f32.mxu0 0.0
  %1044 = vmatmul.mubr.f32.gmra.mxu0 %v975
  %v1045 = vpop.f32.mrf.mxu0
  %v1046 = vadd.f32 0.0, %v1045
  %v1047 = vpop.f32.mrf.mxu0
  %1048 = vdwg.mxu0
  %1050 = vrot.lane.b32.xlu0 %v714, 8
  %v1051 = vpop.permute.xlu0 %1050
  %1054 = vrot.lane.b32.xlu0 %v880, 16
  %v1055 = vpop.permute.xlu0 %1054
  %1058 = vrot.lane.b32.xlu0 %v1046, 24
  %v1059 = vpop.permute.xlu0 %1058
  %v1061 = vsel %vm384, %v548, %v1051
  %vm1062 = vcmask 130048
  %v1063 = vsel %vm1062, %v1061, %v1055
  %vm1064 = vcmask 195584
  %v1065 = vsel %vm1064, %v1063, %v1059
  %v1066 = vlaneseq
  %v1067 = vshrl.u32 %v1066, 7
  %v1068 = vsub.s32 3, %v1067
  %v1069 = vrot.slane %v136, %v1068
  %v1071 = vsel %vm161, %v1065, 0
  %1073 = vmatprep.subr.mxu0 0.0
  %1074 = vmatpush1.msra.mxu0 0.0
  %1075 = vmatprep.subr.mxu0 0.0
  %1076 = vmatpush1.msra.mxu0 0.0
  %1077 = vmatprep.subr.mxu0 0.0
  %1078 = vmatpush1.msra.mxu0 0.0
  %1079 = vmatprep.subr.mxu0 0.0
  %1080 = vmatpush1.msra.mxu0 0.0
  %1081 = vmatprep.subr.mxu0 0.0
  %1082 = vmatpush1.msra.mxu0 0.0
  %1083 = vmatprep.subr.mxu0 0.0
  %1084 = vmatpush1.msra.mxu0 0.0
  %1085 = vmatprep.subr.mxu0 0.0
  %1086 = vmatpush1.msra.mxu0 0.0
  %1087 = vmatprep.subr.mxu0 0.0
  %1088 = vmatpush1.msra.mxu0 0.0
  %1089 = vmatprep.subr.mxu0 0.0
  %1090 = vmatpush1.msra.mxu0 0.0
  %1091 = vmatprep.subr.mxu0 0.0
  %1092 = vmatpush1.msra.mxu0 0.0
  %1093 = vmatprep.subr.mxu0 0.0
  %1094 = vmatpush1.msra.mxu0 0.0
  %1095 = vmatprep.subr.mxu0 0.0
  %1096 = vmatpush1.msra.mxu0 0.0
  %1097 = vmatprep.subr.mxu0 0.0
  %1098 = vmatpush1.msra.mxu0 %v156
  %1099 = vmatprep.subr.mxu0 0.0
  %1100 = vmatpush1.msra.mxu0 %v155
  %1101 = vmatprep.subr.mxu0 0.0
  %1102 = vmatpush1.msra.mxu0 %v154
  %1103 = vmatprep.subr.mxu0 0.0
  %1104 = vmatpush1.msra.mxu0 %v153
  %1105 = vmatprep.subr.mxu0 0.0
  %1106 = vmatpush2.msra.mxu0 0.0
  %1107 = vmatprep.subr.mxu0 0.0
  %1108 = vmatpush2.msra.mxu0 0.0
  %1109 = vmatprep.subr.mxu0 0.0
  %1110 = vmatpush2.msra.mxu0 0.0
  %1111 = vmatprep.subr.mxu0 0.0
  %1112 = vmatpush2.msra.mxu0 0.0
  %1113 = vmatprep.subr.mxu0 0.0
  %1114 = vmatpush2.msra.mxu0 0.0
  %1115 = vmatprep.subr.mxu0 0.0
  %1116 = vmatpush2.msra.mxu0 0.0
  %1117 = vmatprep.subr.mxu0 0.0
  %1118 = vmatpush2.msra.mxu0 0.0
  %1119 = vmatprep.subr.mxu0 0.0
  %1120 = vmatpush2.msra.mxu0 0.0
  %1121 = vmatprep.subr.mxu0 0.0
  %1122 = vmatpush2.msra.mxu0 0.0
  %1123 = vmatprep.subr.mxu0 0.0
  %1124 = vmatpush2.msra.mxu0 0.0
  %1125 = vmatprep.subr.mxu0 0.0
  %1126 = vmatpush2.msra.mxu0 0.0
  %1127 = vmatprep.subr.mxu0 0.0
  %1128 = vmatpush2.msra.mxu0 0.0
  %1129 = vmatprep.subr.mxu0 0.0
  %1130 = vmatpush2.msra.mxu0 0.0
  %1131 = vmatprep.subr.mxu0 0.0
  %1132 = vmatpush2.msra.mxu0 0.0
  %1133 = vmatprep.subr.mxu0 0.0
  %1134 = vmatpush2.msra.mxu0 0.0
  %1135 = vmatprep.subr.mxu0 0.0
  %1136 = vmatpush2.msra.mxu0 0.0
  %1137 = vmatprep.mubr.f32.mxu0 0.0
  %1138 = vmatmul.mubr.f32.gmra.mxu0 %v1071
  %v1139 = vpop.f32.mrf.mxu0
  %v1140 = vadd.f32 %v1069, %v1139
  %v1141 = vpop.f32.mrf.mxu0
  %1142 = vdwg.mxu0
  %v1143 = vadd.f32 %v128, %v1140
  %vm1144 = vcmask 259072
  %v1145 = vsel %vm1144, %v1143, 0.0
  %1146 = vadd.xlane.f32.xlu0 %v1145
  %v1147 = vpop.xlane.xlu0 %1146
  %v1148 = vrcp.pop 32.0
  %v1149 = vmul.f32 %v1147, %v1148
  %v1150 = vsub.f32 %v1143, %v1149
  %v1151 = vmul.f32 %v1150, %v1150
  %v1152 = vsel %vm1144, %v1151, 0.0
  %1153 = vadd.xlane.f32.xlu0 %v1152
  %v1154 = vpop.xlane.xlu0 %1153
  %v1155 = vmul.f32 %v1154, %v1148
  %v1156 = vadd.f32 %v1155, 1e-05
  %v1157 = vrsqrt.pop %v1156
  %v1158 = vmul.f32 %v1150, %v1157
  %v1159 = vlaneseq
  %v1160 = vshrl.u32 %v1159, 7
  %v1161 = vsub.s32 0, %v1160
  %v1162 = vrot.slane %v137, %v1161
  %v1163 = vmul.f32 %v1158, %v1162
  %v1164 = vlaneseq
  %v1165 = vshrl.u32 %v1164, 7
  %v1166 = vsub.s32 1, %v1165
  %v1167 = vrot.slane %v137, %v1166
  %v1168 = vadd.f32 %v1163, %v1167
  %v1169 = vld [vmem:[%s7] sm:$0xff]
  %v1170 = vld [vmem:[%s7 + $0x8] sm:$0xff]
  %v1171 = vld [vmem:[%s7 + $0x10] sm:$0xff]
  %v1172 = vld [vmem:[%s7 + $0x18] sm:$0xff]
  %s1173 = scalar_lea.vmem %s7, 32
  %v1174 = vld [vmem:[%s1173] sm:$0xff]
  %v1175 = vld [vmem:[%s1173 + $0x8] sm:$0xff]
  %v1176 = vld [vmem:[%s1173 + $0x10] sm:$0xff]
  %v1177 = vld [vmem:[%s1173 + $0x18] sm:$0xff]
  %s1178 = scalar_lea.vmem %s7, 64
  %v1179 = vld [vmem:[%s1178] sm:$0xff]
  %v1180 = vld [vmem:[%s1178 + $0x8] sm:$0xff]
  %v1181 = vld [vmem:[%s1178 + $0x10] sm:$0xff]
  %v1182 = vld [vmem:[%s1178 + $0x18] sm:$0xff]
  %s1183 = scalar_lea.vmem %s7, 96
  %v1184 = vld [vmem:[%s1183] sm:$0xff]
  %v1185 = vld [vmem:[%s1183 + $0x8] sm:$0xff]
  %v1186 = vld [vmem:[%s1183 + $0x10] sm:$0xff]
  %v1187 = vld [vmem:[%s1183 + $0x18] sm:$0xff]
  %v1188 = vlaneseq
  %v1189 = vshrl.u32 %v1188, 7
  %v1190 = vsub.s32 4, %v1189
  %v1191 = vrot.slane %v136, %v1190
  %v1193 = vsel %vm161, %v1168, 0
  %1195 = vmatprep.subr.mxu0 0.0
  %1196 = vmatpush1.msra.mxu0 0.0
  %1197 = vmatprep.subr.mxu0 0.0
  %1198 = vmatpush1.msra.mxu0 0.0
  %1199 = vmatprep.subr.mxu0 0.0
  %1200 = vmatpush1.msra.mxu0 0.0
  %1201 = vmatprep.subr.mxu0 0.0
  %1202 = vmatpush1.msra.mxu0 0.0
  %1203 = vmatprep.subr.mxu0 0.0
  %1204 = vmatpush1.msra.mxu0 0.0
  %1205 = vmatprep.subr.mxu0 0.0
  %1206 = vmatpush1.msra.mxu0 0.0
  %1207 = vmatprep.subr.mxu0 0.0
  %1208 = vmatpush1.msra.mxu0 0.0
  %1209 = vmatprep.subr.mxu0 0.0
  %1210 = vmatpush1.msra.mxu0 0.0
  %1211 = vmatprep.subr.mxu0 0.0
  %1212 = vmatpush1.msra.mxu0 0.0
  %1213 = vmatprep.subr.mxu0 0.0
  %1214 = vmatpush1.msra.mxu0 0.0
  %1215 = vmatprep.subr.mxu0 0.0
  %1216 = vmatpush1.msra.mxu0 0.0
  %1217 = vmatprep.subr.mxu0 0.0
  %1218 = vmatpush1.msra.mxu0 0.0
  %1219 = vmatprep.subr.mxu0 0.0
  %1220 = vmatpush1.msra.mxu0 %v1172
  %1221 = vmatprep.subr.mxu0 0.0
  %1222 = vmatpush1.msra.mxu0 %v1171
  %1223 = vmatprep.subr.mxu0 0.0
  %1224 = vmatpush1.msra.mxu0 %v1170
  %1225 = vmatprep.subr.mxu0 0.0
  %1226 = vmatpush1.msra.mxu0 %v1169
  %1227 = vmatprep.subr.mxu0 0.0
  %1228 = vmatpush2.msra.mxu0 0.0
  %1229 = vmatprep.subr.mxu0 0.0
  %1230 = vmatpush2.msra.mxu0 0.0
  %1231 = vmatprep.subr.mxu0 0.0
  %1232 = vmatpush2.msra.mxu0 0.0
  %1233 = vmatprep.subr.mxu0 0.0
  %1234 = vmatpush2.msra.mxu0 0.0
  %1235 = vmatprep.subr.mxu0 0.0
  %1236 = vmatpush2.msra.mxu0 0.0
  %1237 = vmatprep.subr.mxu0 0.0
  %1238 = vmatpush2.msra.mxu0 0.0
  %1239 = vmatprep.subr.mxu0 0.0
  %1240 = vmatpush2.msra.mxu0 0.0
  %1241 = vmatprep.subr.mxu0 0.0
  %1242 = vmatpush2.msra.mxu0 0.0
  %1243 = vmatprep.subr.mxu0 0.0
  %1244 = vmatpush2.msra.mxu0 0.0
  %1245 = vmatprep.subr.mxu0 0.0
  %1246 = vmatpush2.msra.mxu0 0.0
  %1247 = vmatprep.subr.mxu0 0.0
  %1248 = vmatpush2.msra.mxu0 0.0
  %1249 = vmatprep.subr.mxu0 0.0
  %1250 = vmatpush2.msra.mxu0 0.0
  %1251 = vmatprep.subr.mxu0 0.0
  %1252 = vmatpush2.msra.mxu0 0.0
  %1253 = vmatprep.subr.mxu0 0.0
  %1254 = vmatpush2.msra.mxu0 0.0
  %1255 = vmatprep.subr.mxu0 0.0
  %1256 = vmatpush2.msra.mxu0 0.0
  %1257 = vmatprep.subr.mxu0 0.0
  %1258 = vmatpush2.msra.mxu0 0.0
  %1259 = vmatprep.mubr.f32.mxu0 0.0
  %1260 = vmatmul.mubr.f32.gmra.mxu0 %v1193
  %v1261 = vpop.f32.mrf.mxu0
  %v1262 = vadd.f32 %v1191, %v1261
  %v1263 = vpop.f32.mrf.mxu0
  %1264 = vdwg.mxu0
  %v1265 = vlaneseq
  %v1266 = vshrl.u32 %v1265, 7
  %v1267 = vsub.s32 5, %v1266
  %v1268 = vrot.slane %v136, %v1267
  %v1270 = vsel %vm161, %v131, 0
  %v1273 = vsel %vm161, %v132, 0
  %v1276 = vsel %vm161, %v133, 0
  %1278 = vmatprep.subr.mxu0 0.0
  %1279 = vmatpush1.msra.mxu0 0.0
  %1280 = vmatprep.subr.mxu0 0.0
  %1281 = vmatpush1.msra.mxu0 0.0
  %1282 = vmatprep.subr.mxu0 0.0
  %1283 = vmatpush1.msra.mxu0 0.0
  %1284 = vmatprep.subr.mxu0 0.0
  %1285 = vmatpush1.msra.mxu0 0.0
  %1286 = vmatprep.subr.mxu0 0.0
  %1287 = vmatpush1.msra.mxu0 0.0
  %1288 = vmatprep.subr.mxu0 0.0
  %1289 = vmatpush1.msra.mxu0 0.0
  %1290 = vmatprep.subr.mxu0 0.0
  %1291 = vmatpush1.msra.mxu0 0.0
  %1292 = vmatprep.subr.mxu0 0.0
  %1293 = vmatpush1.msra.mxu0 0.0
  %1294 = vmatprep.subr.mxu0 0.0
  %1295 = vmatpush1.msra.mxu0 0.0
  %1296 = vmatprep.subr.mxu0 0.0
  %1297 = vmatpush1.msra.mxu0 0.0
  %1298 = vmatprep.subr.mxu0 0.0
  %1299 = vmatpush1.msra.mxu0 0.0
  %1300 = vmatprep.subr.mxu0 0.0
  %1301 = vmatpush1.msra.mxu0 0.0
  %1302 = vmatprep.subr.mxu0 0.0
  %1303 = vmatpush1.msra.mxu0 %v1177
  %1304 = vmatprep.subr.mxu0 0.0
  %1305 = vmatpush1.msra.mxu0 %v1176
  %1306 = vmatprep.subr.mxu0 0.0
  %1307 = vmatpush1.msra.mxu0 %v1175
  %1308 = vmatprep.subr.mxu0 0.0
  %1309 = vmatpush1.msra.mxu0 %v1174
  %1310 = vmatprep.subr.mxu0 0.0
  %1311 = vmatpush2.msra.mxu0 0.0
  %1312 = vmatprep.subr.mxu0 0.0
  %1313 = vmatpush2.msra.mxu0 0.0
  %1314 = vmatprep.subr.mxu0 0.0
  %1315 = vmatpush2.msra.mxu0 0.0
  %1316 = vmatprep.subr.mxu0 0.0
  %1317 = vmatpush2.msra.mxu0 0.0
  %1318 = vmatprep.subr.mxu0 0.0
  %1319 = vmatpush2.msra.mxu0 0.0
  %1320 = vmatprep.subr.mxu0 0.0
  %1321 = vmatpush2.msra.mxu0 0.0
  %1322 = vmatprep.subr.mxu0 0.0
  %1323 = vmatpush2.msra.mxu0 0.0
  %1324 = vmatprep.subr.mxu0 0.0
  %1325 = vmatpush2.msra.mxu0 0.0
  %1326 = vmatprep.subr.mxu0 0.0
  %1327 = vmatpush2.msra.mxu0 0.0
  %1328 = vmatprep.subr.mxu0 0.0
  %1329 = vmatpush2.msra.mxu0 0.0
  %1330 = vmatprep.subr.mxu0 0.0
  %1331 = vmatpush2.msra.mxu0 0.0
  %1332 = vmatprep.subr.mxu0 0.0
  %1333 = vmatpush2.msra.mxu0 0.0
  %1334 = vmatprep.subr.mxu0 0.0
  %1335 = vmatpush2.msra.mxu0 0.0
  %1336 = vmatprep.subr.mxu0 0.0
  %1337 = vmatpush2.msra.mxu0 0.0
  %1338 = vmatprep.subr.mxu0 0.0
  %1339 = vmatpush2.msra.mxu0 0.0
  %1340 = vmatprep.subr.mxu0 0.0
  %1341 = vmatpush2.msra.mxu0 0.0
  %1342 = vmatprep.mubr.f32.mxu0 0.0
  %1343 = vmatmul.mubr.f32.gmra.mxu0 %v1270
  %v1344 = vpop.f32.mrf.mxu0
  %v1345 = vadd.f32 %v1268, %v1344
  %v1346 = vpop.f32.mrf.mxu0
  %1347 = vmatprep.mubr.f32.mxu0 0.0
  %1348 = vmatmul.mubr.f32.gmra.mxu0 %v1273
  %v1349 = vpop.f32.mrf.mxu0
  %v1350 = vadd.f32 %v1268, %v1349
  %v1351 = vpop.f32.mrf.mxu0
  %1352 = vmatprep.mubr.f32.mxu0 0.0
  %1353 = vmatmul.mubr.f32.gmra.mxu0 %v1276
  %v1354 = vpop.f32.mrf.mxu0
  %v1355 = vadd.f32 %v1268, %v1354
  %v1356 = vpop.f32.mrf.mxu0
  %1357 = vdwg.mxu0
  %v1358 = vlaneseq
  %v1359 = vshrl.u32 %v1358, 7
  %v1360 = vsub.s32 6, %v1359
  %v1361 = vrot.slane %v136, %v1360
  %1362 = vmatprep.subr.mxu0 0.0
  %1363 = vmatpush1.msra.mxu0 0.0
  %1364 = vmatprep.subr.mxu0 0.0
  %1365 = vmatpush1.msra.mxu0 0.0
  %1366 = vmatprep.subr.mxu0 0.0
  %1367 = vmatpush1.msra.mxu0 0.0
  %1368 = vmatprep.subr.mxu0 0.0
  %1369 = vmatpush1.msra.mxu0 0.0
  %1370 = vmatprep.subr.mxu0 0.0
  %1371 = vmatpush1.msra.mxu0 0.0
  %1372 = vmatprep.subr.mxu0 0.0
  %1373 = vmatpush1.msra.mxu0 0.0
  %1374 = vmatprep.subr.mxu0 0.0
  %1375 = vmatpush1.msra.mxu0 0.0
  %1376 = vmatprep.subr.mxu0 0.0
  %1377 = vmatpush1.msra.mxu0 0.0
  %1378 = vmatprep.subr.mxu0 0.0
  %1379 = vmatpush1.msra.mxu0 0.0
  %1380 = vmatprep.subr.mxu0 0.0
  %1381 = vmatpush1.msra.mxu0 0.0
  %1382 = vmatprep.subr.mxu0 0.0
  %1383 = vmatpush1.msra.mxu0 0.0
  %1384 = vmatprep.subr.mxu0 0.0
  %1385 = vmatpush1.msra.mxu0 0.0
  %1386 = vmatprep.subr.mxu0 0.0
  %1387 = vmatpush1.msra.mxu0 %v1182
  %1388 = vmatprep.subr.mxu0 0.0
  %1389 = vmatpush1.msra.mxu0 %v1181
  %1390 = vmatprep.subr.mxu0 0.0
  %1391 = vmatpush1.msra.mxu0 %v1180
  %1392 = vmatprep.subr.mxu0 0.0
  %1393 = vmatpush1.msra.mxu0 %v1179
  %1394 = vmatprep.subr.mxu0 0.0
  %1395 = vmatpush2.msra.mxu0 0.0
  %1396 = vmatprep.subr.mxu0 0.0
  %1397 = vmatpush2.msra.mxu0 0.0
  %1398 = vmatprep.subr.mxu0 0.0
  %1399 = vmatpush2.msra.mxu0 0.0
  %1400 = vmatprep.subr.mxu0 0.0
  %1401 = vmatpush2.msra.mxu0 0.0
  %1402 = vmatprep.subr.mxu0 0.0
  %1403 = vmatpush2.msra.mxu0 0.0
  %1404 = vmatprep.subr.mxu0 0.0
  %1405 = vmatpush2.msra.mxu0 0.0
  %1406 = vmatprep.subr.mxu0 0.0
  %1407 = vmatpush2.msra.mxu0 0.0
  %1408 = vmatprep.subr.mxu0 0.0
  %1409 = vmatpush2.msra.mxu0 0.0
  %1410 = vmatprep.subr.mxu0 0.0
  %1411 = vmatpush2.msra.mxu0 0.0
  %1412 = vmatprep.subr.mxu0 0.0
  %1413 = vmatpush2.msra.mxu0 0.0
  %1414 = vmatprep.subr.mxu0 0.0
  %1415 = vmatpush2.msra.mxu0 0.0
  %1416 = vmatprep.subr.mxu0 0.0
  %1417 = vmatpush2.msra.mxu0 0.0
  %1418 = vmatprep.subr.mxu0 0.0
  %1419 = vmatpush2.msra.mxu0 0.0
  %1420 = vmatprep.subr.mxu0 0.0
  %1421 = vmatpush2.msra.mxu0 0.0
  %1422 = vmatprep.subr.mxu0 0.0
  %1423 = vmatpush2.msra.mxu0 0.0
  %1424 = vmatprep.subr.mxu0 0.0
  %1425 = vmatpush2.msra.mxu0 0.0
  %1426 = vmatprep.mubr.f32.mxu0 0.0
  %1427 = vmatmul.mubr.f32.gmra.mxu0 %v1270
  %v1428 = vpop.f32.mrf.mxu0
  %v1429 = vadd.f32 %v1361, %v1428
  %v1430 = vpop.f32.mrf.mxu0
  %1431 = vmatprep.mubr.f32.mxu0 0.0
  %1432 = vmatmul.mubr.f32.gmra.mxu0 %v1273
  %v1433 = vpop.f32.mrf.mxu0
  %v1434 = vadd.f32 %v1361, %v1433
  %v1435 = vpop.f32.mrf.mxu0
  %1436 = vmatprep.mubr.f32.mxu0 0.0
  %1437 = vmatmul.mubr.f32.gmra.mxu0 %v1276
  %v1438 = vpop.f32.mrf.mxu0
  %v1439 = vadd.f32 %v1361, %v1438
  %v1440 = vpop.f32.mrf.mxu0
  %1441 = vdwg.mxu0
  %v1442 = vmul.f32 %v1262, 0.35355338
  %v1444 = vsel %vm384, %v1442, 0
  %v1447 = vsel %vm384, %v1345, 0
  %v1450 = vsel %vm384, %v1350, 0
  %v1453 = vsel %vm384, %v1355, 0
  %1455 = vmatprep.subr.mxu0 0.0
  %1456 = vmatpush1.xpose.msra.mxu0 0.0
  %1457 = vmatprep.subr.mxu0 0.0
  %1458 = vmatpush1.xpose.msra.mxu0 0.0
  %1459 = vmatprep.subr.mxu0 0.0
  %1460 = vmatpush1.xpose.msra.mxu0 0.0
  %1461 = vmatprep.subr.mxu0 0.0
  %1462 = vmatpush1.xpose.msra.mxu0 0.0
  %1463 = vmatprep.subr.mxu0 0.0
  %1464 = vmatpush1.xpose.msra.mxu0 0.0
  %1465 = vmatprep.subr.mxu0 0.0
  %1466 = vmatpush1.xpose.msra.mxu0 0.0
  %1467 = vmatprep.subr.mxu0 0.0
  %1468 = vmatpush1.xpose.msra.mxu0 0.0
  %1469 = vmatprep.subr.mxu0 0.0
  %1470 = vmatpush1.xpose.msra.mxu0 0.0
  %1471 = vmatprep.subr.mxu0 0.0
  %1472 = vmatpush1.xpose.msra.mxu0 0.0
  %1473 = vmatprep.subr.mxu0 0.0
  %1474 = vmatpush1.xpose.msra.mxu0 0.0
  %1475 = vmatprep.subr.mxu0 0.0
  %1476 = vmatpush1.xpose.msra.mxu0 0.0
  %1477 = vmatprep.subr.mxu0 0.0
  %1478 = vmatpush1.xpose.msra.mxu0 0.0
  %1479 = vmatprep.subr.mxu0 0.0
  %1480 = vmatpush1.xpose.msra.mxu0 0.0
  %1481 = vmatprep.subr.mxu0 0.0
  %1482 = vmatpush1.xpose.msra.mxu0 %v1453
  %1483 = vmatprep.subr.mxu0 0.0
  %1484 = vmatpush1.xpose.msra.mxu0 %v1450
  %1485 = vmatprep.subr.mxu0 0.0
  %1486 = vmatpush1.xpose.msra.mxu0 %v1447
  %1487 = vmatprep.subr.mxu0 0.0
  %1488 = vmatpush2.xpose.msra.mxu0 0.0
  %1489 = vmatprep.subr.mxu0 0.0
  %1490 = vmatpush2.xpose.msra.mxu0 0.0
  %1491 = vmatprep.subr.mxu0 0.0
  %1492 = vmatpush2.xpose.msra.mxu0 0.0
  %1493 = vmatprep.subr.mxu0 0.0
  %1494 = vmatpush2.xpose.msra.mxu0 0.0
  %1495 = vmatprep.subr.mxu0 0.0
  %1496 = vmatpush2.xpose.msra.mxu0 0.0
  %1497 = vmatprep.subr.mxu0 0.0
  %1498 = vmatpush2.xpose.msra.mxu0 0.0
  %1499 = vmatprep.subr.mxu0 0.0
  %1500 = vmatpush2.xpose.msra.mxu0 0.0
  %1501 = vmatprep.subr.mxu0 0.0
  %1502 = vmatpush2.xpose.msra.mxu0 0.0
  %1503 = vmatprep.subr.mxu0 0.0
  %1504 = vmatpush2.xpose.msra.mxu0 0.0
  %1505 = vmatprep.subr.mxu0 0.0
  %1506 = vmatpush2.xpose.msra.mxu0 0.0
  %1507 = vmatprep.subr.mxu0 0.0
  %1508 = vmatpush2.xpose.msra.mxu0 0.0
  %1509 = vmatprep.subr.mxu0 0.0
  %1510 = vmatpush2.xpose.msra.mxu0 0.0
  %1511 = vmatprep.subr.mxu0 0.0
  %1512 = vmatpush2.xpose.msra.mxu0 0.0
  %1513 = vmatprep.subr.mxu0 0.0
  %1514 = vmatpush2.xpose.msra.mxu0 0.0
  %1515 = vmatprep.subr.mxu0 0.0
  %1516 = vmatpush2.xpose.msra.mxu0 0.0
  %1517 = vmatprep.subr.mxu0 0.0
  %1518 = vmatpush2.xpose.msra.mxu0 0.0
  %1519 = vmatprep.mubr.f32.mxu0 0.0
  %1520 = vmatmul.mubr.f32.gmra.mxu0 %v1444
  %v1521 = vpop.f32.mrf.mxu0
  %v1522 = vadd.f32 %v135, %v1521
  %v1523 = vpop.f32.mrf.mxu0
  %1524 = vdwg.mxu0
  %vm1525 = vcmask 193536
  %v1526 = vsel %vm1525, %v1522, -inf
  %1527 = vmax.xlane.f32.xlu0 %v1526
  %v1528 = vpop.xlane.xlu0 %1527
  %v1529 = vsub.f32 %v1522, %v1528
  %v1530 = vmul.f32 %v1529, 1.442695
  %v1531 = vpow.pop %v1530
  %v1532 = vsel %vm1525, %v1531, 0.0
  %1533 = vadd.xlane.f32.xlu0 %v1532
  %v1534 = vpop.xlane.xlu0 %1533
  %v1535 = vrcp.pop %v1534
  %v1536 = vmul.f32 %v1531, %v1535
  %v1538 = vsel %vm1064, %v1536, 0
  %1540 = vmatprep.subr.mxu0 0.0
  %1541 = vmatpush1.msra.mxu0 0.0
  %1542 = vmatprep.subr.mxu0 0.0
  %1543 = vmatpush1.msra.mxu0 0.0
  %1544 = vmatprep.subr.mxu0 0.0
  %1545 = vmatpush1.msra.mxu0 0.0
  %1546 = vmatprep.subr.mxu0 0.0
  %1547 = vmatpush1.msra.mxu0 0.0
  %1548 = vmatprep.subr.mxu0 0.0
  %1549 = vmatpush1.msra.mxu0 0.0
  %1550 = vmatprep.subr.mxu0 0.0
  %1551 = vmatpush1.msra.mxu0 0.0
  %1552 = vmatprep.subr.mxu0 0.0
  %1553 = vmatpush1.msra.mxu0 0.0
  %1554 = vmatprep.subr.mxu0 0.0
  %1555 = vmatpush1.msra.mxu0 0.0
  %1556 = vmatprep.subr.mxu0 0.0
  %1557 = vmatpush1.msra.mxu0 0.0
  %1558 = vmatprep.subr.mxu0 0.0
  %1559 = vmatpush1.msra.mxu0 0.0
  %1560 = vmatprep.subr.mxu0 0.0
  %1561 = vmatpush1.msra.mxu0 0.0
  %1562 = vmatprep.subr.mxu0 0.0
  %1563 = vmatpush1.msra.mxu0 0.0
  %1564 = vmatprep.subr.mxu0 0.0
  %1565 = vmatpush1.msra.mxu0 0.0
  %1566 = vmatprep.subr.mxu0 0.0
  %1567 = vmatpush1.msra.mxu0 %v1439
  %1568 = vmatprep.subr.mxu0 0.0
  %1569 = vmatpush1.msra.mxu0 %v1434
  %1570 = vmatprep.subr.mxu0 0.0
  %1571 = vmatpush1.msra.mxu0 %v1429
  %1572 = vmatprep.subr.mxu0 0.0
  %1573 = vmatpush2.msra.mxu0 0.0
  %1574 = vmatprep.subr.mxu0 0.0
  %1575 = vmatpush2.msra.mxu0 0.0
  %1576 = vmatprep.subr.mxu0 0.0
  %1577 = vmatpush2.msra.mxu0 0.0
  %1578 = vmatprep.subr.mxu0 0.0
  %1579 = vmatpush2.msra.mxu0 0.0
  %1580 = vmatprep.subr.mxu0 0.0
  %1581 = vmatpush2.msra.mxu0 0.0
  %1582 = vmatprep.subr.mxu0 0.0
  %1583 = vmatpush2.msra.mxu0 0.0
  %1584 = vmatprep.subr.mxu0 0.0
  %1585 = vmatpush2.msra.mxu0 0.0
  %1586 = vmatprep.subr.mxu0 0.0
  %1587 = vmatpush2.msra.mxu0 0.0
  %1588 = vmatprep.subr.mxu0 0.0
  %1589 = vmatpush2.msra.mxu0 0.0
  %1590 = vmatprep.subr.mxu0 0.0
  %1591 = vmatpush2.msra.mxu0 0.0
  %1592 = vmatprep.subr.mxu0 0.0
  %1593 = vmatpush2.msra.mxu0 0.0
  %1594 = vmatprep.subr.mxu0 0.0
  %1595 = vmatpush2.msra.mxu0 0.0
  %1596 = vmatprep.subr.mxu0 0.0
  %1597 = vmatpush2.msra.mxu0 0.0
  %1598 = vmatprep.subr.mxu0 0.0
  %1599 = vmatpush2.msra.mxu0 0.0
  %1600 = vmatprep.subr.mxu0 0.0
  %1601 = vmatpush2.msra.mxu0 0.0
  %1602 = vmatprep.subr.mxu0 0.0
  %1603 = vmatpush2.msra.mxu0 0.0
  %1604 = vmatprep.mubr.f32.mxu0 0.0
  %1605 = vmatmul.mubr.f32.gmra.mxu0 %v1538
  %v1606 = vpop.f32.mrf.mxu0
  %v1607 = vadd.f32 0.0, %v1606
  %v1608 = vpop.f32.mrf.mxu0
  %1609 = vdwg.mxu0
  %1610 = vrot.lane.b32.xlu0 %v1442, 120
  %v1611 = vpop.permute.xlu0 %1610
  %1612 = vrot.lane.b32.xlu0 %v1345, 120
  %v1613 = vpop.permute.xlu0 %1612
  %1614 = vrot.lane.b32.xlu0 %v1350, 120
  %v1615 = vpop.permute.xlu0 %1614
  %1616 = vrot.lane.b32.xlu0 %v1355, 120
  %v1617 = vpop.permute.xlu0 %1616
  %v1618 = vsel %vm384, %v1611, 0
  %v1620 = vsel %vm384, %v1613, 0
  %v1622 = vsel %vm384, %v1615, 0
  %v1624 = vsel %vm384, %v1617, 0
  %1626 = vmatprep.subr.mxu0 0.0
  %1627 = vmatpush1.xpose.msra.mxu0 0.0
  %1628 = vmatprep.subr.mxu0 0.0
  %1629 = vmatpush1.xpose.msra.mxu0 0.0
  %1630 = vmatprep.subr.mxu0 0.0
  %1631 = vmatpush1.xpose.msra.mxu0 0.0
  %1632 = vmatprep.subr.mxu0 0.0
  %1633 = vmatpush1.xpose.msra.mxu0 0.0
  %1634 = vmatprep.subr.mxu0 0.0
  %1635 = vmatpush1.xpose.msra.mxu0 0.0
  %1636 = vmatprep.subr.mxu0 0.0
  %1637 = vmatpush1.xpose.msra.mxu0 0.0
  %1638 = vmatprep.subr.mxu0 0.0
  %1639 = vmatpush1.xpose.msra.mxu0 0.0
  %1640 = vmatprep.subr.mxu0 0.0
  %1641 = vmatpush1.xpose.msra.mxu0 0.0
  %1642 = vmatprep.subr.mxu0 0.0
  %1643 = vmatpush1.xpose.msra.mxu0 0.0
  %1644 = vmatprep.subr.mxu0 0.0
  %1645 = vmatpush1.xpose.msra.mxu0 0.0
  %1646 = vmatprep.subr.mxu0 0.0
  %1647 = vmatpush1.xpose.msra.mxu0 0.0
  %1648 = vmatprep.subr.mxu0 0.0
  %1649 = vmatpush1.xpose.msra.mxu0 0.0
  %1650 = vmatprep.subr.mxu0 0.0
  %1651 = vmatpush1.xpose.msra.mxu0 0.0
  %1652 = vmatprep.subr.mxu0 0.0
  %1653 = vmatpush1.xpose.msra.mxu0 %v1624
  %1654 = vmatprep.subr.mxu0 0.0
  %1655 = vmatpush1.xpose.msra.mxu0 %v1622
  %1656 = vmatprep.subr.mxu0 0.0
  %1657 = vmatpush1.xpose.msra.mxu0 %v1620
  %1658 = vmatprep.subr.mxu0 0.0
  %1659 = vmatpush2.xpose.msra.mxu0 0.0
  %1660 = vmatprep.subr.mxu0 0.0
  %1661 = vmatpush2.xpose.msra.mxu0 0.0
  %1662 = vmatprep.subr.mxu0 0.0
  %1663 = vmatpush2.xpose.msra.mxu0 0.0
  %1664 = vmatprep.subr.mxu0 0.0
  %1665 = vmatpush2.xpose.msra.mxu0 0.0
  %1666 = vmatprep.subr.mxu0 0.0
  %1667 = vmatpush2.xpose.msra.mxu0 0.0
  %1668 = vmatprep.subr.mxu0 0.0
  %1669 = vmatpush2.xpose.msra.mxu0 0.0
  %1670 = vmatprep.subr.mxu0 0.0
  %1671 = vmatpush2.xpose.msra.mxu0 0.0
  %1672 = vmatprep.subr.mxu0 0.0
  %1673 = vmatpush2.xpose.msra.mxu0 0.0
  %1674 = vmatprep.subr.mxu0 0.0
  %1675 = vmatpush2.xpose.msra.mxu0 0.0
  %1676 = vmatprep.subr.mxu0 0.0
  %1677 = vmatpush2.xpose.msra.mxu0 0.0
  %1678 = vmatprep.subr.mxu0 0.0
  %1679 = vmatpush2.xpose.msra.mxu0 0.0
  %1680 = vmatprep.subr.mxu0 0.0
  %1681 = vmatpush2.xpose.msra.mxu0 0.0
  %1682 = vmatprep.subr.mxu0 0.0
  %1683 = vmatpush2.xpose.msra.mxu0 0.0
  %1684 = vmatprep.subr.mxu0 0.0
  %1685 = vmatpush2.xpose.msra.mxu0 0.0
  %1686 = vmatprep.subr.mxu0 0.0
  %1687 = vmatpush2.xpose.msra.mxu0 0.0
  %1688 = vmatprep.subr.mxu0 0.0
  %1689 = vmatpush2.xpose.msra.mxu0 0.0
  %1690 = vmatprep.mubr.f32.mxu0 0.0
  %1691 = vmatmul.mubr.f32.gmra.mxu0 %v1618
  %v1692 = vpop.f32.mrf.mxu0
  %v1693 = vadd.f32 %v135, %v1692
  %v1694 = vpop.f32.mrf.mxu0
  %1695 = vdwg.mxu0
  %v1696 = vsel %vm1525, %v1693, -inf
  %1697 = vmax.xlane.f32.xlu0 %v1696
  %v1698 = vpop.xlane.xlu0 %1697
  %v1699 = vsub.f32 %v1693, %v1698
  %v1700 = vmul.f32 %v1699, 1.442695
  %v1701 = vpow.pop %v1700
  %v1702 = vsel %vm1525, %v1701, 0.0
  %1703 = vadd.xlane.f32.xlu0 %v1702
  %v1704 = vpop.xlane.xlu0 %1703
  %v1705 = vrcp.pop %v1704
  %v1706 = vmul.f32 %v1701, %v1705
  %1710 = vrot.lane.b32.xlu0 %v1429, 120
  %v1711 = vpop.permute.xlu0 %1710
  %1712 = vrot.lane.b32.xlu0 %v1434, 120
  %v1713 = vpop.permute.xlu0 %1712
  %1714 = vrot.lane.b32.xlu0 %v1439, 120
  %v1715 = vpop.permute.xlu0 %1714
  %v1720 = vsel %vm1064, %v1706, 0
  %1722 = vmatprep.subr.mxu0 0.0
  %1723 = vmatpush1.msra.mxu0 0.0
  %1724 = vmatprep.subr.mxu0 0.0
  %1725 = vmatpush1.msra.mxu0 0.0
  %1726 = vmatprep.subr.mxu0 0.0
  %1727 = vmatpush1.msra.mxu0 0.0
  %1728 = vmatprep.subr.mxu0 0.0
  %1729 = vmatpush1.msra.mxu0 0.0
  %1730 = vmatprep.subr.mxu0 0.0
  %1731 = vmatpush1.msra.mxu0 0.0
  %1732 = vmatprep.subr.mxu0 0.0
  %1733 = vmatpush1.msra.mxu0 0.0
  %1734 = vmatprep.subr.mxu0 0.0
  %1735 = vmatpush1.msra.mxu0 0.0
  %1736 = vmatprep.subr.mxu0 0.0
  %1737 = vmatpush1.msra.mxu0 0.0
  %1738 = vmatprep.subr.mxu0 0.0
  %1739 = vmatpush1.msra.mxu0 0.0
  %1740 = vmatprep.subr.mxu0 0.0
  %1741 = vmatpush1.msra.mxu0 0.0
  %1742 = vmatprep.subr.mxu0 0.0
  %1743 = vmatpush1.msra.mxu0 0.0
  %1744 = vmatprep.subr.mxu0 0.0
  %1745 = vmatpush1.msra.mxu0 0.0
  %1746 = vmatprep.subr.mxu0 0.0
  %1747 = vmatpush1.msra.mxu0 0.0
  %1748 = vmatprep.subr.mxu0 0.0
  %1749 = vmatpush1.msra.mxu0 %v1715
  %1750 = vmatprep.subr.mxu0 0.0
  %1751 = vmatpush1.msra.mxu0 %v1713
  %1752 = vmatprep.subr.mxu0 0.0
  %1753 = vmatpush1.msra.mxu0 %v1711
  %1754 = vmatprep.subr.mxu0 0.0
  %1755 = vmatpush2.msra.mxu0 0.0
  %1756 = vmatprep.subr.mxu0 0.0
  %1757 = vmatpush2.msra.mxu0 0.0
  %1758 = vmatprep.subr.mxu0 0.0
  %1759 = vmatpush2.msra.mxu0 0.0
  %1760 = vmatprep.subr.mxu0 0.0
  %1761 = vmatpush2.msra.mxu0 0.0
  %1762 = vmatprep.subr.mxu0 0.0
  %1763 = vmatpush2.msra.mxu0 0.0
  %1764 = vmatprep.subr.mxu0 0.0
  %1765 = vmatpush2.msra.mxu0 0.0
  %1766 = vmatprep.subr.mxu0 0.0
  %1767 = vmatpush2.msra.mxu0 0.0
  %1768 = vmatprep.subr.mxu0 0.0
  %1769 = vmatpush2.msra.mxu0 0.0
  %1770 = vmatprep.subr.mxu0 0.0
  %1771 = vmatpush2.msra.mxu0 0.0
  %1772 = vmatprep.subr.mxu0 0.0
  %1773 = vmatpush2.msra.mxu0 0.0
  %1774 = vmatprep.subr.mxu0 0.0
  %1775 = vmatpush2.msra.mxu0 0.0
  %1776 = vmatprep.subr.mxu0 0.0
  %1777 = vmatpush2.msra.mxu0 0.0
  %1778 = vmatprep.subr.mxu0 0.0
  %1779 = vmatpush2.msra.mxu0 0.0
  %1780 = vmatprep.subr.mxu0 0.0
  %1781 = vmatpush2.msra.mxu0 0.0
  %1782 = vmatprep.subr.mxu0 0.0
  %1783 = vmatpush2.msra.mxu0 0.0
  %1784 = vmatprep.subr.mxu0 0.0
  %1785 = vmatpush2.msra.mxu0 0.0
  %1786 = vmatprep.mubr.f32.mxu0 0.0
  %1787 = vmatmul.mubr.f32.gmra.mxu0 %v1720
  %v1788 = vpop.f32.mrf.mxu0
  %v1789 = vadd.f32 0.0, %v1788
  %v1790 = vpop.f32.mrf.mxu0
  %1791 = vdwg.mxu0
  %1792 = vrot.lane.b32.xlu0 %v1442, 112
  %v1793 = vpop.permute.xlu0 %1792
  %1794 = vrot.lane.b32.xlu0 %v1345, 112
  %v1795 = vpop.permute.xlu0 %1794
  %1796 = vrot.lane.b32.xlu0 %v1350, 112
  %v1797 = vpop.permute.xlu0 %1796
  %1798 = vrot.lane.b32.xlu0 %v1355, 112
  %v1799 = vpop.permute.xlu0 %1798
  %v1800 = vsel %vm384, %v1793, 0
  %v1802 = vsel %vm384, %v1795, 0
  %v1804 = vsel %vm384, %v1797, 0
  %v1806 = vsel %vm384, %v1799, 0
  %1808 = vmatprep.subr.mxu0 0.0
  %1809 = vmatpush1.xpose.msra.mxu0 0.0
  %1810 = vmatprep.subr.mxu0 0.0
  %1811 = vmatpush1.xpose.msra.mxu0 0.0
  %1812 = vmatprep.subr.mxu0 0.0
  %1813 = vmatpush1.xpose.msra.mxu0 0.0
  %1814 = vmatprep.subr.mxu0 0.0
  %1815 = vmatpush1.xpose.msra.mxu0 0.0
  %1816 = vmatprep.subr.mxu0 0.0
  %1817 = vmatpush1.xpose.msra.mxu0 0.0
  %1818 = vmatprep.subr.mxu0 0.0
  %1819 = vmatpush1.xpose.msra.mxu0 0.0
  %1820 = vmatprep.subr.mxu0 0.0
  %1821 = vmatpush1.xpose.msra.mxu0 0.0
  %1822 = vmatprep.subr.mxu0 0.0
  %1823 = vmatpush1.xpose.msra.mxu0 0.0
  %1824 = vmatprep.subr.mxu0 0.0
  %1825 = vmatpush1.xpose.msra.mxu0 0.0
  %1826 = vmatprep.subr.mxu0 0.0
  %1827 = vmatpush1.xpose.msra.mxu0 0.0
  %1828 = vmatprep.subr.mxu0 0.0
  %1829 = vmatpush1.xpose.msra.mxu0 0.0
  %1830 = vmatprep.subr.mxu0 0.0
  %1831 = vmatpush1.xpose.msra.mxu0 0.0
  %1832 = vmatprep.subr.mxu0 0.0
  %1833 = vmatpush1.xpose.msra.mxu0 0.0
  %1834 = vmatprep.subr.mxu0 0.0
  %1835 = vmatpush1.xpose.msra.mxu0 %v1806
  %1836 = vmatprep.subr.mxu0 0.0
  %1837 = vmatpush1.xpose.msra.mxu0 %v1804
  %1838 = vmatprep.subr.mxu0 0.0
  %1839 = vmatpush1.xpose.msra.mxu0 %v1802
  %1840 = vmatprep.subr.mxu0 0.0
  %1841 = vmatpush2.xpose.msra.mxu0 0.0
  %1842 = vmatprep.subr.mxu0 0.0
  %1843 = vmatpush2.xpose.msra.mxu0 0.0
  %1844 = vmatprep.subr.mxu0 0.0
  %1845 = vmatpush2.xpose.msra.mxu0 0.0
  %1846 = vmatprep.subr.mxu0 0.0
  %1847 = vmatpush2.xpose.msra.mxu0 0.0
  %1848 = vmatprep.subr.mxu0 0.0
  %1849 = vmatpush2.xpose.msra.mxu0 0.0
  %1850 = vmatprep.subr.mxu0 0.0
  %1851 = vmatpush2.xpose.msra.mxu0 0.0
  %1852 = vmatprep.subr.mxu0 0.0
  %1853 = vmatpush2.xpose.msra.mxu0 0.0
  %1854 = vmatprep.subr.mxu0 0.0
  %1855 = vmatpush2.xpose.msra.mxu0 0.0
  %1856 = vmatprep.subr.mxu0 0.0
  %1857 = vmatpush2.xpose.msra.mxu0 0.0
  %1858 = vmatprep.subr.mxu0 0.0
  %1859 = vmatpush2.xpose.msra.mxu0 0.0
  %1860 = vmatprep.subr.mxu0 0.0
  %1861 = vmatpush2.xpose.msra.mxu0 0.0
  %1862 = vmatprep.subr.mxu0 0.0
  %1863 = vmatpush2.xpose.msra.mxu0 0.0
  %1864 = vmatprep.subr.mxu0 0.0
  %1865 = vmatpush2.xpose.msra.mxu0 0.0
  %1866 = vmatprep.subr.mxu0 0.0
  %1867 = vmatpush2.xpose.msra.mxu0 0.0
  %1868 = vmatprep.subr.mxu0 0.0
  %1869 = vmatpush2.xpose.msra.mxu0 0.0
  %1870 = vmatprep.subr.mxu0 0.0
  %1871 = vmatpush2.xpose.msra.mxu0 0.0
  %1872 = vmatprep.mubr.f32.mxu0 0.0
  %1873 = vmatmul.mubr.f32.gmra.mxu0 %v1800
  %v1874 = vpop.f32.mrf.mxu0
  %v1875 = vadd.f32 %v135, %v1874
  %v1876 = vpop.f32.mrf.mxu0
  %1877 = vdwg.mxu0
  %v1878 = vsel %vm1525, %v1875, -inf
  %1879 = vmax.xlane.f32.xlu0 %v1878
  %v1880 = vpop.xlane.xlu0 %1879
  %v1881 = vsub.f32 %v1875, %v1880
  %v1882 = vmul.f32 %v1881, 1.442695
  %v1883 = vpow.pop %v1882
  %v1884 = vsel %vm1525, %v1883, 0.0
  %1885 = vadd.xlane.f32.xlu0 %v1884
  %v1886 = vpop.xlane.xlu0 %1885
  %v1887 = vrcp.pop %v1886
  %v1888 = vmul.f32 %v1883, %v1887
  %1889 = vrot.lane.b32.xlu0 %v1429, 112
  %v1890 = vpop.permute.xlu0 %1889
  %1891 = vrot.lane.b32.xlu0 %v1434, 112
  %v1892 = vpop.permute.xlu0 %1891
  %1893 = vrot.lane.b32.xlu0 %v1439, 112
  %v1894 = vpop.permute.xlu0 %1893
  %v1899 = vsel %vm1064, %v1888, 0
  %1901 = vmatprep.subr.mxu0 0.0
  %1902 = vmatpush1.msra.mxu0 0.0
  %1903 = vmatprep.subr.mxu0 0.0
  %1904 = vmatpush1.msra.mxu0 0.0
  %1905 = vmatprep.subr.mxu0 0.0
  %1906 = vmatpush1.msra.mxu0 0.0
  %1907 = vmatprep.subr.mxu0 0.0
  %1908 = vmatpush1.msra.mxu0 0.0
  %1909 = vmatprep.subr.mxu0 0.0
  %1910 = vmatpush1.msra.mxu0 0.0
  %1911 = vmatprep.subr.mxu0 0.0
  %1912 = vmatpush1.msra.mxu0 0.0
  %1913 = vmatprep.subr.mxu0 0.0
  %1914 = vmatpush1.msra.mxu0 0.0
  %1915 = vmatprep.subr.mxu0 0.0
  %1916 = vmatpush1.msra.mxu0 0.0
  %1917 = vmatprep.subr.mxu0 0.0
  %1918 = vmatpush1.msra.mxu0 0.0
  %1919 = vmatprep.subr.mxu0 0.0
  %1920 = vmatpush1.msra.mxu0 0.0
  %1921 = vmatprep.subr.mxu0 0.0
  %1922 = vmatpush1.msra.mxu0 0.0
  %1923 = vmatprep.subr.mxu0 0.0
  %1924 = vmatpush1.msra.mxu0 0.0
  %1925 = vmatprep.subr.mxu0 0.0
  %1926 = vmatpush1.msra.mxu0 0.0
  %1927 = vmatprep.subr.mxu0 0.0
  %1928 = vmatpush1.msra.mxu0 %v1894
  %1929 = vmatprep.subr.mxu0 0.0
  %1930 = vmatpush1.msra.mxu0 %v1892
  %1931 = vmatprep.subr.mxu0 0.0
  %1932 = vmatpush1.msra.mxu0 %v1890
  %1933 = vmatprep.subr.mxu0 0.0
  %1934 = vmatpush2.msra.mxu0 0.0
  %1935 = vmatprep.subr.mxu0 0.0
  %1936 = vmatpush2.msra.mxu0 0.0
  %1937 = vmatprep.subr.mxu0 0.0
  %1938 = vmatpush2.msra.mxu0 0.0
  %1939 = vmatprep.subr.mxu0 0.0
  %1940 = vmatpush2.msra.mxu0 0.0
  %1941 = vmatprep.subr.mxu0 0.0
  %1942 = vmatpush2.msra.mxu0 0.0
  %1943 = vmatprep.subr.mxu0 0.0
  %1944 = vmatpush2.msra.mxu0 0.0
  %1945 = vmatprep.subr.mxu0 0.0
  %1946 = vmatpush2.msra.mxu0 0.0
  %1947 = vmatprep.subr.mxu0 0.0
  %1948 = vmatpush2.msra.mxu0 0.0
  %1949 = vmatprep.subr.mxu0 0.0
  %1950 = vmatpush2.msra.mxu0 0.0
  %1951 = vmatprep.subr.mxu0 0.0
  %1952 = vmatpush2.msra.mxu0 0.0
  %1953 = vmatprep.subr.mxu0 0.0
  %1954 = vmatpush2.msra.mxu0 0.0
  %1955 = vmatprep.subr.mxu0 0.0
  %1956 = vmatpush2.msra.mxu0 0.0
  %1957 = vmatprep.subr.mxu0 0.0
  %1958 = vmatpush2.msra.mxu0 0.0
  %1959 = vmatprep.subr.mxu0 0.0
  %1960 = vmatpush2.msra.mxu0 0.0
  %1961 = vmatprep.subr.mxu0 0.0
  %1962 = vmatpush2.msra.mxu0 0.0
  %1963 = vmatprep.subr.mxu0 0.0
  %1964 = vmatpush2.msra.mxu0 0.0
  %1965 = vmatprep.mubr.f32.mxu0 0.0
  %1966 = vmatmul.mubr.f32.gmra.mxu0 %v1899
  %v1967 = vpop.f32.mrf.mxu0
  %v1968 = vadd.f32 0.0, %v1967
  %v1969 = vpop.f32.mrf.mxu0
  %1970 = vdwg.mxu0
  %1971 = vrot.lane.b32.xlu0 %v1442, 104
  %v1972 = vpop.permute.xlu0 %1971
  %1973 = vrot.lane.b32.xlu0 %v1345, 104
  %v1974 = vpop.permute.xlu0 %1973
  %1975 = vrot.lane.b32.xlu0 %v1350, 104
  %v1976 = vpop.permute.xlu0 %1975
  %1977 = vrot.lane.b32.xlu0 %v1355, 104
  %v1978 = vpop.permute.xlu0 %1977
  %v1979 = vsel %vm384, %v1972, 0
  %v1981 = vsel %vm384, %v1974, 0
  %v1983 = vsel %vm384, %v1976, 0
  %v1985 = vsel %vm384, %v1978, 0
  %1987 = vmatprep.subr.mxu0 0.0
  %1988 = vmatpush1.xpose.msra.mxu0 0.0
  %1989 = vmatprep.subr.mxu0 0.0
  %1990 = vmatpush1.xpose.msra.mxu0 0.0
  %1991 = vmatprep.subr.mxu0 0.0
  %1992 = vmatpush1.xpose.msra.mxu0 0.0
  %1993 = vmatprep.subr.mxu0 0.0
  %1994 = vmatpush1.xpose.msra.mxu0 0.0
  %1995 = vmatprep.subr.mxu0 0.0
  %1996 = vmatpush1.xpose.msra.mxu0 0.0
  %1997 = vmatprep.subr.mxu0 0.0
  %1998 = vmatpush1.xpose.msra.mxu0 0.0
  %1999 = vmatprep.subr.mxu0 0.0
  %2000 = vmatpush1.xpose.msra.mxu0 0.0
  %2001 = vmatprep.subr.mxu0 0.0
  %2002 = vmatpush1.xpose.msra.mxu0 0.0
  %2003 = vmatprep.subr.mxu0 0.0
  %2004 = vmatpush1.xpose.msra.mxu0 0.0
  %2005 = vmatprep.subr.mxu0 0.0
  %2006 = vmatpush1.xpose.msra.mxu0 0.0
  %2007 = vmatprep.subr.mxu0 0.0
  %2008 = vmatpush1.xpose.msra.mxu0 0.0
  %2009 = vmatprep.subr.mxu0 0.0
  %2010 = vmatpush1.xpose.msra.mxu0 0.0
  %2011 = vmatprep.subr.mxu0 0.0
  %2012 = vmatpush1.xpose.msra.mxu0 0.0
  %2013 = vmatprep.subr.mxu0 0.0
  %2014 = vmatpush1.xpose.msra.mxu0 %v1985
  %2015 = vmatprep.subr.mxu0 0.0
  %2016 = vmatpush1.xpose.msra.mxu0 %v1983
  %2017 = vmatprep.subr.mxu0 0.0
  %2018 = vmatpush1.xpose.msra.mxu0 %v1981
  %2019 = vmatprep.subr.mxu0 0.0
  %2020 = vmatpush2.xpose.msra.mxu0 0.0
  %2021 = vmatprep.subr.mxu0 0.0
  %2022 = vmatpush2.xpose.msra.mxu0 0.0
  %2023 = vmatprep.subr.mxu0 0.0
  %2024 = vmatpush2.xpose.msra.mxu0 0.0
  %2025 = vmatprep.subr.mxu0 0.0
  %2026 = vmatpush2.xpose.msra.mxu0 0.0
  %2027 = vmatprep.subr.mxu0 0.0
  %2028 = vmatpush2.xpose.msra.mxu0 0.0
  %2029 = vmatprep.subr.mxu0 0.0
  %2030 = vmatpush2.xpose.msra.mxu0 0.0
  %2031 = vmatprep.subr.mxu0 0.0
  %2032 = vmatpush2.xpose.msra.mxu0 0.0
  %2033 = vmatprep.subr.mxu0 0.0
  %2034 = vmatpush2.xpose.msra.mxu0 0.0
  %2035 = vmatprep.subr.mxu0 0.0
  %2036 = vmatpush2.xpose.msra.mxu0 0.0
  %2037 = vmatprep.subr.mxu0 0.0
  %2038 = vmatpush2.xpose.msra.mxu0 0.0
  %2039 = vmatprep.subr.mxu0 0.0
  %2040 = vmatpush2.xpose.msra.mxu0 0.0
  %2041 = vmatprep.subr.mxu0 0.0
  %2042 = vmatpush2.xpose.msra.mxu0 0.0
  %2043 = vmatprep.subr.mxu0 0.0
  %2044 = vmatpush2.xpose.msra.mxu0 0.0
  %2045 = vmatprep.subr.mxu0 0.0
  %2046 = vmatpush2.xpose.msra.mxu0 0.0
  %2047 = vmatprep.subr.mxu0 0.0
  %2048 = vmatpush2.xpose.msra.mxu0 0.0
  %2049 = vmatprep.subr.mxu0 0.0
  %2050 = vmatpush2.xpose.msra.mxu0 0.0
  %2051 = vmatprep.mubr.f32.mxu0 0.0
  %2052 = vmatmul.mubr.f32.gmra.mxu0 %v1979
  %v2053 = vpop.f32.mrf.mxu0
  %v2054 = vadd.f32 %v135, %v2053
  %v2055 = vpop.f32.mrf.mxu0
  %2056 = vdwg.mxu0
  %v2057 = vsel %vm1525, %v2054, -inf
  %2058 = vmax.xlane.f32.xlu0 %v2057
  %v2059 = vpop.xlane.xlu0 %2058
  %v2060 = vsub.f32 %v2054, %v2059
  %v2061 = vmul.f32 %v2060, 1.442695
  %v2062 = vpow.pop %v2061
  %v2063 = vsel %vm1525, %v2062, 0.0
  %2064 = vadd.xlane.f32.xlu0 %v2063
  %v2065 = vpop.xlane.xlu0 %2064
  %v2066 = vrcp.pop %v2065
  %v2067 = vmul.f32 %v2062, %v2066
  %2068 = vrot.lane.b32.xlu0 %v1429, 104
  %v2069 = vpop.permute.xlu0 %2068
  %2070 = vrot.lane.b32.xlu0 %v1434, 104
  %v2071 = vpop.permute.xlu0 %2070
  %2072 = vrot.lane.b32.xlu0 %v1439, 104
  %v2073 = vpop.permute.xlu0 %2072
  %v2078 = vsel %vm1064, %v2067, 0
  %2080 = vmatprep.subr.mxu0 0.0
  %2081 = vmatpush1.msra.mxu0 0.0
  %2082 = vmatprep.subr.mxu0 0.0
  %2083 = vmatpush1.msra.mxu0 0.0
  %2084 = vmatprep.subr.mxu0 0.0
  %2085 = vmatpush1.msra.mxu0 0.0
  %2086 = vmatprep.subr.mxu0 0.0
  %2087 = vmatpush1.msra.mxu0 0.0
  %2088 = vmatprep.subr.mxu0 0.0
  %2089 = vmatpush1.msra.mxu0 0.0
  %2090 = vmatprep.subr.mxu0 0.0
  %2091 = vmatpush1.msra.mxu0 0.0
  %2092 = vmatprep.subr.mxu0 0.0
  %2093 = vmatpush1.msra.mxu0 0.0
  %2094 = vmatprep.subr.mxu0 0.0
  %2095 = vmatpush1.msra.mxu0 0.0
  %2096 = vmatprep.subr.mxu0 0.0
  %2097 = vmatpush1.msra.mxu0 0.0
  %2098 = vmatprep.subr.mxu0 0.0
  %2099 = vmatpush1.msra.mxu0 0.0
  %2100 = vmatprep.subr.mxu0 0.0
  %2101 = vmatpush1.msra.mxu0 0.0
  %2102 = vmatprep.subr.mxu0 0.0
  %2103 = vmatpush1.msra.mxu0 0.0
  %2104 = vmatprep.subr.mxu0 0.0
  %2105 = vmatpush1.msra.mxu0 0.0
  %2106 = vmatprep.subr.mxu0 0.0
  %2107 = vmatpush1.msra.mxu0 %v2073
  %2108 = vmatprep.subr.mxu0 0.0
  %2109 = vmatpush1.msra.mxu0 %v2071
  %2110 = vmatprep.subr.mxu0 0.0
  %2111 = vmatpush1.msra.mxu0 %v2069
  %2112 = vmatprep.subr.mxu0 0.0
  %2113 = vmatpush2.msra.mxu0 0.0
  %2114 = vmatprep.subr.mxu0 0.0
  %2115 = vmatpush2.msra.mxu0 0.0
  %2116 = vmatprep.subr.mxu0 0.0
  %2117 = vmatpush2.msra.mxu0 0.0
  %2118 = vmatprep.subr.mxu0 0.0
  %2119 = vmatpush2.msra.mxu0 0.0
  %2120 = vmatprep.subr.mxu0 0.0
  %2121 = vmatpush2.msra.mxu0 0.0
  %2122 = vmatprep.subr.mxu0 0.0
  %2123 = vmatpush2.msra.mxu0 0.0
  %2124 = vmatprep.subr.mxu0 0.0
  %2125 = vmatpush2.msra.mxu0 0.0
  %2126 = vmatprep.subr.mxu0 0.0
  %2127 = vmatpush2.msra.mxu0 0.0
  %2128 = vmatprep.subr.mxu0 0.0
  %2129 = vmatpush2.msra.mxu0 0.0
  %2130 = vmatprep.subr.mxu0 0.0
  %2131 = vmatpush2.msra.mxu0 0.0
  %2132 = vmatprep.subr.mxu0 0.0
  %2133 = vmatpush2.msra.mxu0 0.0
  %2134 = vmatprep.subr.mxu0 0.0
  %2135 = vmatpush2.msra.mxu0 0.0
  %2136 = vmatprep.subr.mxu0 0.0
  %2137 = vmatpush2.msra.mxu0 0.0
  %2138 = vmatprep.subr.mxu0 0.0
  %2139 = vmatpush2.msra.mxu0 0.0
  %2140 = vmatprep.subr.mxu0 0.0
  %2141 = vmatpush2.msra.mxu0 0.0
  %2142 = vmatprep.subr.mxu0 0.0
  %2143 = vmatpush2.msra.mxu0 0.0
  %2144 = vmatprep.mubr.f32.mxu0 0.0
  %2145 = vmatmul.mubr.f32.gmra.mxu0 %v2078
  %v2146 = vpop.f32.mrf.mxu0
  %v2147 = vadd.f32 0.0, %v2146
  %v2148 = vpop.f32.mrf.mxu0
  %2149 = vdwg.mxu0
  %2151 = vrot.lane.b32.xlu0 %v1789, 8
  %v2152 = vpop.permute.xlu0 %2151
  %2155 = vrot.lane.b32.xlu0 %v1968, 16
  %v2156 = vpop.permute.xlu0 %2155
  %2159 = vrot.lane.b32.xlu0 %v2147, 24
  %v2160 = vpop.permute.xlu0 %2159
  %v2162 = vsel %vm384, %v1607, %v2152
  %v2163 = vsel %vm1062, %v2162, %v2156
  %v2164 = vsel %vm1064, %v2163, %v2160
  %v2165 = vlaneseq
  %v2166 = vshrl.u32 %v2165, 7
  %v2167 = vsub.s32 7, %v2166
  %v2168 = vrot.slane %v136, %v2167
  %v2170 = vsel %vm161, %v2164, 0
  %2172 = vmatprep.subr.mxu0 0.0
  %2173 = vmatpush1.msra.mxu0 0.0
  %2174 = vmatprep.subr.mxu0 0.0
  %2175 = vmatpush1.msra.mxu0 0.0
  %2176 = vmatprep.subr.mxu0 0.0
  %2177 = vmatpush1.msra.mxu0 0.0
  %2178 = vmatprep.subr.mxu0 0.0
  %2179 = vmatpush1.msra.mxu0 0.0
  %2180 = vmatprep.subr.mxu0 0.0
  %2181 = vmatpush1.msra.mxu0 0.0
  %2182 = vmatprep.subr.mxu0 0.0
  %2183 = vmatpush1.msra.mxu0 0.0
  %2184 = vmatprep.subr.mxu0 0.0
  %2185 = vmatpush1.msra.mxu0 0.0
  %2186 = vmatprep.subr.mxu0 0.0
  %2187 = vmatpush1.msra.mxu0 0.0
  %2188 = vmatprep.subr.mxu0 0.0
  %2189 = vmatpush1.msra.mxu0 0.0
  %2190 = vmatprep.subr.mxu0 0.0
  %2191 = vmatpush1.msra.mxu0 0.0
  %2192 = vmatprep.subr.mxu0 0.0
  %2193 = vmatpush1.msra.mxu0 0.0
  %2194 = vmatprep.subr.mxu0 0.0
  %2195 = vmatpush1.msra.mxu0 0.0
  %2196 = vmatprep.subr.mxu0 0.0
  %2197 = vmatpush1.msra.mxu0 %v1187
  %2198 = vmatprep.subr.mxu0 0.0
  %2199 = vmatpush1.msra.mxu0 %v1186
  %2200 = vmatprep.subr.mxu0 0.0
  %2201 = vmatpush1.msra.mxu0 %v1185
  %2202 = vmatprep.subr.mxu0 0.0
  %2203 = vmatpush1.msra.mxu0 %v1184
  %2204 = vmatprep.subr.mxu0 0.0
  %2205 = vmatpush2.msra.mxu0 0.0
  %2206 = vmatprep.subr.mxu0 0.0
  %2207 = vmatpush2.msra.mxu0 0.0
  %2208 = vmatprep.subr.mxu0 0.0
  %2209 = vmatpush2.msra.mxu0 0.0
  %2210 = vmatprep.subr.mxu0 0.0
  %2211 = vmatpush2.msra.mxu0 0.0
  %2212 = vmatprep.subr.mxu0 0.0
  %2213 = vmatpush2.msra.mxu0 0.0
  %2214 = vmatprep.subr.mxu0 0.0
  %2215 = vmatpush2.msra.mxu0 0.0
  %2216 = vmatprep.subr.mxu0 0.0
  %2217 = vmatpush2.msra.mxu0 0.0
  %2218 = vmatprep.subr.mxu0 0.0
  %2219 = vmatpush2.msra.mxu0 0.0
  %2220 = vmatprep.subr.mxu0 0.0
  %2221 = vmatpush2.msra.mxu0 0.0
  %2222 = vmatprep.subr.mxu0 0.0
  %2223 = vmatpush2.msra.mxu0 0.0
  %2224 = vmatprep.subr.mxu0 0.0
  %2225 = vmatpush2.msra.mxu0 0.0
  %2226 = vmatprep.subr.mxu0 0.0
  %2227 = vmatpush2.msra.mxu0 0.0
  %2228 = vmatprep.subr.mxu0 0.0
  %2229 = vmatpush2.msra.mxu0 0.0
  %2230 = vmatprep.subr.mxu0 0.0
  %2231 = vmatpush2.msra.mxu0 0.0
  %2232 = vmatprep.subr.mxu0 0.0
  %2233 = vmatpush2.msra.mxu0 0.0
  %2234 = vmatprep.subr.mxu0 0.0
  %2235 = vmatpush2.msra.mxu0 0.0
  %2236 = vmatprep.mubr.f32.mxu0 0.0
  %2237 = vmatmul.mubr.f32.gmra.mxu0 %v2170
  %v2238 = vpop.f32.mrf.mxu0
  %v2239 = vadd.f32 %v2168, %v2238
  %v2240 = vpop.f32.mrf.mxu0
  %2241 = vdwg.mxu0
  %v2242 = vadd.f32 %v1168, %v2239
  %v2243 = vsel %vm1144, %v2242, 0.0
  %2244 = vadd.xlane.f32.xlu0 %v2243
  %v2245 = vpop.xlane.xlu0 %2244
  %v2246 = vmul.f32 %v2245, %v1148
  %v2247 = vsub.f32 %v2242, %v2246
  %v2248 = vmul.f32 %v2247, %v2247
  %v2249 = vsel %vm1144, %v2248, 0.0
  %2250 = vadd.xlane.f32.xlu0 %v2249
  %v2251 = vpop.xlane.xlu0 %2250
  %v2252 = vmul.f32 %v2251, %v1148
  %v2253 = vadd.f32 %v2252, 1e-05
  %v2254 = vrsqrt.pop %v2253
  %v2255 = vmul.f32 %v2247, %v2254
  %v2256 = vlaneseq
  %v2257 = vshrl.u32 %v2256, 7
  %v2258 = vsub.s32 2, %v2257
  %v2259 = vrot.slane %v137, %v2258
  %v2260 = vmul.f32 %v2255, %v2259
  %v2261 = vlaneseq
  %v2262 = vshrl.u32 %v2261, 7
  %v2263 = vsub.s32 3, %v2262
  %v2264 = vrot.slane %v137, %v2263
  %v2265 = vadd.f32 %v2260, %v2264
  %v2266 = vld [vmem:[%s8] sm:$0xff]
  %v2267 = vld [vmem:[%s8 + $0x8] sm:$0xff]
  %v2268 = vld [vmem:[%s8 + $0x10] sm:$0xff]
  %v2269 = vld [vmem:[%s8 + $0x18] sm:$0xff]
  %v2270 = vld [vmem:[%s11] sm:$0x1]
  %v2272 = vlaneseq
  %v2273 = vshrl.u32 %v2272, 7
  %v2274 = vsub.s32 0, %v2273
  %v2275 = vrot.slane %v2270, %v2274
  %v2278 = vsel %vm161, %v2265, 0
  %2280 = vmatprep.subr.mxu0 0.0
  %2281 = vmatpush1.msra.mxu0 0.0
  %2282 = vmatprep.subr.mxu0 0.0
  %2283 = vmatpush1.msra.mxu0 0.0
  %2284 = vmatprep.subr.mxu0 0.0
  %2285 = vmatpush1.msra.mxu0 0.0
  %2286 = vmatprep.subr.mxu0 0.0
  %2287 = vmatpush1.msra.mxu0 0.0
  %2288 = vmatprep.subr.mxu0 0.0
  %2289 = vmatpush1.msra.mxu0 0.0
  %2290 = vmatprep.subr.mxu0 0.0
  %2291 = vmatpush1.msra.mxu0 0.0
  %2292 = vmatprep.subr.mxu0 0.0
  %2293 = vmatpush1.msra.mxu0 0.0
  %2294 = vmatprep.subr.mxu0 0.0
  %2295 = vmatpush1.msra.mxu0 0.0
  %2296 = vmatprep.subr.mxu0 0.0
  %2297 = vmatpush1.msra.mxu0 0.0
  %2298 = vmatprep.subr.mxu0 0.0
  %2299 = vmatpush1.msra.mxu0 0.0
  %2300 = vmatprep.subr.mxu0 0.0
  %2301 = vmatpush1.msra.mxu0 0.0
  %2302 = vmatprep.subr.mxu0 0.0
  %2303 = vmatpush1.msra.mxu0 0.0
  %2304 = vmatprep.subr.mxu0 0.0
  %2305 = vmatpush1.msra.mxu0 %v2269
  %2306 = vmatprep.subr.mxu0 0.0
  %2307 = vmatpush1.msra.mxu0 %v2268
  %2308 = vmatprep.subr.mxu0 0.0
  %2309 = vmatpush1.msra.mxu0 %v2267
  %2310 = vmatprep.subr.mxu0 0.0
  %2311 = vmatpush1.msra.mxu0 %v2266
  %2312 = vmatprep.subr.mxu0 0.0
  %2313 = vmatpush2.msra.mxu0 0.0
  %2314 = vmatprep.subr.mxu0 0.0
  %2315 = vmatpush2.msra.mxu0 0.0
  %2316 = vmatprep.subr.mxu0 0.0
  %2317 = vmatpush2.msra.mxu0 0.0
  %2318 = vmatprep.subr.mxu0 0.0
  %2319 = vmatpush2.msra.mxu0 0.0
  %2320 = vmatprep.subr.mxu0 0.0
  %2321 = vmatpush2.msra.mxu0 0.0
  %2322 = vmatprep.subr.mxu0 0.0
  %2323 = vmatpush2.msra.mxu0 0.0
  %2324 = vmatprep.subr.mxu0 0.0
  %2325 = vmatpush2.msra.mxu0 0.0
  %2326 = vmatprep.subr.mxu0 0.0
  %2327 = vmatpush2.msra.mxu0 0.0
  %2328 = vmatprep.subr.mxu0 0.0
  %2329 = vmatpush2.msra.mxu0 0.0
  %2330 = vmatprep.subr.mxu0 0.0
  %2331 = vmatpush2.msra.mxu0 0.0
  %2332 = vmatprep.subr.mxu0 0.0
  %2333 = vmatpush2.msra.mxu0 0.0
  %2334 = vmatprep.subr.mxu0 0.0
  %2335 = vmatpush2.msra.mxu0 0.0
  %2336 = vmatprep.subr.mxu0 0.0
  %2337 = vmatpush2.msra.mxu0 0.0
  %2338 = vmatprep.subr.mxu0 0.0
  %2339 = vmatpush2.msra.mxu0 0.0
  %2340 = vmatprep.subr.mxu0 0.0
  %2341 = vmatpush2.msra.mxu0 0.0
  %2342 = vmatprep.subr.mxu0 0.0
  %2343 = vmatpush2.msra.mxu0 0.0
  %2344 = vmatprep.mubr.f32.mxu0 0.0
  %2345 = vmatmul.mubr.f32.gmra.mxu0 %v2278
  %v2346 = vpop.f32.mrf.mxu0
  %v2347 = vadd.f32 %v2275, %v2346
  %v2348 = vpop.f32.mrf.mxu0
  %2349 = vdwg.mxu0
  %v2350 = vmul.f32 %v2347, 0.5
  %v2351 = vmul.f32 %v2347, 0.70710677
  %v2352 = vand.u32 2147483647, %v2351
  %v2353 = vmul.f32 %v2352, 0.3275911
  %v2354 = vadd.f32 %v2353, 1.0
  %v2355 = vrcp.pop %v2354
  %v2356 = vmul.f32 1.0, %v2355
  %v2357 = vmul.f32 %v2356, 1.0614054
  %v2358 = vadd.f32 %v2357, -1.4531521
  %v2359 = vmul.f32 %v2358, %v2356
  %v2360 = vadd.f32 %v2359, 1.4214138
  %v2361 = vmul.f32 %v2360, %v2356
  %v2362 = vadd.f32 %v2361, -0.28449672
  %v2363 = vmul.f32 %v2362, %v2356
  %v2364 = vadd.f32 %v2363, 0.2548296
  %v2365 = vmul.f32 %v2364, %v2356
  %v2366 = vsub.f32 0.0, %v2351
  %v2367 = vmul.f32 %v2366, %v2351
  %v2368 = vmul.f32 %v2367, 1.442695
  %v2369 = vpow.pop %v2368
  %v2370 = vmul.f32 %v2365, %v2369
  %v2371 = vsub.f32 1.0, %v2370
  %vm2372 = vcmp.ge.f32.partialorder %v2351, 0.0
  %v2373 = vsub.f32 0.0, %v2371
  %v2374 = vsel %vm2372, %v2371, %v2373
  %v2375 = vadd.f32 %v2374, 1.0
  %v2376 = vmul.f32 %v2350, %v2375
  %v2377 = vld [vmem:[%s9] sm:$0xff]
  %v2378 = vld [vmem:[%s9 + $0x8] sm:$0xff]
  %v2379 = vld [vmem:[%s9 + $0x10] sm:$0xff]
  %v2380 = vld [vmem:[%s9 + $0x18] sm:$0xff]
  %v2381 = vld [vmem:[%s9 + $0x20] sm:$0xff]
  %v2382 = vld [vmem:[%s9 + $0x28] sm:$0xff]
  %v2383 = vld [vmem:[%s9 + $0x30] sm:$0xff]
  %v2384 = vld [vmem:[%s9 + $0x38] sm:$0xff]
  %v2385 = vlaneseq
  %v2386 = vshrl.u32 %v2385, 7
  %v2387 = vsub.s32 4, %v2386
  %v2388 = vrot.slane %v137, %v2387
  %vm2389 = vcmask 523264
  %v2391 = vsel %vm2389, %v2376, 0
  %2393 = vmatprep.subr.mxu0 0.0
  %2394 = vmatpush1.msra.mxu0 0.0
  %2395 = vmatprep.subr.mxu0 0.0
  %2396 = vmatpush1.msra.mxu0 0.0
  %2397 = vmatprep.subr.mxu0 0.0
  %2398 = vmatpush1.msra.mxu0 0.0
  %2399 = vmatprep.subr.mxu0 0.0
  %2400 = vmatpush1.msra.mxu0 0.0
  %2401 = vmatprep.subr.mxu0 0.0
  %2402 = vmatpush1.msra.mxu0 0.0
  %2403 = vmatprep.subr.mxu0 0.0
  %2404 = vmatpush1.msra.mxu0 0.0
  %2405 = vmatprep.subr.mxu0 0.0
  %2406 = vmatpush1.msra.mxu0 0.0
  %2407 = vmatprep.subr.mxu0 0.0
  %2408 = vmatpush1.msra.mxu0 0.0
  %2409 = vmatprep.subr.mxu0 0.0
  %2410 = vmatpush1.msra.mxu0 %v2384
  %2411 = vmatprep.subr.mxu0 0.0
  %2412 = vmatpush1.msra.mxu0 %v2383
  %2413 = vmatprep.subr.mxu0 0.0
  %2414 = vmatpush1.msra.mxu0 %v2382
  %2415 = vmatprep.subr.mxu0 0.0
  %2416 = vmatpush1.msra.mxu0 %v2381
  %2417 = vmatprep.subr.mxu0 0.0
  %2418 = vmatpush1.msra.mxu0 %v2380
  %2419 = vmatprep.subr.mxu0 0.0
  %2420 = vmatpush1.msra.mxu0 %v2379
  %2421 = vmatprep.subr.mxu0 0.0
  %2422 = vmatpush1.msra.mxu0 %v2378
  %2423 = vmatprep.subr.mxu0 0.0
  %2424 = vmatpush1.msra.mxu0 %v2377
  %2425 = vmatprep.subr.mxu0 0.0
  %2426 = vmatpush2.msra.mxu0 0.0
  %2427 = vmatprep.subr.mxu0 0.0
  %2428 = vmatpush2.msra.mxu0 0.0
  %2429 = vmatprep.subr.mxu0 0.0
  %2430 = vmatpush2.msra.mxu0 0.0
  %2431 = vmatprep.subr.mxu0 0.0
  %2432 = vmatpush2.msra.mxu0 0.0
  %2433 = vmatprep.subr.mxu0 0.0
  %2434 = vmatpush2.msra.mxu0 0.0
  %2435 = vmatprep.subr.mxu0 0.0
  %2436 = vmatpush2.msra.mxu0 0.0
  %2437 = vmatprep.subr.mxu0 0.0
  %2438 = vmatpush2.msra.mxu0 0.0
  %2439 = vmatprep.subr.mxu0 0.0
  %2440 = vmatpush2.msra.mxu0 0.0
  %2441 = vmatprep.subr.mxu0 0.0
  %2442 = vmatpush2.msra.mxu0 0.0
  %2443 = vmatprep.subr.mxu0 0.0
  %2444 = vmatpush2.msra.mxu0 0.0
  %2445 = vmatprep.subr.mxu0 0.0
  %2446 = vmatpush2.msra.mxu0 0.0
  %2447 = vmatprep.subr.mxu0 0.0
  %2448 = vmatpush2.msra.mxu0 0.0
  %2449 = vmatprep.subr.mxu0 0.0
  %2450 = vmatpush2.msra.mxu0 0.0
  %2451 = vmatprep.subr.mxu0 0.0
  %2452 = vmatpush2.msra.mxu0 0.0
  %2453 = vmatprep.subr.mxu0 0.0
  %2454 = vmatpush2.msra.mxu0 0.0
  %2455 = vmatprep.subr.mxu0 0.0
  %2456 = vmatpush2.msra.mxu0 0.0
  %2457 = vmatprep.mubr.f32.mxu0 0.0
  %2458 = vmatmul.mubr.f32.gmra.mxu0 %v2391
  %v2459 = vpop.f32.mrf.mxu0
  %v2460 = vadd.f32 %v2388, %v2459
  %v2461 = vpop.f32.mrf.mxu0
  %2462 = vdwg.mxu0
  %v2463 = vadd.f32 %v2265, %v2460
  %v2464 = vsel %vm1144, %v2463, 0.0
  %2465 = vadd.xlane.f32.xlu0 %v2464
  %v2466 = vpop.xlane.xlu0 %2465
  %v2467 = vmul.f32 %v2466, %v1148
  %v2468 = vsub.f32 %v2463, %v2467
  %v2469 = vmul.f32 %v2468, %v2468
  %v2470 = vsel %vm1144, %v2469, 0.0
  %2471 = vadd.xlane.f32.xlu0 %v2470
  %v2472 = vpop.xlane.xlu0 %2471
  %v2473 = vmul.f32 %v2472, %v1148
  %v2474 = vadd.f32 %v2473, 1e-05
  %v2475 = vrsqrt.pop %v2474
  %v2476 = vmul.f32 %v2468, %v2475
  %v2477 = vlaneseq
  %v2478 = vshrl.u32 %v2477, 7
  %v2479 = vsub.s32 5, %v2478
  %v2480 = vrot.slane %v137, %v2479
  %v2481 = vmul.f32 %v2476, %v2480
  %v2482 = vlaneseq
  %v2483 = vshrl.u32 %v2482, 7
  %v2484 = vsub.s32 6, %v2483
  %v2485 = vrot.slane %v137, %v2484
  %v2486 = vadd.f32 %v2481, %v2485
  %v2487 = vld [vmem:[%s12] sm:$0x3]
  %v2488 = vsel %vm1144, %v2486, 0.0
  %2489 = vadd.xlane.f32.xlu0 %v2488
  %v2490 = vpop.xlane.xlu0 %2489
  %v2491 = vmul.f32 %v2490, %v1148
  %v2492 = vsub.f32 %v2486, %v2491
  %v2493 = vmul.f32 %v2492, %v2492
  %v2494 = vsel %vm1144, %v2493, 0.0
  %2495 = vadd.xlane.f32.xlu0 %v2494
  %v2496 = vpop.xlane.xlu0 %2495
  %v2497 = vmul.f32 %v2496, %v1148
  %v2498 = vadd.f32 %v2497, 1e-05
  %v2499 = vrsqrt.pop %v2498
  %v2500 = vmul.f32 %v2492, %v2499
  %v2501 = vlaneseq
  %v2502 = vshrl.u32 %v2501, 7
  %v2503 = vsub.s32 0, %v2502
  %v2504 = vrot.slane %v2487, %v2503
  %v2505 = vmul.f32 %v2500, %v2504
  %v2506 = vlaneseq
  %v2507 = vshrl.u32 %v2506, 7
  %v2508 = vsub.s32 1, %v2507
  %v2509 = vrot.slane %v2487, %v2508
  %v2510 = vadd.f32 %v2505, %v2509
  %v2511 = vld [vmem:[%s13] sm:$0xff]
  %v2512 = vld [vmem:[%s13 + $0x8] sm:$0xff]
  %v2513 = vld [vmem:[%s13 + $0x10] sm:$0xff]
  %v2514 = vld [vmem:[%s13 + $0x18] sm:$0xff]
  %v2515 = vld [vmem:[%s14] sm:$0x1]
  %v2517 = vlaneseq
  %v2518 = vshrl.u32 %v2517, 7
  %v2519 = vsub.s32 0, %v2518
  %v2520 = vrot.slane %v2515, %v2519
  %v2523 = vsel %vm161, %v2510, 0
  %2525 = vmatprep.subr.mxu0 0.0
  %2526 = vmatpush1.msra.mxu0 0.0
  %2527 = vmatprep.subr.mxu0 0.0
  %2528 = vmatpush1.msra.mxu0 0.0
  %2529 = vmatprep.subr.mxu0 0.0
  %2530 = vmatpush1.msra.mxu0 0.0
  %2531 = vmatprep.subr.mxu0 0.0
  %2532 = vmatpush1.msra.mxu0 0.0
  %2533 = vmatprep.subr.mxu0 0.0
  %2534 = vmatpush1.msra.mxu0 0.0
  %2535 = vmatprep.subr.mxu0 0.0
  %2536 = vmatpush1.msra.mxu0 0.0
  %2537 = vmatprep.subr.mxu0 0.0
  %2538 = vmatpush1.msra.mxu0 0.0
  %2539 = vmatprep.subr.mxu0 0.0
  %2540 = vmatpush1.msra.mxu0 0.0
  %2541 = vmatprep.subr.mxu0 0.0
  %2542 = vmatpush1.msra.mxu0 0.0
  %2543 = vmatprep.subr.mxu0 0.0
  %2544 = vmatpush1.msra.mxu0 0.0
  %2545 = vmatprep.subr.mxu0 0.0
  %2546 = vmatpush1.msra.mxu0 0.0
  %2547 = vmatprep.subr.mxu0 0.0
  %2548 = vmatpush1.msra.mxu0 0.0
  %2549 = vmatprep.subr.mxu0 0.0
  %2550 = vmatpush1.msra.mxu0 %v2514
  %2551 = vmatprep.subr.mxu0 0.0
  %2552 = vmatpush1.msra.mxu0 %v2513
  %2553 = vmatprep.subr.mxu0 0.0
  %2554 = vmatpush1.msra.mxu0 %v2512
  %2555 = vmatprep.subr.mxu0 0.0
  %2556 = vmatpush1.msra.mxu0 %v2511
  %2557 = vmatprep.subr.mxu0 0.0
  %2558 = vmatpush2.msra.mxu0 0.0
  %2559 = vmatprep.subr.mxu0 0.0
  %2560 = vmatpush2.msra.mxu0 0.0
  %2561 = vmatprep.subr.mxu0 0.0
  %2562 = vmatpush2.msra.mxu0 0.0
  %2563 = vmatprep.subr.mxu0 0.0
  %2564 = vmatpush2.msra.mxu0 0.0
  %2565 = vmatprep.subr.mxu0 0.0
  %2566 = vmatpush2.msra.mxu0 0.0
  %2567 = vmatprep.subr.mxu0 0.0
  %2568 = vmatpush2.msra.mxu0 0.0
  %2569 = vmatprep.subr.mxu0 0.0
  %2570 = vmatpush2.msra.mxu0 0.0
  %2571 = vmatprep.subr.mxu0 0.0
  %2572 = vmatpush2.msra.mxu0 0.0
  %2573 = vmatprep.subr.mxu0 0.0
  %2574 = vmatpush2.msra.mxu0 0.0
  %2575 = vmatprep.subr.mxu0 0.0
  %2576 = vmatpush2.msra.mxu0 0.0
  %2577 = vmatprep.subr.mxu0 0.0
  %2578 = vmatpush2.msra.mxu0 0.0
  %2579 = vmatprep.subr.mxu0 0.0
  %2580 = vmatpush2.msra.mxu0 0.0
  %2581 = vmatprep.subr.mxu0 0.0
  %2582 = vmatpush2.msra.mxu0 0.0
  %2583 = vmatprep.subr.mxu0 0.0
  %2584 = vmatpush2.msra.mxu0 0.0
  %2585 = vmatprep.subr.mxu0 0.0
  %2586 = vmatpush2.msra.mxu0 0.0
  %2587 = vmatprep.subr.mxu0 0.0
  %2588 = vmatpush2.msra.mxu0 0.0
  %2589 = vmatprep.mubr.f32.mxu0 0.0
  %2590 = vmatmul.mubr.f32.gmra.mxu0 %v2523
  %v2591 = vpop.f32.mrf.mxu0
  %v2592 = vadd.f32 %v2520, %v2591
  %v2593 = vpop.f32.mrf.mxu0
  %2594 = vdwg.mxu0
  %vm2595 = vcmask 29696
  %2596 = vst.msk [vmem:[%s15] sm:$0x3f] %vm2595, %v2592
  // Predicated region
  $region62: #{_lambda_.4} parent=0 // pred_check
    _
  $region63: #{_lambda_.4} parent=0 // pred_check_branch
    %2598 = sbr.rel (0) target = $region65
  $region64: #{_lambda_.4} parent=0 // pred_region
    _
  $region65: #{_lambda_.4} parent=0 // pred_fallthru
    _
  // Predicated region
  $region66: #{_lambda_.4} parent=0 // pred_check
    _
  $region67: #{_lambda_.4} parent=0 // pred_check_branch
    %2600 = sbr.rel (0) target = $region69
  $region68: #{_lambda_.4} parent=0 // pred_region
    _
  $region69: #{_lambda_.4} parent=0 // pred_fallthru
    _

// kernel: _lambda_.5
$region0: #{_lambda_.5}
  #allocation0 [shape = 'u32[]', space=smem, size = 0x4, offset = 0x4, fixed_abs, tag = 'smem constant byte address 0x4 - core index']
  #allocation1 [shape = 'u32[144,128]{1,0:T(1,128)}', space=vmem, size = 0x12000, scoped, tag = 'internal scratch']
  %s0 = inlined_call_operand.vmem [shape: f32[12,4], index: 0, kind: input, shape index: {}]
  %s1 = inlined_call_operand.vmem [shape: f32[4,32], index: 1, kind: input, shape index: {}]
  %s2 = inlined_call_operand.vmem [shape: f32[12,32], index: 2, kind: input, shape index: {}]
  %s3 = inlined_call_operand.vmem [shape: f32[24,32], index: 3, kind: input, shape index: {}]
  %s4 = inlined_call_operand.vmem [shape: f32[12,12], index: 4, kind: input, shape index: {}]
  %s5 = inlined_call_operand.vmem [shape: f32[12,24], index: 5, kind: input, shape index: {}]
  %s6 = inlined_call_operand.vmem [shape: f32[1,4,32,32], index: 6, kind: input, shape index: {}]
  %s7 = inlined_call_operand.vmem [shape: f32[1,4,32,32], index: 7, kind: input, shape index: {}]
  %s8 = inlined_call_operand.vmem [shape: f32[1,32,64], index: 8, kind: input, shape index: {}]
  %s9 = inlined_call_operand.vmem [shape: f32[1,64,32], index: 9, kind: input, shape index: {}]
  %s10 = inlined_call_operand.vmem [shape: f32[1,15,32], index: 10, kind: input, shape index: {}]
  %s11 = inlined_call_operand.vmem [shape: f32[1,1,64], index: 11, kind: input, shape index: {}]
  %s12 = inlined_call_operand.vmem [shape: f32[2,32], index: 12, kind: input, shape index: {}]
  %s13 = inlined_call_operand.vmem [shape: f32[32,4], index: 13, kind: input, shape index: {}]
  %s14 = inlined_call_operand.vmem [shape: f32[1,4], index: 14, kind: input, shape index: {}]
  %s15 = inlined_call_operand.vmem [shape: f32[12,4], index: 15, kind: output, shape index: {}]
  %s16 = sld [smem:[#allocation0]]
  $region70: #{_lambda_.5} parent=0
    _
  %s18 = ssub.s32 1, %s16
  %s19 = scalar_select 0, %s18, %s16
  // Predicated region
  $region2: #{_lambda_.5} parent=0 // pred_check
    _
  $region3: #{_lambda_.5} parent=0 // pred_check_branch
    %21 = sbr.rel (0) target = $region5
  $region4: #{_lambda_.5} parent=0 // pred_region
    _
  $region5: #{_lambda_.5} parent=0 // pred_fallthru
    _
  // Predicated region
  $region6: #{_lambda_.5} parent=0 // pred_check
    _
  $region7: #{_lambda_.5} parent=0 // pred_check_branch
    %23 = sbr.rel (0) target = $region9
  $region8: #{_lambda_.5} parent=0 // pred_region
    _
  $region9: #{_lambda_.5} parent=0 // pred_fallthru
    _
  // Predicated region
  $region10: #{_lambda_.5} parent=0 // pred_check
    _
  $region11: #{_lambda_.5} parent=0 // pred_check_branch
    %25 = sbr.rel (0) target = $region13
  $region12: #{_lambda_.5} parent=0 // pred_region
    _
  $region13: #{_lambda_.5} parent=0 // pred_fallthru
    _
  // Predicated region
  $region14: #{_lambda_.5} parent=0 // pred_check
    _
  $region15: #{_lambda_.5} parent=0 // pred_check_branch
    %27 = sbr.rel (0) target = $region17
  $region16: #{_lambda_.5} parent=0 // pred_region
    _
  $region17: #{_lambda_.5} parent=0 // pred_fallthru
    _
  // Predicated region
  $region18: #{_lambda_.5} parent=0 // pred_check
    _
  $region19: #{_lambda_.5} parent=0 // pred_check_branch
    %29 = sbr.rel (0) target = $region21
  $region20: #{_lambda_.5} parent=0 // pred_region
    _
  $region21: #{_lambda_.5} parent=0 // pred_fallthru
    _
  // Predicated region
  $region22: #{_lambda_.5} parent=0 // pred_check
    _
  $region23: #{_lambda_.5} parent=0 // pred_check_branch
    %31 = sbr.rel (0) target = $region25
  $region24: #{_lambda_.5} parent=0 // pred_region
    _
  $region25: #{_lambda_.5} parent=0 // pred_fallthru
    _
  // Predicated region
  $region26: #{_lambda_.5} parent=0 // pred_check
    _
  $region27: #{_lambda_.5} parent=0 // pred_check_branch
    %33 = sbr.rel (0) target = $region29
  $region28: #{_lambda_.5} parent=0 // pred_region
    _
  $region29: #{_lambda_.5} parent=0 // pred_fallthru
    _
  // Predicated region
  $region30: #{_lambda_.5} parent=0 // pred_check
    _
  $region31: #{_lambda_.5} parent=0 // pred_check_branch
    %35 = sbr.rel (0) target = $region33
  $region32: #{_lambda_.5} parent=0 // pred_region
    _
  $region33: #{_lambda_.5} parent=0 // pred_fallthru
    _
  // Predicated region
  $region34: #{_lambda_.5} parent=0 // pred_check
    _
  $region35: #{_lambda_.5} parent=0 // pred_check_branch
    %37 = sbr.rel (0) target = $region37
  $region36: #{_lambda_.5} parent=0 // pred_region
    _
  $region37: #{_lambda_.5} parent=0 // pred_fallthru
    _
  // Predicated region
  $region38: #{_lambda_.5} parent=0 // pred_check
    _
  $region39: #{_lambda_.5} parent=0 // pred_check_branch
    %39 = sbr.rel (0) target = $region41
  $region40: #{_lambda_.5} parent=0 // pred_region
    _
  $region41: #{_lambda_.5} parent=0 // pred_fallthru
    _
  // Predicated region
  $region42: #{_lambda_.5} parent=0 // pred_check
    _
  $region43: #{_lambda_.5} parent=0 // pred_check_branch
    %41 = sbr.rel (0) target = $region45
  $region44: #{_lambda_.5} parent=0 // pred_region
    _
  $region45: #{_lambda_.5} parent=0 // pred_fallthru
    _
  // Predicated region
  $region46: #{_lambda_.5} parent=0 // pred_check
    _
  $region47: #{_lambda_.5} parent=0 // pred_check_branch
    %43 = sbr.rel (0) target = $region49
  $region48: #{_lambda_.5} parent=0 // pred_region
    _
  $region49: #{_lambda_.5} parent=0 // pred_fallthru
    _
  // Predicated region
  $region50: #{_lambda_.5} parent=0 // pred_check
    _
  $region51: #{_lambda_.5} parent=0 // pred_check_branch
    %45 = sbr.rel (0) target = $region53
  $region52: #{_lambda_.5} parent=0 // pred_region
    _
  $region53: #{_lambda_.5} parent=0 // pred_fallthru
    _
  // Predicated region
  $region54: #{_lambda_.5} parent=0 // pred_check
    _
  $region55: #{_lambda_.5} parent=0 // pred_check_branch
    %47 = sbr.rel (0) target = $region57
  $region56: #{_lambda_.5} parent=0 // pred_region
    _
  $region57: #{_lambda_.5} parent=0 // pred_fallthru
    _
  // Predicated region
  $region58: #{_lambda_.5} parent=0 // pred_check
    _
  $region59: #{_lambda_.5} parent=0 // pred_check_branch
    %49 = sbr.rel (0) target = $region61
  $region60: #{_lambda_.5} parent=0 // pred_region
    _
  $region61: #{_lambda_.5} parent=0 // pred_fallthru
    _
  %v50 = vld [vmem:[%s0] sm:$0xff]
  %v51 = vld [vmem:[%s0 + $0x8] sm:$0xf]
  %v52 = vld [vmem:[%s1] sm:$0xf]
  %v53 = vld [vmem:[%s2] sm:$0xff]
  %v54 = vld [vmem:[%s2 + $0x8] sm:$0xf]
  %vm55 = vcmask 31744
  %v57 = vsel %vm55, %v50, 0
  %v60 = vsel %vm55, %v51, 0
  %vm62 = vcmask 1043456
  %v64 = vsel %vm62, %v52, 0
  %66 = vmatprep.subr.mxu0 0.0
  %67 = vmatpush1.msra.mxu0 0.0
  %68 = vmatprep.subr.mxu0 0.0
  %69 = vmatpush1.msra.mxu0 0.0
  %70 = vmatprep.subr.mxu0 0.0
  %71 = vmatpush1.msra.mxu0 0.0
  %72 = vmatprep.subr.mxu0 0.0
  %73 = vmatpush1.msra.mxu0 0.0
  %74 = vmatprep.subr.mxu0 0.0
  %75 = vmatpush1.msra.mxu0 0.0
  %76 = vmatprep.subr.mxu0 0.0
  %77 = vmatpush1.msra.mxu0 0.0
  %78 = vmatprep.subr.mxu0 0.0
  %79 = vmatpush1.msra.mxu0 0.0
  %80 = vmatprep.subr.mxu0 0.0
  %81 = vmatpush1.msra.mxu0 0.0
  %82 = vmatprep.subr.mxu0 0.0
  %83 = vmatpush1.msra.mxu0 0.0
  %84 = vmatprep.subr.mxu0 0.0
  %85 = vmatpush1.msra.mxu0 0.0
  %86 = vmatprep.subr.mxu0 0.0
  %87 = vmatpush1.msra.mxu0 0.0
  %88 = vmatprep.subr.mxu0 0.0
  %89 = vmatpush1.msra.mxu0 0.0
  %90 = vmatprep.subr.mxu0 0.0
  %91 = vmatpush1.msra.mxu0 0.0
  %92 = vmatprep.subr.mxu0 0.0
  %93 = vmatpush1.msra.mxu0 0.0
  %94 = vmatprep.subr.mxu0 0.0
  %95 = vmatpush1.msra.mxu0 0.0
  %96 = vmatprep.subr.mxu0 0.0
  %97 = vmatpush1.msra.mxu0 %v64
  %98 = vmatprep.subr.mxu0 0.0
  %99 = vmatpush2.msra.mxu0 0.0
  %100 = vmatprep.subr.mxu0 0.0
  %101 = vmatpush2.msra.mxu0 0.0
  %102 = vmatprep.subr.mxu0 0.0
  %103 = vmatpush2.msra.mxu0 0.0
  %104 = vmatprep.subr.mxu0 0.0
  %105 = vmatpush2.msra.mxu0 0.0
  %106 = vmatprep.subr.mxu0 0.0
  %107 = vmatpush2.msra.mxu0 0.0
  %108 = vmatprep.subr.mxu0 0.0
  %109 = vmatpush2.msra.mxu0 0.0
  %110 = vmatprep.subr.mxu0 0.0
  %111 = vmatpush2.msra.mxu0 0.0
  %112 = vmatprep.subr.mxu0 0.0
  %113 = vmatpush2.msra.mxu0 0.0
  %114 = vmatprep.subr.mxu0 0.0
  %115 = vmatpush2.msra.mxu0 0.0
  %116 = vmatprep.subr.mxu0 0.0
  %117 = vmatpush2.msra.mxu0 0.0
  %118 = vmatprep.subr.mxu0 0.0
  %119 = vmatpush2.msra.mxu0 0.0
  %120 = vmatprep.subr.mxu0 0.0
  %121 = vmatpush2.msra.mxu0 0.0
  %122 = vmatprep.subr.mxu0 0.0
  %123 = vmatpush2.msra.mxu0 0.0
  %124 = vmatprep.subr.mxu0 0.0
  %125 = vmatpush2.msra.mxu0 0.0
  %126 = vmatprep.subr.mxu0 0.0
  %127 = vmatpush2.msra.mxu0 0.0
  %128 = vmatprep.subr.mxu0 0.0
  %129 = vmatpush2.msra.mxu0 0.0
  %130 = vmatprep.mubr.f32.mxu0 0.0
  %131 = vmatmul.mubr.f32.gmra.mxu0 %v57
  %v132 = vpop.f32.mrf.mxu0
  %v133 = vadd.f32 %v53, %v132
  %v134 = vpop.f32.mrf.mxu0
  %135 = vmatprep.mubr.f32.mxu0 0.0
  %136 = vmatmul.mubr.f32.gmra.mxu0 %v60
  %v137 = vpop.f32.mrf.mxu0
  %v138 = vadd.f32 %v54, %v137
  %v139 = vpop.f32.mrf.mxu0
  %140 = vdwg.mxu0
  %v141 = vld [vmem:[%s3] sm:$0xff]
  %v142 = vld [vmem:[%s3 + $0x8] sm:$0xff]
  %v143 = vld [vmem:[%s3 + $0x10] sm:$0xff]
  %v144 = vld [vmem:[%s4] sm:$0xff]
  %v145 = vld [vmem:[%s4 + $0x8] sm:$0xf]
  %v146 = vld [vmem:[%s5] sm:$0xff]
  %v147 = vld [vmem:[%s5 + $0x8] sm:$0xf]
  %v148 = vld [vmem:[%s10] sm:$0xff]
  %v149 = vld [vmem:[%s10 + $0x8] sm:$0x7f]
  %v150 = vld [vmem:[%s6] sm:$0xff]
  %v151 = vld [vmem:[%s6 + $0x8] sm:$0xff]
  %v152 = vld [vmem:[%s6 + $0x10] sm:$0xff]
  %v153 = vld [vmem:[%s6 + $0x18] sm:$0xff]
  %s154 = scalar_lea.vmem %s6, 32
  %v155 = vld [vmem:[%s154] sm:$0xff]
  %v156 = vld [vmem:[%s154 + $0x8] sm:$0xff]
  %v157 = vld [vmem:[%s154 + $0x10] sm:$0xff]
  %v158 = vld [vmem:[%s154 + $0x18] sm:$0xff]
  %s159 = scalar_lea.vmem %s6, 64
  %v160 = vld [vmem:[%s159] sm:$0xff]
  %v161 = vld [vmem:[%s159 + $0x8] sm:$0xff]
  %v162 = vld [vmem:[%s159 + $0x10] sm:$0xff]
  %v163 = vld [vmem:[%s159 + $0x18] sm:$0xff]
  %s164 = scalar_lea.vmem %s6, 96
  %v165 = vld [vmem:[%s164] sm:$0xff]
  %v166 = vld [vmem:[%s164 + $0x8] sm:$0xff]
  %v167 = vld [vmem:[%s164 + $0x10] sm:$0xff]
  %v168 = vld [vmem:[%s164 + $0x18] sm:$0xff]
  %v169 = vlaneseq
  %v170 = vshrl.u32 %v169, 7
  %v171 = vsub.s32 0, %v170
  %v172 = vrot.slane %v148, %v171
  %vm173 = vcmask 261120
  %v175 = vsel %vm173, %v133, 0
  %v178 = vsel %vm173, %v138, 0
  %180 = vmatprep.subr.mxu0 0.0
  %181 = vmatpush1.msra.mxu0 0.0
  %182 = vmatprep.subr.mxu0 0.0
  %183 = vmatpush1.msra.mxu0 0.0
  %184 = vmatprep.subr.mxu0 0.0
  %185 = vmatpush1.msra.mxu0 0.0
  %186 = vmatprep.subr.mxu0 0.0
  %187 = vmatpush1.msra.mxu0 0.0
  %188 = vmatprep.subr.mxu0 0.0
  %189 = vmatpush1.msra.mxu0 0.0
  %190 = vmatprep.subr.mxu0 0.0
  %191 = vmatpush1.msra.mxu0 0.0
  %192 = vmatprep.subr.mxu0 0.0
  %193 = vmatpush1.msra.mxu0 0.0
  %194 = vmatprep.subr.mxu0 0.0
  %195 = vmatpush1.msra.mxu0 0.0
  %196 = vmatprep.subr.mxu0 0.0
  %197 = vmatpush1.msra.mxu0 0.0
  %198 = vmatprep.subr.mxu0 0.0
  %199 = vmatpush1.msra.mxu0 0.0
  %200 = vmatprep.subr.mxu0 0.0
  %201 = vmatpush1.msra.mxu0 0.0
  %202 = vmatprep.subr.mxu0 0.0
  %203 = vmatpush1.msra.mxu0 0.0
  %204 = vmatprep.subr.mxu0 0.0
  %205 = vmatpush1.msra.mxu0 %v153
  %206 = vmatprep.subr.mxu0 0.0
  %207 = vmatpush1.msra.mxu0 %v152
  %208 = vmatprep.subr.mxu0 0.0
  %209 = vmatpush1.msra.mxu0 %v151
  %210 = vmatprep.subr.mxu0 0.0
  %211 = vmatpush1.msra.mxu0 %v150
  %212 = vmatprep.subr.mxu0 0.0
  %213 = vmatpush2.msra.mxu0 0.0
  %214 = vmatprep.subr.mxu0 0.0
  %215 = vmatpush2.msra.mxu0 0.0
  %216 = vmatprep.subr.mxu0 0.0
  %217 = vmatpush2.msra.mxu0 0.0
  %218 = vmatprep.subr.mxu0 0.0
  %219 = vmatpush2.msra.mxu0 0.0
  %220 = vmatprep.subr.mxu0 0.0
  %221 = vmatpush2.msra.mxu0 0.0
  %222 = vmatprep.subr.mxu0 0.0
  %223 = vmatpush2.msra.mxu0 0.0
  %224 = vmatprep.subr.mxu0 0.0
  %225 = vmatpush2.msra.mxu0 0.0
  %226 = vmatprep.subr.mxu0 0.0
  %227 = vmatpush2.msra.mxu0 0.0
  %228 = vmatprep.subr.mxu0 0.0
  %229 = vmatpush2.msra.mxu0 0.0
  %230 = vmatprep.subr.mxu0 0.0
  %231 = vmatpush2.msra.mxu0 0.0
  %232 = vmatprep.subr.mxu0 0.0
  %233 = vmatpush2.msra.mxu0 0.0
  %234 = vmatprep.subr.mxu0 0.0
  %235 = vmatpush2.msra.mxu0 0.0
  %236 = vmatprep.subr.mxu0 0.0
  %237 = vmatpush2.msra.mxu0 0.0
  %238 = vmatprep.subr.mxu0 0.0
  %239 = vmatpush2.msra.mxu0 0.0
  %240 = vmatprep.subr.mxu0 0.0
  %241 = vmatpush2.msra.mxu0 0.0
  %242 = vmatprep.subr.mxu0 0.0
  %243 = vmatpush2.msra.mxu0 0.0
  %244 = vmatprep.mubr.f32.mxu0 0.0
  %245 = vmatmul.mubr.f32.gmra.mxu0 %v175
  %v246 = vpop.f32.mrf.mxu0
  %v247 = vadd.f32 %v172, %v246
  %v248 = vpop.f32.mrf.mxu0
  %249 = vmatprep.mubr.f32.mxu0 0.0
  %250 = vmatmul.mubr.f32.gmra.mxu0 %v178
  %v251 = vpop.f32.mrf.mxu0
  %v252 = vadd.f32 %v172, %v251
  %v253 = vpop.f32.mrf.mxu0
  %254 = vdwg.mxu0
  %v255 = vlaneseq
  %v256 = vshrl.u32 %v255, 7
  %v257 = vsub.s32 1, %v256
  %v258 = vrot.slane %v148, %v257
  %259 = vmatprep.subr.mxu0 0.0
  %260 = vmatpush1.msra.mxu0 0.0
  %261 = vmatprep.subr.mxu0 0.0
  %262 = vmatpush1.msra.mxu0 0.0
  %263 = vmatprep.subr.mxu0 0.0
  %264 = vmatpush1.msra.mxu0 0.0
  %265 = vmatprep.subr.mxu0 0.0
  %266 = vmatpush1.msra.mxu0 0.0
  %267 = vmatprep.subr.mxu0 0.0
  %268 = vmatpush1.msra.mxu0 0.0
  %269 = vmatprep.subr.mxu0 0.0
  %270 = vmatpush1.msra.mxu0 0.0
  %271 = vmatprep.subr.mxu0 0.0
  %272 = vmatpush1.msra.mxu0 0.0
  %273 = vmatprep.subr.mxu0 0.0
  %274 = vmatpush1.msra.mxu0 0.0
  %275 = vmatprep.subr.mxu0 0.0
  %276 = vmatpush1.msra.mxu0 0.0
  %277 = vmatprep.subr.mxu0 0.0
  %278 = vmatpush1.msra.mxu0 0.0
  %279 = vmatprep.subr.mxu0 0.0
  %280 = vmatpush1.msra.mxu0 0.0
  %281 = vmatprep.subr.mxu0 0.0
  %282 = vmatpush1.msra.mxu0 0.0
  %283 = vmatprep.subr.mxu0 0.0
  %284 = vmatpush1.msra.mxu0 %v158
  %285 = vmatprep.subr.mxu0 0.0
  %286 = vmatpush1.msra.mxu0 %v157
  %287 = vmatprep.subr.mxu0 0.0
  %288 = vmatpush1.msra.mxu0 %v156
  %289 = vmatprep.subr.mxu0 0.0
  %290 = vmatpush1.msra.mxu0 %v155
  %291 = vmatprep.subr.mxu0 0.0
  %292 = vmatpush2.msra.mxu0 0.0
  %293 = vmatprep.subr.mxu0 0.0
  %294 = vmatpush2.msra.mxu0 0.0
  %295 = vmatprep.subr.mxu0 0.0
  %296 = vmatpush2.msra.mxu0 0.0
  %297 = vmatprep.subr.mxu0 0.0
  %298 = vmatpush2.msra.mxu0 0.0
  %299 = vmatprep.subr.mxu0 0.0
  %300 = vmatpush2.msra.mxu0 0.0
  %301 = vmatprep.subr.mxu0 0.0
  %302 = vmatpush2.msra.mxu0 0.0
  %303 = vmatprep.subr.mxu0 0.0
  %304 = vmatpush2.msra.mxu0 0.0
  %305 = vmatprep.subr.mxu0 0.0
  %306 = vmatpush2.msra.mxu0 0.0
  %307 = vmatprep.subr.mxu0 0.0
  %308 = vmatpush2.msra.mxu0 0.0
  %309 = vmatprep.subr.mxu0 0.0
  %310 = vmatpush2.msra.mxu0 0.0
  %311 = vmatprep.subr.mxu0 0.0
  %312 = vmatpush2.msra.mxu0 0.0
  %313 = vmatprep.subr.mxu0 0.0
  %314 = vmatpush2.msra.mxu0 0.0
  %315 = vmatprep.subr.mxu0 0.0
  %316 = vmatpush2.msra.mxu0 0.0
  %317 = vmatprep.subr.mxu0 0.0
  %318 = vmatpush2.msra.mxu0 0.0
  %319 = vmatprep.subr.mxu0 0.0
  %320 = vmatpush2.msra.mxu0 0.0
  %321 = vmatprep.subr.mxu0 0.0
  %322 = vmatpush2.msra.mxu0 0.0
  %323 = vmatprep.mubr.f32.mxu0 0.0
  %324 = vmatmul.mubr.f32.gmra.mxu0 %v175
  %v325 = vpop.f32.mrf.mxu0
  %v326 = vadd.f32 %v258, %v325
  %v327 = vpop.f32.mrf.mxu0
  %328 = vmatprep.mubr.f32.mxu0 0.0
  %329 = vmatmul.mubr.f32.gmra.mxu0 %v178
  %v330 = vpop.f32.mrf.mxu0
  %v331 = vadd.f32 %v258, %v330
  %v332 = vpop.f32.mrf.mxu0
  %333 = vdwg.mxu0
  %v334 = vlaneseq
  %v335 = vshrl.u32 %v334, 7
  %v336 = vsub.s32 2, %v335
  %v337 = vrot.slane %v148, %v336
  %338 = vmatprep.subr.mxu0 0.0
  %339 = vmatpush1.msra.mxu0 0.0
  %340 = vmatprep.subr.mxu0 0.0
  %341 = vmatpush1.msra.mxu0 0.0
  %342 = vmatprep.subr.mxu0 0.0
  %343 = vmatpush1.msra.mxu0 0.0
  %344 = vmatprep.subr.mxu0 0.0
  %345 = vmatpush1.msra.mxu0 0.0
  %346 = vmatprep.subr.mxu0 0.0
  %347 = vmatpush1.msra.mxu0 0.0
  %348 = vmatprep.subr.mxu0 0.0
  %349 = vmatpush1.msra.mxu0 0.0
  %350 = vmatprep.subr.mxu0 0.0
  %351 = vmatpush1.msra.mxu0 0.0
  %352 = vmatprep.subr.mxu0 0.0
  %353 = vmatpush1.msra.mxu0 0.0
  %354 = vmatprep.subr.mxu0 0.0
  %355 = vmatpush1.msra.mxu0 0.0
  %356 = vmatprep.subr.mxu0 0.0
  %357 = vmatpush1.msra.mxu0 0.0
  %358 = vmatprep.subr.mxu0 0.0
  %359 = vmatpush1.msra.mxu0 0.0
  %360 = vmatprep.subr.mxu0 0.0
  %361 = vmatpush1.msra.mxu0 0.0
  %362 = vmatprep.subr.mxu0 0.0
  %363 = vmatpush1.msra.mxu0 %v163
  %364 = vmatprep.subr.mxu0 0.0
  %365 = vmatpush1.msra.mxu0 %v162
  %366 = vmatprep.subr.mxu0 0.0
  %367 = vmatpush1.msra.mxu0 %v161
  %368 = vmatprep.subr.mxu0 0.0
  %369 = vmatpush1.msra.mxu0 %v160
  %370 = vmatprep.subr.mxu0 0.0
  %371 = vmatpush2.msra.mxu0 0.0
  %372 = vmatprep.subr.mxu0 0.0
  %373 = vmatpush2.msra.mxu0 0.0
  %374 = vmatprep.subr.mxu0 0.0
  %375 = vmatpush2.msra.mxu0 0.0
  %376 = vmatprep.subr.mxu0 0.0
  %377 = vmatpush2.msra.mxu0 0.0
  %378 = vmatprep.subr.mxu0 0.0
  %379 = vmatpush2.msra.mxu0 0.0
  %380 = vmatprep.subr.mxu0 0.0
  %381 = vmatpush2.msra.mxu0 0.0
  %382 = vmatprep.subr.mxu0 0.0
  %383 = vmatpush2.msra.mxu0 0.0
  %384 = vmatprep.subr.mxu0 0.0
  %385 = vmatpush2.msra.mxu0 0.0
  %386 = vmatprep.subr.mxu0 0.0
  %387 = vmatpush2.msra.mxu0 0.0
  %388 = vmatprep.subr.mxu0 0.0
  %389 = vmatpush2.msra.mxu0 0.0
  %390 = vmatprep.subr.mxu0 0.0
  %391 = vmatpush2.msra.mxu0 0.0
  %392 = vmatprep.subr.mxu0 0.0
  %393 = vmatpush2.msra.mxu0 0.0
  %394 = vmatprep.subr.mxu0 0.0
  %395 = vmatpush2.msra.mxu0 0.0
  %396 = vmatprep.subr.mxu0 0.0
  %397 = vmatpush2.msra.mxu0 0.0
  %398 = vmatprep.subr.mxu0 0.0
  %399 = vmatpush2.msra.mxu0 0.0
  %400 = vmatprep.subr.mxu0 0.0
  %401 = vmatpush2.msra.mxu0 0.0
  %402 = vmatprep.mubr.f32.mxu0 0.0
  %403 = vmatmul.mubr.f32.gmra.mxu0 %v175
  %v404 = vpop.f32.mrf.mxu0
  %v405 = vadd.f32 %v337, %v404
  %v406 = vpop.f32.mrf.mxu0
  %407 = vmatprep.mubr.f32.mxu0 0.0
  %408 = vmatmul.mubr.f32.gmra.mxu0 %v178
  %v409 = vpop.f32.mrf.mxu0
  %v410 = vadd.f32 %v337, %v409
  %v411 = vpop.f32.mrf.mxu0
  %412 = vdwg.mxu0
  %v413 = vmul.f32 %v247, 0.35355338
  %v414 = vmul.f32 %v252, 0.35355338
  %vm415 = vcmask 64512
  %v417 = vsel %vm415, %v413, 0
  %v420 = vsel %vm415, %v414, 0
  %v423 = vsel %vm415, %v326, 0
  %v426 = vsel %vm415, %v331, 0
  %428 = vmatprep.subr.mxu0 0.0
  %429 = vmatpush1.xpose.msra.mxu0 0.0
  %430 = vmatprep.subr.mxu0 0.0
  %431 = vmatpush1.xpose.msra.mxu0 0.0
  %432 = vmatprep.subr.mxu0 0.0
  %433 = vmatpush1.xpose.msra.mxu0 0.0
  %434 = vmatprep.subr.mxu0 0.0
  %435 = vmatpush1.xpose.msra.mxu0 0.0
  %436 = vmatprep.subr.mxu0 0.0
  %437 = vmatpush1.xpose.msra.mxu0 0.0
  %438 = vmatprep.subr.mxu0 0.0
  %439 = vmatpush1.xpose.msra.mxu0 0.0
  %440 = vmatprep.subr.mxu0 0.0
  %441 = vmatpush1.xpose.msra.mxu0 0.0
  %442 = vmatprep.subr.mxu0 0.0
  %443 = vmatpush1.xpose.msra.mxu0 0.0
  %444 = vmatprep.subr.mxu0 0.0
  %445 = vmatpush1.xpose.msra.mxu0 0.0
  %446 = vmatprep.subr.mxu0 0.0
  %447 = vmatpush1.xpose.msra.mxu0 0.0
  %448 = vmatprep.subr.mxu0 0.0
  %449 = vmatpush1.xpose.msra.mxu0 0.0
  %450 = vmatprep.subr.mxu0 0.0
  %451 = vmatpush1.xpose.msra.mxu0 0.0
  %452 = vmatprep.subr.mxu0 0.0
  %453 = vmatpush1.xpose.msra.mxu0 0.0
  %454 = vmatprep.subr.mxu0 0.0
  %455 = vmatpush1.xpose.msra.mxu0 0.0
  %456 = vmatprep.subr.mxu0 0.0
  %457 = vmatpush1.xpose.msra.mxu0 %v426
  %458 = vmatprep.subr.mxu0 0.0
  %459 = vmatpush1.xpose.msra.mxu0 %v423
  %460 = vmatprep.subr.mxu0 0.0
  %461 = vmatpush2.xpose.msra.mxu0 0.0
  %462 = vmatprep.subr.mxu0 0.0
  %463 = vmatpush2.xpose.msra.mxu0 0.0
  %464 = vmatprep.subr.mxu0 0.0
  %465 = vmatpush2.xpose.msra.mxu0 0.0
  %466 = vmatprep.subr.mxu0 0.0
  %467 = vmatpush2.xpose.msra.mxu0 0.0
  %468 = vmatprep.subr.mxu0 0.0
  %469 = vmatpush2.xpose.msra.mxu0 0.0
  %470 = vmatprep.subr.mxu0 0.0
  %471 = vmatpush2.xpose.msra.mxu0 0.0
  %472 = vmatprep.subr.mxu0 0.0
  %473 = vmatpush2.xpose.msra.mxu0 0.0
  %474 = vmatprep.subr.mxu0 0.0
  %475 = vmatpush2.xpose.msra.mxu0 0.0
  %476 = vmatprep.subr.mxu0 0.0
  %477 = vmatpush2.xpose.msra.mxu0 0.0
  %478 = vmatprep.subr.mxu0 0.0
  %479 = vmatpush2.xpose.msra.mxu0 0.0
  %480 = vmatprep.subr.mxu0 0.0
  %481 = vmatpush2.xpose.msra.mxu0 0.0
  %482 = vmatprep.subr.mxu0 0.0
  %483 = vmatpush2.xpose.msra.mxu0 0.0
  %484 = vmatprep.subr.mxu0 0.0
  %485 = vmatpush2.xpose.msra.mxu0 0.0
  %486 = vmatprep.subr.mxu0 0.0
  %487 = vmatpush2.xpose.msra.mxu0 0.0
  %488 = vmatprep.subr.mxu0 0.0
  %489 = vmatpush2.xpose.msra.mxu0 0.0
  %490 = vmatprep.subr.mxu0 0.0
  %491 = vmatpush2.xpose.msra.mxu0 0.0
  %492 = vmatprep.mubr.f32.mxu0 0.0
  %493 = vmatmul.mubr.f32.gmra.mxu0 %v417
  %v494 = vpop.f32.mrf.mxu0
  %v495 = vadd.f32 %v144, %v494
  %v496 = vpop.f32.mrf.mxu0
  %497 = vmatprep.mubr.f32.mxu0 0.0
  %498 = vmatmul.mubr.f32.gmra.mxu0 %v420
  %v499 = vpop.f32.mrf.mxu0
  %v500 = vadd.f32 %v145, %v499
  %v501 = vpop.f32.mrf.mxu0
  %502 = vdwg.mxu0
  %vm503 = vcmask 97280
  %v504 = vsel %vm503, %v495, -inf
  %505 = vmax.xlane.f32.xlu0 %v504
  %v506 = vpop.xlane.xlu0 %505
  %vm507 = vcmask 93184
  %v508 = vsel %vm507, %v500, -inf
  %509 = vmax.xlane.f32.xlu0 %v508
  %v510 = vpop.xlane.xlu0 %509
  %v511 = vsub.f32 %v495, %v506
  %v512 = vsub.f32 %v500, %v510
  %v513 = vmul.f32 %v511, 1.442695
  %v514 = vpow.pop %v513
  %v515 = vmul.f32 %v512, 1.442695
  %v516 = vpow.pop %v515
  %v517 = vsel %vm503, %v514, 0.0
  %518 = vadd.xlane.f32.xlu0 %v517
  %v519 = vpop.xlane.xlu0 %518
  %v520 = vsel %vm507, %v516, 0.0
  %521 = vadd.xlane.f32.xlu0 %v520
  %v522 = vpop.xlane.xlu0 %521
  %v523 = vrcp.pop %v519
  %v524 = vrcp.pop %v522
  %v525 = vmul.f32 %v514, %v523
  %v526 = vmul.f32 %v516, %v524
  %v528 = vsel %vm503, %v525, 0
  %v531 = vsel %vm503, %v526, 0
  %v534 = vsel %vm62, %v410, 0
  %536 = vmatprep.subr.mxu0 0.0
  %537 = vmatpush1.msra.mxu0 0.0
  %538 = vmatprep.subr.mxu0 0.0
  %539 = vmatpush1.msra.mxu0 0.0
  %540 = vmatprep.subr.mxu0 0.0
  %541 = vmatpush1.msra.mxu0 0.0
  %542 = vmatprep.subr.mxu0 0.0
  %543 = vmatpush1.msra.mxu0 0.0
  %544 = vmatprep.subr.mxu0 0.0
  %545 = vmatpush1.msra.mxu0 0.0
  %546 = vmatprep.subr.mxu0 0.0
  %547 = vmatpush1.msra.mxu0 0.0
  %548 = vmatprep.subr.mxu0 0.0
  %549 = vmatpush1.msra.mxu0 0.0
  %550 = vmatprep.subr.mxu0 0.0
  %551 = vmatpush1.msra.mxu0 0.0
  %552 = vmatprep.subr.mxu0 0.0
  %553 = vmatpush1.msra.mxu0 0.0
  %554 = vmatprep.subr.mxu0 0.0
  %555 = vmatpush1.msra.mxu0 0.0
  %556 = vmatprep.subr.mxu0 0.0
  %557 = vmatpush1.msra.mxu0 0.0
  %558 = vmatprep.subr.mxu0 0.0
  %559 = vmatpush1.msra.mxu0 0.0
  %560 = vmatprep.subr.mxu0 0.0
  %561 = vmatpush1.msra.mxu0 0.0
  %562 = vmatprep.subr.mxu0 0.0
  %563 = vmatpush1.msra.mxu0 0.0
  %564 = vmatprep.subr.mxu0 0.0
  %565 = vmatpush1.msra.mxu0 %v534
  %566 = vmatprep.subr.mxu0 0.0
  %567 = vmatpush1.msra.mxu0 %v405
  %568 = vmatprep.subr.mxu0 0.0
  %569 = vmatpush2.msra.mxu0 0.0
  %570 = vmatprep.subr.mxu0 0.0
  %571 = vmatpush2.msra.mxu0 0.0
  %572 = vmatprep.subr.mxu0 0.0
  %573 = vmatpush2.msra.mxu0 0.0
  %574 = vmatprep.subr.mxu0 0.0
  %575 = vmatpush2.msra.mxu0 0.0
  %576 = vmatprep.subr.mxu0 0.0
  %577 = vmatpush2.msra.mxu0 0.0
  %578 = vmatprep.subr.mxu0 0.0
  %579 = vmatpush2.msra.mxu0 0.0
  %580 = vmatprep.subr.mxu0 0.0
  %581 = vmatpush2.msra.mxu0 0.0
  %582 = vmatprep.subr.mxu0 0.0
  %583 = vmatpush2.msra.mxu0 0.0
  %584 = vmatprep.subr.mxu0 0.0
  %585 = vmatpush2.msra.mxu0 0.0
  %586 = vmatprep.subr.mxu0 0.0
  %587 = vmatpush2.msra.mxu0 0.0
  %588 = vmatprep.subr.mxu0 0.0
  %589 = vmatpush2.msra.mxu0 0.0
  %590 = vmatprep.subr.mxu0 0.0
  %591 = vmatpush2.msra.mxu0 0.0
  %592 = vmatprep.subr.mxu0 0.0
  %593 = vmatpush2.msra.mxu0 0.0
  %594 = vmatprep.subr.mxu0 0.0
  %595 = vmatpush2.msra.mxu0 0.0
  %596 = vmatprep.subr.mxu0 0.0
  %597 = vmatpush2.msra.mxu0 0.0
  %598 = vmatprep.subr.mxu0 0.0
  %599 = vmatpush2.msra.mxu0 0.0
  %600 = vmatprep.mubr.f32.mxu0 0.0
  %601 = vmatmul.mubr.f32.gmra.mxu0 %v528
  %v602 = vpop.f32.mrf.mxu0
  %v603 = vadd.f32 0.0, %v602
  %v604 = vpop.f32.mrf.mxu0
  %605 = vmatprep.mubr.f32.mxu0 0.0
  %606 = vmatmul.mubr.f32.gmra.mxu0 %v531
  %v607 = vpop.f32.mrf.mxu0
  %v608 = vadd.f32 0.0, %v607
  %v609 = vpop.f32.mrf.mxu0
  %610 = vdwg.mxu0
  %611 = vrot.lane.b32.xlu0 %v413, 120
  %v612 = vpop.permute.xlu0 %611
  %613 = vrot.lane.b32.xlu0 %v414, 120
  %v614 = vpop.permute.xlu0 %613
  %615 = vrot.lane.b32.xlu0 %v326, 120
  %v616 = vpop.permute.xlu0 %615
  %617 = vrot.lane.b32.xlu0 %v331, 120
  %v618 = vpop.permute.xlu0 %617
  %v619 = vsel %vm415, %v612, 0
  %v621 = vsel %vm415, %v614, 0
  %v623 = vsel %vm415, %v616, 0
  %v625 = vsel %vm415, %v618, 0
  %627 = vmatprep.subr.mxu0 0.0
  %628 = vmatpush1.xpose.msra.mxu0 0.0
  %629 = vmatprep.subr.mxu0 0.0
  %630 = vmatpush1.xpose.msra.mxu0 0.0
  %631 = vmatprep.subr.mxu0 0.0
  %632 = vmatpush1.xpose.msra.mxu0 0.0
  %633 = vmatprep.subr.mxu0 0.0
  %634 = vmatpush1.xpose.msra.mxu0 0.0
  %635 = vmatprep.subr.mxu0 0.0
  %636 = vmatpush1.xpose.msra.mxu0 0.0
  %637 = vmatprep.subr.mxu0 0.0
  %638 = vmatpush1.xpose.msra.mxu0 0.0
  %639 = vmatprep.subr.mxu0 0.0
  %640 = vmatpush1.xpose.msra.mxu0 0.0
  %641 = vmatprep.subr.mxu0 0.0
  %642 = vmatpush1.xpose.msra.mxu0 0.0
  %643 = vmatprep.subr.mxu0 0.0
  %644 = vmatpush1.xpose.msra.mxu0 0.0
  %645 = vmatprep.subr.mxu0 0.0
  %646 = vmatpush1.xpose.msra.mxu0 0.0
  %647 = vmatprep.subr.mxu0 0.0
  %648 = vmatpush1.xpose.msra.mxu0 0.0
  %649 = vmatprep.subr.mxu0 0.0
  %650 = vmatpush1.xpose.msra.mxu0 0.0
  %651 = vmatprep.subr.mxu0 0.0
  %652 = vmatpush1.xpose.msra.mxu0 0.0
  %653 = vmatprep.subr.mxu0 0.0
  %654 = vmatpush1.xpose.msra.mxu0 0.0
  %655 = vmatprep.subr.mxu0 0.0
  %656 = vmatpush1.xpose.msra.mxu0 %v625
  %657 = vmatprep.subr.mxu0 0.0
  %658 = vmatpush1.xpose.msra.mxu0 %v623
  %659 = vmatprep.subr.mxu0 0.0
  %660 = vmatpush2.xpose.msra.mxu0 0.0
  %661 = vmatprep.subr.mxu0 0.0
  %662 = vmatpush2.xpose.msra.mxu0 0.0
  %663 = vmatprep.subr.mxu0 0.0
  %664 = vmatpush2.xpose.msra.mxu0 0.0
  %665 = vmatprep.subr.mxu0 0.0
  %666 = vmatpush2.xpose.msra.mxu0 0.0
  %667 = vmatprep.subr.mxu0 0.0
  %668 = vmatpush2.xpose.msra.mxu0 0.0
  %669 = vmatprep.subr.mxu0 0.0
  %670 = vmatpush2.xpose.msra.mxu0 0.0
  %671 = vmatprep.subr.mxu0 0.0
  %672 = vmatpush2.xpose.msra.mxu0 0.0
  %673 = vmatprep.subr.mxu0 0.0
  %674 = vmatpush2.xpose.msra.mxu0 0.0
  %675 = vmatprep.subr.mxu0 0.0
  %676 = vmatpush2.xpose.msra.mxu0 0.0
  %677 = vmatprep.subr.mxu0 0.0
  %678 = vmatpush2.xpose.msra.mxu0 0.0
  %679 = vmatprep.subr.mxu0 0.0
  %680 = vmatpush2.xpose.msra.mxu0 0.0
  %681 = vmatprep.subr.mxu0 0.0
  %682 = vmatpush2.xpose.msra.mxu0 0.0
  %683 = vmatprep.subr.mxu0 0.0
  %684 = vmatpush2.xpose.msra.mxu0 0.0
  %685 = vmatprep.subr.mxu0 0.0
  %686 = vmatpush2.xpose.msra.mxu0 0.0
  %687 = vmatprep.subr.mxu0 0.0
  %688 = vmatpush2.xpose.msra.mxu0 0.0
  %689 = vmatprep.subr.mxu0 0.0
  %690 = vmatpush2.xpose.msra.mxu0 0.0
  %691 = vmatprep.mubr.f32.mxu0 0.0
  %692 = vmatmul.mubr.f32.gmra.mxu0 %v619
  %v693 = vpop.f32.mrf.mxu0
  %v694 = vadd.f32 %v144, %v693
  %v695 = vpop.f32.mrf.mxu0
  %696 = vmatprep.mubr.f32.mxu0 0.0
  %697 = vmatmul.mubr.f32.gmra.mxu0 %v621
  %v698 = vpop.f32.mrf.mxu0
  %v699 = vadd.f32 %v145, %v698
  %v700 = vpop.f32.mrf.mxu0
  %701 = vdwg.mxu0
  %v702 = vsel %vm503, %v694, -inf
  %703 = vmax.xlane.f32.xlu0 %v702
  %v704 = vpop.xlane.xlu0 %703
  %v705 = vsel %vm507, %v699, -inf
  %706 = vmax.xlane.f32.xlu0 %v705
  %v707 = vpop.xlane.xlu0 %706
  %v708 = vsub.f32 %v694, %v704
  %v709 = vsub.f32 %v699, %v707
  %v710 = vmul.f32 %v708, 1.442695
  %v711 = vpow.pop %v710
  %v712 = vmul.f32 %v709, 1.442695
  %v713 = vpow.pop %v712
  %v714 = vsel %vm503, %v711, 0.0
  %715 = vadd.xlane.f32.xlu0 %v714
  %v716 = vpop.xlane.xlu0 %715
  %v717 = vsel %vm507, %v713, 0.0
  %718 = vadd.xlane.f32.xlu0 %v717
  %v719 = vpop.xlane.xlu0 %718
  %v720 = vrcp.pop %v716
  %v721 = vrcp.pop %v719
  %v722 = vmul.f32 %v711, %v720
  %v723 = vmul.f32 %v713, %v721
  %725 = vrot.lane.b32.xlu0 %v405, 120
  %v726 = vpop.permute.xlu0 %725
  %727 = vrot.lane.b32.xlu0 %v410, 120
  %v728 = vpop.permute.xlu0 %727
  %v731 = vsel %vm503, %v722, 0
  %v734 = vsel %vm503, %v723, 0
  %v736 = vsel %vm62, %v728, 0
  %738 = vmatprep.subr.mxu0 0.0
  %739 = vmatpush1.msra.mxu0 0.0
  %740 = vmatprep.subr.mxu0 0.0
  %741 = vmatpush1.msra.mxu0 0.0
  %742 = vmatprep.subr.mxu0 0.0
  %743 = vmatpush1.msra.mxu0 0.0
  %744 = vmatprep.subr.mxu0 0.0
  %745 = vmatpush1.msra.mxu0 0.0
  %746 = vmatprep.subr.mxu0 0.0
  %747 = vmatpush1.msra.mxu0 0.0
  %748 = vmatprep.subr.mxu0 0.0
  %749 = vmatpush1.msra.mxu0 0.0
  %750 = vmatprep.subr.mxu0 0.0
  %751 = vmatpush1.msra.mxu0 0.0
  %752 = vmatprep.subr.mxu0 0.0
  %753 = vmatpush1.msra.mxu0 0.0
  %754 = vmatprep.subr.mxu0 0.0
  %755 = vmatpush1.msra.mxu0 0.0
  %756 = vmatprep.subr.mxu0 0.0
  %757 = vmatpush1.msra.mxu0 0.0
  %758 = vmatprep.subr.mxu0 0.0
  %759 = vmatpush1.msra.mxu0 0.0
  %760 = vmatprep.subr.mxu0 0.0
  %761 = vmatpush1.msra.mxu0 0.0
  %762 = vmatprep.subr.mxu0 0.0
  %763 = vmatpush1.msra.mxu0 0.0
  %764 = vmatprep.subr.mxu0 0.0
  %765 = vmatpush1.msra.mxu0 0.0
  %766 = vmatprep.subr.mxu0 0.0
  %767 = vmatpush1.msra.mxu0 %v736
  %768 = vmatprep.subr.mxu0 0.0
  %769 = vmatpush1.msra.mxu0 %v726
  %770 = vmatprep.subr.mxu0 0.0
  %771 = vmatpush2.msra.mxu0 0.0
  %772 = vmatprep.subr.mxu0 0.0
  %773 = vmatpush2.msra.mxu0 0.0
  %774 = vmatprep.subr.mxu0 0.0
  %775 = vmatpush2.msra.mxu0 0.0
  %776 = vmatprep.subr.mxu0 0.0
  %777 = vmatpush2.msra.mxu0 0.0
  %778 = vmatprep.subr.mxu0 0.0
  %779 = vmatpush2.msra.mxu0 0.0
  %780 = vmatprep.subr.mxu0 0.0
  %781 = vmatpush2.msra.mxu0 0.0
  %782 = vmatprep.subr.mxu0 0.0
  %783 = vmatpush2.msra.mxu0 0.0
  %784 = vmatprep.subr.mxu0 0.0
  %785 = vmatpush2.msra.mxu0 0.0
  %786 = vmatprep.subr.mxu0 0.0
  %787 = vmatpush2.msra.mxu0 0.0
  %788 = vmatprep.subr.mxu0 0.0
  %789 = vmatpush2.msra.mxu0 0.0
  %790 = vmatprep.subr.mxu0 0.0
  %791 = vmatpush2.msra.mxu0 0.0
  %792 = vmatprep.subr.mxu0 0.0
  %793 = vmatpush2.msra.mxu0 0.0
  %794 = vmatprep.subr.mxu0 0.0
  %795 = vmatpush2.msra.mxu0 0.0
  %796 = vmatprep.subr.mxu0 0.0
  %797 = vmatpush2.msra.mxu0 0.0
  %798 = vmatprep.subr.mxu0 0.0
  %799 = vmatpush2.msra.mxu0 0.0
  %800 = vmatprep.subr.mxu0 0.0
  %801 = vmatpush2.msra.mxu0 0.0
  %802 = vmatprep.mubr.f32.mxu0 0.0
  %803 = vmatmul.mubr.f32.gmra.mxu0 %v731
  %v804 = vpop.f32.mrf.mxu0
  %v805 = vadd.f32 0.0, %v804
  %v806 = vpop.f32.mrf.mxu0
  %807 = vmatprep.mubr.f32.mxu0 0.0
  %808 = vmatmul.mubr.f32.gmra.mxu0 %v734
  %v809 = vpop.f32.mrf.mxu0
  %v810 = vadd.f32 0.0, %v809
  %v811 = vpop.f32.mrf.mxu0
  %812 = vdwg.mxu0
  %813 = vrot.lane.b32.xlu0 %v413, 112
  %v814 = vpop.permute.xlu0 %813
  %815 = vrot.lane.b32.xlu0 %v414, 112
  %v816 = vpop.permute.xlu0 %815
  %817 = vrot.lane.b32.xlu0 %v326, 112
  %v818 = vpop.permute.xlu0 %817
  %819 = vrot.lane.b32.xlu0 %v331, 112
  %v820 = vpop.permute.xlu0 %819
  %v821 = vsel %vm415, %v814, 0
  %v823 = vsel %vm415, %v816, 0
  %v825 = vsel %vm415, %v818, 0
  %v827 = vsel %vm415, %v820, 0
  %829 = vmatprep.subr.mxu0 0.0
  %830 = vmatpush1.xpose.msra.mxu0 0.0
  %831 = vmatprep.subr.mxu0 0.0
  %832 = vmatpush1.xpose.msra.mxu0 0.0
  %833 = vmatprep.subr.mxu0 0.0
  %834 = vmatpush1.xpose.msra.mxu0 0.0
  %835 = vmatprep.subr.mxu0 0.0
  %836 = vmatpush1.xpose.msra.mxu0 0.0
  %837 = vmatprep.subr.mxu0 0.0
  %838 = vmatpush1.xpose.msra.mxu0 0.0
  %839 = vmatprep.subr.mxu0 0.0
  %840 = vmatpush1.xpose.msra.mxu0 0.0
  %841 = vmatprep.subr.mxu0 0.0
  %842 = vmatpush1.xpose.msra.mxu0 0.0
  %843 = vmatprep.subr.mxu0 0.0
  %844 = vmatpush1.xpose.msra.mxu0 0.0
  %845 = vmatprep.subr.mxu0 0.0
  %846 = vmatpush1.xpose.msra.mxu0 0.0
  %847 = vmatprep.subr.mxu0 0.0
  %848 = vmatpush1.xpose.msra.mxu0 0.0
  %849 = vmatprep.subr.mxu0 0.0
  %850 = vmatpush1.xpose.msra.mxu0 0.0
  %851 = vmatprep.subr.mxu0 0.0
  %852 = vmatpush1.xpose.msra.mxu0 0.0
  %853 = vmatprep.subr.mxu0 0.0
  %854 = vmatpush1.xpose.msra.mxu0 0.0
  %855 = vmatprep.subr.mxu0 0.0
  %856 = vmatpush1.xpose.msra.mxu0 0.0
  %857 = vmatprep.subr.mxu0 0.0
  %858 = vmatpush1.xpose.msra.mxu0 %v827
  %859 = vmatprep.subr.mxu0 0.0
  %860 = vmatpush1.xpose.msra.mxu0 %v825
  %861 = vmatprep.subr.mxu0 0.0
  %862 = vmatpush2.xpose.msra.mxu0 0.0
  %863 = vmatprep.subr.mxu0 0.0
  %864 = vmatpush2.xpose.msra.mxu0 0.0
  %865 = vmatprep.subr.mxu0 0.0
  %866 = vmatpush2.xpose.msra.mxu0 0.0
  %867 = vmatprep.subr.mxu0 0.0
  %868 = vmatpush2.xpose.msra.mxu0 0.0
  %869 = vmatprep.subr.mxu0 0.0
  %870 = vmatpush2.xpose.msra.mxu0 0.0
  %871 = vmatprep.subr.mxu0 0.0
  %872 = vmatpush2.xpose.msra.mxu0 0.0
  %873 = vmatprep.subr.mxu0 0.0
  %874 = vmatpush2.xpose.msra.mxu0 0.0
  %875 = vmatprep.subr.mxu0 0.0
  %876 = vmatpush2.xpose.msra.mxu0 0.0
  %877 = vmatprep.subr.mxu0 0.0
  %878 = vmatpush2.xpose.msra.mxu0 0.0
  %879 = vmatprep.subr.mxu0 0.0
  %880 = vmatpush2.xpose.msra.mxu0 0.0
  %881 = vmatprep.subr.mxu0 0.0
  %882 = vmatpush2.xpose.msra.mxu0 0.0
  %883 = vmatprep.subr.mxu0 0.0
  %884 = vmatpush2.xpose.msra.mxu0 0.0
  %885 = vmatprep.subr.mxu0 0.0
  %886 = vmatpush2.xpose.msra.mxu0 0.0
  %887 = vmatprep.subr.mxu0 0.0
  %888 = vmatpush2.xpose.msra.mxu0 0.0
  %889 = vmatprep.subr.mxu0 0.0
  %890 = vmatpush2.xpose.msra.mxu0 0.0
  %891 = vmatprep.subr.mxu0 0.0
  %892 = vmatpush2.xpose.msra.mxu0 0.0
  %893 = vmatprep.mubr.f32.mxu0 0.0
  %894 = vmatmul.mubr.f32.gmra.mxu0 %v821
  %v895 = vpop.f32.mrf.mxu0
  %v896 = vadd.f32 %v144, %v895
  %v897 = vpop.f32.mrf.mxu0
  %898 = vmatprep.mubr.f32.mxu0 0.0
  %899 = vmatmul.mubr.f32.gmra.mxu0 %v823
  %v900 = vpop.f32.mrf.mxu0
  %v901 = vadd.f32 %v145, %v900
  %v902 = vpop.f32.mrf.mxu0
  %903 = vdwg.mxu0
  %v904 = vsel %vm503, %v896, -inf
  %905 = vmax.xlane.f32.xlu0 %v904
  %v906 = vpop.xlane.xlu0 %905
  %v907 = vsel %vm507, %v901, -inf
  %908 = vmax.xlane.f32.xlu0 %v907
  %v909 = vpop.xlane.xlu0 %908
  %v910 = vsub.f32 %v896, %v906
  %v911 = vsub.f32 %v901, %v909
  %v912 = vmul.f32 %v910, 1.442695
  %v913 = vpow.pop %v912
  %v914 = vmul.f32 %v911, 1.442695
  %v915 = vpow.pop %v914
  %v916 = vsel %vm503, %v913, 0.0
  %917 = vadd.xlane.f32.xlu0 %v916
  %v918 = vpop.xlane.xlu0 %917
  %v919 = vsel %vm507, %v915, 0.0
  %920 = vadd.xlane.f32.xlu0 %v919
  %v921 = vpop.xlane.xlu0 %920
  %v922 = vrcp.pop %v918
  %v923 = vrcp.pop %v921
  %v924 = vmul.f32 %v913, %v922
  %v925 = vmul.f32 %v915, %v923
  %926 = vrot.lane.b32.xlu0 %v405, 112
  %v927 = vpop.permute.xlu0 %926
  %928 = vrot.lane.b32.xlu0 %v410, 112
  %v929 = vpop.permute.xlu0 %928
  %v932 = vsel %vm503, %v924, 0
  %v935 = vsel %vm503, %v925, 0
  %v937 = vsel %vm62, %v929, 0
  %939 = vmatprep.subr.mxu0 0.0
  %940 = vmatpush1.msra.mxu0 0.0
  %941 = vmatprep.subr.mxu0 0.0
  %942 = vmatpush1.msra.mxu0 0.0
  %943 = vmatprep.subr.mxu0 0.0
  %944 = vmatpush1.msra.mxu0 0.0
  %945 = vmatprep.subr.mxu0 0.0
  %946 = vmatpush1.msra.mxu0 0.0
  %947 = vmatprep.subr.mxu0 0.0
  %948 = vmatpush1.msra.mxu0 0.0
  %949 = vmatprep.subr.mxu0 0.0
  %950 = vmatpush1.msra.mxu0 0.0
  %951 = vmatprep.subr.mxu0 0.0
  %952 = vmatpush1.msra.mxu0 0.0
  %953 = vmatprep.subr.mxu0 0.0
  %954 = vmatpush1.msra.mxu0 0.0
  %955 = vmatprep.subr.mxu0 0.0
  %956 = vmatpush1.msra.mxu0 0.0
  %957 = vmatprep.subr.mxu0 0.0
  %958 = vmatpush1.msra.mxu0 0.0
  %959 = vmatprep.subr.mxu0 0.0
  %960 = vmatpush1.msra.mxu0 0.0
  %961 = vmatprep.subr.mxu0 0.0
  %962 = vmatpush1.msra.mxu0 0.0
  %963 = vmatprep.subr.mxu0 0.0
  %964 = vmatpush1.msra.mxu0 0.0
  %965 = vmatprep.subr.mxu0 0.0
  %966 = vmatpush1.msra.mxu0 0.0
  %967 = vmatprep.subr.mxu0 0.0
  %968 = vmatpush1.msra.mxu0 %v937
  %969 = vmatprep.subr.mxu0 0.0
  %970 = vmatpush1.msra.mxu0 %v927
  %971 = vmatprep.subr.mxu0 0.0
  %972 = vmatpush2.msra.mxu0 0.0
  %973 = vmatprep.subr.mxu0 0.0
  %974 = vmatpush2.msra.mxu0 0.0
  %975 = vmatprep.subr.mxu0 0.0
  %976 = vmatpush2.msra.mxu0 0.0
  %977 = vmatprep.subr.mxu0 0.0
  %978 = vmatpush2.msra.mxu0 0.0
  %979 = vmatprep.subr.mxu0 0.0
  %980 = vmatpush2.msra.mxu0 0.0
  %981 = vmatprep.subr.mxu0 0.0
  %982 = vmatpush2.msra.mxu0 0.0
  %983 = vmatprep.subr.mxu0 0.0
  %984 = vmatpush2.msra.mxu0 0.0
  %985 = vmatprep.subr.mxu0 0.0
  %986 = vmatpush2.msra.mxu0 0.0
  %987 = vmatprep.subr.mxu0 0.0
  %988 = vmatpush2.msra.mxu0 0.0
  %989 = vmatprep.subr.mxu0 0.0
  %990 = vmatpush2.msra.mxu0 0.0
  %991 = vmatprep.subr.mxu0 0.0
  %992 = vmatpush2.msra.mxu0 0.0
  %993 = vmatprep.subr.mxu0 0.0
  %994 = vmatpush2.msra.mxu0 0.0
  %995 = vmatprep.subr.mxu0 0.0
  %996 = vmatpush2.msra.mxu0 0.0
  %997 = vmatprep.subr.mxu0 0.0
  %998 = vmatpush2.msra.mxu0 0.0
  %999 = vmatprep.subr.mxu0 0.0
  %1000 = vmatpush2.msra.mxu0 0.0
  %1001 = vmatprep.subr.mxu0 0.0
  %1002 = vmatpush2.msra.mxu0 0.0
  %1003 = vmatprep.mubr.f32.mxu0 0.0
  %1004 = vmatmul.mubr.f32.gmra.mxu0 %v932
  %v1005 = vpop.f32.mrf.mxu0
  %v1006 = vadd.f32 0.0, %v1005
  %v1007 = vpop.f32.mrf.mxu0
  %1008 = vmatprep.mubr.f32.mxu0 0.0
  %1009 = vmatmul.mubr.f32.gmra.mxu0 %v935
  %v1010 = vpop.f32.mrf.mxu0
  %v1011 = vadd.f32 0.0, %v1010
  %v1012 = vpop.f32.mrf.mxu0
  %1013 = vdwg.mxu0
  %1014 = vrot.lane.b32.xlu0 %v413, 104
  %v1015 = vpop.permute.xlu0 %1014
  %1016 = vrot.lane.b32.xlu0 %v414, 104
  %v1017 = vpop.permute.xlu0 %1016
  %1018 = vrot.lane.b32.xlu0 %v326, 104
  %v1019 = vpop.permute.xlu0 %1018
  %1020 = vrot.lane.b32.xlu0 %v331, 104
  %v1021 = vpop.permute.xlu0 %1020
  %v1022 = vsel %vm415, %v1015, 0
  %v1024 = vsel %vm415, %v1017, 0
  %v1026 = vsel %vm415, %v1019, 0
  %v1028 = vsel %vm415, %v1021, 0
  %1030 = vmatprep.subr.mxu0 0.0
  %1031 = vmatpush1.xpose.msra.mxu0 0.0
  %1032 = vmatprep.subr.mxu0 0.0
  %1033 = vmatpush1.xpose.msra.mxu0 0.0
  %1034 = vmatprep.subr.mxu0 0.0
  %1035 = vmatpush1.xpose.msra.mxu0 0.0
  %1036 = vmatprep.subr.mxu0 0.0
  %1037 = vmatpush1.xpose.msra.mxu0 0.0
  %1038 = vmatprep.subr.mxu0 0.0
  %1039 = vmatpush1.xpose.msra.mxu0 0.0
  %1040 = vmatprep.subr.mxu0 0.0
  %1041 = vmatpush1.xpose.msra.mxu0 0.0
  %1042 = vmatprep.subr.mxu0 0.0
  %1043 = vmatpush1.xpose.msra.mxu0 0.0
  %1044 = vmatprep.subr.mxu0 0.0
  %1045 = vmatpush1.xpose.msra.mxu0 0.0
  %1046 = vmatprep.subr.mxu0 0.0
  %1047 = vmatpush1.xpose.msra.mxu0 0.0
  %1048 = vmatprep.subr.mxu0 0.0
  %1049 = vmatpush1.xpose.msra.mxu0 0.0
  %1050 = vmatprep.subr.mxu0 0.0
  %1051 = vmatpush1.xpose.msra.mxu0 0.0
  %1052 = vmatprep.subr.mxu0 0.0
  %1053 = vmatpush1.xpose.msra.mxu0 0.0
  %1054 = vmatprep.subr.mxu0 0.0
  %1055 = vmatpush1.xpose.msra.mxu0 0.0
  %1056 = vmatprep.subr.mxu0 0.0
  %1057 = vmatpush1.xpose.msra.mxu0 0.0
  %1058 = vmatprep.subr.mxu0 0.0
  %1059 = vmatpush1.xpose.msra.mxu0 %v1028
  %1060 = vmatprep.subr.mxu0 0.0
  %1061 = vmatpush1.xpose.msra.mxu0 %v1026
  %1062 = vmatprep.subr.mxu0 0.0
  %1063 = vmatpush2.xpose.msra.mxu0 0.0
  %1064 = vmatprep.subr.mxu0 0.0
  %1065 = vmatpush2.xpose.msra.mxu0 0.0
  %1066 = vmatprep.subr.mxu0 0.0
  %1067 = vmatpush2.xpose.msra.mxu0 0.0
  %1068 = vmatprep.subr.mxu0 0.0
  %1069 = vmatpush2.xpose.msra.mxu0 0.0
  %1070 = vmatprep.subr.mxu0 0.0
  %1071 = vmatpush2.xpose.msra.mxu0 0.0
  %1072 = vmatprep.subr.mxu0 0.0
  %1073 = vmatpush2.xpose.msra.mxu0 0.0
  %1074 = vmatprep.subr.mxu0 0.0
  %1075 = vmatpush2.xpose.msra.mxu0 0.0
  %1076 = vmatprep.subr.mxu0 0.0
  %1077 = vmatpush2.xpose.msra.mxu0 0.0
  %1078 = vmatprep.subr.mxu0 0.0
  %1079 = vmatpush2.xpose.msra.mxu0 0.0
  %1080 = vmatprep.subr.mxu0 0.0
  %1081 = vmatpush2.xpose.msra.mxu0 0.0
  %1082 = vmatprep.subr.mxu0 0.0
  %1083 = vmatpush2.xpose.msra.mxu0 0.0
  %1084 = vmatprep.subr.mxu0 0.0
  %1085 = vmatpush2.xpose.msra.mxu0 0.0
  %1086 = vmatprep.subr.mxu0 0.0
  %1087 = vmatpush2.xpose.msra.mxu0 0.0
  %1088 = vmatprep.subr.mxu0 0.0
  %1089 = vmatpush2.xpose.msra.mxu0 0.0
  %1090 = vmatprep.subr.mxu0 0.0
  %1091 = vmatpush2.xpose.msra.mxu0 0.0
  %1092 = vmatprep.subr.mxu0 0.0
  %1093 = vmatpush2.xpose.msra.mxu0 0.0
  %1094 = vmatprep.mubr.f32.mxu0 0.0
  %1095 = vmatmul.mubr.f32.gmra.mxu0 %v1022
  %v1096 = vpop.f32.mrf.mxu0
  %v1097 = vadd.f32 %v144, %v1096
  %v1098 = vpop.f32.mrf.mxu0
  %1099 = vmatprep.mubr.f32.mxu0 0.0
  %1100 = vmatmul.mubr.f32.gmra.mxu0 %v1024
  %v1101 = vpop.f32.mrf.mxu0
  %v1102 = vadd.f32 %v145, %v1101
  %v1103 = vpop.f32.mrf.mxu0
  %1104 = vdwg.mxu0
  %v1105 = vsel %vm503, %v1097, -inf
  %1106 = vmax.xlane.f32.xlu0 %v1105
  %v1107 = vpop.xlane.xlu0 %1106
  %v1108 = vsel %vm507, %v1102, -inf
  %1109 = vmax.xlane.f32.xlu0 %v1108
  %v1110 = vpop.xlane.xlu0 %1109
  %v1111 = vsub.f32 %v1097, %v1107
  %v1112 = vsub.f32 %v1102, %v1110
  %v1113 = vmul.f32 %v1111, 1.442695
  %v1114 = vpow.pop %v1113
  %v1115 = vmul.f32 %v1112, 1.442695
  %v1116 = vpow.pop %v1115
  %v1117 = vsel %vm503, %v1114, 0.0
  %1118 = vadd.xlane.f32.xlu0 %v1117
  %v1119 = vpop.xlane.xlu0 %1118
  %v1120 = vsel %vm507, %v1116, 0.0
  %1121 = vadd.xlane.f32.xlu0 %v1120
  %v1122 = vpop.xlane.xlu0 %1121
  %v1123 = vrcp.pop %v1119
  %v1124 = vrcp.pop %v1122
  %v1125 = vmul.f32 %v1114, %v1123
  %v1126 = vmul.f32 %v1116, %v1124
  %1127 = vrot.lane.b32.xlu0 %v405, 104
  %v1128 = vpop.permute.xlu0 %1127
  %1129 = vrot.lane.b32.xlu0 %v410, 104
  %v1130 = vpop.permute.xlu0 %1129
  %v1133 = vsel %vm503, %v1125, 0
  %v1136 = vsel %vm503, %v1126, 0
  %v1138 = vsel %vm62, %v1130, 0
  %1140 = vmatprep.subr.mxu0 0.0
  %1141 = vmatpush1.msra.mxu0 0.0
  %1142 = vmatprep.subr.mxu0 0.0
  %1143 = vmatpush1.msra.mxu0 0.0
  %1144 = vmatprep.subr.mxu0 0.0
  %1145 = vmatpush1.msra.mxu0 0.0
  %1146 = vmatprep.subr.mxu0 0.0
  %1147 = vmatpush1.msra.mxu0 0.0
  %1148 = vmatprep.subr.mxu0 0.0
  %1149 = vmatpush1.msra.mxu0 0.0
  %1150 = vmatprep.subr.mxu0 0.0
  %1151 = vmatpush1.msra.mxu0 0.0
  %1152 = vmatprep.subr.mxu0 0.0
  %1153 = vmatpush1.msra.mxu0 0.0
  %1154 = vmatprep.subr.mxu0 0.0
  %1155 = vmatpush1.msra.mxu0 0.0
  %1156 = vmatprep.subr.mxu0 0.0
  %1157 = vmatpush1.msra.mxu0 0.0
  %1158 = vmatprep.subr.mxu0 0.0
  %1159 = vmatpush1.msra.mxu0 0.0
  %1160 = vmatprep.subr.mxu0 0.0
  %1161 = vmatpush1.msra.mxu0 0.0
  %1162 = vmatprep.subr.mxu0 0.0
  %1163 = vmatpush1.msra.mxu0 0.0
  %1164 = vmatprep.subr.mxu0 0.0
  %1165 = vmatpush1.msra.mxu0 0.0
  %1166 = vmatprep.subr.mxu0 0.0
  %1167 = vmatpush1.msra.mxu0 0.0
  %1168 = vmatprep.subr.mxu0 0.0
  %1169 = vmatpush1.msra.mxu0 %v1138
  %1170 = vmatprep.subr.mxu0 0.0
  %1171 = vmatpush1.msra.mxu0 %v1128
  %1172 = vmatprep.subr.mxu0 0.0
  %1173 = vmatpush2.msra.mxu0 0.0
  %1174 = vmatprep.subr.mxu0 0.0
  %1175 = vmatpush2.msra.mxu0 0.0
  %1176 = vmatprep.subr.mxu0 0.0
  %1177 = vmatpush2.msra.mxu0 0.0
  %1178 = vmatprep.subr.mxu0 0.0
  %1179 = vmatpush2.msra.mxu0 0.0
  %1180 = vmatprep.subr.mxu0 0.0
  %1181 = vmatpush2.msra.mxu0 0.0
  %1182 = vmatprep.subr.mxu0 0.0
  %1183 = vmatpush2.msra.mxu0 0.0
  %1184 = vmatprep.subr.mxu0 0.0
  %1185 = vmatpush2.msra.mxu0 0.0
  %1186 = vmatprep.subr.mxu0 0.0
  %1187 = vmatpush2.msra.mxu0 0.0
  %1188 = vmatprep.subr.mxu0 0.0
  %1189 = vmatpush2.msra.mxu0 0.0
  %1190 = vmatprep.subr.mxu0 0.0
  %1191 = vmatpush2.msra.mxu0 0.0
  %1192 = vmatprep.subr.mxu0 0.0
  %1193 = vmatpush2.msra.mxu0 0.0
  %1194 = vmatprep.subr.mxu0 0.0
  %1195 = vmatpush2.msra.mxu0 0.0
  %1196 = vmatprep.subr.mxu0 0.0
  %1197 = vmatpush2.msra.mxu0 0.0
  %1198 = vmatprep.subr.mxu0 0.0
  %1199 = vmatpush2.msra.mxu0 0.0
  %1200 = vmatprep.subr.mxu0 0.0
  %1201 = vmatpush2.msra.mxu0 0.0
  %1202 = vmatprep.subr.mxu0 0.0
  %1203 = vmatpush2.msra.mxu0 0.0
  %1204 = vmatprep.mubr.f32.mxu0 0.0
  %1205 = vmatmul.mubr.f32.gmra.mxu0 %v1133
  %v1206 = vpop.f32.mrf.mxu0
  %v1207 = vadd.f32 0.0, %v1206
  %v1208 = vpop.f32.mrf.mxu0
  %1209 = vmatprep.mubr.f32.mxu0 0.0
  %1210 = vmatmul.mubr.f32.gmra.mxu0 %v1136
  %v1211 = vpop.f32.mrf.mxu0
  %v1212 = vadd.f32 0.0, %v1211
  %v1213 = vpop.f32.mrf.mxu0
  %1214 = vdwg.mxu0
  %1217 = vrot.lane.b32.xlu0 %v805, 8
  %v1218 = vpop.permute.xlu0 %1217
  %1219 = vrot.lane.b32.xlu0 %v810, 8
  %v1220 = vpop.permute.xlu0 %1219
  %1225 = vrot.lane.b32.xlu0 %v1006, 16
  %v1226 = vpop.permute.xlu0 %1225
  %1227 = vrot.lane.b32.xlu0 %v1011, 16
  %v1228 = vpop.permute.xlu0 %1227
  %1233 = vrot.lane.b32.xlu0 %v1207, 24
  %v1234 = vpop.permute.xlu0 %1233
  %1235 = vrot.lane.b32.xlu0 %v1212, 24
  %v1236 = vpop.permute.xlu0 %1235
  %v1239 = vsel %vm415, %v603, %v1218
  %v1240 = vsel %vm415, %v608, %v1220
  %vm1241 = vcmask 130048
  %v1242 = vsel %vm1241, %v1239, %v1226
  %v1243 = vsel %vm1241, %v1240, %v1228
  %vm1244 = vcmask 195584
  %v1245 = vsel %vm1244, %v1242, %v1234
  %v1246 = vsel %vm1244, %v1243, %v1236
  %v1247 = vlaneseq
  %v1248 = vshrl.u32 %v1247, 7
  %v1249 = vsub.s32 3, %v1248
  %v1250 = vrot.slane %v148, %v1249
  %v1252 = vsel %vm173, %v1245, 0
  %v1255 = vsel %vm173, %v1246, 0
  %1257 = vmatprep.subr.mxu0 0.0
  %1258 = vmatpush1.msra.mxu0 0.0
  %1259 = vmatprep.subr.mxu0 0.0
  %1260 = vmatpush1.msra.mxu0 0.0
  %1261 = vmatprep.subr.mxu0 0.0
  %1262 = vmatpush1.msra.mxu0 0.0
  %1263 = vmatprep.subr.mxu0 0.0
  %1264 = vmatpush1.msra.mxu0 0.0
  %1265 = vmatprep.subr.mxu0 0.0
  %1266 = vmatpush1.msra.mxu0 0.0
  %1267 = vmatprep.subr.mxu0 0.0
  %1268 = vmatpush1.msra.mxu0 0.0
  %1269 = vmatprep.subr.mxu0 0.0
  %1270 = vmatpush1.msra.mxu0 0.0
  %1271 = vmatprep.subr.mxu0 0.0
  %1272 = vmatpush1.msra.mxu0 0.0
  %1273 = vmatprep.subr.mxu0 0.0
  %1274 = vmatpush1.msra.mxu0 0.0
  %1275 = vmatprep.subr.mxu0 0.0
  %1276 = vmatpush1.msra.mxu0 0.0
  %1277 = vmatprep.subr.mxu0 0.0
  %1278 = vmatpush1.msra.mxu0 0.0
  %1279 = vmatprep.subr.mxu0 0.0
  %1280 = vmatpush1.msra.mxu0 0.0
  %1281 = vmatprep.subr.mxu0 0.0
  %1282 = vmatpush1.msra.mxu0 %v168
  %1283 = vmatprep.subr.mxu0 0.0
  %1284 = vmatpush1.msra.mxu0 %v167
  %1285 = vmatprep.subr.mxu0 0.0
  %1286 = vmatpush1.msra.mxu0 %v166
  %1287 = vmatprep.subr.mxu0 0.0
  %1288 = vmatpush1.msra.mxu0 %v165
  %1289 = vmatprep.subr.mxu0 0.0
  %1290 = vmatpush2.msra.mxu0 0.0
  %1291 = vmatprep.subr.mxu0 0.0
  %1292 = vmatpush2.msra.mxu0 0.0
  %1293 = vmatprep.subr.mxu0 0.0
  %1294 = vmatpush2.msra.mxu0 0.0
  %1295 = vmatprep.subr.mxu0 0.0
  %1296 = vmatpush2.msra.mxu0 0.0
  %1297 = vmatprep.subr.mxu0 0.0
  %1298 = vmatpush2.msra.mxu0 0.0
  %1299 = vmatprep.subr.mxu0 0.0
  %1300 = vmatpush2.msra.mxu0 0.0
  %1301 = vmatprep.subr.mxu0 0.0
  %1302 = vmatpush2.msra.mxu0 0.0
  %1303 = vmatprep.subr.mxu0 0.0
  %1304 = vmatpush2.msra.mxu0 0.0
  %1305 = vmatprep.subr.mxu0 0.0
  %1306 = vmatpush2.msra.mxu0 0.0
  %1307 = vmatprep.subr.mxu0 0.0
  %1308 = vmatpush2.msra.mxu0 0.0
  %1309 = vmatprep.subr.mxu0 0.0
  %1310 = vmatpush2.msra.mxu0 0.0
  %1311 = vmatprep.subr.mxu0 0.0
  %1312 = vmatpush2.msra.mxu0 0.0
  %1313 = vmatprep.subr.mxu0 0.0
  %1314 = vmatpush2.msra.mxu0 0.0
  %1315 = vmatprep.subr.mxu0 0.0
  %1316 = vmatpush2.msra.mxu0 0.0
  %1317 = vmatprep.subr.mxu0 0.0
  %1318 = vmatpush2.msra.mxu0 0.0
  %1319 = vmatprep.subr.mxu0 0.0
  %1320 = vmatpush2.msra.mxu0 0.0
  %1321 = vmatprep.mubr.f32.mxu0 0.0
  %1322 = vmatmul.mubr.f32.gmra.mxu0 %v1252
  %v1323 = vpop.f32.mrf.mxu0
  %v1324 = vadd.f32 %v1250, %v1323
  %v1325 = vpop.f32.mrf.mxu0
  %1326 = vmatprep.mubr.f32.mxu0 0.0
  %1327 = vmatmul.mubr.f32.gmra.mxu0 %v1255
  %v1328 = vpop.f32.mrf.mxu0
  %v1329 = vadd.f32 %v1250, %v1328
  %v1330 = vpop.f32.mrf.mxu0
  %1331 = vdwg.mxu0
  %v1332 = vadd.f32 %v133, %v1324
  %v1333 = vadd.f32 %v138, %v1329
  %v1334 = vsel %vm173, %v1332, 0.0
  %1335 = vadd.xlane.f32.xlu0 %v1334
  %v1336 = vpop.xlane.xlu0 %1335
  %vm1337 = vcmask 257024
  %v1338 = vsel %vm1337, %v1333, 0.0
  %1339 = vadd.xlane.f32.xlu0 %v1338
  %v1340 = vpop.xlane.xlu0 %1339
  %v1341 = vrcp.pop 32.0
  %v1342 = vmul.f32 %v1336, %v1341
  %v1343 = vmul.f32 %v1340, %v1341
  %v1344 = vsub.f32 %v1332, %v1342
  %v1345 = vsub.f32 %v1333, %v1343
  %v1346 = vmul.f32 %v1344, %v1344
  %v1347 = vmul.f32 %v1345, %v1345
  %v1348 = vsel %vm173, %v1346, 0.0
  %1349 = vadd.xlane.f32.xlu0 %v1348
  %v1350 = vpop.xlane.xlu0 %1349
  %v1351 = vsel %vm1337, %v1347, 0.0
  %1352 = vadd.xlane.f32.xlu0 %v1351
  %v1353 = vpop.xlane.xlu0 %1352
  %v1354 = vmul.f32 %v1350, %v1341
  %v1355 = vmul.f32 %v1353, %v1341
  %v1356 = vadd.f32 %v1354, 1e-05
  %v1357 = vadd.f32 %v1355, 1e-05
  %v1358 = vrsqrt.pop %v1356
  %v1359 = vrsqrt.pop %v1357
  %v1360 = vmul.f32 %v1344, %v1358
  %v1361 = vmul.f32 %v1345, %v1359
  %v1362 = vlaneseq
  %v1363 = vshrl.u32 %v1362, 7
  %v1364 = vsub.s32 0, %v1363
  %v1365 = vrot.slane %v149, %v1364
  %v1366 = vmul.f32 %v1360, %v1365
  %v1367 = vmul.f32 %v1361, %v1365
  %v1368 = vlaneseq
  %v1369 = vshrl.u32 %v1368, 7
  %v1370 = vsub.s32 1, %v1369
  %v1371 = vrot.slane %v149, %v1370
  %v1372 = vadd.f32 %v1366, %v1371
  %v1373 = vadd.f32 %v1367, %v1371
  %v1374 = vld [vmem:[%s7] sm:$0xff]
  %v1375 = vld [vmem:[%s7 + $0x8] sm:$0xff]
  %v1376 = vld [vmem:[%s7 + $0x10] sm:$0xff]
  %v1377 = vld [vmem:[%s7 + $0x18] sm:$0xff]
  %s1378 = scalar_lea.vmem %s7, 32
  %v1379 = vld [vmem:[%s1378] sm:$0xff]
  %v1380 = vld [vmem:[%s1378 + $0x8] sm:$0xff]
  %v1381 = vld [vmem:[%s1378 + $0x10] sm:$0xff]
  %v1382 = vld [vmem:[%s1378 + $0x18] sm:$0xff]
  %s1383 = scalar_lea.vmem %s7, 64
  %v1384 = vld [vmem:[%s1383] sm:$0xff]
  %v1385 = vld [vmem:[%s1383 + $0x8] sm:$0xff]
  %v1386 = vld [vmem:[%s1383 + $0x10] sm:$0xff]
  %v1387 = vld [vmem:[%s1383 + $0x18] sm:$0xff]
  %s1388 = scalar_lea.vmem %s7, 96
  %v1389 = vld [vmem:[%s1388] sm:$0xff]
  %v1390 = vld [vmem:[%s1388 + $0x8] sm:$0xff]
  %v1391 = vld [vmem:[%s1388 + $0x10] sm:$0xff]
  %v1392 = vld [vmem:[%s1388 + $0x18] sm:$0xff]
  %v1393 = vlaneseq
  %v1394 = vshrl.u32 %v1393, 7
  %v1395 = vsub.s32 4, %v1394
  %v1396 = vrot.slane %v148, %v1395
  %v1398 = vsel %vm173, %v1372, 0
  %v1401 = vsel %vm173, %v1373, 0
  %1403 = vmatprep.subr.mxu0 0.0
  %1404 = vmatpush1.msra.mxu0 0.0
  %1405 = vmatprep.subr.mxu0 0.0
  %1406 = vmatpush1.msra.mxu0 0.0
  %1407 = vmatprep.subr.mxu0 0.0
  %1408 = vmatpush1.msra.mxu0 0.0
  %1409 = vmatprep.subr.mxu0 0.0
  %1410 = vmatpush1.msra.mxu0 0.0
  %1411 = vmatprep.subr.mxu0 0.0
  %1412 = vmatpush1.msra.mxu0 0.0
  %1413 = vmatprep.subr.mxu0 0.0
  %1414 = vmatpush1.msra.mxu0 0.0
  %1415 = vmatprep.subr.mxu0 0.0
  %1416 = vmatpush1.msra.mxu0 0.0
  %1417 = vmatprep.subr.mxu0 0.0
  %1418 = vmatpush1.msra.mxu0 0.0
  %1419 = vmatprep.subr.mxu0 0.0
  %1420 = vmatpush1.msra.mxu0 0.0
  %1421 = vmatprep.subr.mxu0 0.0
  %1422 = vmatpush1.msra.mxu0 0.0
  %1423 = vmatprep.subr.mxu0 0.0
  %1424 = vmatpush1.msra.mxu0 0.0
  %1425 = vmatprep.subr.mxu0 0.0
  %1426 = vmatpush1.msra.mxu0 0.0
  %1427 = vmatprep.subr.mxu0 0.0
  %1428 = vmatpush1.msra.mxu0 %v1377
  %1429 = vmatprep.subr.mxu0 0.0
  %1430 = vmatpush1.msra.mxu0 %v1376
  %1431 = vmatprep.subr.mxu0 0.0
  %1432 = vmatpush1.msra.mxu0 %v1375
  %1433 = vmatprep.subr.mxu0 0.0
  %1434 = vmatpush1.msra.mxu0 %v1374
  %1435 = vmatprep.subr.mxu0 0.0
  %1436 = vmatpush2.msra.mxu0 0.0
  %1437 = vmatprep.subr.mxu0 0.0
  %1438 = vmatpush2.msra.mxu0 0.0
  %1439 = vmatprep.subr.mxu0 0.0
  %1440 = vmatpush2.msra.mxu0 0.0
  %1441 = vmatprep.subr.mxu0 0.0
  %1442 = vmatpush2.msra.mxu0 0.0
  %1443 = vmatprep.subr.mxu0 0.0
  %1444 = vmatpush2.msra.mxu0 0.0
  %1445 = vmatprep.subr.mxu0 0.0
  %1446 = vmatpush2.msra.mxu0 0.0
  %1447 = vmatprep.subr.mxu0 0.0
  %1448 = vmatpush2.msra.mxu0 0.0
  %1449 = vmatprep.subr.mxu0 0.0
  %1450 = vmatpush2.msra.mxu0 0.0
  %1451 = vmatprep.subr.mxu0 0.0
  %1452 = vmatpush2.msra.mxu0 0.0
  %1453 = vmatprep.subr.mxu0 0.0
  %1454 = vmatpush2.msra.mxu0 0.0
  %1455 = vmatprep.subr.mxu0 0.0
  %1456 = vmatpush2.msra.mxu0 0.0
  %1457 = vmatprep.subr.mxu0 0.0
  %1458 = vmatpush2.msra.mxu0 0.0
  %1459 = vmatprep.subr.mxu0 0.0
  %1460 = vmatpush2.msra.mxu0 0.0
  %1461 = vmatprep.subr.mxu0 0.0
  %1462 = vmatpush2.msra.mxu0 0.0
  %1463 = vmatprep.subr.mxu0 0.0
  %1464 = vmatpush2.msra.mxu0 0.0
  %1465 = vmatprep.subr.mxu0 0.0
  %1466 = vmatpush2.msra.mxu0 0.0
  %1467 = vmatprep.mubr.f32.mxu0 0.0
  %1468 = vmatmul.mubr.f32.gmra.mxu0 %v1398
  %v1469 = vpop.f32.mrf.mxu0
  %v1470 = vadd.f32 %v1396, %v1469
  %v1471 = vpop.f32.mrf.mxu0
  %1472 = vmatprep.mubr.f32.mxu0 0.0
  %1473 = vmatmul.mubr.f32.gmra.mxu0 %v1401
  %v1474 = vpop.f32.mrf.mxu0
  %v1475 = vadd.f32 %v1396, %v1474
  %v1476 = vpop.f32.mrf.mxu0
  %1477 = vdwg.mxu0
  %v1478 = vlaneseq
  %v1479 = vshrl.u32 %v1478, 7
  %v1480 = vsub.s32 5, %v1479
  %v1481 = vrot.slane %v148, %v1480
  %v1483 = vsel %vm173, %v141, 0
  %v1486 = vsel %vm173, %v142, 0
  %v1489 = vsel %vm173, %v143, 0
  %1491 = vmatprep.subr.mxu0 0.0
  %1492 = vmatpush1.msra.mxu0 0.0
  %1493 = vmatprep.subr.mxu0 0.0
  %1494 = vmatpush1.msra.mxu0 0.0
  %1495 = vmatprep.subr.mxu0 0.0
  %1496 = vmatpush1.msra.mxu0 0.0
  %1497 = vmatprep.subr.mxu0 0.0
  %1498 = vmatpush1.msra.mxu0 0.0
  %1499 = vmatprep.subr.mxu0 0.0
  %1500 = vmatpush1.msra.mxu0 0.0
  %1501 = vmatprep.subr.mxu0 0.0
  %1502 = vmatpush1.msra.mxu0 0.0
  %1503 = vmatprep.subr.mxu0 0.0
  %1504 = vmatpush1.msra.mxu0 0.0
  %1505 = vmatprep.subr.mxu0 0.0
  %1506 = vmatpush1.msra.mxu0 0.0
  %1507 = vmatprep.subr.mxu0 0.0
  %1508 = vmatpush1.msra.mxu0 0.0
  %1509 = vmatprep.subr.mxu0 0.0
  %1510 = vmatpush1.msra.mxu0 0.0
  %1511 = vmatprep.subr.mxu0 0.0
  %1512 = vmatpush1.msra.mxu0 0.0
  %1513 = vmatprep.subr.mxu0 0.0
  %1514 = vmatpush1.msra.mxu0 0.0
  %1515 = vmatprep.subr.mxu0 0.0
  %1516 = vmatpush1.msra.mxu0 %v1382
  %1517 = vmatprep.subr.mxu0 0.0
  %1518 = vmatpush1.msra.mxu0 %v1381
  %1519 = vmatprep.subr.mxu0 0.0
  %1520 = vmatpush1.msra.mxu0 %v1380
  %1521 = vmatprep.subr.mxu0 0.0
  %1522 = vmatpush1.msra.mxu0 %v1379
  %1523 = vmatprep.subr.mxu0 0.0
  %1524 = vmatpush2.msra.mxu0 0.0
  %1525 = vmatprep.subr.mxu0 0.0
  %1526 = vmatpush2.msra.mxu0 0.0
  %1527 = vmatprep.subr.mxu0 0.0
  %1528 = vmatpush2.msra.mxu0 0.0
  %1529 = vmatprep.subr.mxu0 0.0
  %1530 = vmatpush2.msra.mxu0 0.0
  %1531 = vmatprep.subr.mxu0 0.0
  %1532 = vmatpush2.msra.mxu0 0.0
  %1533 = vmatprep.subr.mxu0 0.0
  %1534 = vmatpush2.msra.mxu0 0.0
  %1535 = vmatprep.subr.mxu0 0.0
  %1536 = vmatpush2.msra.mxu0 0.0
  %1537 = vmatprep.subr.mxu0 0.0
  %1538 = vmatpush2.msra.mxu0 0.0
  %1539 = vmatprep.subr.mxu0 0.0
  %1540 = vmatpush2.msra.mxu0 0.0
  %1541 = vmatprep.subr.mxu0 0.0
  %1542 = vmatpush2.msra.mxu0 0.0
  %1543 = vmatprep.subr.mxu0 0.0
  %1544 = vmatpush2.msra.mxu0 0.0
  %1545 = vmatprep.subr.mxu0 0.0
  %1546 = vmatpush2.msra.mxu0 0.0
  %1547 = vmatprep.subr.mxu0 0.0
  %1548 = vmatpush2.msra.mxu0 0.0
  %1549 = vmatprep.subr.mxu0 0.0
  %1550 = vmatpush2.msra.mxu0 0.0
  %1551 = vmatprep.subr.mxu0 0.0
  %1552 = vmatpush2.msra.mxu0 0.0
  %1553 = vmatprep.subr.mxu0 0.0
  %1554 = vmatpush2.msra.mxu0 0.0
  %1555 = vmatprep.mubr.f32.mxu0 0.0
  %1556 = vmatmul.mubr.f32.gmra.mxu0 %v1483
  %v1557 = vpop.f32.mrf.mxu0
  %v1558 = vadd.f32 %v1481, %v1557
  %v1559 = vpop.f32.mrf.mxu0
  %1560 = vmatprep.mubr.f32.mxu0 0.0
  %1561 = vmatmul.mubr.f32.gmra.mxu0 %v1486
  %v1562 = vpop.f32.mrf.mxu0
  %v1563 = vadd.f32 %v1481, %v1562
  %v1564 = vpop.f32.mrf.mxu0
  %1565 = vmatprep.mubr.f32.mxu0 0.0
  %1566 = vmatmul.mubr.f32.gmra.mxu0 %v1489
  %v1567 = vpop.f32.mrf.mxu0
  %v1568 = vadd.f32 %v1481, %v1567
  %v1569 = vpop.f32.mrf.mxu0
  %1570 = vdwg.mxu0
  %v1571 = vlaneseq
  %v1572 = vshrl.u32 %v1571, 7
  %v1573 = vsub.s32 6, %v1572
  %v1574 = vrot.slane %v148, %v1573
  %1575 = vmatprep.subr.mxu0 0.0
  %1576 = vmatpush1.msra.mxu0 0.0
  %1577 = vmatprep.subr.mxu0 0.0
  %1578 = vmatpush1.msra.mxu0 0.0
  %1579 = vmatprep.subr.mxu0 0.0
  %1580 = vmatpush1.msra.mxu0 0.0
  %1581 = vmatprep.subr.mxu0 0.0
  %1582 = vmatpush1.msra.mxu0 0.0
  %1583 = vmatprep.subr.mxu0 0.0
  %1584 = vmatpush1.msra.mxu0 0.0
  %1585 = vmatprep.subr.mxu0 0.0
  %1586 = vmatpush1.msra.mxu0 0.0
  %1587 = vmatprep.subr.mxu0 0.0
  %1588 = vmatpush1.msra.mxu0 0.0
  %1589 = vmatprep.subr.mxu0 0.0
  %1590 = vmatpush1.msra.mxu0 0.0
  %1591 = vmatprep.subr.mxu0 0.0
  %1592 = vmatpush1.msra.mxu0 0.0
  %1593 = vmatprep.subr.mxu0 0.0
  %1594 = vmatpush1.msra.mxu0 0.0
  %1595 = vmatprep.subr.mxu0 0.0
  %1596 = vmatpush1.msra.mxu0 0.0
  %1597 = vmatprep.subr.mxu0 0.0
  %1598 = vmatpush1.msra.mxu0 0.0
  %1599 = vmatprep.subr.mxu0 0.0
  %1600 = vmatpush1.msra.mxu0 %v1387
  %1601 = vmatprep.subr.mxu0 0.0
  %1602 = vmatpush1.msra.mxu0 %v1386
  %1603 = vmatprep.subr.mxu0 0.0
  %1604 = vmatpush1.msra.mxu0 %v1385
  %1605 = vmatprep.subr.mxu0 0.0
  %1606 = vmatpush1.msra.mxu0 %v1384
  %1607 = vmatprep.subr.mxu0 0.0
  %1608 = vmatpush2.msra.mxu0 0.0
  %1609 = vmatprep.subr.mxu0 0.0
  %1610 = vmatpush2.msra.mxu0 0.0
  %1611 = vmatprep.subr.mxu0 0.0
  %1612 = vmatpush2.msra.mxu0 0.0
  %1613 = vmatprep.subr.mxu0 0.0
  %1614 = vmatpush2.msra.mxu0 0.0
  %1615 = vmatprep.subr.mxu0 0.0
  %1616 = vmatpush2.msra.mxu0 0.0
  %1617 = vmatprep.subr.mxu0 0.0
  %1618 = vmatpush2.msra.mxu0 0.0
  %1619 = vmatprep.subr.mxu0 0.0
  %1620 = vmatpush2.msra.mxu0 0.0
  %1621 = vmatprep.subr.mxu0 0.0
  %1622 = vmatpush2.msra.mxu0 0.0
  %1623 = vmatprep.subr.mxu0 0.0
  %1624 = vmatpush2.msra.mxu0 0.0
  %1625 = vmatprep.subr.mxu0 0.0
  %1626 = vmatpush2.msra.mxu0 0.0
  %1627 = vmatprep.subr.mxu0 0.0
  %1628 = vmatpush2.msra.mxu0 0.0
  %1629 = vmatprep.subr.mxu0 0.0
  %1630 = vmatpush2.msra.mxu0 0.0
  %1631 = vmatprep.subr.mxu0 0.0
  %1632 = vmatpush2.msra.mxu0 0.0
  %1633 = vmatprep.subr.mxu0 0.0
  %1634 = vmatpush2.msra.mxu0 0.0
  %1635 = vmatprep.subr.mxu0 0.0
  %1636 = vmatpush2.msra.mxu0 0.0
  %1637 = vmatprep.subr.mxu0 0.0
  %1638 = vmatpush2.msra.mxu0 0.0
  %1639 = vmatprep.mubr.f32.mxu0 0.0
  %1640 = vmatmul.mubr.f32.gmra.mxu0 %v1483
  %v1641 = vpop.f32.mrf.mxu0
  %v1642 = vadd.f32 %v1574, %v1641
  %v1643 = vpop.f32.mrf.mxu0
  %1644 = vmatprep.mubr.f32.mxu0 0.0
  %1645 = vmatmul.mubr.f32.gmra.mxu0 %v1486
  %v1646 = vpop.f32.mrf.mxu0
  %v1647 = vadd.f32 %v1574, %v1646
  %v1648 = vpop.f32.mrf.mxu0
  %1649 = vmatprep.mubr.f32.mxu0 0.0
  %1650 = vmatmul.mubr.f32.gmra.mxu0 %v1489
  %v1651 = vpop.f32.mrf.mxu0
  %v1652 = vadd.f32 %v1574, %v1651
  %v1653 = vpop.f32.mrf.mxu0
  %1654 = vdwg.mxu0
  %v1655 = vmul.f32 %v1470, 0.35355338
  %v1656 = vmul.f32 %v1475, 0.35355338
  %v1658 = vsel %vm415, %v1655, 0
  %v1661 = vsel %vm415, %v1656, 0
  %v1664 = vsel %vm415, %v1558, 0
  %v1667 = vsel %vm415, %v1563, 0
  %v1670 = vsel %vm415, %v1568, 0
  %1672 = vmatprep.subr.mxu0 0.0
  %1673 = vmatpush1.xpose.msra.mxu0 0.0
  %1674 = vmatprep.subr.mxu0 0.0
  %1675 = vmatpush1.xpose.msra.mxu0 0.0
  %1676 = vmatprep.subr.mxu0 0.0
  %1677 = vmatpush1.xpose.msra.mxu0 0.0
  %1678 = vmatprep.subr.mxu0 0.0
  %1679 = vmatpush1.xpose.msra.mxu0 0.0
  %1680 = vmatprep.subr.mxu0 0.0
  %1681 = vmatpush1.xpose.msra.mxu0 0.0
  %1682 = vmatprep.subr.mxu0 0.0
  %1683 = vmatpush1.xpose.msra.mxu0 0.0
  %1684 = vmatprep.subr.mxu0 0.0
  %1685 = vmatpush1.xpose.msra.mxu0 0.0
  %1686 = vmatprep.subr.mxu0 0.0
  %1687 = vmatpush1.xpose.msra.mxu0 0.0
  %1688 = vmatprep.subr.mxu0 0.0
  %1689 = vmatpush1.xpose.msra.mxu0 0.0
  %1690 = vmatprep.subr.mxu0 0.0
  %1691 = vmatpush1.xpose.msra.mxu0 0.0
  %1692 = vmatprep.subr.mxu0 0.0
  %1693 = vmatpush1.xpose.msra.mxu0 0.0
  %1694 = vmatprep.subr.mxu0 0.0
  %1695 = vmatpush1.xpose.msra.mxu0 0.0
  %1696 = vmatprep.subr.mxu0 0.0
  %1697 = vmatpush1.xpose.msra.mxu0 0.0
  %1698 = vmatprep.subr.mxu0 0.0
  %1699 = vmatpush1.xpose.msra.mxu0 %v1670
  %1700 = vmatprep.subr.mxu0 0.0
  %1701 = vmatpush1.xpose.msra.mxu0 %v1667
  %1702 = vmatprep.subr.mxu0 0.0
  %1703 = vmatpush1.xpose.msra.mxu0 %v1664
  %1704 = vmatprep.subr.mxu0 0.0
  %1705 = vmatpush2.xpose.msra.mxu0 0.0
  %1706 = vmatprep.subr.mxu0 0.0
  %1707 = vmatpush2.xpose.msra.mxu0 0.0
  %1708 = vmatprep.subr.mxu0 0.0
  %1709 = vmatpush2.xpose.msra.mxu0 0.0
  %1710 = vmatprep.subr.mxu0 0.0
  %1711 = vmatpush2.xpose.msra.mxu0 0.0
  %1712 = vmatprep.subr.mxu0 0.0
  %1713 = vmatpush2.xpose.msra.mxu0 0.0
  %1714 = vmatprep.subr.mxu0 0.0
  %1715 = vmatpush2.xpose.msra.mxu0 0.0
  %1716 = vmatprep.subr.mxu0 0.0
  %1717 = vmatpush2.xpose.msra.mxu0 0.0
  %1718 = vmatprep.subr.mxu0 0.0
  %1719 = vmatpush2.xpose.msra.mxu0 0.0
  %1720 = vmatprep.subr.mxu0 0.0
  %1721 = vmatpush2.xpose.msra.mxu0 0.0
  %1722 = vmatprep.subr.mxu0 0.0
  %1723 = vmatpush2.xpose.msra.mxu0 0.0
  %1724 = vmatprep.subr.mxu0 0.0
  %1725 = vmatpush2.xpose.msra.mxu0 0.0
  %1726 = vmatprep.subr.mxu0 0.0
  %1727 = vmatpush2.xpose.msra.mxu0 0.0
  %1728 = vmatprep.subr.mxu0 0.0
  %1729 = vmatpush2.xpose.msra.mxu0 0.0
  %1730 = vmatprep.subr.mxu0 0.0
  %1731 = vmatpush2.xpose.msra.mxu0 0.0
  %1732 = vmatprep.subr.mxu0 0.0
  %1733 = vmatpush2.xpose.msra.mxu0 0.0
  %1734 = vmatprep.subr.mxu0 0.0
  %1735 = vmatpush2.xpose.msra.mxu0 0.0
  %1736 = vmatprep.mubr.f32.mxu0 0.0
  %1737 = vmatmul.mubr.f32.gmra.mxu0 %v1658
  %v1738 = vpop.f32.mrf.mxu0
  %v1739 = vadd.f32 %v146, %v1738
  %v1740 = vpop.f32.mrf.mxu0
  %1741 = vmatprep.mubr.f32.mxu0 0.0
  %1742 = vmatmul.mubr.f32.gmra.mxu0 %v1661
  %v1743 = vpop.f32.mrf.mxu0
  %v1744 = vadd.f32 %v147, %v1743
  %v1745 = vpop.f32.mrf.mxu0
  %1746 = vdwg.mxu0
  %v1747 = vsel %vm1244, %v1739, -inf
  %1748 = vmax.xlane.f32.xlu0 %v1747
  %v1749 = vpop.xlane.xlu0 %1748
  %vm1750 = vcmask 191488
  %v1751 = vsel %vm1750, %v1744, -inf
  %1752 = vmax.xlane.f32.xlu0 %v1751
  %v1753 = vpop.xlane.xlu0 %1752
  %v1754 = vsub.f32 %v1739, %v1749
  %v1755 = vsub.f32 %v1744, %v1753
  %v1756 = vmul.f32 %v1754, 1.442695
  %v1757 = vpow.pop %v1756
  %v1758 = vmul.f32 %v1755, 1.442695
  %v1759 = vpow.pop %v1758
  %v1760 = vsel %vm1244, %v1757, 0.0
  %1761 = vadd.xlane.f32.xlu0 %v1760
  %v1762 = vpop.xlane.xlu0 %1761
  %v1763 = vsel %vm1750, %v1759, 0.0
  %1764 = vadd.xlane.f32.xlu0 %v1763
  %v1765 = vpop.xlane.xlu0 %1764
  %v1766 = vrcp.pop %v1762
  %v1767 = vrcp.pop %v1765
  %v1768 = vmul.f32 %v1757, %v1766
  %v1769 = vmul.f32 %v1759, %v1767
  %v1771 = vsel %vm1244, %v1768, 0
  %v1774 = vsel %vm1244, %v1769, 0
  %1776 = vmatprep.subr.mxu0 0.0
  %1777 = vmatpush1.msra.mxu0 0.0
  %1778 = vmatprep.subr.mxu0 0.0
  %1779 = vmatpush1.msra.mxu0 0.0
  %1780 = vmatprep.subr.mxu0 0.0
  %1781 = vmatpush1.msra.mxu0 0.0
  %1782 = vmatprep.subr.mxu0 0.0
  %1783 = vmatpush1.msra.mxu0 0.0
  %1784 = vmatprep.subr.mxu0 0.0
  %1785 = vmatpush1.msra.mxu0 0.0
  %1786 = vmatprep.subr.mxu0 0.0
  %1787 = vmatpush1.msra.mxu0 0.0
  %1788 = vmatprep.subr.mxu0 0.0
  %1789 = vmatpush1.msra.mxu0 0.0
  %1790 = vmatprep.subr.mxu0 0.0
  %1791 = vmatpush1.msra.mxu0 0.0
  %1792 = vmatprep.subr.mxu0 0.0
  %1793 = vmatpush1.msra.mxu0 0.0
  %1794 = vmatprep.subr.mxu0 0.0
  %1795 = vmatpush1.msra.mxu0 0.0
  %1796 = vmatprep.subr.mxu0 0.0
  %1797 = vmatpush1.msra.mxu0 0.0
  %1798 = vmatprep.subr.mxu0 0.0
  %1799 = vmatpush1.msra.mxu0 0.0
  %1800 = vmatprep.subr.mxu0 0.0
  %1801 = vmatpush1.msra.mxu0 0.0
  %1802 = vmatprep.subr.mxu0 0.0
  %1803 = vmatpush1.msra.mxu0 %v1652
  %1804 = vmatprep.subr.mxu0 0.0
  %1805 = vmatpush1.msra.mxu0 %v1647
  %1806 = vmatprep.subr.mxu0 0.0
  %1807 = vmatpush1.msra.mxu0 %v1642
  %1808 = vmatprep.subr.mxu0 0.0
  %1809 = vmatpush2.msra.mxu0 0.0
  %1810 = vmatprep.subr.mxu0 0.0
  %1811 = vmatpush2.msra.mxu0 0.0
  %1812 = vmatprep.subr.mxu0 0.0
  %1813 = vmatpush2.msra.mxu0 0.0
  %1814 = vmatprep.subr.mxu0 0.0
  %1815 = vmatpush2.msra.mxu0 0.0
  %1816 = vmatprep.subr.mxu0 0.0
  %1817 = vmatpush2.msra.mxu0 0.0
  %1818 = vmatprep.subr.mxu0 0.0
  %1819 = vmatpush2.msra.mxu0 0.0
  %1820 = vmatprep.subr.mxu0 0.0
  %1821 = vmatpush2.msra.mxu0 0.0
  %1822 = vmatprep.subr.mxu0 0.0
  %1823 = vmatpush2.msra.mxu0 0.0
  %1824 = vmatprep.subr.mxu0 0.0
  %1825 = vmatpush2.msra.mxu0 0.0
  %1826 = vmatprep.subr.mxu0 0.0
  %1827 = vmatpush2.msra.mxu0 0.0
  %1828 = vmatprep.subr.mxu0 0.0
  %1829 = vmatpush2.msra.mxu0 0.0
  %1830 = vmatprep.subr.mxu0 0.0
  %1831 = vmatpush2.msra.mxu0 0.0
  %1832 = vmatprep.subr.mxu0 0.0
  %1833 = vmatpush2.msra.mxu0 0.0
  %1834 = vmatprep.subr.mxu0 0.0
  %1835 = vmatpush2.msra.mxu0 0.0
  %1836 = vmatprep.subr.mxu0 0.0
  %1837 = vmatpush2.msra.mxu0 0.0
  %1838 = vmatprep.subr.mxu0 0.0
  %1839 = vmatpush2.msra.mxu0 0.0
  %1840 = vmatprep.mubr.f32.mxu0 0.0
  %1841 = vmatmul.mubr.f32.gmra.mxu0 %v1771
  %v1842 = vpop.f32.mrf.mxu0
  %v1843 = vadd.f32 0.0, %v1842
  %v1844 = vpop.f32.mrf.mxu0
  %1845 = vmatprep.mubr.f32.mxu0 0.0
  %1846 = vmatmul.mubr.f32.gmra.mxu0 %v1774
  %v1847 = vpop.f32.mrf.mxu0
  %v1848 = vadd.f32 0.0, %v1847
  %v1849 = vpop.f32.mrf.mxu0
  %1850 = vdwg.mxu0
  %1851 = vrot.lane.b32.xlu0 %v1655, 120
  %v1852 = vpop.permute.xlu0 %1851
  %1853 = vrot.lane.b32.xlu0 %v1656, 120
  %v1854 = vpop.permute.xlu0 %1853
  %1855 = vrot.lane.b32.xlu0 %v1558, 120
  %v1856 = vpop.permute.xlu0 %1855
  %1857 = vrot.lane.b32.xlu0 %v1563, 120
  %v1858 = vpop.permute.xlu0 %1857
  %1859 = vrot.lane.b32.xlu0 %v1568, 120
  %v1860 = vpop.permute.xlu0 %1859
  %v1861 = vsel %vm415, %v1852, 0
  %v1863 = vsel %vm415, %v1854, 0
  %v1865 = vsel %vm415, %v1856, 0
  %v1867 = vsel %vm415, %v1858, 0
  %v1869 = vsel %vm415, %v1860, 0
  %1871 = vmatprep.subr.mxu0 0.0
  %1872 = vmatpush1.xpose.msra.mxu0 0.0
  %1873 = vmatprep.subr.mxu0 0.0
  %1874 = vmatpush1.xpose.msra.mxu0 0.0
  %1875 = vmatprep.subr.mxu0 0.0
  %1876 = vmatpush1.xpose.msra.mxu0 0.0
  %1877 = vmatprep.subr.mxu0 0.0
  %1878 = vmatpush1.xpose.msra.mxu0 0.0
  %1879 = vmatprep.subr.mxu0 0.0
  %1880 = vmatpush1.xpose.msra.mxu0 0.0
  %1881 = vmatprep.subr.mxu0 0.0
  %1882 = vmatpush1.xpose.msra.mxu0 0.0
  %1883 = vmatprep.subr.mxu0 0.0
  %1884 = vmatpush1.xpose.msra.mxu0 0.0
  %1885 = vmatprep.subr.mxu0 0.0
  %1886 = vmatpush1.xpose.msra.mxu0 0.0
  %1887 = vmatprep.subr.mxu0 0.0
  %1888 = vmatpush1.xpose.msra.mxu0 0.0
  %1889 = vmatprep.subr.mxu0 0.0
  %1890 = vmatpush1.xpose.msra.mxu0 0.0
  %1891 = vmatprep.subr.mxu0 0.0
  %1892 = vmatpush1.xpose.msra.mxu0 0.0
  %1893 = vmatprep.subr.mxu0 0.0
  %1894 = vmatpush1.xpose.msra.mxu0 0.0
  %1895 = vmatprep.subr.mxu0 0.0
  %1896 = vmatpush1.xpose.msra.mxu0 0.0
  %1897 = vmatprep.subr.mxu0 0.0
  %1898 = vmatpush1.xpose.msra.mxu0 %v1869
  %1899 = vmatprep.subr.mxu0 0.0
  %1900 = vmatpush1.xpose.msra.mxu0 %v1867
  %1901 = vmatprep.subr.mxu0 0.0
  %1902 = vmatpush1.xpose.msra.mxu0 %v1865
  %1903 = vmatprep.subr.mxu0 0.0
  %1904 = vmatpush2.xpose.msra.mxu0 0.0
  %1905 = vmatprep.subr.mxu0 0.0
  %1906 = vmatpush2.xpose.msra.mxu0 0.0
  %1907 = vmatprep.subr.mxu0 0.0
  %1908 = vmatpush2.xpose.msra.mxu0 0.0
  %1909 = vmatprep.subr.mxu0 0.0
  %1910 = vmatpush2.xpose.msra.mxu0 0.0
  %1911 = vmatprep.subr.mxu0 0.0
  %1912 = vmatpush2.xpose.msra.mxu0 0.0
  %1913 = vmatprep.subr.mxu0 0.0
  %1914 = vmatpush2.xpose.msra.mxu0 0.0
  %1915 = vmatprep.subr.mxu0 0.0
  %1916 = vmatpush2.xpose.msra.mxu0 0.0
  %1917 = vmatprep.subr.mxu0 0.0
  %1918 = vmatpush2.xpose.msra.mxu0 0.0
  %1919 = vmatprep.subr.mxu0 0.0
  %1920 = vmatpush2.xpose.msra.mxu0 0.0
  %1921 = vmatprep.subr.mxu0 0.0
  %1922 = vmatpush2.xpose.msra.mxu0 0.0
  %1923 = vmatprep.subr.mxu0 0.0
  %1924 = vmatpush2.xpose.msra.mxu0 0.0
  %1925 = vmatprep.subr.mxu0 0.0
  %1926 = vmatpush2.xpose.msra.mxu0 0.0
  %1927 = vmatprep.subr.mxu0 0.0
  %1928 = vmatpush2.xpose.msra.mxu0 0.0
  %1929 = vmatprep.subr.mxu0 0.0
  %1930 = vmatpush2.xpose.msra.mxu0 0.0
  %1931 = vmatprep.subr.mxu0 0.0
  %1932 = vmatpush2.xpose.msra.mxu0 0.0
  %1933 = vmatprep.subr.mxu0 0.0
  %1934 = vmatpush2.xpose.msra.mxu0 0.0
  %1935 = vmatprep.mubr.f32.mxu0 0.0
  %1936 = vmatmul.mubr.f32.gmra.mxu0 %v1861
  %v1937 = vpop.f32.mrf.mxu0
  %v1938 = vadd.f32 %v146, %v1937
  %v1939 = vpop.f32.mrf.mxu0
  %1940 = vmatprep.mubr.f32.mxu0 0.0
  %1941 = vmatmul.mubr.f32.gmra.mxu0 %v1863
  %v1942 = vpop.f32.mrf.mxu0
  %v1943 = vadd.f32 %v147, %v1942
  %v1944 = vpop.f32.mrf.mxu0
  %1945 = vdwg.mxu0
  %v1946 = vsel %vm1244, %v1938, -inf
  %1947 = vmax.xlane.f32.xlu0 %v1946
  %v1948 = vpop.xlane.xlu0 %1947
  %v1949 = vsel %vm1750, %v1943, -inf
  %1950 = vmax.xlane.f32.xlu0 %v1949
  %v1951 = vpop.xlane.xlu0 %1950
  %v1952 = vsub.f32 %v1938, %v1948
  %v1953 = vsub.f32 %v1943, %v1951
  %v1954 = vmul.f32 %v1952, 1.442695
  %v1955 = vpow.pop %v1954
  %v1956 = vmul.f32 %v1953, 1.442695
  %v1957 = vpow.pop %v1956
  %v1958 = vsel %vm1244, %v1955, 0.0
  %1959 = vadd.xlane.f32.xlu0 %v1958
  %v1960 = vpop.xlane.xlu0 %1959
  %v1961 = vsel %vm1750, %v1957, 0.0
  %1962 = vadd.xlane.f32.xlu0 %v1961
  %v1963 = vpop.xlane.xlu0 %1962
  %v1964 = vrcp.pop %v1960
  %v1965 = vrcp.pop %v1963
  %v1966 = vmul.f32 %v1955, %v1964
  %v1967 = vmul.f32 %v1957, %v1965
  %1971 = vrot.lane.b32.xlu0 %v1642, 120
  %v1972 = vpop.permute.xlu0 %1971
  %1973 = vrot.lane.b32.xlu0 %v1647, 120
  %v1974 = vpop.permute.xlu0 %1973
  %1975 = vrot.lane.b32.xlu0 %v1652, 120
  %v1976 = vpop.permute.xlu0 %1975
  %v1981 = vsel %vm1244, %v1966, 0
  %v1984 = vsel %vm1244, %v1967, 0
  %1986 = vmatprep.subr.mxu0 0.0
  %1987 = vmatpush1.msra.mxu0 0.0
  %1988 = vmatprep.subr.mxu0 0.0
  %1989 = vmatpush1.msra.mxu0 0.0
  %1990 = vmatprep.subr.mxu0 0.0
  %1991 = vmatpush1.msra.mxu0 0.0
  %1992 = vmatprep.subr.mxu0 0.0
  %1993 = vmatpush1.msra.mxu0 0.0
  %1994 = vmatprep.subr.mxu0 0.0
  %1995 = vmatpush1.msra.mxu0 0.0
  %1996 = vmatprep.subr.mxu0 0.0
  %1997 = vmatpush1.msra.mxu0 0.0
  %1998 = vmatprep.subr.mxu0 0.0
  %1999 = vmatpush1.msra.mxu0 0.0
  %2000 = vmatprep.subr.mxu0 0.0
  %2001 = vmatpush1.msra.mxu0 0.0
  %2002 = vmatprep.subr.mxu0 0.0
  %2003 = vmatpush1.msra.mxu0 0.0
  %2004 = vmatprep.subr.mxu0 0.0
  %2005 = vmatpush1.msra.mxu0 0.0
  %2006 = vmatprep.subr.mxu0 0.0
  %2007 = vmatpush1.msra.mxu0 0.0
  %2008 = vmatprep.subr.mxu0 0.0
  %2009 = vmatpush1.msra.mxu0 0.0
  %2010 = vmatprep.subr.mxu0 0.0
  %2011 = vmatpush1.msra.mxu0 0.0
  %2012 = vmatprep.subr.mxu0 0.0
  %2013 = vmatpush1.msra.mxu0 %v1976
  %2014 = vmatprep.subr.mxu0 0.0
  %2015 = vmatpush1.msra.mxu0 %v1974
  %2016 = vmatprep.subr.mxu0 0.0
  %2017 = vmatpush1.msra.mxu0 %v1972
  %2018 = vmatprep.subr.mxu0 0.0
  %2019 = vmatpush2.msra.mxu0 0.0
  %2020 = vmatprep.subr.mxu0 0.0
  %2021 = vmatpush2.msra.mxu0 0.0
  %2022 = vmatprep.subr.mxu0 0.0
  %2023 = vmatpush2.msra.mxu0 0.0
  %2024 = vmatprep.subr.mxu0 0.0
  %2025 = vmatpush2.msra.mxu0 0.0
  %2026 = vmatprep.subr.mxu0 0.0
  %2027 = vmatpush2.msra.mxu0 0.0
  %2028 = vmatprep.subr.mxu0 0.0
  %2029 = vmatpush2.msra.mxu0 0.0
  %2030 = vmatprep.subr.mxu0 0.0
  %2031 = vmatpush2.msra.mxu0 0.0
  %2032 = vmatprep.subr.mxu0 0.0
  %2033 = vmatpush2.msra.mxu0 0.0
  %2034 = vmatprep.subr.mxu0 0.0
  %2035 = vmatpush2.msra.mxu0 0.0
  %2036 = vmatprep.subr.mxu0 0.0
  %2037 = vmatpush2.msra.mxu0 0.0
  %2038 = vmatprep.subr.mxu0 0.0
  %2039 = vmatpush2.msra.mxu0 0.0
  %2040 = vmatprep.subr.mxu0 0.0
  %2041 = vmatpush2.msra.mxu0 0.0
  %2042 = vmatprep.subr.mxu0 0.0
  %2043 = vmatpush2.msra.mxu0 0.0
  %2044 = vmatprep.subr.mxu0 0.0
  %2045 = vmatpush2.msra.mxu0 0.0
  %2046 = vmatprep.subr.mxu0 0.0
  %2047 = vmatpush2.msra.mxu0 0.0
  %2048 = vmatprep.subr.mxu0 0.0
  %2049 = vmatpush2.msra.mxu0 0.0
  %2050 = vmatprep.mubr.f32.mxu0 0.0
  %2051 = vmatmul.mubr.f32.gmra.mxu0 %v1981
  %v2052 = vpop.f32.mrf.mxu0
  %v2053 = vadd.f32 0.0, %v2052
  %v2054 = vpop.f32.mrf.mxu0
  %2055 = vmatprep.mubr.f32.mxu0 0.0
  %2056 = vmatmul.mubr.f32.gmra.mxu0 %v1984
  %v2057 = vpop.f32.mrf.mxu0
  %v2058 = vadd.f32 0.0, %v2057
  %v2059 = vpop.f32.mrf.mxu0
  %2060 = vdwg.mxu0
  %2061 = vrot.lane.b32.xlu0 %v1655, 112
  %v2062 = vpop.permute.xlu0 %2061
  %2063 = vrot.lane.b32.xlu0 %v1656, 112
  %v2064 = vpop.permute.xlu0 %2063
  %2065 = vrot.lane.b32.xlu0 %v1558, 112
  %v2066 = vpop.permute.xlu0 %2065
  %2067 = vrot.lane.b32.xlu0 %v1563, 112
  %v2068 = vpop.permute.xlu0 %2067
  %2069 = vrot.lane.b32.xlu0 %v1568, 112
  %v2070 = vpop.permute.xlu0 %2069
  %v2071 = vsel %vm415, %v2062, 0
  %v2073 = vsel %vm415, %v2064, 0
  %v2075 = vsel %vm415, %v2066, 0
  %v2077 = vsel %vm415, %v2068, 0
  %v2079 = vsel %vm415, %v2070, 0
  %2081 = vmatprep.subr.mxu0 0.0
  %2082 = vmatpush1.xpose.msra.mxu0 0.0
  %2083 = vmatprep.subr.mxu0 0.0
  %2084 = vmatpush1.xpose.msra.mxu0 0.0
  %2085 = vmatprep.subr.mxu0 0.0
  %2086 = vmatpush1.xpose.msra.mxu0 0.0
  %2087 = vmatprep.subr.mxu0 0.0
  %2088 = vmatpush1.xpose.msra.mxu0 0.0
  %2089 = vmatprep.subr.mxu0 0.0
  %2090 = vmatpush1.xpose.msra.mxu0 0.0
  %2091 = vmatprep.subr.mxu0 0.0
  %2092 = vmatpush1.xpose.msra.mxu0 0.0
  %2093 = vmatprep.subr.mxu0 0.0
  %2094 = vmatpush1.xpose.msra.mxu0 0.0
  %2095 = vmatprep.subr.mxu0 0.0
  %2096 = vmatpush1.xpose.msra.mxu0 0.0
  %2097 = vmatprep.subr.mxu0 0.0
  %2098 = vmatpush1.xpose.msra.mxu0 0.0
  %2099 = vmatprep.subr.mxu0 0.0
  %2100 = vmatpush1.xpose.msra.mxu0 0.0
  %2101 = vmatprep.subr.mxu0 0.0
  %2102 = vmatpush1.xpose.msra.mxu0 0.0
  %2103 = vmatprep.subr.mxu0 0.0
  %2104 = vmatpush1.xpose.msra.mxu0 0.0
  %2105 = vmatprep.subr.mxu0 0.0
  %2106 = vmatpush1.xpose.msra.mxu0 0.0
  %2107 = vmatprep.subr.mxu0 0.0
  %2108 = vmatpush1.xpose.msra.mxu0 %v2079
  %2109 = vmatprep.subr.mxu0 0.0
  %2110 = vmatpush1.xpose.msra.mxu0 %v2077
  %2111 = vmatprep.subr.mxu0 0.0
  %2112 = vmatpush1.xpose.msra.mxu0 %v2075
  %2113 = vmatprep.subr.mxu0 0.0
  %2114 = vmatpush2.xpose.msra.mxu0 0.0
  %2115 = vmatprep.subr.mxu0 0.0
  %2116 = vmatpush2.xpose.msra.mxu0 0.0
  %2117 = vmatprep.subr.mxu0 0.0
  %2118 = vmatpush2.xpose.msra.mxu0 0.0
  %2119 = vmatprep.subr.mxu0 0.0
  %2120 = vmatpush2.xpose.msra.mxu0 0.0
  %2121 = vmatprep.subr.mxu0 0.0
  %2122 = vmatpush2.xpose.msra.mxu0 0.0
  %2123 = vmatprep.subr.mxu0 0.0
  %2124 = vmatpush2.xpose.msra.mxu0 0.0
  %2125 = vmatprep.subr.mxu0 0.0
  %2126 = vmatpush2.xpose.msra.mxu0 0.0
  %2127 = vmatprep.subr.mxu0 0.0
  %2128 = vmatpush2.xpose.msra.mxu0 0.0
  %2129 = vmatprep.subr.mxu0 0.0
  %2130 = vmatpush2.xpose.msra.mxu0 0.0
  %2131 = vmatprep.subr.mxu0 0.0
  %2132 = vmatpush2.xpose.msra.mxu0 0.0
  %2133 = vmatprep.subr.mxu0 0.0
  %2134 = vmatpush2.xpose.msra.mxu0 0.0
  %2135 = vmatprep.subr.mxu0 0.0
  %2136 = vmatpush2.xpose.msra.mxu0 0.0
  %2137 = vmatprep.subr.mxu0 0.0
  %2138 = vmatpush2.xpose.msra.mxu0 0.0
  %2139 = vmatprep.subr.mxu0 0.0
  %2140 = vmatpush2.xpose.msra.mxu0 0.0
  %2141 = vmatprep.subr.mxu0 0.0
  %2142 = vmatpush2.xpose.msra.mxu0 0.0
  %2143 = vmatprep.subr.mxu0 0.0
  %2144 = vmatpush2.xpose.msra.mxu0 0.0
  %2145 = vmatprep.mubr.f32.mxu0 0.0
  %2146 = vmatmul.mubr.f32.gmra.mxu0 %v2071
  %v2147 = vpop.f32.mrf.mxu0
  %v2148 = vadd.f32 %v146, %v2147
  %v2149 = vpop.f32.mrf.mxu0
  %2150 = vmatprep.mubr.f32.mxu0 0.0
  %2151 = vmatmul.mubr.f32.gmra.mxu0 %v2073
  %v2152 = vpop.f32.mrf.mxu0
  %v2153 = vadd.f32 %v147, %v2152
  %v2154 = vpop.f32.mrf.mxu0
  %2155 = vdwg.mxu0
  %v2156 = vsel %vm1244, %v2148, -inf
  %2157 = vmax.xlane.f32.xlu0 %v2156
  %v2158 = vpop.xlane.xlu0 %2157
  %v2159 = vsel %vm1750, %v2153, -inf
  %2160 = vmax.xlane.f32.xlu0 %v2159
  %v2161 = vpop.xlane.xlu0 %2160
  %v2162 = vsub.f32 %v2148, %v2158
  %v2163 = vsub.f32 %v2153, %v2161
  %v2164 = vmul.f32 %v2162, 1.442695
  %v2165 = vpow.pop %v2164
  %v2166 = vmul.f32 %v2163, 1.442695
  %v2167 = vpow.pop %v2166
  %v2168 = vsel %vm1244, %v2165, 0.0
  %2169 = vadd.xlane.f32.xlu0 %v2168
  %v2170 = vpop.xlane.xlu0 %2169
  %v2171 = vsel %vm1750, %v2167, 0.0
  %2172 = vadd.xlane.f32.xlu0 %v2171
  %v2173 = vpop.xlane.xlu0 %2172
  %v2174 = vrcp.pop %v2170
  %v2175 = vrcp.pop %v2173
  %v2176 = vmul.f32 %v2165, %v2174
  %v2177 = vmul.f32 %v2167, %v2175
  %2178 = vrot.lane.b32.xlu0 %v1642, 112
  %v2179 = vpop.permute.xlu0 %2178
  %2180 = vrot.lane.b32.xlu0 %v1647, 112
  %v2181 = vpop.permute.xlu0 %2180
  %2182 = vrot.lane.b32.xlu0 %v1652, 112
  %v2183 = vpop.permute.xlu0 %2182
  %v2188 = vsel %vm1244, %v2176, 0
  %v2191 = vsel %vm1244, %v2177, 0
  %2193 = vmatprep.subr.mxu0 0.0
  %2194 = vmatpush1.msra.mxu0 0.0
  %2195 = vmatprep.subr.mxu0 0.0
  %2196 = vmatpush1.msra.mxu0 0.0
  %2197 = vmatprep.subr.mxu0 0.0
  %2198 = vmatpush1.msra.mxu0 0.0
  %2199 = vmatprep.subr.mxu0 0.0
  %2200 = vmatpush1.msra.mxu0 0.0
  %2201 = vmatprep.subr.mxu0 0.0
  %2202 = vmatpush1.msra.mxu0 0.0
  %2203 = vmatprep.subr.mxu0 0.0
  %2204 = vmatpush1.msra.mxu0 0.0
  %2205 = vmatprep.subr.mxu0 0.0
  %2206 = vmatpush1.msra.mxu0 0.0
  %2207 = vmatprep.subr.mxu0 0.0
  %2208 = vmatpush1.msra.mxu0 0.0
  %2209 = vmatprep.subr.mxu0 0.0
  %2210 = vmatpush1.msra.mxu0 0.0
  %2211 = vmatprep.subr.mxu0 0.0
  %2212 = vmatpush1.msra.mxu0 0.0
  %2213 = vmatprep.subr.mxu0 0.0
  %2214 = vmatpush1.msra.mxu0 0.0
  %2215 = vmatprep.subr.mxu0 0.0
  %2216 = vmatpush1.msra.mxu0 0.0
  %2217 = vmatprep.subr.mxu0 0.0
  %2218 = vmatpush1.msra.mxu0 0.0
  %2219 = vmatprep.subr.mxu0 0.0
  %2220 = vmatpush1.msra.mxu0 %v2183
  %2221 = vmatprep.subr.mxu0 0.0
  %2222 = vmatpush1.msra.mxu0 %v2181
  %2223 = vmatprep.subr.mxu0 0.0
  %2224 = vmatpush1.msra.mxu0 %v2179
  %2225 = vmatprep.subr.mxu0 0.0
  %2226 = vmatpush2.msra.mxu0 0.0
  %2227 = vmatprep.subr.mxu0 0.0
  %2228 = vmatpush2.msra.mxu0 0.0
  %2229 = vmatprep.subr.mxu0 0.0
  %2230 = vmatpush2.msra.mxu0 0.0
  %2231 = vmatprep.subr.mxu0 0.0
  %2232 = vmatpush2.msra.mxu0 0.0
  %2233 = vmatprep.subr.mxu0 0.0
  %2234 = vmatpush2.msra.mxu0 0.0
  %2235 = vmatprep.subr.mxu0 0.0
  %2236 = vmatpush2.msra.mxu0 0.0
  %2237 = vmatprep.subr.mxu0 0.0
  %2238 = vmatpush2.msra.mxu0 0.0
  %2239 = vmatprep.subr.mxu0 0.0
  %2240 = vmatpush2.msra.mxu0 0.0
  %2241 = vmatprep.subr.mxu0 0.0
  %2242 = vmatpush2.msra.mxu0 0.0
  %2243 = vmatprep.subr.mxu0 0.0
  %2244 = vmatpush2.msra.mxu0 0.0
  %2245 = vmatprep.subr.mxu0 0.0
  %2246 = vmatpush2.msra.mxu0 0.0
  %2247 = vmatprep.subr.mxu0 0.0
  %2248 = vmatpush2.msra.mxu0 0.0
  %2249 = vmatprep.subr.mxu0 0.0
  %2250 = vmatpush2.msra.mxu0 0.0
  %2251 = vmatprep.subr.mxu0 0.0
  %2252 = vmatpush2.msra.mxu0 0.0
  %2253 = vmatprep.subr.mxu0 0.0
  %2254 = vmatpush2.msra.mxu0 0.0
  %2255 = vmatprep.subr.mxu0 0.0
  %2256 = vmatpush2.msra.mxu0 0.0
  %2257 = vmatprep.mubr.f32.mxu0 0.0
  %2258 = vmatmul.mubr.f32.gmra.mxu0 %v2188
  %v2259 = vpop.f32.mrf.mxu0
  %v2260 = vadd.f32 0.0, %v2259
  %v2261 = vpop.f32.mrf.mxu0
  %2262 = vmatprep.mubr.f32.mxu0 0.0
  %2263 = vmatmul.mubr.f32.gmra.mxu0 %v2191
  %v2264 = vpop.f32.mrf.mxu0
  %v2265 = vadd.f32 0.0, %v2264
  %v2266 = vpop.f32.mrf.mxu0
  %2267 = vdwg.mxu0
  %2268 = vrot.lane.b32.xlu0 %v1655, 104
  %v2269 = vpop.permute.xlu0 %2268
  %2270 = vrot.lane.b32.xlu0 %v1656, 104
  %v2271 = vpop.permute.xlu0 %2270
  %2272 = vrot.lane.b32.xlu0 %v1558, 104
  %v2273 = vpop.permute.xlu0 %2272
  %2274 = vrot.lane.b32.xlu0 %v1563, 104
  %v2275 = vpop.permute.xlu0 %2274
  %2276 = vrot.lane.b32.xlu0 %v1568, 104
  %v2277 = vpop.permute.xlu0 %2276
  %v2278 = vsel %vm415, %v2269, 0
  %v2280 = vsel %vm415, %v2271, 0
  %v2282 = vsel %vm415, %v2273, 0
  %v2284 = vsel %vm415, %v2275, 0
  %v2286 = vsel %vm415, %v2277, 0
  %2288 = vmatprep.subr.mxu0 0.0
  %2289 = vmatpush1.xpose.msra.mxu0 0.0
  %2290 = vmatprep.subr.mxu0 0.0
  %2291 = vmatpush1.xpose.msra.mxu0 0.0
  %2292 = vmatprep.subr.mxu0 0.0
  %2293 = vmatpush1.xpose.msra.mxu0 0.0
  %2294 = vmatprep.subr.mxu0 0.0
  %2295 = vmatpush1.xpose.msra.mxu0 0.0
  %2296 = vmatprep.subr.mxu0 0.0
  %2297 = vmatpush1.xpose.msra.mxu0 0.0
  %2298 = vmatprep.subr.mxu0 0.0
  %2299 = vmatpush1.xpose.msra.mxu0 0.0
  %2300 = vmatprep.subr.mxu0 0.0
  %2301 = vmatpush1.xpose.msra.mxu0 0.0
  %2302 = vmatprep.subr.mxu0 0.0
  %2303 = vmatpush1.xpose.msra.mxu0 0.0
  %2304 = vmatprep.subr.mxu0 0.0
  %2305 = vmatpush1.xpose.msra.mxu0 0.0
  %2306 = vmatprep.subr.mxu0 0.0
  %2307 = vmatpush1.xpose.msra.mxu0 0.0
  %2308 = vmatprep.subr.mxu0 0.0
  %2309 = vmatpush1.xpose.msra.mxu0 0.0
  %2310 = vmatprep.subr.mxu0 0.0
  %2311 = vmatpush1.xpose.msra.mxu0 0.0
  %2312 = vmatprep.subr.mxu0 0.0
  %2313 = vmatpush1.xpose.msra.mxu0 0.0
  %2314 = vmatprep.subr.mxu0 0.0
  %2315 = vmatpush1.xpose.msra.mxu0 %v2286
  %2316 = vmatprep.subr.mxu0 0.0
  %2317 = vmatpush1.xpose.msra.mxu0 %v2284
  %2318 = vmatprep.subr.mxu0 0.0
  %2319 = vmatpush1.xpose.msra.mxu0 %v2282
  %2320 = vmatprep.subr.mxu0 0.0
  %2321 = vmatpush2.xpose.msra.mxu0 0.0
  %2322 = vmatprep.subr.mxu0 0.0
  %2323 = vmatpush2.xpose.msra.mxu0 0.0
  %2324 = vmatprep.subr.mxu0 0.0
  %2325 = vmatpush2.xpose.msra.mxu0 0.0
  %2326 = vmatprep.subr.mxu0 0.0
  %2327 = vmatpush2.xpose.msra.mxu0 0.0
  %2328 = vmatprep.subr.mxu0 0.0
  %2329 = vmatpush2.xpose.msra.mxu0 0.0
  %2330 = vmatprep.subr.mxu0 0.0
  %2331 = vmatpush2.xpose.msra.mxu0 0.0
  %2332 = vmatprep.subr.mxu0 0.0
  %2333 = vmatpush2.xpose.msra.mxu0 0.0
  %2334 = vmatprep.subr.mxu0 0.0
  %2335 = vmatpush2.xpose.msra.mxu0 0.0
  %2336 = vmatprep.subr.mxu0 0.0
  %2337 = vmatpush2.xpose.msra.mxu0 0.0
  %2338 = vmatprep.subr.mxu0 0.0
  %2339 = vmatpush2.xpose.msra.mxu0 0.0
  %2340 = vmatprep.subr.mxu0 0.0
  %2341 = vmatpush2.xpose.msra.mxu0 0.0
  %2342 = vmatprep.subr.mxu0 0.0
  %2343 = vmatpush2.xpose.msra.mxu0 0.0
  %2344 = vmatprep.subr.mxu0 0.0
  %2345 = vmatpush2.xpose.msra.mxu0 0.0
  %2346 = vmatprep.subr.mxu0 0.0
  %2347 = vmatpush2.xpose.msra.mxu0 0.0
  %2348 = vmatprep.subr.mxu0 0.0
  %2349 = vmatpush2.xpose.msra.mxu0 0.0
  %2350 = vmatprep.subr.mxu0 0.0
  %2351 = vmatpush2.xpose.msra.mxu0 0.0
  %2352 = vmatprep.mubr.f32.mxu0 0.0
  %2353 = vmatmul.mubr.f32.gmra.mxu0 %v2278
  %v2354 = vpop.f32.mrf.mxu0
  %v2355 = vadd.f32 %v146, %v2354
  %v2356 = vpop.f32.mrf.mxu0
  %2357 = vmatprep.mubr.f32.mxu0 0.0
  %2358 = vmatmul.mubr.f32.gmra.mxu0 %v2280
  %v2359 = vpop.f32.mrf.mxu0
  %v2360 = vadd.f32 %v147, %v2359
  %v2361 = vpop.f32.mrf.mxu0
  %2362 = vdwg.mxu0
  %v2363 = vsel %vm1244, %v2355, -inf
  %2364 = vmax.xlane.f32.xlu0 %v2363
  %v2365 = vpop.xlane.xlu0 %2364
  %v2366 = vsel %vm1750, %v2360, -inf
  %2367 = vmax.xlane.f32.xlu0 %v2366
  %v2368 = vpop.xlane.xlu0 %2367
  %v2369 = vsub.f32 %v2355, %v2365
  %v2370 = vsub.f32 %v2360, %v2368
  %v2371 = vmul.f32 %v2369, 1.442695
  %v2372 = vpow.pop %v2371
  %v2373 = vmul.f32 %v2370, 1.442695
  %v2374 = vpow.pop %v2373
  %v2375 = vsel %vm1244, %v2372, 0.0
  %2376 = vadd.xlane.f32.xlu0 %v2375
  %v2377 = vpop.xlane.xlu0 %2376
  %v2378 = vsel %vm1750, %v2374, 0.0
  %2379 = vadd.xlane.f32.xlu0 %v2378
  %v2380 = vpop.xlane.xlu0 %2379
  %v2381 = vrcp.pop %v2377
  %v2382 = vrcp.pop %v2380
  %v2383 = vmul.f32 %v2372, %v2381
  %v2384 = vmul.f32 %v2374, %v2382
  %2385 = vrot.lane.b32.xlu0 %v1642, 104
  %v2386 = vpop.permute.xlu0 %2385
  %2387 = vrot.lane.b32.xlu0 %v1647, 104
  %v2388 = vpop.permute.xlu0 %2387
  %2389 = vrot.lane.b32.xlu0 %v1652, 104
  %v2390 = vpop.permute.xlu0 %2389
  %v2395 = vsel %vm1244, %v2383, 0
  %v2398 = vsel %vm1244, %v2384, 0
  %2400 = vmatprep.subr.mxu0 0.0
  %2401 = vmatpush1.msra.mxu0 0.0
  %2402 = vmatprep.subr.mxu0 0.0
  %2403 = vmatpush1.msra.mxu0 0.0
  %2404 = vmatprep.subr.mxu0 0.0
  %2405 = vmatpush1.msra.mxu0 0.0
  %2406 = vmatprep.subr.mxu0 0.0
  %2407 = vmatpush1.msra.mxu0 0.0
  %2408 = vmatprep.subr.mxu0 0.0
  %2409 = vmatpush1.msra.mxu0 0.0
  %2410 = vmatprep.subr.mxu0 0.0
  %2411 = vmatpush1.msra.mxu0 0.0
  %2412 = vmatprep.subr.mxu0 0.0
  %2413 = vmatpush1.msra.mxu0 0.0
  %2414 = vmatprep.subr.mxu0 0.0
  %2415 = vmatpush1.msra.mxu0 0.0
  %2416 = vmatprep.subr.mxu0 0.0
  %2417 = vmatpush1.msra.mxu0 0.0
  %2418 = vmatprep.subr.mxu0 0.0
  %2419 = vmatpush1.msra.mxu0 0.0
  %2420 = vmatprep.subr.mxu0 0.0
  %2421 = vmatpush1.msra.mxu0 0.0
  %2422 = vmatprep.subr.mxu0 0.0
  %2423 = vmatpush1.msra.mxu0 0.0
  %2424 = vmatprep.subr.mxu0 0.0
  %2425 = vmatpush1.msra.mxu0 0.0
  %2426 = vmatprep.subr.mxu0 0.0
  %2427 = vmatpush1.msra.mxu0 %v2390
  %2428 = vmatprep.subr.mxu0 0.0
  %2429 = vmatpush1.msra.mxu0 %v2388
  %2430 = vmatprep.subr.mxu0 0.0
  %2431 = vmatpush1.msra.mxu0 %v2386
  %2432 = vmatprep.subr.mxu0 0.0
  %2433 = vmatpush2.msra.mxu0 0.0
  %2434 = vmatprep.subr.mxu0 0.0
  %2435 = vmatpush2.msra.mxu0 0.0
  %2436 = vmatprep.subr.mxu0 0.0
  %2437 = vmatpush2.msra.mxu0 0.0
  %2438 = vmatprep.subr.mxu0 0.0
  %2439 = vmatpush2.msra.mxu0 0.0
  %2440 = vmatprep.subr.mxu0 0.0
  %2441 = vmatpush2.msra.mxu0 0.0
  %2442 = vmatprep.subr.mxu0 0.0
  %2443 = vmatpush2.msra.mxu0 0.0
  %2444 = vmatprep.subr.mxu0 0.0
  %2445 = vmatpush2.msra.mxu0 0.0
  %2446 = vmatprep.subr.mxu0 0.0
  %2447 = vmatpush2.msra.mxu0 0.0
  %2448 = vmatprep.subr.mxu0 0.0
  %2449 = vmatpush2.msra.mxu0 0.0
  %2450 = vmatprep.subr.mxu0 0.0
  %2451 = vmatpush2.msra.mxu0 0.0
  %2452 = vmatprep.subr.mxu0 0.0
  %2453 = vmatpush2.msra.mxu0 0.0
  %2454 = vmatprep.subr.mxu0 0.0
  %2455 = vmatpush2.msra.mxu0 0.0
  %2456 = vmatprep.subr.mxu0 0.0
  %2457 = vmatpush2.msra.mxu0 0.0
  %2458 = vmatprep.subr.mxu0 0.0
  %2459 = vmatpush2.msra.mxu0 0.0
  %2460 = vmatprep.subr.mxu0 0.0
  %2461 = vmatpush2.msra.mxu0 0.0
  %2462 = vmatprep.subr.mxu0 0.0
  %2463 = vmatpush2.msra.mxu0 0.0
  %2464 = vmatprep.mubr.f32.mxu0 0.0
  %2465 = vmatmul.mubr.f32.gmra.mxu0 %v2395
  %v2466 = vpop.f32.mrf.mxu0
  %v2467 = vadd.f32 0.0, %v2466
  %v2468 = vpop.f32.mrf.mxu0
  %2469 = vmatprep.mubr.f32.mxu0 0.0
  %2470 = vmatmul.mubr.f32.gmra.mxu0 %v2398
  %v2471 = vpop.f32.mrf.mxu0
  %v2472 = vadd.f32 0.0, %v2471
  %v2473 = vpop.f32.mrf.mxu0
  %2474 = vdwg.mxu0
  %2477 = vrot.lane.b32.xlu0 %v2053, 8
  %v2478 = vpop.permute.xlu0 %2477
  %2479 = vrot.lane.b32.xlu0 %v2058, 8
  %v2480 = vpop.permute.xlu0 %2479
  %2485 = vrot.lane.b32.xlu0 %v2260, 16
  %v2486 = vpop.permute.xlu0 %2485
  %2487 = vrot.lane.b32.xlu0 %v2265, 16
  %v2488 = vpop.permute.xlu0 %2487
  %2493 = vrot.lane.b32.xlu0 %v2467, 24
  %v2494 = vpop.permute.xlu0 %2493
  %2495 = vrot.lane.b32.xlu0 %v2472, 24
  %v2496 = vpop.permute.xlu0 %2495
  %v2499 = vsel %vm415, %v1843, %v2478
  %v2500 = vsel %vm415, %v1848, %v2480
  %v2501 = vsel %vm1241, %v2499, %v2486
  %v2502 = vsel %vm1241, %v2500, %v2488
  %v2503 = vsel %vm1244, %v2501, %v2494
  %v2504 = vsel %vm1244, %v2502, %v2496
  %v2505 = vlaneseq
  %v2506 = vshrl.u32 %v2505, 7
  %v2507 = vsub.s32 7, %v2506
  %v2508 = vrot.slane %v148, %v2507
  %v2510 = vsel %vm173, %v2503, 0
  %v2513 = vsel %vm173, %v2504, 0
  %2515 = vmatprep.subr.mxu0 0.0
  %2516 = vmatpush1.msra.mxu0 0.0
  %2517 = vmatprep.subr.mxu0 0.0
  %2518 = vmatpush1.msra.mxu0 0.0
  %2519 = vmatprep.subr.mxu0 0.0
  %2520 = vmatpush1.msra.mxu0 0.0
  %2521 = vmatprep.subr.mxu0 0.0
  %2522 = vmatpush1.msra.mxu0 0.0
  %2523 = vmatprep.subr.mxu0 0.0
  %2524 = vmatpush1.msra.mxu0 0.0
  %2525 = vmatprep.subr.mxu0 0.0
  %2526 = vmatpush1.msra.mxu0 0.0
  %2527 = vmatprep.subr.mxu0 0.0
  %2528 = vmatpush1.msra.mxu0 0.0
  %2529 = vmatprep.subr.mxu0 0.0
  %2530 = vmatpush1.msra.mxu0 0.0
  %2531 = vmatprep.subr.mxu0 0.0
  %2532 = vmatpush1.msra.mxu0 0.0
  %2533 = vmatprep.subr.mxu0 0.0
  %2534 = vmatpush1.msra.mxu0 0.0
  %2535 = vmatprep.subr.mxu0 0.0
  %2536 = vmatpush1.msra.mxu0 0.0
  %2537 = vmatprep.subr.mxu0 0.0
  %2538 = vmatpush1.msra.mxu0 0.0
  %2539 = vmatprep.subr.mxu0 0.0
  %2540 = vmatpush1.msra.mxu0 %v1392
  %2541 = vmatprep.subr.mxu0 0.0
  %2542 = vmatpush1.msra.mxu0 %v1391
  %2543 = vmatprep.subr.mxu0 0.0
  %2544 = vmatpush1.msra.mxu0 %v1390
  %2545 = vmatprep.subr.mxu0 0.0
  %2546 = vmatpush1.msra.mxu0 %v1389
  %2547 = vmatprep.subr.mxu0 0.0
  %2548 = vmatpush2.msra.mxu0 0.0
  %2549 = vmatprep.subr.mxu0 0.0
  %2550 = vmatpush2.msra.mxu0 0.0
  %2551 = vmatprep.subr.mxu0 0.0
  %2552 = vmatpush2.msra.mxu0 0.0
  %2553 = vmatprep.subr.mxu0 0.0
  %2554 = vmatpush2.msra.mxu0 0.0
  %2555 = vmatprep.subr.mxu0 0.0
  %2556 = vmatpush2.msra.mxu0 0.0
  %2557 = vmatprep.subr.mxu0 0.0
  %2558 = vmatpush2.msra.mxu0 0.0
  %2559 = vmatprep.subr.mxu0 0.0
  %2560 = vmatpush2.msra.mxu0 0.0
  %2561 = vmatprep.subr.mxu0 0.0
  %2562 = vmatpush2.msra.mxu0 0.0
  %2563 = vmatprep.subr.mxu0 0.0
  %2564 = vmatpush2.msra.mxu0 0.0
  %2565 = vmatprep.subr.mxu0 0.0
  %2566 = vmatpush2.msra.mxu0 0.0
  %2567 = vmatprep.subr.mxu0 0.0
  %2568 = vmatpush2.msra.mxu0 0.0
  %2569 = vmatprep.subr.mxu0 0.0
  %2570 = vmatpush2.msra.mxu0 0.0
  %2571 = vmatprep.subr.mxu0 0.0
  %2572 = vmatpush2.msra.mxu0 0.0
  %2573 = vmatprep.subr.mxu0 0.0
  %2574 = vmatpush2.msra.mxu0 0.0
  %2575 = vmatprep.subr.mxu0 0.0
  %2576 = vmatpush2.msra.mxu0 0.0
  %2577 = vmatprep.subr.mxu0 0.0
  %2578 = vmatpush2.msra.mxu0 0.0
  %2579 = vmatprep.mubr.f32.mxu0 0.0
  %2580 = vmatmul.mubr.f32.gmra.mxu0 %v2510
  %v2581 = vpop.f32.mrf.mxu0
  %v2582 = vadd.f32 %v2508, %v2581
  %v2583 = vpop.f32.mrf.mxu0
  %2584 = vmatprep.mubr.f32.mxu0 0.0
  %2585 = vmatmul.mubr.f32.gmra.mxu0 %v2513
  %v2586 = vpop.f32.mrf.mxu0
  %v2587 = vadd.f32 %v2508, %v2586
  %v2588 = vpop.f32.mrf.mxu0
  %2589 = vdwg.mxu0
  %v2590 = vadd.f32 %v1372, %v2582
  %v2591 = vadd.f32 %v1373, %v2587
  %v2592 = vsel %vm173, %v2590, 0.0
  %2593 = vadd.xlane.f32.xlu0 %v2592
  %v2594 = vpop.xlane.xlu0 %2593
  %v2595 = vsel %vm1337, %v2591, 0.0
  %2596 = vadd.xlane.f32.xlu0 %v2595
  %v2597 = vpop.xlane.xlu0 %2596
  %v2598 = vmul.f32 %v2594, %v1341
  %v2599 = vmul.f32 %v2597, %v1341
  %v2600 = vsub.f32 %v2590, %v2598
  %v2601 = vsub.f32 %v2591, %v2599
  %v2602 = vmul.f32 %v2600, %v2600
  %v2603 = vmul.f32 %v2601, %v2601
  %v2604 = vsel %vm173, %v2602, 0.0
  %2605 = vadd.xlane.f32.xlu0 %v2604
  %v2606 = vpop.xlane.xlu0 %2605
  %v2607 = vsel %vm1337, %v2603, 0.0
  %2608 = vadd.xlane.f32.xlu0 %v2607
  %v2609 = vpop.xlane.xlu0 %2608
  %v2610 = vmul.f32 %v2606, %v1341
  %v2611 = vmul.f32 %v2609, %v1341
  %v2612 = vadd.f32 %v2610, 1e-05
  %v2613 = vadd.f32 %v2611, 1e-05
  %v2614 = vrsqrt.pop %v2612
  %v2615 = vrsqrt.pop %v2613
  %v2616 = vmul.f32 %v2600, %v2614
  %v2617 = vmul.f32 %v2601, %v2615
  %v2618 = vlaneseq
  %v2619 = vshrl.u32 %v2618, 7
  %v2620 = vsub.s32 2, %v2619
  %v2621 = vrot.slane %v149, %v2620
  %v2622 = vmul.f32 %v2616, %v2621
  %v2623 = vmul.f32 %v2617, %v2621
  %v2624 = vlaneseq
  %v2625 = vshrl.u32 %v2624, 7
  %v2626 = vsub.s32 3, %v2625
  %v2627 = vrot.slane %v149, %v2626
  %v2628 = vadd.f32 %v2622, %v2627
  %v2629 = vadd.f32 %v2623, %v2627
  %v2630 = vld [vmem:[%s8] sm:$0xff]
  %v2631 = vld [vmem:[%s8 + $0x8] sm:$0xff]
  %v2632 = vld [vmem:[%s8 + $0x10] sm:$0xff]
  %v2633 = vld [vmem:[%s8 + $0x18] sm:$0xff]
  %v2634 = vld [vmem:[%s11] sm:$0x1]
  %v2636 = vlaneseq
  %v2637 = vshrl.u32 %v2636, 7
  %v2638 = vsub.s32 0, %v2637
  %v2639 = vrot.slane %v2634, %v2638
  %v2642 = vsel %vm173, %v2628, 0
  %v2645 = vsel %vm173, %v2629, 0
  %2647 = vmatprep.subr.mxu0 0.0
  %2648 = vmatpush1.msra.mxu0 0.0
  %2649 = vmatprep.subr.mxu0 0.0
  %2650 = vmatpush1.msra.mxu0 0.0
  %2651 = vmatprep.subr.mxu0 0.0
  %2652 = vmatpush1.msra.mxu0 0.0
  %2653 = vmatprep.subr.mxu0 0.0
  %2654 = vmatpush1.msra.mxu0 0.0
  %2655 = vmatprep.subr.mxu0 0.0
  %2656 = vmatpush1.msra.mxu0 0.0
  %2657 = vmatprep.subr.mxu0 0.0
  %2658 = vmatpush1.msra.mxu0 0.0
  %2659 = vmatprep.subr.mxu0 0.0
  %2660 = vmatpush1.msra.mxu0 0.0
  %2661 = vmatprep.subr.mxu0 0.0
  %2662 = vmatpush1.msra.mxu0 0.0
  %2663 = vmatprep.subr.mxu0 0.0
  %2664 = vmatpush1.msra.mxu0 0.0
  %2665 = vmatprep.subr.mxu0 0.0
  %2666 = vmatpush1.msra.mxu0 0.0
  %2667 = vmatprep.subr.mxu0 0.0
  %2668 = vmatpush1.msra.mxu0 0.0
  %2669 = vmatprep.subr.mxu0 0.0
  %2670 = vmatpush1.msra.mxu0 0.0
  %2671 = vmatprep.subr.mxu0 0.0
  %2672 = vmatpush1.msra.mxu0 %v2633
  %2673 = vmatprep.subr.mxu0 0.0
  %2674 = vmatpush1.msra.mxu0 %v2632
  %2675 = vmatprep.subr.mxu0 0.0
  %2676 = vmatpush1.msra.mxu0 %v2631
  %2677 = vmatprep.subr.mxu0 0.0
  %2678 = vmatpush1.msra.mxu0 %v2630
  %2679 = vmatprep.subr.mxu0 0.0
  %2680 = vmatpush2.msra.mxu0 0.0
  %2681 = vmatprep.subr.mxu0 0.0
  %2682 = vmatpush2.msra.mxu0 0.0
  %2683 = vmatprep.subr.mxu0 0.0
  %2684 = vmatpush2.msra.mxu0 0.0
  %2685 = vmatprep.subr.mxu0 0.0
  %2686 = vmatpush2.msra.mxu0 0.0
  %2687 = vmatprep.subr.mxu0 0.0
  %2688 = vmatpush2.msra.mxu0 0.0
  %2689 = vmatprep.subr.mxu0 0.0
  %2690 = vmatpush2.msra.mxu0 0.0
  %2691 = vmatprep.subr.mxu0 0.0
  %2692 = vmatpush2.msra.mxu0 0.0
  %2693 = vmatprep.subr.mxu0 0.0
  %2694 = vmatpush2.msra.mxu0 0.0
  %2695 = vmatprep.subr.mxu0 0.0
  %2696 = vmatpush2.msra.mxu0 0.0
  %2697 = vmatprep.subr.mxu0 0.0
  %2698 = vmatpush2.msra.mxu0 0.0
  %2699 = vmatprep.subr.mxu0 0.0
  %2700 = vmatpush2.msra.mxu0 0.0
  %2701 = vmatprep.subr.mxu0 0.0
  %2702 = vmatpush2.msra.mxu0 0.0
  %2703 = vmatprep.subr.mxu0 0.0
  %2704 = vmatpush2.msra.mxu0 0.0
  %2705 = vmatprep.subr.mxu0 0.0
  %2706 = vmatpush2.msra.mxu0 0.0
  %2707 = vmatprep.subr.mxu0 0.0
  %2708 = vmatpush2.msra.mxu0 0.0
  %2709 = vmatprep.subr.mxu0 0.0
  %2710 = vmatpush2.msra.mxu0 0.0
  %2711 = vmatprep.mubr.f32.mxu0 0.0
  %2712 = vmatmul.mubr.f32.gmra.mxu0 %v2642
  %v2713 = vpop.f32.mrf.mxu0
  %v2714 = vadd.f32 %v2639, %v2713
  %v2715 = vpop.f32.mrf.mxu0
  %2716 = vmatprep.mubr.f32.mxu0 0.0
  %2717 = vmatmul.mubr.f32.gmra.mxu0 %v2645
  %v2718 = vpop.f32.mrf.mxu0
  %v2719 = vadd.f32 %v2639, %v2718
  %v2720 = vpop.f32.mrf.mxu0
  %2721 = vdwg.mxu0
  %v2722 = vmul.f32 %v2714, 0.5
  %v2723 = vmul.f32 %v2719, 0.5
  %v2724 = vmul.f32 %v2714, 0.70710677
  %v2725 = vmul.f32 %v2719, 0.70710677
  %v2726 = vand.u32 2147483647, %v2724
  %v2727 = vand.u32 2147483647, %v2725
  %v2728 = vmul.f32 %v2726, 0.3275911
  %v2729 = vmul.f32 %v2727, 0.3275911
  %v2730 = vadd.f32 %v2728, 1.0
  %v2731 = vadd.f32 %v2729, 1.0
  %v2732 = vrcp.pop %v2730
  %v2733 = vmul.f32 1.0, %v2732
  %v2734 = vrcp.pop %v2731
  %v2735 = vmul.f32 1.0, %v2734
  %v2736 = vmul.f32 %v2733, 1.0614054
  %v2737 = vmul.f32 %v2735, 1.0614054
  %v2738 = vadd.f32 %v2736, -1.4531521
  %v2739 = vadd.f32 %v2737, -1.4531521
  %v2740 = vmul.f32 %v2738, %v2733
  %v2741 = vmul.f32 %v2739, %v2735
  %v2742 = vadd.f32 %v2740, 1.4214138
  %v2743 = vadd.f32 %v2741, 1.4214138
  %v2744 = vmul.f32 %v2742, %v2733
  %v2745 = vmul.f32 %v2743, %v2735
  %v2746 = vadd.f32 %v2744, -0.28449672
  %v2747 = vadd.f32 %v2745, -0.28449672
  %v2748 = vmul.f32 %v2746, %v2733
  %v2749 = vmul.f32 %v2747, %v2735
  %v2750 = vadd.f32 %v2748, 0.2548296
  %v2751 = vadd.f32 %v2749, 0.2548296
  %v2752 = vmul.f32 %v2750, %v2733
  %v2753 = vmul.f32 %v2751, %v2735
  %v2754 = vsub.f32 0.0, %v2724
  %v2755 = vsub.f32 0.0, %v2725
  %v2756 = vmul.f32 %v2754, %v2724
  %v2757 = vmul.f32 %v2755, %v2725
  %v2758 = vmul.f32 %v2756, 1.442695
  %v2759 = vpow.pop %v2758
  %v2760 = vmul.f32 %v2757, 1.442695
  %v2761 = vpow.pop %v2760
  %v2762 = vmul.f32 %v2752, %v2759
  %v2763 = vmul.f32 %v2753, %v2761
  %v2764 = vsub.f32 1.0, %v2762
  %v2765 = vsub.f32 1.0, %v2763
  %vm2766 = vcmp.ge.f32.partialorder %v2724, 0.0
  %vm2767 = vcmp.ge.f32.partialorder %v2725, 0.0
  %v2768 = vsub.f32 0.0, %v2764
  %v2769 = vsub.f32 0.0, %v2765
  %v2770 = vsel %vm2766, %v2764, %v2768
  %v2771 = vsel %vm2767, %v2765, %v2769
  %v2772 = vadd.f32 %v2770, 1.0
  %v2773 = vadd.f32 %v2771, 1.0
  %v2774 = vmul.f32 %v2722, %v2772
  %v2775 = vmul.f32 %v2723, %v2773
  %v2776 = vld [vmem:[%s9] sm:$0xff]
  %v2777 = vld [vmem:[%s9 + $0x8] sm:$0xff]
  %v2778 = vld [vmem:[%s9 + $0x10] sm:$0xff]
  %v2779 = vld [vmem:[%s9 + $0x18] sm:$0xff]
  %v2780 = vld [vmem:[%s9 + $0x20] sm:$0xff]
  %v2781 = vld [vmem:[%s9 + $0x28] sm:$0xff]
  %v2782 = vld [vmem:[%s9 + $0x30] sm:$0xff]
  %v2783 = vld [vmem:[%s9 + $0x38] sm:$0xff]
  %v2784 = vlaneseq
  %v2785 = vshrl.u32 %v2784, 7
  %v2786 = vsub.s32 4, %v2785
  %v2787 = vrot.slane %v149, %v2786
  %vm2788 = vcmask 523264
  %v2790 = vsel %vm2788, %v2774, 0
  %v2793 = vsel %vm2788, %v2775, 0
  %2795 = vmatprep.subr.mxu0 0.0
  %2796 = vmatpush1.msra.mxu0 0.0
  %2797 = vmatprep.subr.mxu0 0.0
  %2798 = vmatpush1.msra.mxu0 0.0
  %2799 = vmatprep.subr.mxu0 0.0
  %2800 = vmatpush1.msra.mxu0 0.0
  %2801 = vmatprep.subr.mxu0 0.0
  %2802 = vmatpush1.msra.mxu0 0.0
  %2803 = vmatprep.subr.mxu0 0.0
  %2804 = vmatpush1.msra.mxu0 0.0
  %2805 = vmatprep.subr.mxu0 0.0
  %2806 = vmatpush1.msra.mxu0 0.0
  %2807 = vmatprep.subr.mxu0 0.0
  %2808 = vmatpush1.msra.mxu0 0.0
  %2809 = vmatprep.subr.mxu0 0.0
  %2810 = vmatpush1.msra.mxu0 0.0
  %2811 = vmatprep.subr.mxu0 0.0
  %2812 = vmatpush1.msra.mxu0 %v2783
  %2813 = vmatprep.subr.mxu0 0.0
  %2814 = vmatpush1.msra.mxu0 %v2782
  %2815 = vmatprep.subr.mxu0 0.0
  %2816 = vmatpush1.msra.mxu0 %v2781
  %2817 = vmatprep.subr.mxu0 0.0
  %2818 = vmatpush1.msra.mxu0 %v2780
  %2819 = vmatprep.subr.mxu0 0.0
  %2820 = vmatpush1.msra.mxu0 %v2779
  %2821 = vmatprep.subr.mxu0 0.0
  %2822 = vmatpush1.msra.mxu0 %v2778
  %2823 = vmatprep.subr.mxu0 0.0
  %2824 = vmatpush1.msra.mxu0 %v2777
  %2825 = vmatprep.subr.mxu0 0.0
  %2826 = vmatpush1.msra.mxu0 %v2776
  %2827 = vmatprep.subr.mxu0 0.0
  %2828 = vmatpush2.msra.mxu0 0.0
  %2829 = vmatprep.subr.mxu0 0.0
  %2830 = vmatpush2.msra.mxu0 0.0
  %2831 = vmatprep.subr.mxu0 0.0
  %2832 = vmatpush2.msra.mxu0 0.0
  %2833 = vmatprep.subr.mxu0 0.0
  %2834 = vmatpush2.msra.mxu0 0.0
  %2835 = vmatprep.subr.mxu0 0.0
  %2836 = vmatpush2.msra.mxu0 0.0
  %2837 = vmatprep.subr.mxu0 0.0
  %2838 = vmatpush2.msra.mxu0 0.0
  %2839 = vmatprep.subr.mxu0 0.0
  %2840 = vmatpush2.msra.mxu0 0.0
  %2841 = vmatprep.subr.mxu0 0.0
  %2842 = vmatpush2.msra.mxu0 0.0
  %2843 = vmatprep.subr.mxu0 0.0
  %2844 = vmatpush2.msra.mxu0 0.0
  %2845 = vmatprep.subr.mxu0 0.0
  %2846 = vmatpush2.msra.mxu0 0.0
  %2847 = vmatprep.subr.mxu0 0.0
  %2848 = vmatpush2.msra.mxu0 0.0
  %2849 = vmatprep.subr.mxu0 0.0
  %2850 = vmatpush2.msra.mxu0 0.0
  %2851 = vmatprep.subr.mxu0 0.0
  %2852 = vmatpush2.msra.mxu0 0.0
  %2853 = vmatprep.subr.mxu0 0.0
  %2854 = vmatpush2.msra.mxu0 0.0
  %2855 = vmatprep.subr.mxu0 0.0
  %2856 = vmatpush2.msra.mxu0 0.0
  %2857 = vmatprep.subr.mxu0 0.0
  %2858 = vmatpush2.msra.mxu0 0.0
  %2859 = vmatprep.mubr.f32.mxu0 0.0
  %2860 = vmatmul.mubr.f32.gmra.mxu0 %v2790
  %v2861 = vpop.f32.mrf.mxu0
  %v2862 = vadd.f32 %v2787, %v2861
  %v2863 = vpop.f32.mrf.mxu0
  %2864 = vmatprep.mubr.f32.mxu0 0.0
  %2865 = vmatmul.mubr.f32.gmra.mxu0 %v2793
  %v2866 = vpop.f32.mrf.mxu0
  %v2867 = vadd.f32 %v2787, %v2866
  %v2868 = vpop.f32.mrf.mxu0
  %2869 = vdwg.mxu0
  %v2870 = vadd.f32 %v2628, %v2862
  %v2871 = vadd.f32 %v2629, %v2867
  %v2872 = vsel %vm173, %v2870, 0.0
  %2873 = vadd.xlane.f32.xlu0 %v2872
  %v2874 = vpop.xlane.xlu0 %2873
  %v2875 = vsel %vm1337, %v2871, 0.0
  %2876 = vadd.xlane.f32.xlu0 %v2875
  %v2877 = vpop.xlane.xlu0 %2876
  %v2878 = vmul.f32 %v2874, %v1341
  %v2879 = vmul.f32 %v2877, %v1341
  %v2880 = vsub.f32 %v2870, %v2878
  %v2881 = vsub.f32 %v2871, %v2879
  %v2882 = vmul.f32 %v2880, %v2880
  %v2883 = vmul.f32 %v2881, %v2881
  %v2884 = vsel %vm173, %v2882, 0.0
  %2885 = vadd.xlane.f32.xlu0 %v2884
  %v2886 = vpop.xlane.xlu0 %2885
  %v2887 = vsel %vm1337, %v2883, 0.0
  %2888 = vadd.xlane.f32.xlu0 %v2887
  %v2889 = vpop.xlane.xlu0 %2888
  %v2890 = vmul.f32 %v2886, %v1341
  %v2891 = vmul.f32 %v2889, %v1341
  %v2892 = vadd.f32 %v2890, 1e-05
  %v2893 = vadd.f32 %v2891, 1e-05
  %v2894 = vrsqrt.pop %v2892
  %v2895 = vrsqrt.pop %v2893
  %v2896 = vmul.f32 %v2880, %v2894
  %v2897 = vmul.f32 %v2881, %v2895
  %v2898 = vlaneseq
  %v2899 = vshrl.u32 %v2898, 7
  %v2900 = vsub.s32 5, %v2899
  %v2901 = vrot.slane %v149, %v2900
  %v2902 = vmul.f32 %v2896, %v2901
  %v2903 = vmul.f32 %v2897, %v2901
  %v2904 = vlaneseq
  %v2905 = vshrl.u32 %v2904, 7
  %v2906 = vsub.s32 6, %v2905
  %v2907 = vrot.slane %v149, %v2906
  %v2908 = vadd.f32 %v2902, %v2907
  %v2909 = vadd.f32 %v2903, %v2907
  %v2910 = vld [vmem:[%s12] sm:$0x3]
  %v2911 = vsel %vm173, %v2908, 0.0
  %2912 = vadd.xlane.f32.xlu0 %v2911
  %v2913 = vpop.xlane.xlu0 %2912
  %v2914 = vsel %vm1337, %v2909, 0.0
  %2915 = vadd.xlane.f32.xlu0 %v2914
  %v2916 = vpop.xlane.xlu0 %2915
  %v2917 = vmul.f32 %v2913, %v1341
  %v2918 = vmul.f32 %v2916, %v1341
  %v2919 = vsub.f32 %v2908, %v2917
  %v2920 = vsub.f32 %v2909, %v2918
  %v2921 = vmul.f32 %v2919, %v2919
  %v2922 = vmul.f32 %v2920, %v2920
  %v2923 = vsel %vm173, %v2921, 0.0
  %2924 = vadd.xlane.f32.xlu0 %v2923
  %v2925 = vpop.xlane.xlu0 %2924
  %v2926 = vsel %vm1337, %v2922, 0.0
  %2927 = vadd.xlane.f32.xlu0 %v2926
  %v2928 = vpop.xlane.xlu0 %2927
  %v2929 = vmul.f32 %v2925, %v1341
  %v2930 = vmul.f32 %v2928, %v1341
  %v2931 = vadd.f32 %v2929, 1e-05
  %v2932 = vadd.f32 %v2930, 1e-05
  %v2933 = vrsqrt.pop %v2931
  %v2934 = vrsqrt.pop %v2932
  %v2935 = vmul.f32 %v2919, %v2933
  %v2936 = vmul.f32 %v2920, %v2934
  %v2937 = vlaneseq
  %v2938 = vshrl.u32 %v2937, 7
  %v2939 = vsub.s32 0, %v2938
  %v2940 = vrot.slane %v2910, %v2939
  %v2941 = vmul.f32 %v2935, %v2940
  %v2942 = vmul.f32 %v2936, %v2940
  %v2943 = vlaneseq
  %v2944 = vshrl.u32 %v2943, 7
  %v2945 = vsub.s32 1, %v2944
  %v2946 = vrot.slane %v2910, %v2945
  %v2947 = vadd.f32 %v2941, %v2946
  %v2948 = vadd.f32 %v2942, %v2946
  %v2949 = vld [vmem:[%s13] sm:$0xff]
  %v2950 = vld [vmem:[%s13 + $0x8] sm:$0xff]
  %v2951 = vld [vmem:[%s13 + $0x10] sm:$0xff]
  %v2952 = vld [vmem:[%s13 + $0x18] sm:$0xff]
  %v2953 = vld [vmem:[%s14] sm:$0x1]
  %v2955 = vlaneseq
  %v2956 = vshrl.u32 %v2955, 7
  %v2957 = vsub.s32 0, %v2956
  %v2958 = vrot.slane %v2953, %v2957
  %v2961 = vsel %vm173, %v2947, 0
  %v2964 = vsel %vm173, %v2948, 0
  %2966 = vmatprep.subr.mxu0 0.0
  %2967 = vmatpush1.msra.mxu0 0.0
  %2968 = vmatprep.subr.mxu0 0.0
  %2969 = vmatpush1.msra.mxu0 0.0
  %2970 = vmatprep.subr.mxu0 0.0
  %2971 = vmatpush1.msra.mxu0 0.0
  %2972 = vmatprep.subr.mxu0 0.0
  %2973 = vmatpush1.msra.mxu0 0.0
  %2974 = vmatprep.subr.mxu0 0.0
  %2975 = vmatpush1.msra.mxu0 0.0
  %2976 = vmatprep.subr.mxu0 0.0
  %2977 = vmatpush1.msra.mxu0 0.0
  %2978 = vmatprep.subr.mxu0 0.0
  %2979 = vmatpush1.msra.mxu0 0.0
  %2980 = vmatprep.subr.mxu0 0.0
  %2981 = vmatpush1.msra.mxu0 0.0
  %2982 = vmatprep.subr.mxu0 0.0
  %2983 = vmatpush1.msra.mxu0 0.0
  %2984 = vmatprep.subr.mxu0 0.0
  %2985 = vmatpush1.msra.mxu0 0.0
  %2986 = vmatprep.subr.mxu0 0.0
  %2987 = vmatpush1.msra.mxu0 0.0
  %2988 = vmatprep.subr.mxu0 0.0
  %2989 = vmatpush1.msra.mxu0 0.0
  %2990 = vmatprep.subr.mxu0 0.0
  %2991 = vmatpush1.msra.mxu0 %v2952
  %2992 = vmatprep.subr.mxu0 0.0
  %2993 = vmatpush1.msra.mxu0 %v2951
  %2994 = vmatprep.subr.mxu0 0.0
  %2995 = vmatpush1.msra.mxu0 %v2950
  %2996 = vmatprep.subr.mxu0 0.0
  %2997 = vmatpush1.msra.mxu0 %v2949
  %2998 = vmatprep.subr.mxu0 0.0
  %2999 = vmatpush2.msra.mxu0 0.0
  %3000 = vmatprep.subr.mxu0 0.0
  %3001 = vmatpush2.msra.mxu0 0.0
  %3002 = vmatprep.subr.mxu0 0.0
  %3003 = vmatpush2.msra.mxu0 0.0
  %3004 = vmatprep.subr.mxu0 0.0
  %3005 = vmatpush2.msra.mxu0 0.0
  %3006 = vmatprep.subr.mxu0 0.0
  %3007 = vmatpush2.msra.mxu0 0.0
  %3008 = vmatprep.subr.mxu0 0.0
  %3009 = vmatpush2.msra.mxu0 0.0
  %3010 = vmatprep.subr.mxu0 0.0
  %3011 = vmatpush2.msra.mxu0 0.0
  %3012 = vmatprep.subr.mxu0 0.0
  %3013 = vmatpush2.msra.mxu0 0.0
  %3014 = vmatprep.subr.mxu0 0.0
  %3015 = vmatpush2.msra.mxu0 0.0
  %3016 = vmatprep.subr.mxu0 0.0
  %3017 = vmatpush2.msra.mxu0 0.0
  %3018 = vmatprep.subr.mxu0 0.0
  %3019 = vmatpush2.msra.mxu0 0.0
  %3020 = vmatprep.subr.mxu0 0.0
  %3021 = vmatpush2.msra.mxu0 0.0
  %3022 = vmatprep.subr.mxu0 0.0
  %3023 = vmatpush2.msra.mxu0 0.0
  %3024 = vmatprep.subr.mxu0 0.0
  %3025 = vmatpush2.msra.mxu0 0.0
  %3026 = vmatprep.subr.mxu0 0.0
  %3027 = vmatpush2.msra.mxu0 0.0
  %3028 = vmatprep.subr.mxu0 0.0
  %3029 = vmatpush2.msra.mxu0 0.0
  %3030 = vmatprep.mubr.f32.mxu0 0.0
  %3031 = vmatmul.mubr.f32.gmra.mxu0 %v2961
  %v3032 = vpop.f32.mrf.mxu0
  %v3033 = vadd.f32 %v2958, %v3032
  %v3034 = vpop.f32.mrf.mxu0
  %3035 = vmatprep.mubr.f32.mxu0 0.0
  %3036 = vmatmul.mubr.f32.gmra.mxu0 %v2964
  %v3037 = vpop.f32.mrf.mxu0
  %v3038 = vadd.f32 %v2958, %v3037
  %v3039 = vpop.f32.mrf.mxu0
  %3040 = vdwg.mxu0
  %3041 = vst.msk [vmem:[%s15] sm:$0xff] %vm55, %v3033
  %vm3042 = vcmask 27648
  %3043 = vst.msk [vmem:[%s15 + $0x8] sm:$0xf] %vm3042, %v3038
  // Predicated region
  $region62: #{_lambda_.5} parent=0 // pred_check
    _
  $region63: #{_lambda_.5} parent=0 // pred_check_branch
    %3045 = sbr.rel (0) target = $region65
  $region64: #{_lambda_.5} parent=0 // pred_region
    _
  $region65: #{_lambda_.5} parent=0 // pred_fallthru
    _
  // Predicated region
  $region66: #{_lambda_.5} parent=0 // pred_check
    _
  $region67: #{_lambda_.5} parent=0 // pred_check_branch
    %3047 = sbr.rel (0) target = $region69
  $region68: #{_lambda_.5} parent=0 // pred_region
    _
  $region69: #{_lambda_.5} parent=0 // pred_fallthru
    _

</llo_original>
